<compile_context>
chip_gen: v7x
topology: tpu7x:2x2x1
jax: 0.10.0
libtpu: 0.0.40
codegen_flags: <defaults>
</compile_context>

<pallas_src>
import jax
import jax.numpy as jnp
from jax.experimental import pallas as pl
from jax.experimental.pallas import tpu as pltpu


def seq_flow_kernel(z_ref, w1_ref, b1_ref, w2_ref, b2_ref, x_ref, ld_ref):
    K, half, H = w1_ref.shape
    cdt = w1_ref.dtype  # matmul operand dtype (f32 default; bf16 optional)

    z = z_ref[...].astype(jnp.float32)
    halves = [z[:, :half], z[:, half:]]          # free: half is a 128-lane boundary
    ld = jnp.zeros((z.shape[0], half), dtype=jnp.float32)

    # Static Python loop over the flow list (mirrors `for flow in self.flows`).
    # TODO(synk): for large K, move K onto an innermost "arbitrary" grid axis with
    # z/ld carried in VMEM scratch (pl.when init/finalize), per-flow weight blocks,
    # and single-buffered weight specs, instead of keeping the whole stack resident.
    for k in range(K):
        idx_id = k % 2            # identity half for this flow
        idx_tr = 1 - idx_id       # transformed half for this flow
        z_id = halves[idx_id]
        z_tr = halves[idx_tr]

        # Conditioner MLP (MXU).  HIGHEST precision keeps full-f32 passes so the
        # kernel matches the plain-JAX reference (modulo accumulation order).
        h = jnp.dot(z_id.astype(cdt), w1_ref[k],
                    preferred_element_type=jnp.float32,
                    precision=jax.lax.Precision.HIGHEST) + b1_ref[k]
        h = jnp.maximum(h, 0.0)

        # Single fused 2*half-lane-wide dot for both conditioner heads; the s / t
        # slices land exactly on a 128-lane vreg boundary (free).
        st = jnp.dot(h.astype(cdt), w2_ref[k],
                     preferred_element_type=jnp.float32,
                     precision=jax.lax.Precision.HIGHEST) + b2_ref[k]
        s = jnp.tanh(st[:, :half])
        t = st[:, half:]

        halves[idx_tr] = z_tr * jnp.exp(s) + t    # affine transform of other half
        ld = ld + s                               # per-lane log|det J| accumulator

    # One 2*half-lane-wide (unmasked) store for x; in-kernel XLU lane reduction
    # for the per-sample log-det (tiny (tb, 1) writeback).
    x_ref[...] = jnp.concatenate(halves, axis=1).astype(x_ref.dtype)
    ld_ref[...] = jnp.sum(ld, axis=1, keepdims=True)


def sequential_flow_forward(z, w1, b1, w2, b2, *, tb=128, matmul_dtype=jnp.float32):
    """Returns (x, total_log_det) exactly like SequentialFlow.forward."""
    B, D = z.shape
    K, half, H = w1.shape
    assert D == 2 * half, "feature dim must split into two equal halves"
    assert w2.shape == (K, H, D) and b2.shape == (K, D)

    # Batch tile: sublane-aligned; pad ragged batches instead of one huge tile.
    tb = max(8, (min(tb, B) // 8) * 8)
    # TODO(synk): sweep tb upward (512-1024) for large real batches; on v5e raise
    # vmem_limit_bytes via CompilerParams if tb > 512 (16 MiB default scoped VMEM).
    B_pad = pl.cdiv(B, tb) * tb
    z_in = z if B_pad == B else jnp.pad(z, ((0, B_pad - B), (0, 0)))
    grid = (B_pad // tb,)

    w1c = w1.astype(matmul_dtype)
    w2c = w2.astype(matmul_dtype)
    b1c = b1.astype(jnp.float32)
    b2c = b2.astype(jnp.float32)

    flops = 2 * B_pad * K * (half * H + H * D)
    transcendentals = 2 * B_pad * K * half                  # tanh + exp per lane
    bytes_accessed = (
        B_pad * D * z.dtype.itemsize * 2                    # z in, x out
        + B_pad * 4                                         # per-sample log-det out
        + K * (half * H + H * D) * jnp.dtype(matmul_dtype).itemsize
        + K * (H + D) * 4)                                  # biases

    x, ld = pl.pallas_call(
        seq_flow_kernel,
        out_shape=(
            jax.ShapeDtypeStruct((B_pad, D), z.dtype),
            jax.ShapeDtypeStruct((B_pad, 1), jnp.float32),
        ),
        grid_spec=pltpu.PrefetchScalarGridSpec(
            num_scalar_prefetch=0,
            grid=grid,
            in_specs=[
                pl.BlockSpec((tb, D), lambda i: (i, 0)),          # z tile
                pl.BlockSpec((K, half, H), lambda i: (0, 0, 0)),  # W1 (VMEM-resident)
                pl.BlockSpec((K, H), lambda i: (0, 0)),           # b1
                pl.BlockSpec((K, H, D), lambda i: (0, 0, 0)),     # W2 (fused s/t heads)
                pl.BlockSpec((K, D), lambda i: (0, 0)),           # b2
            ],
            out_specs=[
                pl.BlockSpec((tb, D), lambda i: (i, 0)),          # x tile (lane-dense)
                pl.BlockSpec((tb, 1), lambda i: (i, 0)),          # per-sample log-det
            ],
        ),
        compiler_params=pltpu.CompilerParams(
            dimension_semantics=("parallel",),
        ),
        cost_estimate=pl.CostEstimate(
            flops=flops,
            transcendentals=transcendentals,
            bytes_accessed=bytes_accessed,
        ),
    )(z_in, w1c, b1c, w2c, b2c)

    return x[:B], ld[:B, 0]


def sequential_flow_ref(z, w1, b1, w2, b2, *, matmul_dtype=jnp.float32):
    """Plain-JAX reference mirroring the PyTorch loop with the kernel's precision."""
    B, D = z.shape
    K = w1.shape[0]
    half = D // 2
    total_log_det = jnp.zeros((B,), jnp.float32)
    z = z.astype(jnp.float32)
    for k in range(K):
        if k % 2 == 0:
            z_id, z_tr = z[:, :half], z[:, half:]
        else:
            z_id, z_tr = z[:, half:], z[:, :half]
        h = jnp.dot(z_id.astype(matmul_dtype), w1[k].astype(matmul_dtype),
                    preferred_element_type=jnp.float32,
                    precision=jax.lax.Precision.HIGHEST) + b1[k]
        h = jnp.maximum(h, 0.0)
        st = jnp.dot(h.astype(matmul_dtype), w2[k].astype(matmul_dtype),
                     preferred_element_type=jnp.float32,
                     precision=jax.lax.Precision.HIGHEST) + b2[k]
        s = jnp.tanh(st[:, :half])
        t = st[:, half:]
        z_tr_new = z_tr * jnp.exp(s) + t
        if k % 2 == 0:
            z = jnp.concatenate([z_id, z_tr_new], axis=1)
        else:
            z = jnp.concatenate([z_tr_new, z_id], axis=1)
        total_log_det = total_log_det + jnp.sum(s, axis=1)
    return z, total_log_det


if __name__ == "__main__":
    # Small but TPU-layout-friendly shapes: half = H = 128 lanes, 128-row batch
    # tiles (grid length 2, even, for megacore balance), K = 3 coupling flows
    # (weight stack ~0.6 MiB, kept VMEM-resident across batch tiles).
    B, D, K, H = 256, 256, 3, 128
    half = D // 2
    TB = 128

    key = jax.random.PRNGKey(0)
    kz, kw1, kb1, kw2, kb2 = jax.random.split(key, 5)

    z = jax.random.normal(kz, (B, D), dtype=jnp.float32)
    w1 = 0.05 * jax.random.normal(kw1, (K, half, H), dtype=jnp.float32)
    b1 = 0.05 * jax.random.normal(kb1, (K, H), dtype=jnp.float32)
    w2 = 0.05 * jax.random.normal(kw2, (K, H, D), dtype=jnp.float32)
    b2 = 0.05 * jax.random.normal(kb2, (K, D), dtype=jnp.float32)

    x, log_det = sequential_flow_forward(z, w1, b1, w2, b2, tb=TB)
    jax.block_until_ready((x, log_det))

    assert x.shape == (B, D) and log_det.shape == (B,)

    x_ref, ld_ref = sequential_flow_ref(z, w1, b1, w2, b2)
    assert jnp.allclose(x, x_ref, atol=5e-3, rtol=5e-3), (
        float(jnp.max(jnp.abs(x - x_ref))))
    assert jnp.allclose(log_det, ld_ref, atol=5e-3, rtol=5e-3), (
        float(jnp.max(jnp.abs(log_det - ld_ref))))

    print("KERNEL_OK")
</pallas_src>

<mosaic_0001>
module attributes {stable_mosaic.version = 11 : i64} {
  func.func @seq_flow_kernel(%arg0: i32, %arg1: memref<128x256xf32, #tpu.memory_space<vmem>>, %arg2: memref<3x128x128xf32, #tpu.memory_space<vmem>>, %arg3: memref<3x128xf32, #tpu.memory_space<vmem>>, %arg4: memref<3x128x256xf32, #tpu.memory_space<vmem>>, %arg5: memref<3x256xf32, #tpu.memory_space<vmem>>, %arg6: memref<128x256xf32, #tpu.memory_space<vmem>>, %arg7: memref<128x1xf32, #tpu.memory_space<vmem>>) attributes {dimension_semantics = [#tpu.dimension_semantics<parallel>], iteration_bounds = array<i64: 2>, scalar_prefetch = 0 : i64, scratch_operands = 0 : i64, tpu.core_type = #tpu.core_type<tc>, window_params = [{transform_indices = @transform_0, window_bounds = array<i64: 128, 256>}, {pipeline_mode = #tpu.pipeline_mode<synchronous>, transform_indices = @transform_1, window_bounds = array<i64: 3, 128, 128>}, {pipeline_mode = #tpu.pipeline_mode<synchronous>, transform_indices = @transform_2, window_bounds = array<i64: 3, 128>}, {pipeline_mode = #tpu.pipeline_mode<synchronous>, transform_indices = @transform_3, window_bounds = array<i64: 3, 128, 256>}, {pipeline_mode = #tpu.pipeline_mode<synchronous>, transform_indices = @transform_4, window_bounds = array<i64: 3, 256>}, {transform_indices = @transform_5, window_bounds = array<i64: 128, 256>}, {transform_indices = @transform_6, window_bounds = array<i64: 128, 1>}]} {
    %c0 = arith.constant 0 : index
    %c0_0 = arith.constant 0 : index
    %0 = vector.load %arg1[%c0, %c0_0] : memref<128x256xf32, #tpu.memory_space<vmem>>, vector<128x256xf32>
    %1 = vector.extract_strided_slice %0 {offsets = [0, 0], sizes = [128, 128], strides = [1, 1]} : vector<128x256xf32> to vector<128x128xf32>
    %2 = vector.extract_strided_slice %0 {offsets = [0, 128], sizes = [128, 128], strides = [1, 1]} : vector<128x256xf32> to vector<128x128xf32>
    %cst = arith.constant 0.000000e+00 : f32
    %3 = vector.broadcast %cst : f32 to vector<128x128xf32>
    %c0_1 = arith.constant 0 : index
    %c0_2 = arith.constant 0 : index
    %c0_3 = arith.constant 0 : index
    %4 = vector.load %arg2[%c0_1, %c0_2, %c0_3] : memref<3x128x128xf32, #tpu.memory_space<vmem>>, vector<1x128x128xf32>
    %5 = vector.shape_cast %4 : vector<1x128x128xf32> to vector<128x128xf32>
    %cst_4 = arith.constant dense<0.000000e+00> : vector<128x128xf32>
    %6 = tpu.matmul %1, %5, %cst_4 {dimension_numbers = #tpu.dot_dimension_numbers<[1], [0], [0], [1], [0, 0, 1, 1], [], []>, precision = #tpu.contract_precision<fp32>} : vector<128x128xf32>, vector<128x128xf32>, vector<128x128xf32> -> vector<128x128xf32>
    %c0_5 = arith.constant 0 : index
    %c0_6 = arith.constant 0 : index
    %7 = vector.load %arg3[%c0_5, %c0_6] : memref<3x128xf32, #tpu.memory_space<vmem>>, vector<1x128xf32>
    %8 = vector.shape_cast %7 : vector<1x128xf32> to vector<128xf32>
    %9 = vector.shape_cast %8 : vector<128xf32> to vector<1x128xf32>
    %10 = vector.broadcast %9 : vector<1x128xf32> to vector<128x128xf32>
    %11 = arith.addf %6, %10 : vector<128x128xf32>
    %cst_7 = arith.constant 0.000000e+00 : f32
    %12 = vector.broadcast %cst_7 : f32 to vector<128x128xf32>
    %13 = arith.maximumf %11, %12 : vector<128x128xf32>
    %c0_8 = arith.constant 0 : index
    %c0_9 = arith.constant 0 : index
    %c0_10 = arith.constant 0 : index
    %14 = vector.load %arg4[%c0_8, %c0_9, %c0_10] : memref<3x128x256xf32, #tpu.memory_space<vmem>>, vector<1x128x256xf32>
    %15 = vector.shape_cast %14 : vector<1x128x256xf32> to vector<128x256xf32>
    %cst_11 = arith.constant dense<0.000000e+00> : vector<128x256xf32>
    %16 = tpu.matmul %13, %15, %cst_11 {dimension_numbers = #tpu.dot_dimension_numbers<[1], [0], [0], [1], [0, 0, 1, 1], [], []>, precision = #tpu.contract_precision<fp32>} : vector<128x128xf32>, vector<128x256xf32>, vector<128x256xf32> -> vector<128x256xf32>
    %c0_12 = arith.constant 0 : index
    %c0_13 = arith.constant 0 : index
    %17 = vector.load %arg5[%c0_12, %c0_13] : memref<3x256xf32, #tpu.memory_space<vmem>>, vector<1x256xf32>
    %18 = vector.shape_cast %17 : vector<1x256xf32> to vector<256xf32>
    %19 = vector.shape_cast %18 : vector<256xf32> to vector<1x256xf32>
    %20 = vector.broadcast %19 : vector<1x256xf32> to vector<128x256xf32>
    %21 = arith.addf %16, %20 : vector<128x256xf32>
    %22 = vector.extract_strided_slice %21 {offsets = [0, 0], sizes = [128, 128], strides = [1, 1]} : vector<128x256xf32> to vector<128x128xf32>
    %23 = math.tanh %22 : vector<128x128xf32>
    %24 = vector.extract_strided_slice %21 {offsets = [0, 128], sizes = [128, 128], strides = [1, 1]} : vector<128x256xf32> to vector<128x128xf32>
    %25 = math.exp %23 : vector<128x128xf32>
    %26 = arith.mulf %2, %25 : vector<128x128xf32>
    %27 = arith.addf %26, %24 : vector<128x128xf32>
    %28 = arith.addf %3, %23 : vector<128x128xf32>
    %c1 = arith.constant 1 : index
    %c0_14 = arith.constant 0 : index
    %c0_15 = arith.constant 0 : index
    %29 = vector.load %arg2[%c1, %c0_14, %c0_15] : memref<3x128x128xf32, #tpu.memory_space<vmem>>, vector<1x128x128xf32>
    %30 = vector.shape_cast %29 : vector<1x128x128xf32> to vector<128x128xf32>
    %cst_16 = arith.constant dense<0.000000e+00> : vector<128x128xf32>
    %31 = tpu.matmul %27, %30, %cst_16 {dimension_numbers = #tpu.dot_dimension_numbers<[1], [0], [0], [1], [0, 0, 1, 1], [], []>, precision = #tpu.contract_precision<fp32>} : vector<128x128xf32>, vector<128x128xf32>, vector<128x128xf32> -> vector<128x128xf32>
    %c1_17 = arith.constant 1 : index
    %c0_18 = arith.constant 0 : index
    %32 = vector.load %arg3[%c1_17, %c0_18] : memref<3x128xf32, #tpu.memory_space<vmem>>, vector<1x128xf32>
    %33 = vector.shape_cast %32 : vector<1x128xf32> to vector<128xf32>
    %34 = vector.shape_cast %33 : vector<128xf32> to vector<1x128xf32>
    %35 = vector.broadcast %34 : vector<1x128xf32> to vector<128x128xf32>
    %36 = arith.addf %31, %35 : vector<128x128xf32>
    %cst_19 = arith.constant 0.000000e+00 : f32
    %37 = vector.broadcast %cst_19 : f32 to vector<128x128xf32>
    %38 = arith.maximumf %36, %37 : vector<128x128xf32>
    %c1_20 = arith.constant 1 : index
    %c0_21 = arith.constant 0 : index
    %c0_22 = arith.constant 0 : index
    %39 = vector.load %arg4[%c1_20, %c0_21, %c0_22] : memref<3x128x256xf32, #tpu.memory_space<vmem>>, vector<1x128x256xf32>
    %40 = vector.shape_cast %39 : vector<1x128x256xf32> to vector<128x256xf32>
    %cst_23 = arith.constant dense<0.000000e+00> : vector<128x256xf32>
    %41 = tpu.matmul %38, %40, %cst_23 {dimension_numbers = #tpu.dot_dimension_numbers<[1], [0], [0], [1], [0, 0, 1, 1], [], []>, precision = #tpu.contract_precision<fp32>} : vector<128x128xf32>, vector<128x256xf32>, vector<128x256xf32> -> vector<128x256xf32>
    %c1_24 = arith.constant 1 : index
    %c0_25 = arith.constant 0 : index
    %42 = vector.load %arg5[%c1_24, %c0_25] : memref<3x256xf32, #tpu.memory_space<vmem>>, vector<1x256xf32>
    %43 = vector.shape_cast %42 : vector<1x256xf32> to vector<256xf32>
    %44 = vector.shape_cast %43 : vector<256xf32> to vector<1x256xf32>
    %45 = vector.broadcast %44 : vector<1x256xf32> to vector<128x256xf32>
    %46 = arith.addf %41, %45 : vector<128x256xf32>
    %47 = vector.extract_strided_slice %46 {offsets = [0, 0], sizes = [128, 128], strides = [1, 1]} : vector<128x256xf32> to vector<128x128xf32>
    %48 = math.tanh %47 : vector<128x128xf32>
    %49 = vector.extract_strided_slice %46 {offsets = [0, 128], sizes = [128, 128], strides = [1, 1]} : vector<128x256xf32> to vector<128x128xf32>
    %50 = math.exp %48 : vector<128x128xf32>
    %51 = arith.mulf %1, %50 : vector<128x128xf32>
    %52 = arith.addf %51, %49 : vector<128x128xf32>
    %53 = arith.addf %28, %48 : vector<128x128xf32>
    %c2 = arith.constant 2 : index
    %c0_26 = arith.constant 0 : index
    %c0_27 = arith.constant 0 : index
    %54 = vector.load %arg2[%c2, %c0_26, %c0_27] : memref<3x128x128xf32, #tpu.memory_space<vmem>>, vector<1x128x128xf32>
    %55 = vector.shape_cast %54 : vector<1x128x128xf32> to vector<128x128xf32>
    %cst_28 = arith.constant dense<0.000000e+00> : vector<128x128xf32>
    %56 = tpu.matmul %52, %55, %cst_28 {dimension_numbers = #tpu.dot_dimension_numbers<[1], [0], [0], [1], [0, 0, 1, 1], [], []>, precision = #tpu.contract_precision<fp32>} : vector<128x128xf32>, vector<128x128xf32>, vector<128x128xf32> -> vector<128x128xf32>
    %c2_29 = arith.constant 2 : index
    %c0_30 = arith.constant 0 : index
    %57 = vector.load %arg3[%c2_29, %c0_30] : memref<3x128xf32, #tpu.memory_space<vmem>>, vector<1x128xf32>
    %58 = vector.shape_cast %57 : vector<1x128xf32> to vector<128xf32>
    %59 = vector.shape_cast %58 : vector<128xf32> to vector<1x128xf32>
    %60 = vector.broadcast %59 : vector<1x128xf32> to vector<128x128xf32>
    %61 = arith.addf %56, %60 : vector<128x128xf32>
    %cst_31 = arith.constant 0.000000e+00 : f32
    %62 = vector.broadcast %cst_31 : f32 to vector<128x128xf32>
    %63 = arith.maximumf %61, %62 : vector<128x128xf32>
    %c2_32 = arith.constant 2 : index
    %c0_33 = arith.constant 0 : index
    %c0_34 = arith.constant 0 : index
    %64 = vector.load %arg4[%c2_32, %c0_33, %c0_34] : memref<3x128x256xf32, #tpu.memory_space<vmem>>, vector<1x128x256xf32>
    %65 = vector.shape_cast %64 : vector<1x128x256xf32> to vector<128x256xf32>
    %cst_35 = arith.constant dense<0.000000e+00> : vector<128x256xf32>
    %66 = tpu.matmul %63, %65, %cst_35 {dimension_numbers = #tpu.dot_dimension_numbers<[1], [0], [0], [1], [0, 0, 1, 1], [], []>, precision = #tpu.contract_precision<fp32>} : vector<128x128xf32>, vector<128x256xf32>, vector<128x256xf32> -> vector<128x256xf32>
    %c2_36 = arith.constant 2 : index
    %c0_37 = arith.constant 0 : index
    %67 = vector.load %arg5[%c2_36, %c0_37] : memref<3x256xf32, #tpu.memory_space<vmem>>, vector<1x256xf32>
    %68 = vector.shape_cast %67 : vector<1x256xf32> to vector<256xf32>
    %69 = vector.shape_cast %68 : vector<256xf32> to vector<1x256xf32>
    %70 = vector.broadcast %69 : vector<1x256xf32> to vector<128x256xf32>
    %71 = arith.addf %66, %70 : vector<128x256xf32>
    %72 = vector.extract_strided_slice %71 {offsets = [0, 0], sizes = [128, 128], strides = [1, 1]} : vector<128x256xf32> to vector<128x128xf32>
    %73 = math.tanh %72 : vector<128x128xf32>
    %74 = vector.extract_strided_slice %71 {offsets = [0, 128], sizes = [128, 128], strides = [1, 1]} : vector<128x256xf32> to vector<128x128xf32>
    %75 = math.exp %73 : vector<128x128xf32>
    %76 = arith.mulf %27, %75 : vector<128x128xf32>
    %77 = arith.addf %76, %74 : vector<128x128xf32>
    %78 = arith.addf %53, %73 : vector<128x128xf32>
    %79 = tpu.concatenate %52, %77 in 1 : vector<128x128xf32>, vector<128x128xf32> -> vector<128x256xf32>
    %c0_38 = arith.constant 0 : index
    %c0_39 = arith.constant 0 : index
    %80 = vector.load %arg6[%c0_38, %c0_39] : memref<128x256xf32, #tpu.memory_space<vmem>>, vector<128x256xf32>
    tpu.vector_store %arg6[%c0_38, %c0_39], %79 {strides = array<i32>} : memref<128x256xf32, #tpu.memory_space<vmem>>, vector<128x256xf32>,
    %cst_40 = arith.constant dense<0.000000e+00> : vector<128xf32>
    %81 = vector.multi_reduction <add>, %78, %cst_40 [1] : vector<128x128xf32> to vector<128xf32>
    %82 = vector.shape_cast %81 : vector<128xf32> to vector<128x1xf32>
    %c0_41 = arith.constant 0 : index
    %c0_42 = arith.constant 0 : index
    %83 = vector.load %arg7[%c0_41, %c0_42] : memref<128x1xf32, #tpu.memory_space<vmem>>, vector<128x1xf32>
    tpu.vector_store %arg7[%c0_41, %c0_42], %82 {strides = array<i32>} : memref<128x1xf32, #tpu.memory_space<vmem>>, vector<128x1xf32>,
    return
  }
  func.func @transform_0(%arg0: i32) -> (i32, i32) {
    %c0_i32 = arith.constant 0 : i32
    %c0_i32_0 = arith.constant 0 : i32
    return %arg0, %c0_i32 : i32, i32
  }
  func.func @transform_1(%arg0: i32) -> (i32, i32, i32) {
    %c0_i32 = arith.constant 0 : i32
    %c0_i32_0 = arith.constant 0 : i32
    %c0_i32_1 = arith.constant 0 : i32
    %c0_i32_2 = arith.constant 0 : i32
    return %c0_i32, %c0_i32_0, %c0_i32_1 : i32, i32, i32
  }
  func.func @transform_2(%arg0: i32) -> (i32, i32) {
    %c0_i32 = arith.constant 0 : i32
    %c0_i32_0 = arith.constant 0 : i32
    %c0_i32_1 = arith.constant 0 : i32
    return %c0_i32, %c0_i32_0 : i32, i32
  }
  func.func @transform_3(%arg0: i32) -> (i32, i32, i32) {
    %c0_i32 = arith.constant 0 : i32
    %c0_i32_0 = arith.constant 0 : i32
    %c0_i32_1 = arith.constant 0 : i32
    %c0_i32_2 = arith.constant 0 : i32
    return %c0_i32, %c0_i32_0, %c0_i32_1 : i32, i32, i32
  }
  func.func @transform_4(%arg0: i32) -> (i32, i32) {
    %c0_i32 = arith.constant 0 : i32
    %c0_i32_0 = arith.constant 0 : i32
    %c0_i32_1 = arith.constant 0 : i32
    return %c0_i32, %c0_i32_0 : i32, i32
  }
  func.func @transform_5(%arg0: i32) -> (i32, i32) {
    %c0_i32 = arith.constant 0 : i32
    %c0_i32_0 = arith.constant 0 : i32
    return %arg0, %c0_i32 : i32, i32
  }
  func.func @transform_6(%arg0: i32) -> (i32, i32) {
    %c0_i32 = arith.constant 0 : i32
    %c0_i32_0 = arith.constant 0 : i32
    return %arg0, %c0_i32 : i32, i32
  }
}

</mosaic_0001>

<llo_original>
// kernel: tpu_custom_call.1
$region0: #{tpu_custom_call.1}
  #allocation0 [shape = 'u32[]', space=smem, size = 0x4, offset = 0x4, fixed_abs, tag = 'smem constant byte address 0x4 - core index']
  #allocation1 [shape = 'u32[144,128]{1,0:T(1,128)}', space=vmem, size = 0x12000, scoped, tag = 'internal scratch']
  %s0 = inlined_call_operand.hbm [shape: f32[256,256], index: 0, kind: input, shape index: {}]
  %s1 = inlined_call_operand.hbm [shape: f32[3,128,128], index: 1, kind: input, shape index: {}]
  %s2 = inlined_call_operand.vmem [shape: f32[3,128], index: 2, kind: input, shape index: {}]
  %s3 = inlined_call_operand.hbm [shape: f32[3,128,256], index: 3, kind: input, shape index: {}]
  %s4 = inlined_call_operand.vmem [shape: f32[3,256], index: 4, kind: input, shape index: {}]
  %s5 = inlined_call_operand.hbm [shape: f32[256,256], index: 5, kind: output, shape index: {0}]
  %s6 = inlined_call_operand.vmem [shape: f32[256,1], index: 6, kind: output, shape index: {1}]
  %7 = xla_tuple %s5, %s6
  %s8 = sld [smem:[#allocation0]]
  $region73: #{tpu_custom_call.1} parent=0
    _
  %s10 = ssub.s32 1, %s8
  %s11 = scalar_select 0, %s10, %s8
  $region1: #{tpu_custom_call.1} parent=0
    #allocation2 [shape = 'u8[262144]{0}', space=vmem, size = 0x40000, scoped, tag = 'input window, operand 0']
    #allocation3 [shape = 's32[2]{0}', space=sflag, size = 0x8, scoped, tag = 'scoped memory for tpu_custom_call.1']
    #allocation4 [shape = 's32[2]{0}', space=sflag, size = 0x8, scoped, tag = 'scoped memory for tpu_custom_call.1']
    #allocation5 [shape = 'u8[196608]{0}', space=vmem, size = 0x30000, scoped, tag = 'input window, operand 1, single buffered']
    #allocation6 [shape = 's32[1]{0}', space=sflag, size = 0x4, scoped, tag = 'scoped memory for tpu_custom_call.1']
    #allocation7 [shape = 'u8[393216]{0}', space=vmem, size = 0x60000, scoped, tag = 'input window, operand 3, single buffered']
    #allocation8 [shape = 'u8[262144]{0}', space=vmem, size = 0x40000, scoped, tag = 'output window, operand 0']
    %12 = vsyncpa [#allocation3], 0
    %s13 = scalar_lea.sflag [#allocation3], 1
    %14 = vsyncpa %s13, 0
    %15 = vsyncpa [#allocation6], 0
    %16 = vsyncpa [#allocation4], 0
    %s17 = scalar_lea.sflag [#allocation4], 1
    %18 = vsyncpa %s17, 0
    loop: start=0, step=1, limit=4
    $region2: #{tpu_custom_call.1} parent=1 // loop_pre_header
      _
    $region3: #{tpu_custom_call.1} parent=1 // loop_header
      %s20 = sphi 0, %s24
      %p21 = scmp.ge.s32.totalorder %s20, 4
      %s30 = sphi 0, %s32
      %s33 = sphi 0, %s30
      %s34 = sphi 0, %s33
      %s50 = sphi 0, %s34
      %s54 = sphi 0, %s54
      %s56 = sphi 0, %s54
      %s57 = sphi 0, %s56
      %s71 = sphi 0, %s57
      %s75 = sphi 0, %s75
      %s77 = sphi 0, %s75
      %s78 = sphi 0, %s77
      %s92 = sphi 0, %s78
      %s96 = sphi 0, %s96
      %s98 = sphi 0, %s96
      %s99 = sphi 0, %s98
      %s113 = sphi 0, %s99
      %s117 = sphi 0, %s117
      %s119 = sphi 0, %s117
      %s120 = sphi 0, %s119
      %s134 = sphi 0, %s120
      %s140 = sphi 0, %s142
      %s143 = sphi 0, %s140
      %s144 = sphi 0, %s143
      %s160 = sphi 0, %s144
      %s166 = sphi 0, %s168
      %s169 = sphi 0, %s166
      %s170 = sphi 0, %s169
      %s186 = sphi 0, %s170
    $region4: #{tpu_custom_call.1} parent=1 // loop_header_branch
      %23 = sbr.rel (%p21) target = $region8
    $region5: #{tpu_custom_call.1} parent=1 // loop_body
      %s25 = ssub.s32 %s20, 1
      %s26 = ssub.s32 %s20, 2
      %s27 = sadd.s32 %s20, 1
      %s28 = ssub.s32 %s20, %s27
      %p29 = scmp.eq.s32.totalorder %s28, 0
      %s31 = sadd.s32 %s30, 1
      %s32 = scalar_select %p29, %s30, %s31
      %p35 = pneg %p29
      %p36 = scmp.eq.s32.totalorder %s20, 1
      %p37 = por %p35, %p36
      %p38 = scmp.ne.s32.totalorder %s30, %s33
      %p39 = scmp.eq.s32.totalorder %s20, 0
      %p40 = por %p38, %p39
      %p41 = scmp.ne.s32.totalorder %s30, %s33
      %p42 = scmp.eq.s32.totalorder %s25, 1
      %p43 = por %p41, %p42
      %p44 = scmp.ne.s32.totalorder %s33, %s34
      %p45 = scmp.eq.s32.totalorder %s25, 0
      %p46 = por %p44, %p45
      %p47 = scmp.ne.s32.totalorder %s33, %s34
      %p48 = scmp.eq.s32.totalorder %s26, 1
      %p49 = por %p47, %p48
      %p51 = scmp.ne.s32.totalorder %s34, %s50
      %p52 = scmp.eq.s32.totalorder %s26, 0
      %p53 = por %p51, %p52
      %s55 = sadd.s32 %s54, 1
      %p58 = scmp.eq.s32.totalorder %s20, 1
      %p59 = scmp.ne.s32.totalorder %s54, %s56
      %p60 = scmp.eq.s32.totalorder %s20, 0
      %p61 = por %p59, %p60
      %p62 = scmp.ne.s32.totalorder %s54, %s56
      %p63 = scmp.eq.s32.totalorder %s25, 1
      %p64 = por %p62, %p63
      %p65 = scmp.ne.s32.totalorder %s56, %s57
      %p66 = scmp.eq.s32.totalorder %s25, 0
      %p67 = por %p65, %p66
      %p68 = scmp.ne.s32.totalorder %s56, %s57
      %p69 = scmp.eq.s32.totalorder %s26, 1
      %p70 = por %p68, %p69
      %p72 = scmp.ne.s32.totalorder %s57, %s71
      %p73 = scmp.eq.s32.totalorder %s26, 0
      %p74 = por %p72, %p73
      %s76 = sadd.s32 %s75, 1
      %p79 = scmp.eq.s32.totalorder %s20, 1
      %p80 = scmp.ne.s32.totalorder %s75, %s77
      %p81 = scmp.eq.s32.totalorder %s20, 0
      %p82 = por %p80, %p81
      %p83 = scmp.ne.s32.totalorder %s75, %s77
      %p84 = scmp.eq.s32.totalorder %s25, 1
      %p85 = por %p83, %p84
      %p86 = scmp.ne.s32.totalorder %s77, %s78
      %p87 = scmp.eq.s32.totalorder %s25, 0
      %p88 = por %p86, %p87
      %p89 = scmp.ne.s32.totalorder %s77, %s78
      %p90 = scmp.eq.s32.totalorder %s26, 1
      %p91 = por %p89, %p90
      %p93 = scmp.ne.s32.totalorder %s78, %s92
      %p94 = scmp.eq.s32.totalorder %s26, 0
      %p95 = por %p93, %p94
      %s97 = sadd.s32 %s96, 1
      %p100 = scmp.eq.s32.totalorder %s20, 1
      %p101 = scmp.ne.s32.totalorder %s96, %s98
      %p102 = scmp.eq.s32.totalorder %s20, 0
      %p103 = por %p101, %p102
      %p104 = scmp.ne.s32.totalorder %s96, %s98
      %p105 = scmp.eq.s32.totalorder %s25, 1
      %p106 = por %p104, %p105
      %p107 = scmp.ne.s32.totalorder %s98, %s99
      %p108 = scmp.eq.s32.totalorder %s25, 0
      %p109 = por %p107, %p108
      %p110 = scmp.ne.s32.totalorder %s98, %s99
      %p111 = scmp.eq.s32.totalorder %s26, 1
      %p112 = por %p110, %p111
      %p114 = scmp.ne.s32.totalorder %s99, %s113
      %p115 = scmp.eq.s32.totalorder %s26, 0
      %p116 = por %p114, %p115
      %s118 = sadd.s32 %s117, 1
      %p121 = scmp.eq.s32.totalorder %s20, 1
      %p122 = scmp.ne.s32.totalorder %s117, %s119
      %p123 = scmp.eq.s32.totalorder %s20, 0
      %p124 = por %p122, %p123
      %p125 = scmp.ne.s32.totalorder %s117, %s119
      %p126 = scmp.eq.s32.totalorder %s25, 1
      %p127 = por %p125, %p126
      %p128 = scmp.ne.s32.totalorder %s119, %s120
      %p129 = scmp.eq.s32.totalorder %s25, 0
      %p130 = por %p128, %p129
      %p131 = scmp.ne.s32.totalorder %s119, %s120
      %p132 = scmp.eq.s32.totalorder %s26, 1
      %p133 = por %p131, %p132
      %p135 = scmp.ne.s32.totalorder %s120, %s134
      %p136 = scmp.eq.s32.totalorder %s26, 0
      %p137 = por %p135, %p136
      %s138 = ssub.s32 %s20, %s27
      %p139 = scmp.eq.s32.totalorder %s138, 0
      %s141 = sadd.s32 %s140, 1
      %s142 = scalar_select %p139, %s140, %s141
      %p145 = pneg %p139
      %p146 = scmp.eq.s32.totalorder %s20, 1
      %p147 = por %p145, %p146
      %p148 = scmp.ne.s32.totalorder %s140, %s143
      %p149 = scmp.eq.s32.totalorder %s20, 0
      %p150 = por %p148, %p149
      %p151 = scmp.ne.s32.totalorder %s140, %s143
      %p152 = scmp.eq.s32.totalorder %s25, 1
      %p153 = por %p151, %p152
      %p154 = scmp.ne.s32.totalorder %s143, %s144
      %p155 = scmp.eq.s32.totalorder %s25, 0
      %p156 = por %p154, %p155
      %p157 = scmp.ne.s32.totalorder %s143, %s144
      %p158 = scmp.eq.s32.totalorder %s26, 1
      %p159 = por %p157, %p158
      %p161 = scmp.ne.s32.totalorder %s144, %s160
      %p162 = scmp.eq.s32.totalorder %s26, 0
      %p163 = por %p161, %p162
      %s164 = ssub.s32 %s20, %s27
      %p165 = scmp.eq.s32.totalorder %s164, 0
      %s167 = sadd.s32 %s166, 1
      %s168 = scalar_select %p165, %s166, %s167
      %p171 = pneg %p165
      %p172 = scmp.eq.s32.totalorder %s20, 1
      %p173 = por %p171, %p172
      %p174 = scmp.ne.s32.totalorder %s166, %s169
      %p175 = scmp.eq.s32.totalorder %s20, 0
      %p176 = por %p174, %p175
      %p177 = scmp.ne.s32.totalorder %s166, %s169
      %p178 = scmp.eq.s32.totalorder %s25, 1
      %p179 = por %p177, %p178
      %p180 = scmp.ne.s32.totalorder %s169, %s170
      %p181 = scmp.eq.s32.totalorder %s25, 0
      %p182 = por %p180, %p181
      %p183 = scmp.ne.s32.totalorder %s169, %s170
      %p184 = scmp.eq.s32.totalorder %s26, 1
      %p185 = por %p183, %p184
      %p187 = scmp.ne.s32.totalorder %s170, %s186
      %p188 = scmp.eq.s32.totalorder %s26, 0
      %p189 = por %p187, %p188
      %p190 = scmp.le.s32.totalorder 1, %s20
      %p191 = scmp.lt.s32.totalorder %s20, 3
      %p192 = pnand %p190, %p191
      %p193 = pneg %p192
      // Predicated region
      $region9: #{tpu_custom_call.1} parent=5 // pred_check
        _
      $region10: #{tpu_custom_call.1} parent=5 // pred_check_branch
        %195 = sbr.rel (%p192) target = $region12
      $region11: #{tpu_custom_call.1} parent=5 // pred_region
        %s196 = ssub.s32 %s20, 1
        // Predicated region
        $region13: #{tpu_custom_call.1} parent=11 // pred_check
          %p197 = pneg %p67
        $region14: #{tpu_custom_call.1} parent=11 // pred_check_branch
          %199 = sbr.rel (%p197) target = $region16
        $region15: #{tpu_custom_call.1} parent=11 // pred_region
          %s201 = ssub.s32 6144, 6144
          %202 = vsyncadd [#allocation6], %s201
          %s203 = sshll.u32 [#allocation5], 4
          %s204 = int_to_ptr.vmem [resolvable:$true] %s203
          %209 = dma.hbm_to_vmem [thread:$0]  %s1, 6144, %s204, [#allocation6], 128, 128, 8
        $region16: #{tpu_custom_call.1} parent=11 // pred_fallthru
          _
        // Predicated region
        $region17: #{tpu_custom_call.1} parent=11 // pred_check
          %p210 = pneg %p88
        $region18: #{tpu_custom_call.1} parent=11 // pred_check_branch
          %212 = sbr.rel (%p210) target = $region20
        $region19: #{tpu_custom_call.1} parent=11 // pred_region
          _
        $region20: #{tpu_custom_call.1} parent=11 // pred_fallthru
          _
        // Predicated region
        $region21: #{tpu_custom_call.1} parent=11 // pred_check
          %p213 = pneg %p109
        $region22: #{tpu_custom_call.1} parent=11 // pred_check_branch
          %215 = sbr.rel (%p213) target = $region24
        $region23: #{tpu_custom_call.1} parent=11 // pred_region
          %s217 = ssub.s32 12288, 12288
          %218 = vsyncadd [#allocation6], %s217
          %s219 = sshll.u32 [#allocation7], 4
          %s220 = int_to_ptr.vmem [resolvable:$true] %s219
          %225 = dma.hbm_to_vmem [thread:$0]  %s3, 12288, %s220, [#allocation6], 256, 256, 16
        $region24: #{tpu_custom_call.1} parent=11 // pred_fallthru
          _
        // Predicated region
        $region25: #{tpu_custom_call.1} parent=11 // pred_check
          %p226 = pneg %p130
        $region26: #{tpu_custom_call.1} parent=11 // pred_check_branch
          %228 = sbr.rel (%p226) target = $region28
        $region27: #{tpu_custom_call.1} parent=11 // pred_region
          _
        $region28: #{tpu_custom_call.1} parent=11 // pred_fallthru
          _
      $region12: #{tpu_custom_call.1} parent=5 // pred_fallthru
        _
      %p229 = scmp.lt.s32.totalorder %s20, 2
      // Predicated region
      $region29: #{tpu_custom_call.1} parent=5 // pred_check
        %p230 = pneg %p229
      $region30: #{tpu_custom_call.1} parent=5 // pred_check_branch
        %232 = sbr.rel (%p230) target = $region32
      $region31: #{tpu_custom_call.1} parent=5 // pred_region
        // Predicated region
        $region33: #{tpu_custom_call.1} parent=31 // pred_check
          %p233 = pneg %p40
        $region34: #{tpu_custom_call.1} parent=31 // pred_check_branch
          %235 = sbr.rel (%p233) target = $region36
        $region35: #{tpu_custom_call.1} parent=31 // pred_region
          %s236 = sand.u32 %s30, 1
          %s237 = scalar_lea.sflag [#allocation3], %s236
          %s238 = sand.u32 %s30, 1
          %s239 = smul.addr %s238, 256
          %s240 = scalar_lea.vmem [#allocation2], %s239
          %s241 = smul.u32 16, %s20
          %s243 = ssub.s32 4096, 4096
          %244 = vsyncadd %s237, %s243
          %s245 = smul.addr %s241, 2
          %s246 = smul.addr %s245, 128
          %s247 = scalar_lea.hbm %s0, %s246
          %s248 = sshll.u32 %s240, 4
          %s249 = int_to_ptr.vmem [resolvable:$true] %s248
          %254 = dma.hbm_to_vmem [thread:$0]  %s247, 4096, %s249, %s237, 256, 256, 16
        $region36: #{tpu_custom_call.1} parent=31 // pred_fallthru
          _
      $region32: #{tpu_custom_call.1} parent=5 // pred_fallthru
        _
      %p255 = scmp.le.s32.totalorder 1, %s20
      %p256 = scmp.lt.s32.totalorder %s20, 3
      %p257 = pnand %p255, %p256
      %p258 = pneg %p257
      // Predicated region
      $region37: #{tpu_custom_call.1} parent=5 // pred_check
        _
      $region38: #{tpu_custom_call.1} parent=5 // pred_check_branch
        %260 = sbr.rel (%p257) target = $region40
      $region39: #{tpu_custom_call.1} parent=5 // pred_region
        %s261 = ssub.s32 %s20, 1
        %s262 = sand.u32 %s33, 1
        %s263 = scalar_lea.sflag [#allocation3], %s262
        %s264 = sand.u32 %s33, 1
        %s265 = smul.addr %s264, 256
        %s266 = scalar_lea.vmem [#allocation2], %s265
        // Predicated region
        $region41: #{tpu_custom_call.1} parent=39 // pred_check
          %p267 = pneg %p46
        $region42: #{tpu_custom_call.1} parent=39 // pred_check_branch
          %269 = sbr.rel (%p267) target = $region44
        $region43: #{tpu_custom_call.1} parent=39 // pred_region
          %270 = dma.done %s263, 4096
        $region44: #{tpu_custom_call.1} parent=39 // pred_fallthru
          _
        // Predicated region
        $region45: #{tpu_custom_call.1} parent=39 // pred_check
          %p271 = pneg %p67
        $region46: #{tpu_custom_call.1} parent=39 // pred_check_branch
          %273 = sbr.rel (%p271) target = $region48
        $region47: #{tpu_custom_call.1} parent=39 // pred_region
          %274 = dma.done [#allocation6], 6144
        $region48: #{tpu_custom_call.1} parent=39 // pred_fallthru
          _
        // Predicated region
        $region49: #{tpu_custom_call.1} parent=39 // pred_check
          %p275 = pneg %p109
        $region50: #{tpu_custom_call.1} parent=39 // pred_check_branch
          %277 = sbr.rel (%p275) target = $region52
        $region51: #{tpu_custom_call.1} parent=39 // pred_region
          %278 = dma.done [#allocation6], 12288
        $region52: #{tpu_custom_call.1} parent=39 // pred_fallthru
          _
        %s279 = sand.u32 %s33, 1
        %s280 = scalar_lea.sflag [#allocation3], %s279
        %s281 = sand.u32 %s33, 1
        %s282 = smul.addr %s281, 256
        %s283 = scalar_lea.vmem [#allocation2], %s282
        %p284 = pneg %p46
        %p285 = pneg %p43
        %p286 = pneg %p67
        %p287 = pneg %p64
        %p288 = pneg %p88
        %p289 = pneg %p85
        %p290 = pneg %p109
        %p291 = pneg %p106
        %p292 = pneg %p130
        %p293 = pneg %p127
        %p294 = pneg %p156
        %p295 = pneg %p153
        %s296 = sand.u32 %s143, 1
        %s297 = scalar_lea.sflag [#allocation4], %s296
        %s298 = sand.u32 %s143, 1
        %s299 = smul.addr %s298, 256
        %s300 = scalar_lea.vmem [#allocation8], %s299
        %p301 = pneg %p182
        %p302 = pneg %p179
        %s303 = smul.u32 16, %s25
        %p304 = scmp.lt.s32.totalorder %s303, 31
        %s305 = scalar_select %p304, %s303, 31
        %s306 = smul.addr %s305, 8
        %s307 = scalar_lea.vmem %s6, %s306
        %s308 = smul.u32 16, %s25
        %s309 = smul.u32 16, %s25
        %s310 = smul.u32 16, %s25
        %p311 = scmp.lt.s32.totalorder %s310, 31
        %s312 = scalar_select %p311, %s310, 31
        %s313 = smul.addr %s312, 8
        %s314 = scalar_lea.vmem %s6, %s313
        %s315 = smul.u32 16, %s25
        %v316 = vld [vmem:[%s266] sm:$0xff]
        %v317 = vld [vmem:[%s266 + $0x8] sm:$0xff]
        %v318 = vld [vmem:[%s266 + $0x10] sm:$0xff]
        %v319 = vld [vmem:[%s266 + $0x18] sm:$0xff]
        %v320 = vld [vmem:[%s266 + $0x20] sm:$0xff]
        %v321 = vld [vmem:[%s266 + $0x28] sm:$0xff]
        %v322 = vld [vmem:[%s266 + $0x30] sm:$0xff]
        %v323 = vld [vmem:[%s266 + $0x38] sm:$0xff]
        %v324 = vld [vmem:[%s266 + $0x40] sm:$0xff]
        %v325 = vld [vmem:[%s266 + $0x48] sm:$0xff]
        %v326 = vld [vmem:[%s266 + $0x50] sm:$0xff]
        %v327 = vld [vmem:[%s266 + $0x58] sm:$0xff]
        %v328 = vld [vmem:[%s266 + $0x60] sm:$0xff]
        %v329 = vld [vmem:[%s266 + $0x68] sm:$0xff]
        %v330 = vld [vmem:[%s266 + $0x70] sm:$0xff]
        %v331 = vld [vmem:[%s266 + $0x78] sm:$0xff]
        %v332 = vld [vmem:[%s266 + $0x80] sm:$0xff]
        %v333 = vld [vmem:[%s266 + $0x88] sm:$0xff]
        %v334 = vld [vmem:[%s266 + $0x90] sm:$0xff]
        %v335 = vld [vmem:[%s266 + $0x98] sm:$0xff]
        %v336 = vld [vmem:[%s266 + $0xa0] sm:$0xff]
        %v337 = vld [vmem:[%s266 + $0xa8] sm:$0xff]
        %v338 = vld [vmem:[%s266 + $0xb0] sm:$0xff]
        %v339 = vld [vmem:[%s266 + $0xb8] sm:$0xff]
        %v340 = vld [vmem:[%s266 + $0xc0] sm:$0xff]
        %v341 = vld [vmem:[%s266 + $0xc8] sm:$0xff]
        %v342 = vld [vmem:[%s266 + $0xd0] sm:$0xff]
        %v343 = vld [vmem:[%s266 + $0xd8] sm:$0xff]
        %v344 = vld [vmem:[%s266 + $0xe0] sm:$0xff]
        %v345 = vld [vmem:[%s266 + $0xe8] sm:$0xff]
        %v346 = vld [vmem:[%s266 + $0xf0] sm:$0xff]
        %v347 = vld [vmem:[%s266 + $0xf8] sm:$0xff]
        %v348 = vld [vmem:[#allocation5] sm:$0xff]
        %v349 = vld [vmem:[#allocation5 + $0x8] sm:$0xff]
        %v350 = vld [vmem:[#allocation5 + $0x10] sm:$0xff]
        %v351 = vld [vmem:[#allocation5 + $0x18] sm:$0xff]
        %v352 = vld [vmem:[#allocation5 + $0x20] sm:$0xff]
        %v353 = vld [vmem:[#allocation5 + $0x28] sm:$0xff]
        %v354 = vld [vmem:[#allocation5 + $0x30] sm:$0xff]
        %v355 = vld [vmem:[#allocation5 + $0x38] sm:$0xff]
        %v356 = vld [vmem:[#allocation5 + $0x40] sm:$0xff]
        %v357 = vld [vmem:[#allocation5 + $0x48] sm:$0xff]
        %v358 = vld [vmem:[#allocation5 + $0x50] sm:$0xff]
        %v359 = vld [vmem:[#allocation5 + $0x58] sm:$0xff]
        %v360 = vld [vmem:[#allocation5 + $0x60] sm:$0xff]
        %v361 = vld [vmem:[#allocation5 + $0x68] sm:$0xff]
        %v362 = vld [vmem:[#allocation5 + $0x70] sm:$0xff]
        %v363 = vld [vmem:[#allocation5 + $0x78] sm:$0xff]
        %v364 = vld [vmem:[%s2] sm:$0x1]
        %v365 = vlaneseq
        %v366 = vshrl.u32 %v365, 7
        %v367 = vsub.s32 0, %v366
        %v368 = vrot.slane %v364, %v367
        %369 = vmatprep.subr.mxu0 0.0
        %v370 = vand.u32 %v348, 4294901760
        %371 = vmatpush1.msra.mxu0 %v370
        %372 = vmatprep.subr.mxu0 0.0
        %v373 = vand.u32 %v349, 4294901760
        %374 = vmatpush1.msra.mxu0 %v373
        %375 = vmatprep.subr.mxu0 0.0
        %v376 = vand.u32 %v350, 4294901760
        %377 = vmatpush1.msra.mxu0 %v376
        %378 = vmatprep.subr.mxu0 0.0
        %v379 = vand.u32 %v351, 4294901760
        %380 = vmatpush1.msra.mxu0 %v379
        %381 = vmatprep.subr.mxu0 0.0
        %v382 = vand.u32 %v352, 4294901760
        %383 = vmatpush1.msra.mxu0 %v382
        %384 = vmatprep.subr.mxu0 0.0
        %v385 = vand.u32 %v353, 4294901760
        %386 = vmatpush1.msra.mxu0 %v385
        %387 = vmatprep.subr.mxu0 0.0
        %v388 = vand.u32 %v354, 4294901760
        %389 = vmatpush1.msra.mxu0 %v388
        %390 = vmatprep.subr.mxu0 0.0
        %v391 = vand.u32 %v355, 4294901760
        %392 = vmatpush1.msra.mxu0 %v391
        %393 = vmatprep.subr.mxu0 0.0
        %v394 = vand.u32 %v356, 4294901760
        %395 = vmatpush1.msra.mxu0 %v394
        %396 = vmatprep.subr.mxu0 0.0
        %v397 = vand.u32 %v357, 4294901760
        %398 = vmatpush1.msra.mxu0 %v397
        %399 = vmatprep.subr.mxu0 0.0
        %v400 = vand.u32 %v358, 4294901760
        %401 = vmatpush1.msra.mxu0 %v400
        %402 = vmatprep.subr.mxu0 0.0
        %v403 = vand.u32 %v359, 4294901760
        %404 = vmatpush1.msra.mxu0 %v403
        %405 = vmatprep.subr.mxu0 0.0
        %v406 = vand.u32 %v360, 4294901760
        %407 = vmatpush1.msra.mxu0 %v406
        %408 = vmatprep.subr.mxu0 0.0
        %v409 = vand.u32 %v361, 4294901760
        %410 = vmatpush1.msra.mxu0 %v409
        %411 = vmatprep.subr.mxu0 0.0
        %v412 = vand.u32 %v362, 4294901760
        %413 = vmatpush1.msra.mxu0 %v412
        %414 = vmatprep.subr.mxu0 0.0
        %v415 = vand.u32 %v363, 4294901760
        %416 = vmatpush1.msra.mxu0 %v415
        %417 = vmatprep.subr.mxu0 0.0
        %418 = vmatpush1.msra.mxu0 0.0
        %419 = vmatprep.subr.mxu0 0.0
        %420 = vmatpush1.msra.mxu0 0.0
        %421 = vmatprep.subr.mxu0 0.0
        %422 = vmatpush1.msra.mxu0 0.0
        %423 = vmatprep.subr.mxu0 0.0
        %424 = vmatpush1.msra.mxu0 0.0
        %425 = vmatprep.subr.mxu0 0.0
        %426 = vmatpush1.msra.mxu0 0.0
        %427 = vmatprep.subr.mxu0 0.0
        %428 = vmatpush1.msra.mxu0 0.0
        %429 = vmatprep.subr.mxu0 0.0
        %430 = vmatpush1.msra.mxu0 0.0
        %431 = vmatprep.subr.mxu0 0.0
        %432 = vmatpush1.msra.mxu0 0.0
        %433 = vmatprep.subr.mxu0 0.0
        %434 = vmatpush1.msra.mxu0 0.0
        %435 = vmatprep.subr.mxu0 0.0
        %436 = vmatpush1.msra.mxu0 0.0
        %437 = vmatprep.subr.mxu0 0.0
        %438 = vmatpush1.msra.mxu0 0.0
        %439 = vmatprep.subr.mxu0 0.0
        %440 = vmatpush1.msra.mxu0 0.0
        %441 = vmatprep.subr.mxu0 0.0
        %442 = vmatpush1.msra.mxu0 0.0
        %443 = vmatprep.subr.mxu0 0.0
        %444 = vmatpush1.msra.mxu0 0.0
        %445 = vmatprep.subr.mxu0 0.0
        %446 = vmatpush1.msra.mxu0 0.0
        %447 = vmatprep.subr.mxu0 0.0
        %448 = vmatpush1.msra.mxu0 0.0
        %449 = vmatprep.mubr.f32.mxu0 0.0
        %v450 = vand.u32 %v316, 4294901760
        %v451 = vsub.f32 %v316, %v450
        %v452 = vand.u32 %v451, 4294901760
        %v453 = vsub.f32 %v451, %v452
        %v454 = vand.u32 %v453, 4294901760
        %455 = vmatmul.mubr.f32.gmra.mrb[0].mxu0 %v454
        %v456 = vpop.f32.mrb[0].mxu0
        %v457 = vadd.f32 %v368, %v456
        %v458 = vpop.f32.mrb[0].mxu0
        %459 = vmatprep.mubr.f32.mxu0 0.0
        %v460 = vand.u32 %v318, 4294901760
        %v461 = vsub.f32 %v318, %v460
        %v462 = vand.u32 %v461, 4294901760
        %v463 = vsub.f32 %v461, %v462
        %v464 = vand.u32 %v463, 4294901760
        %465 = vmatmul.mubr.f32.gmra.mrb[0].mxu0 %v464
        %v466 = vpop.f32.mrb[0].mxu0
        %v467 = vadd.f32 %v368, %v466
        %v468 = vpop.f32.mrb[0].mxu0
        %469 = vmatprep.mubr.f32.mxu0 0.0
        %v470 = vand.u32 %v320, 4294901760
        %v471 = vsub.f32 %v320, %v470
        %v472 = vand.u32 %v471, 4294901760
        %v473 = vsub.f32 %v471, %v472
        %v474 = vand.u32 %v473, 4294901760
        %475 = vmatmul.mubr.f32.gmra.mrb[0].mxu0 %v474
        %v476 = vpop.f32.mrb[0].mxu0
        %v477 = vadd.f32 %v368, %v476
        %v478 = vpop.f32.mrb[0].mxu0
        %479 = vmatprep.mubr.f32.mxu0 0.0
        %v480 = vand.u32 %v322, 4294901760
        %v481 = vsub.f32 %v322, %v480
        %v482 = vand.u32 %v481, 4294901760
        %v483 = vsub.f32 %v481, %v482
        %v484 = vand.u32 %v483, 4294901760
        %485 = vmatmul.mubr.f32.gmra.mrb[0].mxu0 %v484
        %v486 = vpop.f32.mrb[0].mxu0
        %v487 = vadd.f32 %v368, %v486
        %v488 = vpop.f32.mrb[0].mxu0
        %489 = vmatprep.mubr.f32.mxu0 0.0
        %v490 = vand.u32 %v324, 4294901760
        %v491 = vsub.f32 %v324, %v490
        %v492 = vand.u32 %v491, 4294901760
        %v493 = vsub.f32 %v491, %v492
        %v494 = vand.u32 %v493, 4294901760
        %495 = vmatmul.mubr.f32.gmra.mrb[0].mxu0 %v494
        %v496 = vpop.f32.mrb[0].mxu0
        %v497 = vadd.f32 %v368, %v496
        %v498 = vpop.f32.mrb[0].mxu0
        %499 = vmatprep.mubr.f32.mxu0 0.0
        %v500 = vand.u32 %v326, 4294901760
        %v501 = vsub.f32 %v326, %v500
        %v502 = vand.u32 %v501, 4294901760
        %v503 = vsub.f32 %v501, %v502
        %v504 = vand.u32 %v503, 4294901760
        %505 = vmatmul.mubr.f32.gmra.mrb[0].mxu0 %v504
        %v506 = vpop.f32.mrb[0].mxu0
        %v507 = vadd.f32 %v368, %v506
        %v508 = vpop.f32.mrb[0].mxu0
        %509 = vmatprep.mubr.f32.mxu0 0.0
        %v510 = vand.u32 %v328, 4294901760
        %v511 = vsub.f32 %v328, %v510
        %v512 = vand.u32 %v511, 4294901760
        %v513 = vsub.f32 %v511, %v512
        %v514 = vand.u32 %v513, 4294901760
        %515 = vmatmul.mubr.f32.gmra.mrb[0].mxu0 %v514
        %v516 = vpop.f32.mrb[0].mxu0
        %v517 = vadd.f32 %v368, %v516
        %v518 = vpop.f32.mrb[0].mxu0
        %519 = vmatprep.mubr.f32.mxu0 0.0
        %v520 = vand.u32 %v330, 4294901760
        %v521 = vsub.f32 %v330, %v520
        %v522 = vand.u32 %v521, 4294901760
        %v523 = vsub.f32 %v521, %v522
        %v524 = vand.u32 %v523, 4294901760
        %525 = vmatmul.mubr.f32.gmra.mrb[0].mxu0 %v524
        %v526 = vpop.f32.mrb[0].mxu0
        %v527 = vadd.f32 %v368, %v526
        %v528 = vpop.f32.mrb[0].mxu0
        %529 = vmatprep.mubr.f32.mxu0 0.0
        %v530 = vand.u32 %v332, 4294901760
        %v531 = vsub.f32 %v332, %v530
        %v532 = vand.u32 %v531, 4294901760
        %v533 = vsub.f32 %v531, %v532
        %v534 = vand.u32 %v533, 4294901760
        %535 = vmatmul.mubr.f32.gmra.mrb[0].mxu0 %v534
        %v536 = vpop.f32.mrb[0].mxu0
        %v537 = vadd.f32 %v368, %v536
        %v538 = vpop.f32.mrb[0].mxu0
        %539 = vmatprep.mubr.f32.mxu0 0.0
        %v540 = vand.u32 %v334, 4294901760
        %v541 = vsub.f32 %v334, %v540
        %v542 = vand.u32 %v541, 4294901760
        %v543 = vsub.f32 %v541, %v542
        %v544 = vand.u32 %v543, 4294901760
        %545 = vmatmul.mubr.f32.gmra.mrb[0].mxu0 %v544
        %v546 = vpop.f32.mrb[0].mxu0
        %v547 = vadd.f32 %v368, %v546
        %v548 = vpop.f32.mrb[0].mxu0
        %549 = vmatprep.mubr.f32.mxu0 0.0
        %v550 = vand.u32 %v336, 4294901760
        %v551 = vsub.f32 %v336, %v550
        %v552 = vand.u32 %v551, 4294901760
        %v553 = vsub.f32 %v551, %v552
        %v554 = vand.u32 %v553, 4294901760
        %555 = vmatmul.mubr.f32.gmra.mrb[0].mxu0 %v554
        %v556 = vpop.f32.mrb[0].mxu0
        %v557 = vadd.f32 %v368, %v556
        %v558 = vpop.f32.mrb[0].mxu0
        %559 = vmatprep.mubr.f32.mxu0 0.0
        %v560 = vand.u32 %v338, 4294901760
        %v561 = vsub.f32 %v338, %v560
        %v562 = vand.u32 %v561, 4294901760
        %v563 = vsub.f32 %v561, %v562
        %v564 = vand.u32 %v563, 4294901760
        %565 = vmatmul.mubr.f32.gmra.mrb[0].mxu0 %v564
        %v566 = vpop.f32.mrb[0].mxu0
        %v567 = vadd.f32 %v368, %v566
        %v568 = vpop.f32.mrb[0].mxu0
        %569 = vmatprep.mubr.f32.mxu0 0.0
        %v570 = vand.u32 %v340, 4294901760
        %v571 = vsub.f32 %v340, %v570
        %v572 = vand.u32 %v571, 4294901760
        %v573 = vsub.f32 %v571, %v572
        %v574 = vand.u32 %v573, 4294901760
        %575 = vmatmul.mubr.f32.gmra.mrb[0].mxu0 %v574
        %v576 = vpop.f32.mrb[0].mxu0
        %v577 = vadd.f32 %v368, %v576
        %v578 = vpop.f32.mrb[0].mxu0
        %579 = vmatprep.mubr.f32.mxu0 0.0
        %v580 = vand.u32 %v342, 4294901760
        %v581 = vsub.f32 %v342, %v580
        %v582 = vand.u32 %v581, 4294901760
        %v583 = vsub.f32 %v581, %v582
        %v584 = vand.u32 %v583, 4294901760
        %585 = vmatmul.mubr.f32.gmra.mrb[0].mxu0 %v584
        %v586 = vpop.f32.mrb[0].mxu0
        %v587 = vadd.f32 %v368, %v586
        %v588 = vpop.f32.mrb[0].mxu0
        %589 = vmatprep.mubr.f32.mxu0 0.0
        %v590 = vand.u32 %v344, 4294901760
        %v591 = vsub.f32 %v344, %v590
        %v592 = vand.u32 %v591, 4294901760
        %v593 = vsub.f32 %v591, %v592
        %v594 = vand.u32 %v593, 4294901760
        %595 = vmatmul.mubr.f32.gmra.mrb[0].mxu0 %v594
        %v596 = vpop.f32.mrb[0].mxu0
        %v597 = vadd.f32 %v368, %v596
        %v598 = vpop.f32.mrb[0].mxu0
        %599 = vmatprep.mubr.f32.mxu0 0.0
        %v600 = vand.u32 %v346, 4294901760
        %v601 = vsub.f32 %v346, %v600
        %v602 = vand.u32 %v601, 4294901760
        %v603 = vsub.f32 %v601, %v602
        %v604 = vand.u32 %v603, 4294901760
        %605 = vmatmul.mubr.f32.gmra.mrb[0].mxu0 %v604
        %v606 = vpop.f32.mrb[0].mxu0
        %v607 = vadd.f32 %v368, %v606
        %v608 = vpop.f32.mrb[0].mxu0
        %609 = vdwg.mxu0
        %610 = vmatprep.subr.mxu0 0.0
        %v611 = vand.u32 %v348, 4294901760
        %v612 = vsub.f32 %v348, %v611
        %v613 = vand.u32 %v612, 4294901760
        %v614 = vsub.f32 %v612, %v613
        %v615 = vand.u32 %v614, 4294901760
        %616 = vmatpush1.msra.mxu0 %v615
        %617 = vmatprep.subr.mxu0 0.0
        %v618 = vand.u32 %v349, 4294901760
        %v619 = vsub.f32 %v349, %v618
        %v620 = vand.u32 %v619, 4294901760
        %v621 = vsub.f32 %v619, %v620
        %v622 = vand.u32 %v621, 4294901760
        %623 = vmatpush1.msra.mxu0 %v622
        %624 = vmatprep.subr.mxu0 0.0
        %v625 = vand.u32 %v350, 4294901760
        %v626 = vsub.f32 %v350, %v625
        %v627 = vand.u32 %v626, 4294901760
        %v628 = vsub.f32 %v626, %v627
        %v629 = vand.u32 %v628, 4294901760
        %630 = vmatpush1.msra.mxu0 %v629
        %631 = vmatprep.subr.mxu0 0.0
        %v632 = vand.u32 %v351, 4294901760
        %v633 = vsub.f32 %v351, %v632
        %v634 = vand.u32 %v633, 4294901760
        %v635 = vsub.f32 %v633, %v634
        %v636 = vand.u32 %v635, 4294901760
        %637 = vmatpush1.msra.mxu0 %v636
        %638 = vmatprep.subr.mxu0 0.0
        %v639 = vand.u32 %v352, 4294901760
        %v640 = vsub.f32 %v352, %v639
        %v641 = vand.u32 %v640, 4294901760
        %v642 = vsub.f32 %v640, %v641
        %v643 = vand.u32 %v642, 4294901760
        %644 = vmatpush1.msra.mxu0 %v643
        %645 = vmatprep.subr.mxu0 0.0
        %v646 = vand.u32 %v353, 4294901760
        %v647 = vsub.f32 %v353, %v646
        %v648 = vand.u32 %v647, 4294901760
        %v649 = vsub.f32 %v647, %v648
        %v650 = vand.u32 %v649, 4294901760
        %651 = vmatpush1.msra.mxu0 %v650
        %652 = vmatprep.subr.mxu0 0.0
        %v653 = vand.u32 %v354, 4294901760
        %v654 = vsub.f32 %v354, %v653
        %v655 = vand.u32 %v654, 4294901760
        %v656 = vsub.f32 %v654, %v655
        %v657 = vand.u32 %v656, 4294901760
        %658 = vmatpush1.msra.mxu0 %v657
        %659 = vmatprep.subr.mxu0 0.0
        %v660 = vand.u32 %v355, 4294901760
        %v661 = vsub.f32 %v355, %v660
        %v662 = vand.u32 %v661, 4294901760
        %v663 = vsub.f32 %v661, %v662
        %v664 = vand.u32 %v663, 4294901760
        %665 = vmatpush1.msra.mxu0 %v664
        %666 = vmatprep.subr.mxu0 0.0
        %v667 = vand.u32 %v356, 4294901760
        %v668 = vsub.f32 %v356, %v667
        %v669 = vand.u32 %v668, 4294901760
        %v670 = vsub.f32 %v668, %v669
        %v671 = vand.u32 %v670, 4294901760
        %672 = vmatpush1.msra.mxu0 %v671
        %673 = vmatprep.subr.mxu0 0.0
        %v674 = vand.u32 %v357, 4294901760
        %v675 = vsub.f32 %v357, %v674
        %v676 = vand.u32 %v675, 4294901760
        %v677 = vsub.f32 %v675, %v676
        %v678 = vand.u32 %v677, 4294901760
        %679 = vmatpush1.msra.mxu0 %v678
        %680 = vmatprep.subr.mxu0 0.0
        %v681 = vand.u32 %v358, 4294901760
        %v682 = vsub.f32 %v358, %v681
        %v683 = vand.u32 %v682, 4294901760
        %v684 = vsub.f32 %v682, %v683
        %v685 = vand.u32 %v684, 4294901760
        %686 = vmatpush1.msra.mxu0 %v685
        %687 = vmatprep.subr.mxu0 0.0
        %v688 = vand.u32 %v359, 4294901760
        %v689 = vsub.f32 %v359, %v688
        %v690 = vand.u32 %v689, 4294901760
        %v691 = vsub.f32 %v689, %v690
        %v692 = vand.u32 %v691, 4294901760
        %693 = vmatpush1.msra.mxu0 %v692
        %694 = vmatprep.subr.mxu0 0.0
        %v695 = vand.u32 %v360, 4294901760
        %v696 = vsub.f32 %v360, %v695
        %v697 = vand.u32 %v696, 4294901760
        %v698 = vsub.f32 %v696, %v697
        %v699 = vand.u32 %v698, 4294901760
        %700 = vmatpush1.msra.mxu0 %v699
        %701 = vmatprep.subr.mxu0 0.0
        %v702 = vand.u32 %v361, 4294901760
        %v703 = vsub.f32 %v361, %v702
        %v704 = vand.u32 %v703, 4294901760
        %v705 = vsub.f32 %v703, %v704
        %v706 = vand.u32 %v705, 4294901760
        %707 = vmatpush1.msra.mxu0 %v706
        %708 = vmatprep.subr.mxu0 0.0
        %v709 = vand.u32 %v362, 4294901760
        %v710 = vsub.f32 %v362, %v709
        %v711 = vand.u32 %v710, 4294901760
        %v712 = vsub.f32 %v710, %v711
        %v713 = vand.u32 %v712, 4294901760
        %714 = vmatpush1.msra.mxu0 %v713
        %715 = vmatprep.subr.mxu0 0.0
        %v716 = vand.u32 %v363, 4294901760
        %v717 = vsub.f32 %v363, %v716
        %v718 = vand.u32 %v717, 4294901760
        %v719 = vsub.f32 %v717, %v718
        %v720 = vand.u32 %v719, 4294901760
        %721 = vmatpush1.msra.mxu0 %v720
        %722 = vmatprep.subr.mxu0 0.0
        %723 = vmatpush1.msra.mxu0 0.0
        %724 = vmatprep.subr.mxu0 0.0
        %725 = vmatpush1.msra.mxu0 0.0
        %726 = vmatprep.subr.mxu0 0.0
        %727 = vmatpush1.msra.mxu0 0.0
        %728 = vmatprep.subr.mxu0 0.0
        %729 = vmatpush1.msra.mxu0 0.0
        %730 = vmatprep.subr.mxu0 0.0
        %731 = vmatpush1.msra.mxu0 0.0
        %732 = vmatprep.subr.mxu0 0.0
        %733 = vmatpush1.msra.mxu0 0.0
        %734 = vmatprep.subr.mxu0 0.0
        %735 = vmatpush1.msra.mxu0 0.0
        %736 = vmatprep.subr.mxu0 0.0
        %737 = vmatpush1.msra.mxu0 0.0
        %738 = vmatprep.subr.mxu0 0.0
        %739 = vmatpush1.msra.mxu0 0.0
        %740 = vmatprep.subr.mxu0 0.0
        %741 = vmatpush1.msra.mxu0 0.0
        %742 = vmatprep.subr.mxu0 0.0
        %743 = vmatpush1.msra.mxu0 0.0
        %744 = vmatprep.subr.mxu0 0.0
        %745 = vmatpush1.msra.mxu0 0.0
        %746 = vmatprep.subr.mxu0 0.0
        %747 = vmatpush1.msra.mxu0 0.0
        %748 = vmatprep.subr.mxu0 0.0
        %749 = vmatpush1.msra.mxu0 0.0
        %750 = vmatprep.subr.mxu0 0.0
        %751 = vmatpush1.msra.mxu0 0.0
        %752 = vmatprep.subr.mxu0 0.0
        %753 = vmatpush1.msra.mxu0 0.0
        %754 = vmatprep.mubr.f32.mxu0 0.0
        %v755 = vand.u32 %v316, 4294901760
        %756 = vmatmul.mubr.f32.gmra.mrb[0].mxu0 %v755
        %v757 = vpop.f32.mrb[0].mxu0
        %v758 = vadd.f32 %v457, %v757
        %v759 = vpop.f32.mrb[0].mxu0
        %760 = vmatprep.mubr.f32.mxu0 0.0
        %v761 = vand.u32 %v318, 4294901760
        %762 = vmatmul.mubr.f32.gmra.mrb[0].mxu0 %v761
        %v763 = vpop.f32.mrb[0].mxu0
        %v764 = vadd.f32 %v467, %v763
        %v765 = vpop.f32.mrb[0].mxu0
        %766 = vmatprep.mubr.f32.mxu0 0.0
        %v767 = vand.u32 %v320, 4294901760
        %768 = vmatmul.mubr.f32.gmra.mrb[0].mxu0 %v767
        %v769 = vpop.f32.mrb[0].mxu0
        %v770 = vadd.f32 %v477, %v769
        %v771 = vpop.f32.mrb[0].mxu0
        %772 = vmatprep.mubr.f32.mxu0 0.0
        %v773 = vand.u32 %v322, 4294901760
        %774 = vmatmul.mubr.f32.gmra.mrb[0].mxu0 %v773
        %v775 = vpop.f32.mrb[0].mxu0
        %v776 = vadd.f32 %v487, %v775
        %v777 = vpop.f32.mrb[0].mxu0
        %778 = vmatprep.mubr.f32.mxu0 0.0
        %v779 = vand.u32 %v324, 4294901760
        %780 = vmatmul.mubr.f32.gmra.mrb[0].mxu0 %v779
        %v781 = vpop.f32.mrb[0].mxu0
        %v782 = vadd.f32 %v497, %v781
        %v783 = vpop.f32.mrb[0].mxu0
        %784 = vmatprep.mubr.f32.mxu0 0.0
        %v785 = vand.u32 %v326, 4294901760
        %786 = vmatmul.mubr.f32.gmra.mrb[0].mxu0 %v785
        %v787 = vpop.f32.mrb[0].mxu0
        %v788 = vadd.f32 %v507, %v787
        %v789 = vpop.f32.mrb[0].mxu0
        %790 = vmatprep.mubr.f32.mxu0 0.0
        %v791 = vand.u32 %v328, 4294901760
        %792 = vmatmul.mubr.f32.gmra.mrb[0].mxu0 %v791
        %v793 = vpop.f32.mrb[0].mxu0
        %v794 = vadd.f32 %v517, %v793
        %v795 = vpop.f32.mrb[0].mxu0
        %796 = vmatprep.mubr.f32.mxu0 0.0
        %v797 = vand.u32 %v330, 4294901760
        %798 = vmatmul.mubr.f32.gmra.mrb[0].mxu0 %v797
        %v799 = vpop.f32.mrb[0].mxu0
        %v800 = vadd.f32 %v527, %v799
        %v801 = vpop.f32.mrb[0].mxu0
        %802 = vmatprep.mubr.f32.mxu0 0.0
        %v803 = vand.u32 %v332, 4294901760
        %804 = vmatmul.mubr.f32.gmra.mrb[0].mxu0 %v803
        %v805 = vpop.f32.mrb[0].mxu0
        %v806 = vadd.f32 %v537, %v805
        %v807 = vpop.f32.mrb[0].mxu0
        %808 = vmatprep.mubr.f32.mxu0 0.0
        %v809 = vand.u32 %v334, 4294901760
        %810 = vmatmul.mubr.f32.gmra.mrb[0].mxu0 %v809
        %v811 = vpop.f32.mrb[0].mxu0
        %v812 = vadd.f32 %v547, %v811
        %v813 = vpop.f32.mrb[0].mxu0
        %814 = vmatprep.mubr.f32.mxu0 0.0
        %v815 = vand.u32 %v336, 4294901760
        %816 = vmatmul.mubr.f32.gmra.mrb[0].mxu0 %v815
        %v817 = vpop.f32.mrb[0].mxu0
        %v818 = vadd.f32 %v557, %v817
        %v819 = vpop.f32.mrb[0].mxu0
        %820 = vmatprep.mubr.f32.mxu0 0.0
        %v821 = vand.u32 %v338, 4294901760
        %822 = vmatmul.mubr.f32.gmra.mrb[0].mxu0 %v821
        %v823 = vpop.f32.mrb[0].mxu0
        %v824 = vadd.f32 %v567, %v823
        %v825 = vpop.f32.mrb[0].mxu0
        %826 = vmatprep.mubr.f32.mxu0 0.0
        %v827 = vand.u32 %v340, 4294901760
        %828 = vmatmul.mubr.f32.gmra.mrb[0].mxu0 %v827
        %v829 = vpop.f32.mrb[0].mxu0
        %v830 = vadd.f32 %v577, %v829
        %v831 = vpop.f32.mrb[0].mxu0
        %832 = vmatprep.mubr.f32.mxu0 0.0
        %v833 = vand.u32 %v342, 4294901760
        %834 = vmatmul.mubr.f32.gmra.mrb[0].mxu0 %v833
        %v835 = vpop.f32.mrb[0].mxu0
        %v836 = vadd.f32 %v587, %v835
        %v837 = vpop.f32.mrb[0].mxu0
        %838 = vmatprep.mubr.f32.mxu0 0.0
        %v839 = vand.u32 %v344, 4294901760
        %840 = vmatmul.mubr.f32.gmra.mrb[0].mxu0 %v839
        %v841 = vpop.f32.mrb[0].mxu0
        %v842 = vadd.f32 %v597, %v841
        %v843 = vpop.f32.mrb[0].mxu0
        %844 = vmatprep.mubr.f32.mxu0 0.0
        %v845 = vand.u32 %v346, 4294901760
        %846 = vmatmul.mubr.f32.gmra.mrb[0].mxu0 %v845
        %v847 = vpop.f32.mrb[0].mxu0
        %v848 = vadd.f32 %v607, %v847
        %v849 = vpop.f32.mrb[0].mxu0
        %850 = vdwg.mxu0
        %851 = vmatprep.subr.mxu0 0.0
        %v852 = vand.u32 %v348, 4294901760
        %v853 = vsub.f32 %v348, %v852
        %854 = vmatpush1.msra.mxu0 %v853
        %855 = vmatprep.subr.mxu0 0.0
        %v856 = vand.u32 %v349, 4294901760
        %v857 = vsub.f32 %v349, %v856
        %858 = vmatpush1.msra.mxu0 %v857
        %859 = vmatprep.subr.mxu0 0.0
        %v860 = vand.u32 %v350, 4294901760
        %v861 = vsub.f32 %v350, %v860
        %862 = vmatpush1.msra.mxu0 %v861
        %863 = vmatprep.subr.mxu0 0.0
        %v864 = vand.u32 %v351, 4294901760
        %v865 = vsub.f32 %v351, %v864
        %866 = vmatpush1.msra.mxu0 %v865
        %867 = vmatprep.subr.mxu0 0.0
        %v868 = vand.u32 %v352, 4294901760
        %v869 = vsub.f32 %v352, %v868
        %870 = vmatpush1.msra.mxu0 %v869
        %871 = vmatprep.subr.mxu0 0.0
        %v872 = vand.u32 %v353, 4294901760
        %v873 = vsub.f32 %v353, %v872
        %874 = vmatpush1.msra.mxu0 %v873
        %875 = vmatprep.subr.mxu0 0.0
        %v876 = vand.u32 %v354, 4294901760
        %v877 = vsub.f32 %v354, %v876
        %878 = vmatpush1.msra.mxu0 %v877
        %879 = vmatprep.subr.mxu0 0.0
        %v880 = vand.u32 %v355, 4294901760
        %v881 = vsub.f32 %v355, %v880
        %882 = vmatpush1.msra.mxu0 %v881
        %883 = vmatprep.subr.mxu0 0.0
        %v884 = vand.u32 %v356, 4294901760
        %v885 = vsub.f32 %v356, %v884
        %886 = vmatpush1.msra.mxu0 %v885
        %887 = vmatprep.subr.mxu0 0.0
        %v888 = vand.u32 %v357, 4294901760
        %v889 = vsub.f32 %v357, %v888
        %890 = vmatpush1.msra.mxu0 %v889
        %891 = vmatprep.subr.mxu0 0.0
        %v892 = vand.u32 %v358, 4294901760
        %v893 = vsub.f32 %v358, %v892
        %894 = vmatpush1.msra.mxu0 %v893
        %895 = vmatprep.subr.mxu0 0.0
        %v896 = vand.u32 %v359, 4294901760
        %v897 = vsub.f32 %v359, %v896
        %898 = vmatpush1.msra.mxu0 %v897
        %899 = vmatprep.subr.mxu0 0.0
        %v900 = vand.u32 %v360, 4294901760
        %v901 = vsub.f32 %v360, %v900
        %902 = vmatpush1.msra.mxu0 %v901
        %903 = vmatprep.subr.mxu0 0.0
        %v904 = vand.u32 %v361, 4294901760
        %v905 = vsub.f32 %v361, %v904
        %906 = vmatpush1.msra.mxu0 %v905
        %907 = vmatprep.subr.mxu0 0.0
        %v908 = vand.u32 %v362, 4294901760
        %v909 = vsub.f32 %v362, %v908
        %910 = vmatpush1.msra.mxu0 %v909
        %911 = vmatprep.subr.mxu0 0.0
        %v912 = vand.u32 %v363, 4294901760
        %v913 = vsub.f32 %v363, %v912
        %914 = vmatpush1.msra.mxu0 %v913
        %915 = vmatprep.subr.mxu0 0.0
        %916 = vmatpush1.msra.mxu0 0.0
        %917 = vmatprep.subr.mxu0 0.0
        %918 = vmatpush1.msra.mxu0 0.0
        %919 = vmatprep.subr.mxu0 0.0
        %920 = vmatpush1.msra.mxu0 0.0
        %921 = vmatprep.subr.mxu0 0.0
        %922 = vmatpush1.msra.mxu0 0.0
        %923 = vmatprep.subr.mxu0 0.0
        %924 = vmatpush1.msra.mxu0 0.0
        %925 = vmatprep.subr.mxu0 0.0
        %926 = vmatpush1.msra.mxu0 0.0
        %927 = vmatprep.subr.mxu0 0.0
        %928 = vmatpush1.msra.mxu0 0.0
        %929 = vmatprep.subr.mxu0 0.0
        %930 = vmatpush1.msra.mxu0 0.0
        %931 = vmatprep.subr.mxu0 0.0
        %932 = vmatpush1.msra.mxu0 0.0
        %933 = vmatprep.subr.mxu0 0.0
        %934 = vmatpush1.msra.mxu0 0.0
        %935 = vmatprep.subr.mxu0 0.0
        %936 = vmatpush1.msra.mxu0 0.0
        %937 = vmatprep.subr.mxu0 0.0
        %938 = vmatpush1.msra.mxu0 0.0
        %939 = vmatprep.subr.mxu0 0.0
        %940 = vmatpush1.msra.mxu0 0.0
        %941 = vmatprep.subr.mxu0 0.0
        %942 = vmatpush1.msra.mxu0 0.0
        %943 = vmatprep.subr.mxu0 0.0
        %944 = vmatpush1.msra.mxu0 0.0
        %945 = vmatprep.subr.mxu0 0.0
        %946 = vmatpush1.msra.mxu0 0.0
        %947 = vmatprep.mubr.f32.mxu0 0.0
        %v948 = vand.u32 %v316, 4294901760
        %v949 = vsub.f32 %v316, %v948
        %950 = vmatmul.mubr.f32.gmra.mrb[0].mxu0 %v949
        %v951 = vpop.f32.mrb[0].mxu0
        %v952 = vadd.f32 %v758, %v951
        %v953 = vpop.f32.mrb[0].mxu0
        %954 = vmatprep.mubr.f32.mxu0 0.0
        %v955 = vand.u32 %v318, 4294901760
        %v956 = vsub.f32 %v318, %v955
        %957 = vmatmul.mubr.f32.gmra.mrb[0].mxu0 %v956
        %v958 = vpop.f32.mrb[0].mxu0
        %v959 = vadd.f32 %v764, %v958
        %v960 = vpop.f32.mrb[0].mxu0
        %961 = vmatprep.mubr.f32.mxu0 0.0
        %v962 = vand.u32 %v320, 4294901760
        %v963 = vsub.f32 %v320, %v962
        %964 = vmatmul.mubr.f32.gmra.mrb[0].mxu0 %v963
        %v965 = vpop.f32.mrb[0].mxu0
        %v966 = vadd.f32 %v770, %v965
        %v967 = vpop.f32.mrb[0].mxu0
        %968 = vmatprep.mubr.f32.mxu0 0.0
        %v969 = vand.u32 %v322, 4294901760
        %v970 = vsub.f32 %v322, %v969
        %971 = vmatmul.mubr.f32.gmra.mrb[0].mxu0 %v970
        %v972 = vpop.f32.mrb[0].mxu0
        %v973 = vadd.f32 %v776, %v972
        %v974 = vpop.f32.mrb[0].mxu0
        %975 = vmatprep.mubr.f32.mxu0 0.0
        %v976 = vand.u32 %v324, 4294901760
        %v977 = vsub.f32 %v324, %v976
        %978 = vmatmul.mubr.f32.gmra.mrb[0].mxu0 %v977
        %v979 = vpop.f32.mrb[0].mxu0
        %v980 = vadd.f32 %v782, %v979
        %v981 = vpop.f32.mrb[0].mxu0
        %982 = vmatprep.mubr.f32.mxu0 0.0
        %v983 = vand.u32 %v326, 4294901760
        %v984 = vsub.f32 %v326, %v983
        %985 = vmatmul.mubr.f32.gmra.mrb[0].mxu0 %v984
        %v986 = vpop.f32.mrb[0].mxu0
        %v987 = vadd.f32 %v788, %v986
        %v988 = vpop.f32.mrb[0].mxu0
        %989 = vmatprep.mubr.f32.mxu0 0.0
        %v990 = vand.u32 %v328, 4294901760
        %v991 = vsub.f32 %v328, %v990
        %992 = vmatmul.mubr.f32.gmra.mrb[0].mxu0 %v991
        %v993 = vpop.f32.mrb[0].mxu0
        %v994 = vadd.f32 %v794, %v993
        %v995 = vpop.f32.mrb[0].mxu0
        %996 = vmatprep.mubr.f32.mxu0 0.0
        %v997 = vand.u32 %v330, 4294901760
        %v998 = vsub.f32 %v330, %v997
        %999 = vmatmul.mubr.f32.gmra.mrb[0].mxu0 %v998
        %v1000 = vpop.f32.mrb[0].mxu0
        %v1001 = vadd.f32 %v800, %v1000
        %v1002 = vpop.f32.mrb[0].mxu0
        %1003 = vmatprep.mubr.f32.mxu0 0.0
        %v1004 = vand.u32 %v332, 4294901760
        %v1005 = vsub.f32 %v332, %v1004
        %1006 = vmatmul.mubr.f32.gmra.mrb[0].mxu0 %v1005
        %v1007 = vpop.f32.mrb[0].mxu0
        %v1008 = vadd.f32 %v806, %v1007
        %v1009 = vpop.f32.mrb[0].mxu0
        %1010 = vmatprep.mubr.f32.mxu0 0.0
        %v1011 = vand.u32 %v334, 4294901760
        %v1012 = vsub.f32 %v334, %v1011
        %1013 = vmatmul.mubr.f32.gmra.mrb[0].mxu0 %v1012
        %v1014 = vpop.f32.mrb[0].mxu0
        %v1015 = vadd.f32 %v812, %v1014
        %v1016 = vpop.f32.mrb[0].mxu0
        %1017 = vmatprep.mubr.f32.mxu0 0.0
        %v1018 = vand.u32 %v336, 4294901760
        %v1019 = vsub.f32 %v336, %v1018
        %1020 = vmatmul.mubr.f32.gmra.mrb[0].mxu0 %v1019
        %v1021 = vpop.f32.mrb[0].mxu0
        %v1022 = vadd.f32 %v818, %v1021
        %v1023 = vpop.f32.mrb[0].mxu0
        %1024 = vmatprep.mubr.f32.mxu0 0.0
        %v1025 = vand.u32 %v338, 4294901760
        %v1026 = vsub.f32 %v338, %v1025
        %1027 = vmatmul.mubr.f32.gmra.mrb[0].mxu0 %v1026
        %v1028 = vpop.f32.mrb[0].mxu0
        %v1029 = vadd.f32 %v824, %v1028
        %v1030 = vpop.f32.mrb[0].mxu0
        %1031 = vmatprep.mubr.f32.mxu0 0.0
        %v1032 = vand.u32 %v340, 4294901760
        %v1033 = vsub.f32 %v340, %v1032
        %1034 = vmatmul.mubr.f32.gmra.mrb[0].mxu0 %v1033
        %v1035 = vpop.f32.mrb[0].mxu0
        %v1036 = vadd.f32 %v830, %v1035
        %v1037 = vpop.f32.mrb[0].mxu0
        %1038 = vmatprep.mubr.f32.mxu0 0.0
        %v1039 = vand.u32 %v342, 4294901760
        %v1040 = vsub.f32 %v342, %v1039
        %1041 = vmatmul.mubr.f32.gmra.mrb[0].mxu0 %v1040
        %v1042 = vpop.f32.mrb[0].mxu0
        %v1043 = vadd.f32 %v836, %v1042
        %v1044 = vpop.f32.mrb[0].mxu0
        %1045 = vmatprep.mubr.f32.mxu0 0.0
        %v1046 = vand.u32 %v344, 4294901760
        %v1047 = vsub.f32 %v344, %v1046
        %1048 = vmatmul.mubr.f32.gmra.mrb[0].mxu0 %v1047
        %v1049 = vpop.f32.mrb[0].mxu0
        %v1050 = vadd.f32 %v842, %v1049
        %v1051 = vpop.f32.mrb[0].mxu0
        %1052 = vmatprep.mubr.f32.mxu0 0.0
        %v1053 = vand.u32 %v346, 4294901760
        %v1054 = vsub.f32 %v346, %v1053
        %1055 = vmatmul.mubr.f32.gmra.mrb[0].mxu0 %v1054
        %v1056 = vpop.f32.mrb[0].mxu0
        %v1057 = vadd.f32 %v848, %v1056
        %v1058 = vpop.f32.mrb[0].mxu0
        %1059 = vdwg.mxu0
        %1060 = vmatprep.subr.mxu0 0.0
        %v1061 = vand.u32 %v348, 4294901760
        %1062 = vmatpush1.msra.mxu0 %v1061
        %1063 = vmatprep.subr.mxu0 0.0
        %v1064 = vand.u32 %v349, 4294901760
        %1065 = vmatpush1.msra.mxu0 %v1064
        %1066 = vmatprep.subr.mxu0 0.0
        %v1067 = vand.u32 %v350, 4294901760
        %1068 = vmatpush1.msra.mxu0 %v1067
        %1069 = vmatprep.subr.mxu0 0.0
        %v1070 = vand.u32 %v351, 4294901760
        %1071 = vmatpush1.msra.mxu0 %v1070
        %1072 = vmatprep.subr.mxu0 0.0
        %v1073 = vand.u32 %v352, 4294901760
        %1074 = vmatpush1.msra.mxu0 %v1073
        %1075 = vmatprep.subr.mxu0 0.0
        %v1076 = vand.u32 %v353, 4294901760
        %1077 = vmatpush1.msra.mxu0 %v1076
        %1078 = vmatprep.subr.mxu0 0.0
        %v1079 = vand.u32 %v354, 4294901760
        %1080 = vmatpush1.msra.mxu0 %v1079
        %1081 = vmatprep.subr.mxu0 0.0
        %v1082 = vand.u32 %v355, 4294901760
        %1083 = vmatpush1.msra.mxu0 %v1082
        %1084 = vmatprep.subr.mxu0 0.0
        %v1085 = vand.u32 %v356, 4294901760
        %1086 = vmatpush1.msra.mxu0 %v1085
        %1087 = vmatprep.subr.mxu0 0.0
        %v1088 = vand.u32 %v357, 4294901760
        %1089 = vmatpush1.msra.mxu0 %v1088
        %1090 = vmatprep.subr.mxu0 0.0
        %v1091 = vand.u32 %v358, 4294901760
        %1092 = vmatpush1.msra.mxu0 %v1091
        %1093 = vmatprep.subr.mxu0 0.0
        %v1094 = vand.u32 %v359, 4294901760
        %1095 = vmatpush1.msra.mxu0 %v1094
        %1096 = vmatprep.subr.mxu0 0.0
        %v1097 = vand.u32 %v360, 4294901760
        %1098 = vmatpush1.msra.mxu0 %v1097
        %1099 = vmatprep.subr.mxu0 0.0
        %v1100 = vand.u32 %v361, 4294901760
        %1101 = vmatpush1.msra.mxu0 %v1100
        %1102 = vmatprep.subr.mxu0 0.0
        %v1103 = vand.u32 %v362, 4294901760
        %1104 = vmatpush1.msra.mxu0 %v1103
        %1105 = vmatprep.subr.mxu0 0.0
        %v1106 = vand.u32 %v363, 4294901760
        %1107 = vmatpush1.msra.mxu0 %v1106
        %1108 = vmatprep.subr.mxu0 0.0
        %1109 = vmatpush1.msra.mxu0 0.0
        %1110 = vmatprep.subr.mxu0 0.0
        %1111 = vmatpush1.msra.mxu0 0.0
        %1112 = vmatprep.subr.mxu0 0.0
        %1113 = vmatpush1.msra.mxu0 0.0
        %1114 = vmatprep.subr.mxu0 0.0
        %1115 = vmatpush1.msra.mxu0 0.0
        %1116 = vmatprep.subr.mxu0 0.0
        %1117 = vmatpush1.msra.mxu0 0.0
        %1118 = vmatprep.subr.mxu0 0.0
        %1119 = vmatpush1.msra.mxu0 0.0
        %1120 = vmatprep.subr.mxu0 0.0
        %1121 = vmatpush1.msra.mxu0 0.0
        %1122 = vmatprep.subr.mxu0 0.0
        %1123 = vmatpush1.msra.mxu0 0.0
        %1124 = vmatprep.subr.mxu0 0.0
        %1125 = vmatpush1.msra.mxu0 0.0
        %1126 = vmatprep.subr.mxu0 0.0
        %1127 = vmatpush1.msra.mxu0 0.0
        %1128 = vmatprep.subr.mxu0 0.0
        %1129 = vmatpush1.msra.mxu0 0.0
        %1130 = vmatprep.subr.mxu0 0.0
        %1131 = vmatpush1.msra.mxu0 0.0
        %1132 = vmatprep.subr.mxu0 0.0
        %1133 = vmatpush1.msra.mxu0 0.0
        %1134 = vmatprep.subr.mxu0 0.0
        %1135 = vmatpush1.msra.mxu0 0.0
        %1136 = vmatprep.subr.mxu0 0.0
        %1137 = vmatpush1.msra.mxu0 0.0
        %1138 = vmatprep.subr.mxu0 0.0
        %1139 = vmatpush1.msra.mxu0 0.0
        %1140 = vmatprep.mubr.f32.mxu0 0.0
        %v1141 = vand.u32 %v316, 4294901760
        %v1142 = vsub.f32 %v316, %v1141
        %v1143 = vand.u32 %v1142, 4294901760
        %1144 = vmatmul.mubr.f32.gmra.mrb[0].mxu0 %v1143
        %v1145 = vpop.f32.mrb[0].mxu0
        %v1146 = vadd.f32 %v952, %v1145
        %v1147 = vpop.f32.mrb[0].mxu0
        %1148 = vmatprep.mubr.f32.mxu0 0.0
        %v1149 = vand.u32 %v318, 4294901760
        %v1150 = vsub.f32 %v318, %v1149
        %v1151 = vand.u32 %v1150, 4294901760
        %1152 = vmatmul.mubr.f32.gmra.mrb[0].mxu0 %v1151
        %v1153 = vpop.f32.mrb[0].mxu0
        %v1154 = vadd.f32 %v959, %v1153
        %v1155 = vpop.f32.mrb[0].mxu0
        %1156 = vmatprep.mubr.f32.mxu0 0.0
        %v1157 = vand.u32 %v320, 4294901760
        %v1158 = vsub.f32 %v320, %v1157
        %v1159 = vand.u32 %v1158, 4294901760
        %1160 = vmatmul.mubr.f32.gmra.mrb[0].mxu0 %v1159
        %v1161 = vpop.f32.mrb[0].mxu0
        %v1162 = vadd.f32 %v966, %v1161
        %v1163 = vpop.f32.mrb[0].mxu0
        %1164 = vmatprep.mubr.f32.mxu0 0.0
        %v1165 = vand.u32 %v322, 4294901760
        %v1166 = vsub.f32 %v322, %v1165
        %v1167 = vand.u32 %v1166, 4294901760
        %1168 = vmatmul.mubr.f32.gmra.mrb[0].mxu0 %v1167
        %v1169 = vpop.f32.mrb[0].mxu0
        %v1170 = vadd.f32 %v973, %v1169
        %v1171 = vpop.f32.mrb[0].mxu0
        %1172 = vmatprep.mubr.f32.mxu0 0.0
        %v1173 = vand.u32 %v324, 4294901760
        %v1174 = vsub.f32 %v324, %v1173
        %v1175 = vand.u32 %v1174, 4294901760
        %1176 = vmatmul.mubr.f32.gmra.mrb[0].mxu0 %v1175
        %v1177 = vpop.f32.mrb[0].mxu0
        %v1178 = vadd.f32 %v980, %v1177
        %v1179 = vpop.f32.mrb[0].mxu0
        %1180 = vmatprep.mubr.f32.mxu0 0.0
        %v1181 = vand.u32 %v326, 4294901760
        %v1182 = vsub.f32 %v326, %v1181
        %v1183 = vand.u32 %v1182, 4294901760
        %1184 = vmatmul.mubr.f32.gmra.mrb[0].mxu0 %v1183
        %v1185 = vpop.f32.mrb[0].mxu0
        %v1186 = vadd.f32 %v987, %v1185
        %v1187 = vpop.f32.mrb[0].mxu0
        %1188 = vmatprep.mubr.f32.mxu0 0.0
        %v1189 = vand.u32 %v328, 4294901760
        %v1190 = vsub.f32 %v328, %v1189
        %v1191 = vand.u32 %v1190, 4294901760
        %1192 = vmatmul.mubr.f32.gmra.mrb[0].mxu0 %v1191
        %v1193 = vpop.f32.mrb[0].mxu0
        %v1194 = vadd.f32 %v994, %v1193
        %v1195 = vpop.f32.mrb[0].mxu0
        %1196 = vmatprep.mubr.f32.mxu0 0.0
        %v1197 = vand.u32 %v330, 4294901760
        %v1198 = vsub.f32 %v330, %v1197
        %v1199 = vand.u32 %v1198, 4294901760
        %1200 = vmatmul.mubr.f32.gmra.mrb[0].mxu0 %v1199
        %v1201 = vpop.f32.mrb[0].mxu0
        %v1202 = vadd.f32 %v1001, %v1201
        %v1203 = vpop.f32.mrb[0].mxu0
        %1204 = vmatprep.mubr.f32.mxu0 0.0
        %v1205 = vand.u32 %v332, 4294901760
        %v1206 = vsub.f32 %v332, %v1205
        %v1207 = vand.u32 %v1206, 4294901760
        %1208 = vmatmul.mubr.f32.gmra.mrb[0].mxu0 %v1207
        %v1209 = vpop.f32.mrb[0].mxu0
        %v1210 = vadd.f32 %v1008, %v1209
        %v1211 = vpop.f32.mrb[0].mxu0
        %1212 = vmatprep.mubr.f32.mxu0 0.0
        %v1213 = vand.u32 %v334, 4294901760
        %v1214 = vsub.f32 %v334, %v1213
        %v1215 = vand.u32 %v1214, 4294901760
        %1216 = vmatmul.mubr.f32.gmra.mrb[0].mxu0 %v1215
        %v1217 = vpop.f32.mrb[0].mxu0
        %v1218 = vadd.f32 %v1015, %v1217
        %v1219 = vpop.f32.mrb[0].mxu0
        %1220 = vmatprep.mubr.f32.mxu0 0.0
        %v1221 = vand.u32 %v336, 4294901760
        %v1222 = vsub.f32 %v336, %v1221
        %v1223 = vand.u32 %v1222, 4294901760
        %1224 = vmatmul.mubr.f32.gmra.mrb[0].mxu0 %v1223
        %v1225 = vpop.f32.mrb[0].mxu0
        %v1226 = vadd.f32 %v1022, %v1225
        %v1227 = vpop.f32.mrb[0].mxu0
        %1228 = vmatprep.mubr.f32.mxu0 0.0
        %v1229 = vand.u32 %v338, 4294901760
        %v1230 = vsub.f32 %v338, %v1229
        %v1231 = vand.u32 %v1230, 4294901760
        %1232 = vmatmul.mubr.f32.gmra.mrb[0].mxu0 %v1231
        %v1233 = vpop.f32.mrb[0].mxu0
        %v1234 = vadd.f32 %v1029, %v1233
        %v1235 = vpop.f32.mrb[0].mxu0
        %1236 = vmatprep.mubr.f32.mxu0 0.0
        %v1237 = vand.u32 %v340, 4294901760
        %v1238 = vsub.f32 %v340, %v1237
        %v1239 = vand.u32 %v1238, 4294901760
        %1240 = vmatmul.mubr.f32.gmra.mrb[0].mxu0 %v1239
        %v1241 = vpop.f32.mrb[0].mxu0
        %v1242 = vadd.f32 %v1036, %v1241
        %v1243 = vpop.f32.mrb[0].mxu0
        %1244 = vmatprep.mubr.f32.mxu0 0.0
        %v1245 = vand.u32 %v342, 4294901760
        %v1246 = vsub.f32 %v342, %v1245
        %v1247 = vand.u32 %v1246, 4294901760
        %1248 = vmatmul.mubr.f32.gmra.mrb[0].mxu0 %v1247
        %v1249 = vpop.f32.mrb[0].mxu0
        %v1250 = vadd.f32 %v1043, %v1249
        %v1251 = vpop.f32.mrb[0].mxu0
        %1252 = vmatprep.mubr.f32.mxu0 0.0
        %v1253 = vand.u32 %v344, 4294901760
        %v1254 = vsub.f32 %v344, %v1253
        %v1255 = vand.u32 %v1254, 4294901760
        %1256 = vmatmul.mubr.f32.gmra.mrb[0].mxu0 %v1255
        %v1257 = vpop.f32.mrb[0].mxu0
        %v1258 = vadd.f32 %v1050, %v1257
        %v1259 = vpop.f32.mrb[0].mxu0
        %1260 = vmatprep.mubr.f32.mxu0 0.0
        %v1261 = vand.u32 %v346, 4294901760
        %v1262 = vsub.f32 %v346, %v1261
        %v1263 = vand.u32 %v1262, 4294901760
        %1264 = vmatmul.mubr.f32.gmra.mrb[0].mxu0 %v1263
        %v1265 = vpop.f32.mrb[0].mxu0
        %v1266 = vadd.f32 %v1057, %v1265
        %v1267 = vpop.f32.mrb[0].mxu0
        %1268 = vdwg.mxu0
        %1269 = vmatprep.subr.mxu0 0.0
        %v1270 = vand.u32 %v348, 4294901760
        %v1271 = vsub.f32 %v348, %v1270
        %v1272 = vand.u32 %v1271, 4294901760
        %1273 = vmatpush1.msra.mxu0 %v1272
        %1274 = vmatprep.subr.mxu0 0.0
        %v1275 = vand.u32 %v349, 4294901760
        %v1276 = vsub.f32 %v349, %v1275
        %v1277 = vand.u32 %v1276, 4294901760
        %1278 = vmatpush1.msra.mxu0 %v1277
        %1279 = vmatprep.subr.mxu0 0.0
        %v1280 = vand.u32 %v350, 4294901760
        %v1281 = vsub.f32 %v350, %v1280
        %v1282 = vand.u32 %v1281, 4294901760
        %1283 = vmatpush1.msra.mxu0 %v1282
        %1284 = vmatprep.subr.mxu0 0.0
        %v1285 = vand.u32 %v351, 4294901760
        %v1286 = vsub.f32 %v351, %v1285
        %v1287 = vand.u32 %v1286, 4294901760
        %1288 = vmatpush1.msra.mxu0 %v1287
        %1289 = vmatprep.subr.mxu0 0.0
        %v1290 = vand.u32 %v352, 4294901760
        %v1291 = vsub.f32 %v352, %v1290
        %v1292 = vand.u32 %v1291, 4294901760
        %1293 = vmatpush1.msra.mxu0 %v1292
        %1294 = vmatprep.subr.mxu0 0.0
        %v1295 = vand.u32 %v353, 4294901760
        %v1296 = vsub.f32 %v353, %v1295
        %v1297 = vand.u32 %v1296, 4294901760
        %1298 = vmatpush1.msra.mxu0 %v1297
        %1299 = vmatprep.subr.mxu0 0.0
        %v1300 = vand.u32 %v354, 4294901760
        %v1301 = vsub.f32 %v354, %v1300
        %v1302 = vand.u32 %v1301, 4294901760
        %1303 = vmatpush1.msra.mxu0 %v1302
        %1304 = vmatprep.subr.mxu0 0.0
        %v1305 = vand.u32 %v355, 4294901760
        %v1306 = vsub.f32 %v355, %v1305
        %v1307 = vand.u32 %v1306, 4294901760
        %1308 = vmatpush1.msra.mxu0 %v1307
        %1309 = vmatprep.subr.mxu0 0.0
        %v1310 = vand.u32 %v356, 4294901760
        %v1311 = vsub.f32 %v356, %v1310
        %v1312 = vand.u32 %v1311, 4294901760
        %1313 = vmatpush1.msra.mxu0 %v1312
        %1314 = vmatprep.subr.mxu0 0.0
        %v1315 = vand.u32 %v357, 4294901760
        %v1316 = vsub.f32 %v357, %v1315
        %v1317 = vand.u32 %v1316, 4294901760
        %1318 = vmatpush1.msra.mxu0 %v1317
        %1319 = vmatprep.subr.mxu0 0.0
        %v1320 = vand.u32 %v358, 4294901760
        %v1321 = vsub.f32 %v358, %v1320
        %v1322 = vand.u32 %v1321, 4294901760
        %1323 = vmatpush1.msra.mxu0 %v1322
        %1324 = vmatprep.subr.mxu0 0.0
        %v1325 = vand.u32 %v359, 4294901760
        %v1326 = vsub.f32 %v359, %v1325
        %v1327 = vand.u32 %v1326, 4294901760
        %1328 = vmatpush1.msra.mxu0 %v1327
        %1329 = vmatprep.subr.mxu0 0.0
        %v1330 = vand.u32 %v360, 4294901760
        %v1331 = vsub.f32 %v360, %v1330
        %v1332 = vand.u32 %v1331, 4294901760
        %1333 = vmatpush1.msra.mxu0 %v1332
        %1334 = vmatprep.subr.mxu0 0.0
        %v1335 = vand.u32 %v361, 4294901760
        %v1336 = vsub.f32 %v361, %v1335
        %v1337 = vand.u32 %v1336, 4294901760
        %1338 = vmatpush1.msra.mxu0 %v1337
        %1339 = vmatprep.subr.mxu0 0.0
        %v1340 = vand.u32 %v362, 4294901760
        %v1341 = vsub.f32 %v362, %v1340
        %v1342 = vand.u32 %v1341, 4294901760
        %1343 = vmatpush1.msra.mxu0 %v1342
        %1344 = vmatprep.subr.mxu0 0.0
        %v1345 = vand.u32 %v363, 4294901760
        %v1346 = vsub.f32 %v363, %v1345
        %v1347 = vand.u32 %v1346, 4294901760
        %1348 = vmatpush1.msra.mxu0 %v1347
        %1349 = vmatprep.subr.mxu0 0.0
        %1350 = vmatpush1.msra.mxu0 0.0
        %1351 = vmatprep.subr.mxu0 0.0
        %1352 = vmatpush1.msra.mxu0 0.0
        %1353 = vmatprep.subr.mxu0 0.0
        %1354 = vmatpush1.msra.mxu0 0.0
        %1355 = vmatprep.subr.mxu0 0.0
        %1356 = vmatpush1.msra.mxu0 0.0
        %1357 = vmatprep.subr.mxu0 0.0
        %1358 = vmatpush1.msra.mxu0 0.0
        %1359 = vmatprep.subr.mxu0 0.0
        %1360 = vmatpush1.msra.mxu0 0.0
        %1361 = vmatprep.subr.mxu0 0.0
        %1362 = vmatpush1.msra.mxu0 0.0
        %1363 = vmatprep.subr.mxu0 0.0
        %1364 = vmatpush1.msra.mxu0 0.0
        %1365 = vmatprep.subr.mxu0 0.0
        %1366 = vmatpush1.msra.mxu0 0.0
        %1367 = vmatprep.subr.mxu0 0.0
        %1368 = vmatpush1.msra.mxu0 0.0
        %1369 = vmatprep.subr.mxu0 0.0
        %1370 = vmatpush1.msra.mxu0 0.0
        %1371 = vmatprep.subr.mxu0 0.0
        %1372 = vmatpush1.msra.mxu0 0.0
        %1373 = vmatprep.subr.mxu0 0.0
        %1374 = vmatpush1.msra.mxu0 0.0
        %1375 = vmatprep.subr.mxu0 0.0
        %1376 = vmatpush1.msra.mxu0 0.0
        %1377 = vmatprep.subr.mxu0 0.0
        %1378 = vmatpush1.msra.mxu0 0.0
        %1379 = vmatprep.subr.mxu0 0.0
        %1380 = vmatpush1.msra.mxu0 0.0
        %1381 = vmatprep.mubr.f32.mxu0 0.0
        %v1382 = vand.u32 %v316, 4294901760
        %1383 = vmatmul.mubr.f32.gmra.mrb[0].mxu0 %v1382
        %v1384 = vpop.f32.mrb[0].mxu0
        %v1385 = vadd.f32 %v1146, %v1384
        %v1386 = vpop.f32.mrb[0].mxu0
        %1387 = vmatprep.mubr.f32.mxu0 0.0
        %v1388 = vand.u32 %v318, 4294901760
        %1389 = vmatmul.mubr.f32.gmra.mrb[0].mxu0 %v1388
        %v1390 = vpop.f32.mrb[0].mxu0
        %v1391 = vadd.f32 %v1154, %v1390
        %v1392 = vpop.f32.mrb[0].mxu0
        %1393 = vmatprep.mubr.f32.mxu0 0.0
        %v1394 = vand.u32 %v320, 4294901760
        %1395 = vmatmul.mubr.f32.gmra.mrb[0].mxu0 %v1394
        %v1396 = vpop.f32.mrb[0].mxu0
        %v1397 = vadd.f32 %v1162, %v1396
        %v1398 = vpop.f32.mrb[0].mxu0
        %1399 = vmatprep.mubr.f32.mxu0 0.0
        %v1400 = vand.u32 %v322, 4294901760
        %1401 = vmatmul.mubr.f32.gmra.mrb[0].mxu0 %v1400
        %v1402 = vpop.f32.mrb[0].mxu0
        %v1403 = vadd.f32 %v1170, %v1402
        %v1404 = vpop.f32.mrb[0].mxu0
        %1405 = vmatprep.mubr.f32.mxu0 0.0
        %v1406 = vand.u32 %v324, 4294901760
        %1407 = vmatmul.mubr.f32.gmra.mrb[0].mxu0 %v1406
        %v1408 = vpop.f32.mrb[0].mxu0
        %v1409 = vadd.f32 %v1178, %v1408
        %v1410 = vpop.f32.mrb[0].mxu0
        %1411 = vmatprep.mubr.f32.mxu0 0.0
        %v1412 = vand.u32 %v326, 4294901760
        %1413 = vmatmul.mubr.f32.gmra.mrb[0].mxu0 %v1412
        %v1414 = vpop.f32.mrb[0].mxu0
        %v1415 = vadd.f32 %v1186, %v1414
        %v1416 = vpop.f32.mrb[0].mxu0
        %1417 = vmatprep.mubr.f32.mxu0 0.0
        %v1418 = vand.u32 %v328, 4294901760
        %1419 = vmatmul.mubr.f32.gmra.mrb[0].mxu0 %v1418
        %v1420 = vpop.f32.mrb[0].mxu0
        %v1421 = vadd.f32 %v1194, %v1420
        %v1422 = vpop.f32.mrb[0].mxu0
        %1423 = vmatprep.mubr.f32.mxu0 0.0
        %v1424 = vand.u32 %v330, 4294901760
        %1425 = vmatmul.mubr.f32.gmra.mrb[0].mxu0 %v1424
        %v1426 = vpop.f32.mrb[0].mxu0
        %v1427 = vadd.f32 %v1202, %v1426
        %v1428 = vpop.f32.mrb[0].mxu0
        %1429 = vmatprep.mubr.f32.mxu0 0.0
        %v1430 = vand.u32 %v332, 4294901760
        %1431 = vmatmul.mubr.f32.gmra.mrb[0].mxu0 %v1430
        %v1432 = vpop.f32.mrb[0].mxu0
        %v1433 = vadd.f32 %v1210, %v1432
        %v1434 = vpop.f32.mrb[0].mxu0
        %1435 = vmatprep.mubr.f32.mxu0 0.0
        %v1436 = vand.u32 %v334, 4294901760
        %1437 = vmatmul.mubr.f32.gmra.mrb[0].mxu0 %v1436
        %v1438 = vpop.f32.mrb[0].mxu0
        %v1439 = vadd.f32 %v1218, %v1438
        %v1440 = vpop.f32.mrb[0].mxu0
        %1441 = vmatprep.mubr.f32.mxu0 0.0
        %v1442 = vand.u32 %v336, 4294901760
        %1443 = vmatmul.mubr.f32.gmra.mrb[0].mxu0 %v1442
        %v1444 = vpop.f32.mrb[0].mxu0
        %v1445 = vadd.f32 %v1226, %v1444
        %v1446 = vpop.f32.mrb[0].mxu0
        %1447 = vmatprep.mubr.f32.mxu0 0.0
        %v1448 = vand.u32 %v338, 4294901760
        %1449 = vmatmul.mubr.f32.gmra.mrb[0].mxu0 %v1448
        %v1450 = vpop.f32.mrb[0].mxu0
        %v1451 = vadd.f32 %v1234, %v1450
        %v1452 = vpop.f32.mrb[0].mxu0
        %1453 = vmatprep.mubr.f32.mxu0 0.0
        %v1454 = vand.u32 %v340, 4294901760
        %1455 = vmatmul.mubr.f32.gmra.mrb[0].mxu0 %v1454
        %v1456 = vpop.f32.mrb[0].mxu0
        %v1457 = vadd.f32 %v1242, %v1456
        %v1458 = vpop.f32.mrb[0].mxu0
        %1459 = vmatprep.mubr.f32.mxu0 0.0
        %v1460 = vand.u32 %v342, 4294901760
        %1461 = vmatmul.mubr.f32.gmra.mrb[0].mxu0 %v1460
        %v1462 = vpop.f32.mrb[0].mxu0
        %v1463 = vadd.f32 %v1250, %v1462
        %v1464 = vpop.f32.mrb[0].mxu0
        %1465 = vmatprep.mubr.f32.mxu0 0.0
        %v1466 = vand.u32 %v344, 4294901760
        %1467 = vmatmul.mubr.f32.gmra.mrb[0].mxu0 %v1466
        %v1468 = vpop.f32.mrb[0].mxu0
        %v1469 = vadd.f32 %v1258, %v1468
        %v1470 = vpop.f32.mrb[0].mxu0
        %1471 = vmatprep.mubr.f32.mxu0 0.0
        %v1472 = vand.u32 %v346, 4294901760
        %1473 = vmatmul.mubr.f32.gmra.mrb[0].mxu0 %v1472
        %v1474 = vpop.f32.mrb[0].mxu0
        %v1475 = vadd.f32 %v1266, %v1474
        %v1476 = vpop.f32.mrb[0].mxu0
        %1477 = vdwg.mxu0
        %1478 = vmatprep.subr.mxu0 0.0
        %v1479 = vand.u32 %v348, 4294901760
        %1480 = vmatpush1.msra.mxu0 %v1479
        %1481 = vmatprep.subr.mxu0 0.0
        %v1482 = vand.u32 %v349, 4294901760
        %1483 = vmatpush1.msra.mxu0 %v1482
        %1484 = vmatprep.subr.mxu0 0.0
        %v1485 = vand.u32 %v350, 4294901760
        %1486 = vmatpush1.msra.mxu0 %v1485
        %1487 = vmatprep.subr.mxu0 0.0
        %v1488 = vand.u32 %v351, 4294901760
        %1489 = vmatpush1.msra.mxu0 %v1488
        %1490 = vmatprep.subr.mxu0 0.0
        %v1491 = vand.u32 %v352, 4294901760
        %1492 = vmatpush1.msra.mxu0 %v1491
        %1493 = vmatprep.subr.mxu0 0.0
        %v1494 = vand.u32 %v353, 4294901760
        %1495 = vmatpush1.msra.mxu0 %v1494
        %1496 = vmatprep.subr.mxu0 0.0
        %v1497 = vand.u32 %v354, 4294901760
        %1498 = vmatpush1.msra.mxu0 %v1497
        %1499 = vmatprep.subr.mxu0 0.0
        %v1500 = vand.u32 %v355, 4294901760
        %1501 = vmatpush1.msra.mxu0 %v1500
        %1502 = vmatprep.subr.mxu0 0.0
        %v1503 = vand.u32 %v356, 4294901760
        %1504 = vmatpush1.msra.mxu0 %v1503
        %1505 = vmatprep.subr.mxu0 0.0
        %v1506 = vand.u32 %v357, 4294901760
        %1507 = vmatpush1.msra.mxu0 %v1506
        %1508 = vmatprep.subr.mxu0 0.0
        %v1509 = vand.u32 %v358, 4294901760
        %1510 = vmatpush1.msra.mxu0 %v1509
        %1511 = vmatprep.subr.mxu0 0.0
        %v1512 = vand.u32 %v359, 4294901760
        %1513 = vmatpush1.msra.mxu0 %v1512
        %1514 = vmatprep.subr.mxu0 0.0
        %v1515 = vand.u32 %v360, 4294901760
        %1516 = vmatpush1.msra.mxu0 %v1515
        %1517 = vmatprep.subr.mxu0 0.0
        %v1518 = vand.u32 %v361, 4294901760
        %1519 = vmatpush1.msra.mxu0 %v1518
        %1520 = vmatprep.subr.mxu0 0.0
        %v1521 = vand.u32 %v362, 4294901760
        %1522 = vmatpush1.msra.mxu0 %v1521
        %1523 = vmatprep.subr.mxu0 0.0
        %v1524 = vand.u32 %v363, 4294901760
        %1525 = vmatpush1.msra.mxu0 %v1524
        %1526 = vmatprep.subr.mxu0 0.0
        %1527 = vmatpush1.msra.mxu0 0.0
        %1528 = vmatprep.subr.mxu0 0.0
        %1529 = vmatpush1.msra.mxu0 0.0
        %1530 = vmatprep.subr.mxu0 0.0
        %1531 = vmatpush1.msra.mxu0 0.0
        %1532 = vmatprep.subr.mxu0 0.0
        %1533 = vmatpush1.msra.mxu0 0.0
        %1534 = vmatprep.subr.mxu0 0.0
        %1535 = vmatpush1.msra.mxu0 0.0
        %1536 = vmatprep.subr.mxu0 0.0
        %1537 = vmatpush1.msra.mxu0 0.0
        %1538 = vmatprep.subr.mxu0 0.0
        %1539 = vmatpush1.msra.mxu0 0.0
        %1540 = vmatprep.subr.mxu0 0.0
        %1541 = vmatpush1.msra.mxu0 0.0
        %1542 = vmatprep.subr.mxu0 0.0
        %1543 = vmatpush1.msra.mxu0 0.0
        %1544 = vmatprep.subr.mxu0 0.0
        %1545 = vmatpush1.msra.mxu0 0.0
        %1546 = vmatprep.subr.mxu0 0.0
        %1547 = vmatpush1.msra.mxu0 0.0
        %1548 = vmatprep.subr.mxu0 0.0
        %1549 = vmatpush1.msra.mxu0 0.0
        %1550 = vmatprep.subr.mxu0 0.0
        %1551 = vmatpush1.msra.mxu0 0.0
        %1552 = vmatprep.subr.mxu0 0.0
        %1553 = vmatpush1.msra.mxu0 0.0
        %1554 = vmatprep.subr.mxu0 0.0
        %1555 = vmatpush1.msra.mxu0 0.0
        %1556 = vmatprep.subr.mxu0 0.0
        %1557 = vmatpush1.msra.mxu0 0.0
        %1558 = vmatprep.mubr.f32.mxu0 0.0
        %v1559 = vand.u32 %v316, 4294901760
        %1560 = vmatmul.mubr.f32.gmra.mrb[0].mxu0 %v1559
        %v1561 = vpop.f32.mrb[0].mxu0
        %v1562 = vadd.f32 %v1385, %v1561
        %v1563 = vpop.f32.mrb[0].mxu0
        %1564 = vmatprep.mubr.f32.mxu0 0.0
        %v1565 = vand.u32 %v318, 4294901760
        %1566 = vmatmul.mubr.f32.gmra.mrb[0].mxu0 %v1565
        %v1567 = vpop.f32.mrb[0].mxu0
        %v1568 = vadd.f32 %v1391, %v1567
        %v1569 = vpop.f32.mrb[0].mxu0
        %1570 = vmatprep.mubr.f32.mxu0 0.0
        %v1571 = vand.u32 %v320, 4294901760
        %1572 = vmatmul.mubr.f32.gmra.mrb[0].mxu0 %v1571
        %v1573 = vpop.f32.mrb[0].mxu0
        %v1574 = vadd.f32 %v1397, %v1573
        %v1575 = vpop.f32.mrb[0].mxu0
        %1576 = vmatprep.mubr.f32.mxu0 0.0
        %v1577 = vand.u32 %v322, 4294901760
        %1578 = vmatmul.mubr.f32.gmra.mrb[0].mxu0 %v1577
        %v1579 = vpop.f32.mrb[0].mxu0
        %v1580 = vadd.f32 %v1403, %v1579
        %v1581 = vpop.f32.mrb[0].mxu0
        %1582 = vmatprep.mubr.f32.mxu0 0.0
        %v1583 = vand.u32 %v324, 4294901760
        %1584 = vmatmul.mubr.f32.gmra.mrb[0].mxu0 %v1583
        %v1585 = vpop.f32.mrb[0].mxu0
        %v1586 = vadd.f32 %v1409, %v1585
        %v1587 = vpop.f32.mrb[0].mxu0
        %1588 = vmatprep.mubr.f32.mxu0 0.0
        %v1589 = vand.u32 %v326, 4294901760
        %1590 = vmatmul.mubr.f32.gmra.mrb[0].mxu0 %v1589
        %v1591 = vpop.f32.mrb[0].mxu0
        %v1592 = vadd.f32 %v1415, %v1591
        %v1593 = vpop.f32.mrb[0].mxu0
        %1594 = vmatprep.mubr.f32.mxu0 0.0
        %v1595 = vand.u32 %v328, 4294901760
        %1596 = vmatmul.mubr.f32.gmra.mrb[0].mxu0 %v1595
        %v1597 = vpop.f32.mrb[0].mxu0
        %v1598 = vadd.f32 %v1421, %v1597
        %v1599 = vpop.f32.mrb[0].mxu0
        %1600 = vmatprep.mubr.f32.mxu0 0.0
        %v1601 = vand.u32 %v330, 4294901760
        %1602 = vmatmul.mubr.f32.gmra.mrb[0].mxu0 %v1601
        %v1603 = vpop.f32.mrb[0].mxu0
        %v1604 = vadd.f32 %v1427, %v1603
        %v1605 = vpop.f32.mrb[0].mxu0
        %1606 = vmatprep.mubr.f32.mxu0 0.0
        %v1607 = vand.u32 %v332, 4294901760
        %1608 = vmatmul.mubr.f32.gmra.mrb[0].mxu0 %v1607
        %v1609 = vpop.f32.mrb[0].mxu0
        %v1610 = vadd.f32 %v1433, %v1609
        %v1611 = vpop.f32.mrb[0].mxu0
        %1612 = vmatprep.mubr.f32.mxu0 0.0
        %v1613 = vand.u32 %v334, 4294901760
        %1614 = vmatmul.mubr.f32.gmra.mrb[0].mxu0 %v1613
        %v1615 = vpop.f32.mrb[0].mxu0
        %v1616 = vadd.f32 %v1439, %v1615
        %v1617 = vpop.f32.mrb[0].mxu0
        %1618 = vmatprep.mubr.f32.mxu0 0.0
        %v1619 = vand.u32 %v336, 4294901760
        %1620 = vmatmul.mubr.f32.gmra.mrb[0].mxu0 %v1619
        %v1621 = vpop.f32.mrb[0].mxu0
        %v1622 = vadd.f32 %v1445, %v1621
        %v1623 = vpop.f32.mrb[0].mxu0
        %1624 = vmatprep.mubr.f32.mxu0 0.0
        %v1625 = vand.u32 %v338, 4294901760
        %1626 = vmatmul.mubr.f32.gmra.mrb[0].mxu0 %v1625
        %v1627 = vpop.f32.mrb[0].mxu0
        %v1628 = vadd.f32 %v1451, %v1627
        %v1629 = vpop.f32.mrb[0].mxu0
        %1630 = vmatprep.mubr.f32.mxu0 0.0
        %v1631 = vand.u32 %v340, 4294901760
        %1632 = vmatmul.mubr.f32.gmra.mrb[0].mxu0 %v1631
        %v1633 = vpop.f32.mrb[0].mxu0
        %v1634 = vadd.f32 %v1457, %v1633
        %v1635 = vpop.f32.mrb[0].mxu0
        %1636 = vmatprep.mubr.f32.mxu0 0.0
        %v1637 = vand.u32 %v342, 4294901760
        %1638 = vmatmul.mubr.f32.gmra.mrb[0].mxu0 %v1637
        %v1639 = vpop.f32.mrb[0].mxu0
        %v1640 = vadd.f32 %v1463, %v1639
        %v1641 = vpop.f32.mrb[0].mxu0
        %1642 = vmatprep.mubr.f32.mxu0 0.0
        %v1643 = vand.u32 %v344, 4294901760
        %1644 = vmatmul.mubr.f32.gmra.mrb[0].mxu0 %v1643
        %v1645 = vpop.f32.mrb[0].mxu0
        %v1646 = vadd.f32 %v1469, %v1645
        %v1647 = vpop.f32.mrb[0].mxu0
        %1648 = vmatprep.mubr.f32.mxu0 0.0
        %v1649 = vand.u32 %v346, 4294901760
        %1650 = vmatmul.mubr.f32.gmra.mrb[0].mxu0 %v1649
        %v1651 = vpop.f32.mrb[0].mxu0
        %v1652 = vadd.f32 %v1475, %v1651
        %v1653 = vpop.f32.mrb[0].mxu0
        %1654 = vdwg.mxu0
        %v1655 = vmax.f32 %v1562, 0.0
        %v1656 = vmax.f32 %v1568, 0.0
        %v1657 = vmax.f32 %v1574, 0.0
        %v1658 = vmax.f32 %v1580, 0.0
        %v1659 = vmax.f32 %v1586, 0.0
        %v1660 = vmax.f32 %v1592, 0.0
        %v1661 = vmax.f32 %v1598, 0.0
        %v1662 = vmax.f32 %v1604, 0.0
        %v1663 = vmax.f32 %v1610, 0.0
        %v1664 = vmax.f32 %v1616, 0.0
        %v1665 = vmax.f32 %v1622, 0.0
        %v1666 = vmax.f32 %v1628, 0.0
        %v1667 = vmax.f32 %v1634, 0.0
        %v1668 = vmax.f32 %v1640, 0.0
        %v1669 = vmax.f32 %v1646, 0.0
        %v1670 = vmax.f32 %v1652, 0.0
        %v1671 = vld [vmem:[#allocation7] sm:$0xff]
        %v1672 = vld [vmem:[#allocation7 + $0x8] sm:$0xff]
        %v1673 = vld [vmem:[#allocation7 + $0x10] sm:$0xff]
        %v1674 = vld [vmem:[#allocation7 + $0x18] sm:$0xff]
        %v1675 = vld [vmem:[#allocation7 + $0x20] sm:$0xff]
        %v1676 = vld [vmem:[#allocation7 + $0x28] sm:$0xff]
        %v1677 = vld [vmem:[#allocation7 + $0x30] sm:$0xff]
        %v1678 = vld [vmem:[#allocation7 + $0x38] sm:$0xff]
        %v1679 = vld [vmem:[#allocation7 + $0x40] sm:$0xff]
        %v1680 = vld [vmem:[#allocation7 + $0x48] sm:$0xff]
        %v1681 = vld [vmem:[#allocation7 + $0x50] sm:$0xff]
        %v1682 = vld [vmem:[#allocation7 + $0x58] sm:$0xff]
        %v1683 = vld [vmem:[#allocation7 + $0x60] sm:$0xff]
        %v1684 = vld [vmem:[#allocation7 + $0x68] sm:$0xff]
        %v1685 = vld [vmem:[#allocation7 + $0x70] sm:$0xff]
        %v1686 = vld [vmem:[#allocation7 + $0x78] sm:$0xff]
        %v1687 = vld [vmem:[#allocation7 + $0x80] sm:$0xff]
        %v1688 = vld [vmem:[#allocation7 + $0x88] sm:$0xff]
        %v1689 = vld [vmem:[#allocation7 + $0x90] sm:$0xff]
        %v1690 = vld [vmem:[#allocation7 + $0x98] sm:$0xff]
        %v1691 = vld [vmem:[#allocation7 + $0xa0] sm:$0xff]
        %v1692 = vld [vmem:[#allocation7 + $0xa8] sm:$0xff]
        %v1693 = vld [vmem:[#allocation7 + $0xb0] sm:$0xff]
        %v1694 = vld [vmem:[#allocation7 + $0xb8] sm:$0xff]
        %v1695 = vld [vmem:[#allocation7 + $0xc0] sm:$0xff]
        %v1696 = vld [vmem:[#allocation7 + $0xc8] sm:$0xff]
        %v1697 = vld [vmem:[#allocation7 + $0xd0] sm:$0xff]
        %v1698 = vld [vmem:[#allocation7 + $0xd8] sm:$0xff]
        %v1699 = vld [vmem:[#allocation7 + $0xe0] sm:$0xff]
        %v1700 = vld [vmem:[#allocation7 + $0xe8] sm:$0xff]
        %v1701 = vld [vmem:[#allocation7 + $0xf0] sm:$0xff]
        %v1702 = vld [vmem:[#allocation7 + $0xf8] sm:$0xff]
        %v1703 = vld [vmem:[%s4] ss:$4 sm:$0x3]
        %v1705 = vlaneseq
        %v1706 = vshrl.u32 %v1705, 7
        %v1707 = vsub.s32 0, %v1706
        %v1708 = vrot.slane %v1703, %v1707
        %v1709 = vlaneseq
        %v1710 = vshrl.u32 %v1709, 7
        %v1711 = vsub.s32 1, %v1710
        %v1712 = vrot.slane %v1703, %v1711
        %v1715 = vand.u32 %v1672, 4294901760
        %1716 = vmatprep.subr.mxu0 %v1715
        %v1717 = vand.u32 %v1671, 4294901760
        %1718 = vmatpush1.msra.mxu0 %v1717
        %v1719 = vand.u32 %v1674, 4294901760
        %1720 = vmatprep.subr.mxu0 %v1719
        %v1721 = vand.u32 %v1673, 4294901760
        %1722 = vmatpush1.msra.mxu0 %v1721
        %v1723 = vand.u32 %v1676, 4294901760
        %1724 = vmatprep.subr.mxu0 %v1723
        %v1725 = vand.u32 %v1675, 4294901760
        %1726 = vmatpush1.msra.mxu0 %v1725
        %v1727 = vand.u32 %v1678, 4294901760
        %1728 = vmatprep.subr.mxu0 %v1727
        %v1729 = vand.u32 %v1677, 4294901760
        %1730 = vmatpush1.msra.mxu0 %v1729
        %v1731 = vand.u32 %v1680, 4294901760
        %1732 = vmatprep.subr.mxu0 %v1731
        %v1733 = vand.u32 %v1679, 4294901760
        %1734 = vmatpush1.msra.mxu0 %v1733
        %v1735 = vand.u32 %v1682, 4294901760
        %1736 = vmatprep.subr.mxu0 %v1735
        %v1737 = vand.u32 %v1681, 4294901760
        %1738 = vmatpush1.msra.mxu0 %v1737
        %v1739 = vand.u32 %v1684, 4294901760
        %1740 = vmatprep.subr.mxu0 %v1739
        %v1741 = vand.u32 %v1683, 4294901760
        %1742 = vmatpush1.msra.mxu0 %v1741
        %v1743 = vand.u32 %v1686, 4294901760
        %1744 = vmatprep.subr.mxu0 %v1743
        %v1745 = vand.u32 %v1685, 4294901760
        %1746 = vmatpush1.msra.mxu0 %v1745
        %v1747 = vand.u32 %v1688, 4294901760
        %1748 = vmatprep.subr.mxu0 %v1747
        %v1749 = vand.u32 %v1687, 4294901760
        %1750 = vmatpush1.msra.mxu0 %v1749
        %v1751 = vand.u32 %v1690, 4294901760
        %1752 = vmatprep.subr.mxu0 %v1751
        %v1753 = vand.u32 %v1689, 4294901760
        %1754 = vmatpush1.msra.mxu0 %v1753
        %v1755 = vand.u32 %v1692, 4294901760
        %1756 = vmatprep.subr.mxu0 %v1755
        %v1757 = vand.u32 %v1691, 4294901760
        %1758 = vmatpush1.msra.mxu0 %v1757
        %v1759 = vand.u32 %v1694, 4294901760
        %1760 = vmatprep.subr.mxu0 %v1759
        %v1761 = vand.u32 %v1693, 4294901760
        %1762 = vmatpush1.msra.mxu0 %v1761
        %v1763 = vand.u32 %v1696, 4294901760
        %1764 = vmatprep.subr.mxu0 %v1763
        %v1765 = vand.u32 %v1695, 4294901760
        %1766 = vmatpush1.msra.mxu0 %v1765
        %v1767 = vand.u32 %v1698, 4294901760
        %1768 = vmatprep.subr.mxu0 %v1767
        %v1769 = vand.u32 %v1697, 4294901760
        %1770 = vmatpush1.msra.mxu0 %v1769
        %v1771 = vand.u32 %v1700, 4294901760
        %1772 = vmatprep.subr.mxu0 %v1771
        %v1773 = vand.u32 %v1699, 4294901760
        %1774 = vmatpush1.msra.mxu0 %v1773
        %v1775 = vand.u32 %v1702, 4294901760
        %1776 = vmatprep.subr.mxu0 %v1775
        %v1777 = vand.u32 %v1701, 4294901760
        %1778 = vmatpush1.msra.mxu0 %v1777
        %1779 = vmatprep.subr.mxu0 0.0
        %1780 = vmatpush1.msra.mxu0 0.0
        %1781 = vmatprep.subr.mxu0 0.0
        %1782 = vmatpush1.msra.mxu0 0.0
        %1783 = vmatprep.subr.mxu0 0.0
        %1784 = vmatpush1.msra.mxu0 0.0
        %1785 = vmatprep.subr.mxu0 0.0
        %1786 = vmatpush1.msra.mxu0 0.0
        %1787 = vmatprep.subr.mxu0 0.0
        %1788 = vmatpush1.msra.mxu0 0.0
        %1789 = vmatprep.subr.mxu0 0.0
        %1790 = vmatpush1.msra.mxu0 0.0
        %1791 = vmatprep.subr.mxu0 0.0
        %1792 = vmatpush1.msra.mxu0 0.0
        %1793 = vmatprep.subr.mxu0 0.0
        %1794 = vmatpush1.msra.mxu0 0.0
        %1795 = vmatprep.subr.mxu0 0.0
        %1796 = vmatpush1.msra.mxu0 0.0
        %1797 = vmatprep.subr.mxu0 0.0
        %1798 = vmatpush1.msra.mxu0 0.0
        %1799 = vmatprep.subr.mxu0 0.0
        %1800 = vmatpush1.msra.mxu0 0.0
        %1801 = vmatprep.subr.mxu0 0.0
        %1802 = vmatpush1.msra.mxu0 0.0
        %1803 = vmatprep.subr.mxu0 0.0
        %1804 = vmatpush1.msra.mxu0 0.0
        %1805 = vmatprep.subr.mxu0 0.0
        %1806 = vmatpush1.msra.mxu0 0.0
        %1807 = vmatprep.subr.mxu0 0.0
        %1808 = vmatpush1.msra.mxu0 0.0
        %1809 = vmatprep.subr.mxu0 0.0
        %1810 = vmatpush1.msra.mxu0 0.0
        %1811 = vmatprep.mubr.f32.mxu0 0.0
        %v1812 = vand.u32 %v1655, 4294901760
        %v1813 = vsub.f32 %v1655, %v1812
        %v1814 = vand.u32 %v1813, 4294901760
        %v1815 = vsub.f32 %v1813, %v1814
        %v1816 = vand.u32 %v1815, 4294901760
        %1817 = vmatmul.mubr.f32.gmra.mrb[0].mxu0 %v1816
        %v1818 = vpop.f32.mrb[0].mxu0
        %v1819 = vadd.f32 %v1708, %v1818
        %v1820 = vpop.f32.mrb[0].mxu0
        %v1821 = vadd.f32 %v1712, %v1820
        %1822 = vmatprep.mubr.f32.mxu0 0.0
        %v1823 = vand.u32 %v1656, 4294901760
        %v1824 = vsub.f32 %v1656, %v1823
        %v1825 = vand.u32 %v1824, 4294901760
        %v1826 = vsub.f32 %v1824, %v1825
        %v1827 = vand.u32 %v1826, 4294901760
        %1828 = vmatmul.mubr.f32.gmra.mrb[0].mxu0 %v1827
        %v1829 = vpop.f32.mrb[0].mxu0
        %v1830 = vadd.f32 %v1708, %v1829
        %v1831 = vpop.f32.mrb[0].mxu0
        %v1832 = vadd.f32 %v1712, %v1831
        %1833 = vmatprep.mubr.f32.mxu0 0.0
        %v1834 = vand.u32 %v1657, 4294901760
        %v1835 = vsub.f32 %v1657, %v1834
        %v1836 = vand.u32 %v1835, 4294901760
        %v1837 = vsub.f32 %v1835, %v1836
        %v1838 = vand.u32 %v1837, 4294901760
        %1839 = vmatmul.mubr.f32.gmra.mrb[0].mxu0 %v1838
        %v1840 = vpop.f32.mrb[0].mxu0
        %v1841 = vadd.f32 %v1708, %v1840
        %v1842 = vpop.f32.mrb[0].mxu0
        %v1843 = vadd.f32 %v1712, %v1842
        %1844 = vmatprep.mubr.f32.mxu0 0.0
        %v1845 = vand.u32 %v1658, 4294901760
        %v1846 = vsub.f32 %v1658, %v1845
        %v1847 = vand.u32 %v1846, 4294901760
        %v1848 = vsub.f32 %v1846, %v1847
        %v1849 = vand.u32 %v1848, 4294901760
        %1850 = vmatmul.mubr.f32.gmra.mrb[0].mxu0 %v1849
        %v1851 = vpop.f32.mrb[0].mxu0
        %v1852 = vadd.f32 %v1708, %v1851
        %v1853 = vpop.f32.mrb[0].mxu0
        %v1854 = vadd.f32 %v1712, %v1853
        %1855 = vmatprep.mubr.f32.mxu0 0.0
        %v1856 = vand.u32 %v1659, 4294901760
        %v1857 = vsub.f32 %v1659, %v1856
        %v1858 = vand.u32 %v1857, 4294901760
        %v1859 = vsub.f32 %v1857, %v1858
        %v1860 = vand.u32 %v1859, 4294901760
        %1861 = vmatmul.mubr.f32.gmra.mrb[0].mxu0 %v1860
        %v1862 = vpop.f32.mrb[0].mxu0
        %v1863 = vadd.f32 %v1708, %v1862
        %v1864 = vpop.f32.mrb[0].mxu0
        %v1865 = vadd.f32 %v1712, %v1864
        %1866 = vmatprep.mubr.f32.mxu0 0.0
        %v1867 = vand.u32 %v1660, 4294901760
        %v1868 = vsub.f32 %v1660, %v1867
        %v1869 = vand.u32 %v1868, 4294901760
        %v1870 = vsub.f32 %v1868, %v1869
        %v1871 = vand.u32 %v1870, 4294901760
        %1872 = vmatmul.mubr.f32.gmra.mrb[0].mxu0 %v1871
        %v1873 = vpop.f32.mrb[0].mxu0
        %v1874 = vadd.f32 %v1708, %v1873
        %v1875 = vpop.f32.mrb[0].mxu0
        %v1876 = vadd.f32 %v1712, %v1875
        %1877 = vmatprep.mubr.f32.mxu0 0.0
        %v1878 = vand.u32 %v1661, 4294901760
        %v1879 = vsub.f32 %v1661, %v1878
        %v1880 = vand.u32 %v1879, 4294901760
        %v1881 = vsub.f32 %v1879, %v1880
        %v1882 = vand.u32 %v1881, 4294901760
        %1883 = vmatmul.mubr.f32.gmra.mrb[0].mxu0 %v1882
        %v1884 = vpop.f32.mrb[0].mxu0
        %v1885 = vadd.f32 %v1708, %v1884
        %v1886 = vpop.f32.mrb[0].mxu0
        %v1887 = vadd.f32 %v1712, %v1886
        %1888 = vmatprep.mubr.f32.mxu0 0.0
        %v1889 = vand.u32 %v1662, 4294901760
        %v1890 = vsub.f32 %v1662, %v1889
        %v1891 = vand.u32 %v1890, 4294901760
        %v1892 = vsub.f32 %v1890, %v1891
        %v1893 = vand.u32 %v1892, 4294901760
        %1894 = vmatmul.mubr.f32.gmra.mrb[0].mxu0 %v1893
        %v1895 = vpop.f32.mrb[0].mxu0
        %v1896 = vadd.f32 %v1708, %v1895
        %v1897 = vpop.f32.mrb[0].mxu0
        %v1898 = vadd.f32 %v1712, %v1897
        %1899 = vmatprep.mubr.f32.mxu0 0.0
        %v1900 = vand.u32 %v1663, 4294901760
        %v1901 = vsub.f32 %v1663, %v1900
        %v1902 = vand.u32 %v1901, 4294901760
        %v1903 = vsub.f32 %v1901, %v1902
        %v1904 = vand.u32 %v1903, 4294901760
        %1905 = vmatmul.mubr.f32.gmra.mrb[0].mxu0 %v1904
        %v1906 = vpop.f32.mrb[0].mxu0
        %v1907 = vadd.f32 %v1708, %v1906
        %v1908 = vpop.f32.mrb[0].mxu0
        %v1909 = vadd.f32 %v1712, %v1908
        %1910 = vmatprep.mubr.f32.mxu0 0.0
        %v1911 = vand.u32 %v1664, 4294901760
        %v1912 = vsub.f32 %v1664, %v1911
        %v1913 = vand.u32 %v1912, 4294901760
        %v1914 = vsub.f32 %v1912, %v1913
        %v1915 = vand.u32 %v1914, 4294901760
        %1916 = vmatmul.mubr.f32.gmra.mrb[0].mxu0 %v1915
        %v1917 = vpop.f32.mrb[0].mxu0
        %v1918 = vadd.f32 %v1708, %v1917
        %v1919 = vpop.f32.mrb[0].mxu0
        %v1920 = vadd.f32 %v1712, %v1919
        %1921 = vmatprep.mubr.f32.mxu0 0.0
        %v1922 = vand.u32 %v1665, 4294901760
        %v1923 = vsub.f32 %v1665, %v1922
        %v1924 = vand.u32 %v1923, 4294901760
        %v1925 = vsub.f32 %v1923, %v1924
        %v1926 = vand.u32 %v1925, 4294901760
        %1927 = vmatmul.mubr.f32.gmra.mrb[0].mxu0 %v1926
        %v1928 = vpop.f32.mrb[0].mxu0
        %v1929 = vadd.f32 %v1708, %v1928
        %v1930 = vpop.f32.mrb[0].mxu0
        %v1931 = vadd.f32 %v1712, %v1930
        %1932 = vmatprep.mubr.f32.mxu0 0.0
        %v1933 = vand.u32 %v1666, 4294901760
        %v1934 = vsub.f32 %v1666, %v1933
        %v1935 = vand.u32 %v1934, 4294901760
        %v1936 = vsub.f32 %v1934, %v1935
        %v1937 = vand.u32 %v1936, 4294901760
        %1938 = vmatmul.mubr.f32.gmra.mrb[0].mxu0 %v1937
        %v1939 = vpop.f32.mrb[0].mxu0
        %v1940 = vadd.f32 %v1708, %v1939
        %v1941 = vpop.f32.mrb[0].mxu0
        %v1942 = vadd.f32 %v1712, %v1941
        %1943 = vmatprep.mubr.f32.mxu0 0.0
        %v1944 = vand.u32 %v1667, 4294901760
        %v1945 = vsub.f32 %v1667, %v1944
        %v1946 = vand.u32 %v1945, 4294901760
        %v1947 = vsub.f32 %v1945, %v1946
        %v1948 = vand.u32 %v1947, 4294901760
        %1949 = vmatmul.mubr.f32.gmra.mrb[0].mxu0 %v1948
        %v1950 = vpop.f32.mrb[0].mxu0
        %v1951 = vadd.f32 %v1708, %v1950
        %v1952 = vpop.f32.mrb[0].mxu0
        %v1953 = vadd.f32 %v1712, %v1952
        %1954 = vmatprep.mubr.f32.mxu0 0.0
        %v1955 = vand.u32 %v1668, 4294901760
        %v1956 = vsub.f32 %v1668, %v1955
        %v1957 = vand.u32 %v1956, 4294901760
        %v1958 = vsub.f32 %v1956, %v1957
        %v1959 = vand.u32 %v1958, 4294901760
        %1960 = vmatmul.mubr.f32.gmra.mrb[0].mxu0 %v1959
        %v1961 = vpop.f32.mrb[0].mxu0
        %v1962 = vadd.f32 %v1708, %v1961
        %v1963 = vpop.f32.mrb[0].mxu0
        %v1964 = vadd.f32 %v1712, %v1963
        %1965 = vmatprep.mubr.f32.mxu0 0.0
        %v1966 = vand.u32 %v1669, 4294901760
        %v1967 = vsub.f32 %v1669, %v1966
        %v1968 = vand.u32 %v1967, 4294901760
        %v1969 = vsub.f32 %v1967, %v1968
        %v1970 = vand.u32 %v1969, 4294901760
        %1971 = vmatmul.mubr.f32.gmra.mrb[0].mxu0 %v1970
        %v1972 = vpop.f32.mrb[0].mxu0
        %v1973 = vadd.f32 %v1708, %v1972
        %v1974 = vpop.f32.mrb[0].mxu0
        %v1975 = vadd.f32 %v1712, %v1974
        %1976 = vmatprep.mubr.f32.mxu0 0.0
        %v1977 = vand.u32 %v1670, 4294901760
        %v1978 = vsub.f32 %v1670, %v1977
        %v1979 = vand.u32 %v1978, 4294901760
        %v1980 = vsub.f32 %v1978, %v1979
        %v1981 = vand.u32 %v1980, 4294901760
        %1982 = vmatmul.mubr.f32.gmra.mrb[0].mxu0 %v1981
        %v1983 = vpop.f32.mrb[0].mxu0
        %v1984 = vadd.f32 %v1708, %v1983
        %v1985 = vpop.f32.mrb[0].mxu0
        %v1986 = vadd.f32 %v1712, %v1985
        %1987 = vdwg.mxu0
        %v1988 = vand.u32 %v1672, 4294901760
        %v1989 = vsub.f32 %v1672, %v1988
        %v1990 = vand.u32 %v1989, 4294901760
        %v1991 = vsub.f32 %v1989, %v1990
        %v1992 = vand.u32 %v1991, 4294901760
        %1993 = vmatprep.subr.mxu0 %v1992
        %v1994 = vand.u32 %v1671, 4294901760
        %v1995 = vsub.f32 %v1671, %v1994
        %v1996 = vand.u32 %v1995, 4294901760
        %v1997 = vsub.f32 %v1995, %v1996
        %v1998 = vand.u32 %v1997, 4294901760
        %1999 = vmatpush1.msra.mxu0 %v1998
        %v2000 = vand.u32 %v1674, 4294901760
        %v2001 = vsub.f32 %v1674, %v2000
        %v2002 = vand.u32 %v2001, 4294901760
        %v2003 = vsub.f32 %v2001, %v2002
        %v2004 = vand.u32 %v2003, 4294901760
        %2005 = vmatprep.subr.mxu0 %v2004
        %v2006 = vand.u32 %v1673, 4294901760
        %v2007 = vsub.f32 %v1673, %v2006
        %v2008 = vand.u32 %v2007, 4294901760
        %v2009 = vsub.f32 %v2007, %v2008
        %v2010 = vand.u32 %v2009, 4294901760
        %2011 = vmatpush1.msra.mxu0 %v2010
        %v2012 = vand.u32 %v1676, 4294901760
        %v2013 = vsub.f32 %v1676, %v2012
        %v2014 = vand.u32 %v2013, 4294901760
        %v2015 = vsub.f32 %v2013, %v2014
        %v2016 = vand.u32 %v2015, 4294901760
        %2017 = vmatprep.subr.mxu0 %v2016
        %v2018 = vand.u32 %v1675, 4294901760
        %v2019 = vsub.f32 %v1675, %v2018
        %v2020 = vand.u32 %v2019, 4294901760
        %v2021 = vsub.f32 %v2019, %v2020
        %v2022 = vand.u32 %v2021, 4294901760
        %2023 = vmatpush1.msra.mxu0 %v2022
        %v2024 = vand.u32 %v1678, 4294901760
        %v2025 = vsub.f32 %v1678, %v2024
        %v2026 = vand.u32 %v2025, 4294901760
        %v2027 = vsub.f32 %v2025, %v2026
        %v2028 = vand.u32 %v2027, 4294901760
        %2029 = vmatprep.subr.mxu0 %v2028
        %v2030 = vand.u32 %v1677, 4294901760
        %v2031 = vsub.f32 %v1677, %v2030
        %v2032 = vand.u32 %v2031, 4294901760
        %v2033 = vsub.f32 %v2031, %v2032
        %v2034 = vand.u32 %v2033, 4294901760
        %2035 = vmatpush1.msra.mxu0 %v2034
        %v2036 = vand.u32 %v1680, 4294901760
        %v2037 = vsub.f32 %v1680, %v2036
        %v2038 = vand.u32 %v2037, 4294901760
        %v2039 = vsub.f32 %v2037, %v2038
        %v2040 = vand.u32 %v2039, 4294901760
        %2041 = vmatprep.subr.mxu0 %v2040
        %v2042 = vand.u32 %v1679, 4294901760
        %v2043 = vsub.f32 %v1679, %v2042
        %v2044 = vand.u32 %v2043, 4294901760
        %v2045 = vsub.f32 %v2043, %v2044
        %v2046 = vand.u32 %v2045, 4294901760
        %2047 = vmatpush1.msra.mxu0 %v2046
        %v2048 = vand.u32 %v1682, 4294901760
        %v2049 = vsub.f32 %v1682, %v2048
        %v2050 = vand.u32 %v2049, 4294901760
        %v2051 = vsub.f32 %v2049, %v2050
        %v2052 = vand.u32 %v2051, 4294901760
        %2053 = vmatprep.subr.mxu0 %v2052
        %v2054 = vand.u32 %v1681, 4294901760
        %v2055 = vsub.f32 %v1681, %v2054
        %v2056 = vand.u32 %v2055, 4294901760
        %v2057 = vsub.f32 %v2055, %v2056
        %v2058 = vand.u32 %v2057, 4294901760
        %2059 = vmatpush1.msra.mxu0 %v2058
        %v2060 = vand.u32 %v1684, 4294901760
        %v2061 = vsub.f32 %v1684, %v2060
        %v2062 = vand.u32 %v2061, 4294901760
        %v2063 = vsub.f32 %v2061, %v2062
        %v2064 = vand.u32 %v2063, 4294901760
        %2065 = vmatprep.subr.mxu0 %v2064
        %v2066 = vand.u32 %v1683, 4294901760
        %v2067 = vsub.f32 %v1683, %v2066
        %v2068 = vand.u32 %v2067, 4294901760
        %v2069 = vsub.f32 %v2067, %v2068
        %v2070 = vand.u32 %v2069, 4294901760
        %2071 = vmatpush1.msra.mxu0 %v2070
        %v2072 = vand.u32 %v1686, 4294901760
        %v2073 = vsub.f32 %v1686, %v2072
        %v2074 = vand.u32 %v2073, 4294901760
        %v2075 = vsub.f32 %v2073, %v2074
        %v2076 = vand.u32 %v2075, 4294901760
        %2077 = vmatprep.subr.mxu0 %v2076
        %v2078 = vand.u32 %v1685, 4294901760
        %v2079 = vsub.f32 %v1685, %v2078
        %v2080 = vand.u32 %v2079, 4294901760
        %v2081 = vsub.f32 %v2079, %v2080
        %v2082 = vand.u32 %v2081, 4294901760
        %2083 = vmatpush1.msra.mxu0 %v2082
        %v2084 = vand.u32 %v1688, 4294901760
        %v2085 = vsub.f32 %v1688, %v2084
        %v2086 = vand.u32 %v2085, 4294901760
        %v2087 = vsub.f32 %v2085, %v2086
        %v2088 = vand.u32 %v2087, 4294901760
        %2089 = vmatprep.subr.mxu0 %v2088
        %v2090 = vand.u32 %v1687, 4294901760
        %v2091 = vsub.f32 %v1687, %v2090
        %v2092 = vand.u32 %v2091, 4294901760
        %v2093 = vsub.f32 %v2091, %v2092
        %v2094 = vand.u32 %v2093, 4294901760
        %2095 = vmatpush1.msra.mxu0 %v2094
        %v2096 = vand.u32 %v1690, 4294901760
        %v2097 = vsub.f32 %v1690, %v2096
        %v2098 = vand.u32 %v2097, 4294901760
        %v2099 = vsub.f32 %v2097, %v2098
        %v2100 = vand.u32 %v2099, 4294901760
        %2101 = vmatprep.subr.mxu0 %v2100
        %v2102 = vand.u32 %v1689, 4294901760
        %v2103 = vsub.f32 %v1689, %v2102
        %v2104 = vand.u32 %v2103, 4294901760
        %v2105 = vsub.f32 %v2103, %v2104
        %v2106 = vand.u32 %v2105, 4294901760
        %2107 = vmatpush1.msra.mxu0 %v2106
        %v2108 = vand.u32 %v1692, 4294901760
        %v2109 = vsub.f32 %v1692, %v2108
        %v2110 = vand.u32 %v2109, 4294901760
        %v2111 = vsub.f32 %v2109, %v2110
        %v2112 = vand.u32 %v2111, 4294901760
        %2113 = vmatprep.subr.mxu0 %v2112
        %v2114 = vand.u32 %v1691, 4294901760
        %v2115 = vsub.f32 %v1691, %v2114
        %v2116 = vand.u32 %v2115, 4294901760
        %v2117 = vsub.f32 %v2115, %v2116
        %v2118 = vand.u32 %v2117, 4294901760
        %2119 = vmatpush1.msra.mxu0 %v2118
        %v2120 = vand.u32 %v1694, 4294901760
        %v2121 = vsub.f32 %v1694, %v2120
        %v2122 = vand.u32 %v2121, 4294901760
        %v2123 = vsub.f32 %v2121, %v2122
        %v2124 = vand.u32 %v2123, 4294901760
        %2125 = vmatprep.subr.mxu0 %v2124
        %v2126 = vand.u32 %v1693, 4294901760
        %v2127 = vsub.f32 %v1693, %v2126
        %v2128 = vand.u32 %v2127, 4294901760
        %v2129 = vsub.f32 %v2127, %v2128
        %v2130 = vand.u32 %v2129, 4294901760
        %2131 = vmatpush1.msra.mxu0 %v2130
        %v2132 = vand.u32 %v1696, 4294901760
        %v2133 = vsub.f32 %v1696, %v2132
        %v2134 = vand.u32 %v2133, 4294901760
        %v2135 = vsub.f32 %v2133, %v2134
        %v2136 = vand.u32 %v2135, 4294901760
        %2137 = vmatprep.subr.mxu0 %v2136
        %v2138 = vand.u32 %v1695, 4294901760
        %v2139 = vsub.f32 %v1695, %v2138
        %v2140 = vand.u32 %v2139, 4294901760
        %v2141 = vsub.f32 %v2139, %v2140
        %v2142 = vand.u32 %v2141, 4294901760
        %2143 = vmatpush1.msra.mxu0 %v2142
        %v2144 = vand.u32 %v1698, 4294901760
        %v2145 = vsub.f32 %v1698, %v2144
        %v2146 = vand.u32 %v2145, 4294901760
        %v2147 = vsub.f32 %v2145, %v2146
        %v2148 = vand.u32 %v2147, 4294901760
        %2149 = vmatprep.subr.mxu0 %v2148
        %v2150 = vand.u32 %v1697, 4294901760
        %v2151 = vsub.f32 %v1697, %v2150
        %v2152 = vand.u32 %v2151, 4294901760
        %v2153 = vsub.f32 %v2151, %v2152
        %v2154 = vand.u32 %v2153, 4294901760
        %2155 = vmatpush1.msra.mxu0 %v2154
        %v2156 = vand.u32 %v1700, 4294901760
        %v2157 = vsub.f32 %v1700, %v2156
        %v2158 = vand.u32 %v2157, 4294901760
        %v2159 = vsub.f32 %v2157, %v2158
        %v2160 = vand.u32 %v2159, 4294901760
        %2161 = vmatprep.subr.mxu0 %v2160
        %v2162 = vand.u32 %v1699, 4294901760
        %v2163 = vsub.f32 %v1699, %v2162
        %v2164 = vand.u32 %v2163, 4294901760
        %v2165 = vsub.f32 %v2163, %v2164
        %v2166 = vand.u32 %v2165, 4294901760
        %2167 = vmatpush1.msra.mxu0 %v2166
        %v2168 = vand.u32 %v1702, 4294901760
        %v2169 = vsub.f32 %v1702, %v2168
        %v2170 = vand.u32 %v2169, 4294901760
        %v2171 = vsub.f32 %v2169, %v2170
        %v2172 = vand.u32 %v2171, 4294901760
        %2173 = vmatprep.subr.mxu0 %v2172
        %v2174 = vand.u32 %v1701, 4294901760
        %v2175 = vsub.f32 %v1701, %v2174
        %v2176 = vand.u32 %v2175, 4294901760
        %v2177 = vsub.f32 %v2175, %v2176
        %v2178 = vand.u32 %v2177, 4294901760
        %2179 = vmatpush1.msra.mxu0 %v2178
        %2180 = vmatprep.subr.mxu0 0.0
        %2181 = vmatpush1.msra.mxu0 0.0
        %2182 = vmatprep.subr.mxu0 0.0
        %2183 = vmatpush1.msra.mxu0 0.0
        %2184 = vmatprep.subr.mxu0 0.0
        %2185 = vmatpush1.msra.mxu0 0.0
        %2186 = vmatprep.subr.mxu0 0.0
        %2187 = vmatpush1.msra.mxu0 0.0
        %2188 = vmatprep.subr.mxu0 0.0
        %2189 = vmatpush1.msra.mxu0 0.0
        %2190 = vmatprep.subr.mxu0 0.0
        %2191 = vmatpush1.msra.mxu0 0.0
        %2192 = vmatprep.subr.mxu0 0.0
        %2193 = vmatpush1.msra.mxu0 0.0
        %2194 = vmatprep.subr.mxu0 0.0
        %2195 = vmatpush1.msra.mxu0 0.0
        %2196 = vmatprep.subr.mxu0 0.0
        %2197 = vmatpush1.msra.mxu0 0.0
        %2198 = vmatprep.subr.mxu0 0.0
        %2199 = vmatpush1.msra.mxu0 0.0
        %2200 = vmatprep.subr.mxu0 0.0
        %2201 = vmatpush1.msra.mxu0 0.0
        %2202 = vmatprep.subr.mxu0 0.0
        %2203 = vmatpush1.msra.mxu0 0.0
        %2204 = vmatprep.subr.mxu0 0.0
        %2205 = vmatpush1.msra.mxu0 0.0
        %2206 = vmatprep.subr.mxu0 0.0
        %2207 = vmatpush1.msra.mxu0 0.0
        %2208 = vmatprep.subr.mxu0 0.0
        %2209 = vmatpush1.msra.mxu0 0.0
        %2210 = vmatprep.subr.mxu0 0.0
        %2211 = vmatpush1.msra.mxu0 0.0
        %2212 = vmatprep.mubr.f32.mxu0 0.0
        %v2213 = vand.u32 %v1655, 4294901760
        %2214 = vmatmul.mubr.f32.gmra.mrb[0].mxu0 %v2213
        %v2215 = vpop.f32.mrb[0].mxu0
        %v2216 = vadd.f32 %v1819, %v2215
        %v2217 = vpop.f32.mrb[0].mxu0
        %v2218 = vadd.f32 %v1821, %v2217
        %2219 = vmatprep.mubr.f32.mxu0 0.0
        %v2220 = vand.u32 %v1656, 4294901760
        %2221 = vmatmul.mubr.f32.gmra.mrb[0].mxu0 %v2220
        %v2222 = vpop.f32.mrb[0].mxu0
        %v2223 = vadd.f32 %v1830, %v2222
        %v2224 = vpop.f32.mrb[0].mxu0
        %v2225 = vadd.f32 %v1832, %v2224
        %2226 = vmatprep.mubr.f32.mxu0 0.0
        %v2227 = vand.u32 %v1657, 4294901760
        %2228 = vmatmul.mubr.f32.gmra.mrb[0].mxu0 %v2227
        %v2229 = vpop.f32.mrb[0].mxu0
        %v2230 = vadd.f32 %v1841, %v2229
        %v2231 = vpop.f32.mrb[0].mxu0
        %v2232 = vadd.f32 %v1843, %v2231
        %2233 = vmatprep.mubr.f32.mxu0 0.0
        %v2234 = vand.u32 %v1658, 4294901760
        %2235 = vmatmul.mubr.f32.gmra.mrb[0].mxu0 %v2234
        %v2236 = vpop.f32.mrb[0].mxu0
        %v2237 = vadd.f32 %v1852, %v2236
        %v2238 = vpop.f32.mrb[0].mxu0
        %v2239 = vadd.f32 %v1854, %v2238
        %2240 = vmatprep.mubr.f32.mxu0 0.0
        %v2241 = vand.u32 %v1659, 4294901760
        %2242 = vmatmul.mubr.f32.gmra.mrb[0].mxu0 %v2241
        %v2243 = vpop.f32.mrb[0].mxu0
        %v2244 = vadd.f32 %v1863, %v2243
        %v2245 = vpop.f32.mrb[0].mxu0
        %v2246 = vadd.f32 %v1865, %v2245
        %2247 = vmatprep.mubr.f32.mxu0 0.0
        %v2248 = vand.u32 %v1660, 4294901760
        %2249 = vmatmul.mubr.f32.gmra.mrb[0].mxu0 %v2248
        %v2250 = vpop.f32.mrb[0].mxu0
        %v2251 = vadd.f32 %v1874, %v2250
        %v2252 = vpop.f32.mrb[0].mxu0
        %v2253 = vadd.f32 %v1876, %v2252
        %2254 = vmatprep.mubr.f32.mxu0 0.0
        %v2255 = vand.u32 %v1661, 4294901760
        %2256 = vmatmul.mubr.f32.gmra.mrb[0].mxu0 %v2255
        %v2257 = vpop.f32.mrb[0].mxu0
        %v2258 = vadd.f32 %v1885, %v2257
        %v2259 = vpop.f32.mrb[0].mxu0
        %v2260 = vadd.f32 %v1887, %v2259
        %2261 = vmatprep.mubr.f32.mxu0 0.0
        %v2262 = vand.u32 %v1662, 4294901760
        %2263 = vmatmul.mubr.f32.gmra.mrb[0].mxu0 %v2262
        %v2264 = vpop.f32.mrb[0].mxu0
        %v2265 = vadd.f32 %v1896, %v2264
        %v2266 = vpop.f32.mrb[0].mxu0
        %v2267 = vadd.f32 %v1898, %v2266
        %2268 = vmatprep.mubr.f32.mxu0 0.0
        %v2269 = vand.u32 %v1663, 4294901760
        %2270 = vmatmul.mubr.f32.gmra.mrb[0].mxu0 %v2269
        %v2271 = vpop.f32.mrb[0].mxu0
        %v2272 = vadd.f32 %v1907, %v2271
        %v2273 = vpop.f32.mrb[0].mxu0
        %v2274 = vadd.f32 %v1909, %v2273
        %2275 = vmatprep.mubr.f32.mxu0 0.0
        %v2276 = vand.u32 %v1664, 4294901760
        %2277 = vmatmul.mubr.f32.gmra.mrb[0].mxu0 %v2276
        %v2278 = vpop.f32.mrb[0].mxu0
        %v2279 = vadd.f32 %v1918, %v2278
        %v2280 = vpop.f32.mrb[0].mxu0
        %v2281 = vadd.f32 %v1920, %v2280
        %2282 = vmatprep.mubr.f32.mxu0 0.0
        %v2283 = vand.u32 %v1665, 4294901760
        %2284 = vmatmul.mubr.f32.gmra.mrb[0].mxu0 %v2283
        %v2285 = vpop.f32.mrb[0].mxu0
        %v2286 = vadd.f32 %v1929, %v2285
        %v2287 = vpop.f32.mrb[0].mxu0
        %v2288 = vadd.f32 %v1931, %v2287
        %2289 = vmatprep.mubr.f32.mxu0 0.0
        %v2290 = vand.u32 %v1666, 4294901760
        %2291 = vmatmul.mubr.f32.gmra.mrb[0].mxu0 %v2290
        %v2292 = vpop.f32.mrb[0].mxu0
        %v2293 = vadd.f32 %v1940, %v2292
        %v2294 = vpop.f32.mrb[0].mxu0
        %v2295 = vadd.f32 %v1942, %v2294
        %2296 = vmatprep.mubr.f32.mxu0 0.0
        %v2297 = vand.u32 %v1667, 4294901760
        %2298 = vmatmul.mubr.f32.gmra.mrb[0].mxu0 %v2297
        %v2299 = vpop.f32.mrb[0].mxu0
        %v2300 = vadd.f32 %v1951, %v2299
        %v2301 = vpop.f32.mrb[0].mxu0
        %v2302 = vadd.f32 %v1953, %v2301
        %2303 = vmatprep.mubr.f32.mxu0 0.0
        %v2304 = vand.u32 %v1668, 4294901760
        %2305 = vmatmul.mubr.f32.gmra.mrb[0].mxu0 %v2304
        %v2306 = vpop.f32.mrb[0].mxu0
        %v2307 = vadd.f32 %v1962, %v2306
        %v2308 = vpop.f32.mrb[0].mxu0
        %v2309 = vadd.f32 %v1964, %v2308
        %2310 = vmatprep.mubr.f32.mxu0 0.0
        %v2311 = vand.u32 %v1669, 4294901760
        %2312 = vmatmul.mubr.f32.gmra.mrb[0].mxu0 %v2311
        %v2313 = vpop.f32.mrb[0].mxu0
        %v2314 = vadd.f32 %v1973, %v2313
        %v2315 = vpop.f32.mrb[0].mxu0
        %v2316 = vadd.f32 %v1975, %v2315
        %2317 = vmatprep.mubr.f32.mxu0 0.0
        %v2318 = vand.u32 %v1670, 4294901760
        %2319 = vmatmul.mubr.f32.gmra.mrb[0].mxu0 %v2318
        %v2320 = vpop.f32.mrb[0].mxu0
        %v2321 = vadd.f32 %v1984, %v2320
        %v2322 = vpop.f32.mrb[0].mxu0
        %v2323 = vadd.f32 %v1986, %v2322
        %2324 = vdwg.mxu0
        %v2325 = vand.u32 %v1672, 4294901760
        %v2326 = vsub.f32 %v1672, %v2325
        %2327 = vmatprep.subr.mxu0 %v2326
        %v2328 = vand.u32 %v1671, 4294901760
        %v2329 = vsub.f32 %v1671, %v2328
        %2330 = vmatpush1.msra.mxu0 %v2329
        %v2331 = vand.u32 %v1674, 4294901760
        %v2332 = vsub.f32 %v1674, %v2331
        %2333 = vmatprep.subr.mxu0 %v2332
        %v2334 = vand.u32 %v1673, 4294901760
        %v2335 = vsub.f32 %v1673, %v2334
        %2336 = vmatpush1.msra.mxu0 %v2335
        %v2337 = vand.u32 %v1676, 4294901760
        %v2338 = vsub.f32 %v1676, %v2337
        %2339 = vmatprep.subr.mxu0 %v2338
        %v2340 = vand.u32 %v1675, 4294901760
        %v2341 = vsub.f32 %v1675, %v2340
        %2342 = vmatpush1.msra.mxu0 %v2341
        %v2343 = vand.u32 %v1678, 4294901760
        %v2344 = vsub.f32 %v1678, %v2343
        %2345 = vmatprep.subr.mxu0 %v2344
        %v2346 = vand.u32 %v1677, 4294901760
        %v2347 = vsub.f32 %v1677, %v2346
        %2348 = vmatpush1.msra.mxu0 %v2347
        %v2349 = vand.u32 %v1680, 4294901760
        %v2350 = vsub.f32 %v1680, %v2349
        %2351 = vmatprep.subr.mxu0 %v2350
        %v2352 = vand.u32 %v1679, 4294901760
        %v2353 = vsub.f32 %v1679, %v2352
        %2354 = vmatpush1.msra.mxu0 %v2353
        %v2355 = vand.u32 %v1682, 4294901760
        %v2356 = vsub.f32 %v1682, %v2355
        %2357 = vmatprep.subr.mxu0 %v2356
        %v2358 = vand.u32 %v1681, 4294901760
        %v2359 = vsub.f32 %v1681, %v2358
        %2360 = vmatpush1.msra.mxu0 %v2359
        %v2361 = vand.u32 %v1684, 4294901760
        %v2362 = vsub.f32 %v1684, %v2361
        %2363 = vmatprep.subr.mxu0 %v2362
        %v2364 = vand.u32 %v1683, 4294901760
        %v2365 = vsub.f32 %v1683, %v2364
        %2366 = vmatpush1.msra.mxu0 %v2365
        %v2367 = vand.u32 %v1686, 4294901760
        %v2368 = vsub.f32 %v1686, %v2367
        %2369 = vmatprep.subr.mxu0 %v2368
        %v2370 = vand.u32 %v1685, 4294901760
        %v2371 = vsub.f32 %v1685, %v2370
        %2372 = vmatpush1.msra.mxu0 %v2371
        %v2373 = vand.u32 %v1688, 4294901760
        %v2374 = vsub.f32 %v1688, %v2373
        %2375 = vmatprep.subr.mxu0 %v2374
        %v2376 = vand.u32 %v1687, 4294901760
        %v2377 = vsub.f32 %v1687, %v2376
        %2378 = vmatpush1.msra.mxu0 %v2377
        %v2379 = vand.u32 %v1690, 4294901760
        %v2380 = vsub.f32 %v1690, %v2379
        %2381 = vmatprep.subr.mxu0 %v2380
        %v2382 = vand.u32 %v1689, 4294901760
        %v2383 = vsub.f32 %v1689, %v2382
        %2384 = vmatpush1.msra.mxu0 %v2383
        %v2385 = vand.u32 %v1692, 4294901760
        %v2386 = vsub.f32 %v1692, %v2385
        %2387 = vmatprep.subr.mxu0 %v2386
        %v2388 = vand.u32 %v1691, 4294901760
        %v2389 = vsub.f32 %v1691, %v2388
        %2390 = vmatpush1.msra.mxu0 %v2389
        %v2391 = vand.u32 %v1694, 4294901760
        %v2392 = vsub.f32 %v1694, %v2391
        %2393 = vmatprep.subr.mxu0 %v2392
        %v2394 = vand.u32 %v1693, 4294901760
        %v2395 = vsub.f32 %v1693, %v2394
        %2396 = vmatpush1.msra.mxu0 %v2395
        %v2397 = vand.u32 %v1696, 4294901760
        %v2398 = vsub.f32 %v1696, %v2397
        %2399 = vmatprep.subr.mxu0 %v2398
        %v2400 = vand.u32 %v1695, 4294901760
        %v2401 = vsub.f32 %v1695, %v2400
        %2402 = vmatpush1.msra.mxu0 %v2401
        %v2403 = vand.u32 %v1698, 4294901760
        %v2404 = vsub.f32 %v1698, %v2403
        %2405 = vmatprep.subr.mxu0 %v2404
        %v2406 = vand.u32 %v1697, 4294901760
        %v2407 = vsub.f32 %v1697, %v2406
        %2408 = vmatpush1.msra.mxu0 %v2407
        %v2409 = vand.u32 %v1700, 4294901760
        %v2410 = vsub.f32 %v1700, %v2409
        %2411 = vmatprep.subr.mxu0 %v2410
        %v2412 = vand.u32 %v1699, 4294901760
        %v2413 = vsub.f32 %v1699, %v2412
        %2414 = vmatpush1.msra.mxu0 %v2413
        %v2415 = vand.u32 %v1702, 4294901760
        %v2416 = vsub.f32 %v1702, %v2415
        %2417 = vmatprep.subr.mxu0 %v2416
        %v2418 = vand.u32 %v1701, 4294901760
        %v2419 = vsub.f32 %v1701, %v2418
        %2420 = vmatpush1.msra.mxu0 %v2419
        %2421 = vmatprep.subr.mxu0 0.0
        %2422 = vmatpush1.msra.mxu0 0.0
        %2423 = vmatprep.subr.mxu0 0.0
        %2424 = vmatpush1.msra.mxu0 0.0
        %2425 = vmatprep.subr.mxu0 0.0
        %2426 = vmatpush1.msra.mxu0 0.0
        %2427 = vmatprep.subr.mxu0 0.0
        %2428 = vmatpush1.msra.mxu0 0.0
        %2429 = vmatprep.subr.mxu0 0.0
        %2430 = vmatpush1.msra.mxu0 0.0
        %2431 = vmatprep.subr.mxu0 0.0
        %2432 = vmatpush1.msra.mxu0 0.0
        %2433 = vmatprep.subr.mxu0 0.0
        %2434 = vmatpush1.msra.mxu0 0.0
        %2435 = vmatprep.subr.mxu0 0.0
        %2436 = vmatpush1.msra.mxu0 0.0
        %2437 = vmatprep.subr.mxu0 0.0
        %2438 = vmatpush1.msra.mxu0 0.0
        %2439 = vmatprep.subr.mxu0 0.0
        %2440 = vmatpush1.msra.mxu0 0.0
        %2441 = vmatprep.subr.mxu0 0.0
        %2442 = vmatpush1.msra.mxu0 0.0
        %2443 = vmatprep.subr.mxu0 0.0
        %2444 = vmatpush1.msra.mxu0 0.0
        %2445 = vmatprep.subr.mxu0 0.0
        %2446 = vmatpush1.msra.mxu0 0.0
        %2447 = vmatprep.subr.mxu0 0.0
        %2448 = vmatpush1.msra.mxu0 0.0
        %2449 = vmatprep.subr.mxu0 0.0
        %2450 = vmatpush1.msra.mxu0 0.0
        %2451 = vmatprep.subr.mxu0 0.0
        %2452 = vmatpush1.msra.mxu0 0.0
        %2453 = vmatprep.mubr.f32.mxu0 0.0
        %v2454 = vand.u32 %v1655, 4294901760
        %v2455 = vsub.f32 %v1655, %v2454
        %2456 = vmatmul.mubr.f32.gmra.mrb[0].mxu0 %v2455
        %v2457 = vpop.f32.mrb[0].mxu0
        %v2458 = vadd.f32 %v2216, %v2457
        %v2459 = vpop.f32.mrb[0].mxu0
        %v2460 = vadd.f32 %v2218, %v2459
        %2461 = vmatprep.mubr.f32.mxu0 0.0
        %v2462 = vand.u32 %v1656, 4294901760
        %v2463 = vsub.f32 %v1656, %v2462
        %2464 = vmatmul.mubr.f32.gmra.mrb[0].mxu0 %v2463
        %v2465 = vpop.f32.mrb[0].mxu0
        %v2466 = vadd.f32 %v2223, %v2465
        %v2467 = vpop.f32.mrb[0].mxu0
        %v2468 = vadd.f32 %v2225, %v2467
        %2469 = vmatprep.mubr.f32.mxu0 0.0
        %v2470 = vand.u32 %v1657, 4294901760
        %v2471 = vsub.f32 %v1657, %v2470
        %2472 = vmatmul.mubr.f32.gmra.mrb[0].mxu0 %v2471
        %v2473 = vpop.f32.mrb[0].mxu0
        %v2474 = vadd.f32 %v2230, %v2473
        %v2475 = vpop.f32.mrb[0].mxu0
        %v2476 = vadd.f32 %v2232, %v2475
        %2477 = vmatprep.mubr.f32.mxu0 0.0
        %v2478 = vand.u32 %v1658, 4294901760
        %v2479 = vsub.f32 %v1658, %v2478
        %2480 = vmatmul.mubr.f32.gmra.mrb[0].mxu0 %v2479
        %v2481 = vpop.f32.mrb[0].mxu0
        %v2482 = vadd.f32 %v2237, %v2481
        %v2483 = vpop.f32.mrb[0].mxu0
        %v2484 = vadd.f32 %v2239, %v2483
        %2485 = vmatprep.mubr.f32.mxu0 0.0
        %v2486 = vand.u32 %v1659, 4294901760
        %v2487 = vsub.f32 %v1659, %v2486
        %2488 = vmatmul.mubr.f32.gmra.mrb[0].mxu0 %v2487
        %v2489 = vpop.f32.mrb[0].mxu0
        %v2490 = vadd.f32 %v2244, %v2489
        %v2491 = vpop.f32.mrb[0].mxu0
        %v2492 = vadd.f32 %v2246, %v2491
        %2493 = vmatprep.mubr.f32.mxu0 0.0
        %v2494 = vand.u32 %v1660, 4294901760
        %v2495 = vsub.f32 %v1660, %v2494
        %2496 = vmatmul.mubr.f32.gmra.mrb[0].mxu0 %v2495
        %v2497 = vpop.f32.mrb[0].mxu0
        %v2498 = vadd.f32 %v2251, %v2497
        %v2499 = vpop.f32.mrb[0].mxu0
        %v2500 = vadd.f32 %v2253, %v2499
        %2501 = vmatprep.mubr.f32.mxu0 0.0
        %v2502 = vand.u32 %v1661, 4294901760
        %v2503 = vsub.f32 %v1661, %v2502
        %2504 = vmatmul.mubr.f32.gmra.mrb[0].mxu0 %v2503
        %v2505 = vpop.f32.mrb[0].mxu0
        %v2506 = vadd.f32 %v2258, %v2505
        %v2507 = vpop.f32.mrb[0].mxu0
        %v2508 = vadd.f32 %v2260, %v2507
        %2509 = vmatprep.mubr.f32.mxu0 0.0
        %v2510 = vand.u32 %v1662, 4294901760
        %v2511 = vsub.f32 %v1662, %v2510
        %2512 = vmatmul.mubr.f32.gmra.mrb[0].mxu0 %v2511
        %v2513 = vpop.f32.mrb[0].mxu0
        %v2514 = vadd.f32 %v2265, %v2513
        %v2515 = vpop.f32.mrb[0].mxu0
        %v2516 = vadd.f32 %v2267, %v2515
        %2517 = vmatprep.mubr.f32.mxu0 0.0
        %v2518 = vand.u32 %v1663, 4294901760
        %v2519 = vsub.f32 %v1663, %v2518
        %2520 = vmatmul.mubr.f32.gmra.mrb[0].mxu0 %v2519
        %v2521 = vpop.f32.mrb[0].mxu0
        %v2522 = vadd.f32 %v2272, %v2521
        %v2523 = vpop.f32.mrb[0].mxu0
        %v2524 = vadd.f32 %v2274, %v2523
        %2525 = vmatprep.mubr.f32.mxu0 0.0
        %v2526 = vand.u32 %v1664, 4294901760
        %v2527 = vsub.f32 %v1664, %v2526
        %2528 = vmatmul.mubr.f32.gmra.mrb[0].mxu0 %v2527
        %v2529 = vpop.f32.mrb[0].mxu0
        %v2530 = vadd.f32 %v2279, %v2529
        %v2531 = vpop.f32.mrb[0].mxu0
        %v2532 = vadd.f32 %v2281, %v2531
        %2533 = vmatprep.mubr.f32.mxu0 0.0
        %v2534 = vand.u32 %v1665, 4294901760
        %v2535 = vsub.f32 %v1665, %v2534
        %2536 = vmatmul.mubr.f32.gmra.mrb[0].mxu0 %v2535
        %v2537 = vpop.f32.mrb[0].mxu0
        %v2538 = vadd.f32 %v2286, %v2537
        %v2539 = vpop.f32.mrb[0].mxu0
        %v2540 = vadd.f32 %v2288, %v2539
        %2541 = vmatprep.mubr.f32.mxu0 0.0
        %v2542 = vand.u32 %v1666, 4294901760
        %v2543 = vsub.f32 %v1666, %v2542
        %2544 = vmatmul.mubr.f32.gmra.mrb[0].mxu0 %v2543
        %v2545 = vpop.f32.mrb[0].mxu0
        %v2546 = vadd.f32 %v2293, %v2545
        %v2547 = vpop.f32.mrb[0].mxu0
        %v2548 = vadd.f32 %v2295, %v2547
        %2549 = vmatprep.mubr.f32.mxu0 0.0
        %v2550 = vand.u32 %v1667, 4294901760
        %v2551 = vsub.f32 %v1667, %v2550
        %2552 = vmatmul.mubr.f32.gmra.mrb[0].mxu0 %v2551
        %v2553 = vpop.f32.mrb[0].mxu0
        %v2554 = vadd.f32 %v2300, %v2553
        %v2555 = vpop.f32.mrb[0].mxu0
        %v2556 = vadd.f32 %v2302, %v2555
        %2557 = vmatprep.mubr.f32.mxu0 0.0
        %v2558 = vand.u32 %v1668, 4294901760
        %v2559 = vsub.f32 %v1668, %v2558
        %2560 = vmatmul.mubr.f32.gmra.mrb[0].mxu0 %v2559
        %v2561 = vpop.f32.mrb[0].mxu0
        %v2562 = vadd.f32 %v2307, %v2561
        %v2563 = vpop.f32.mrb[0].mxu0
        %v2564 = vadd.f32 %v2309, %v2563
        %2565 = vmatprep.mubr.f32.mxu0 0.0
        %v2566 = vand.u32 %v1669, 4294901760
        %v2567 = vsub.f32 %v1669, %v2566
        %2568 = vmatmul.mubr.f32.gmra.mrb[0].mxu0 %v2567
        %v2569 = vpop.f32.mrb[0].mxu0
        %v2570 = vadd.f32 %v2314, %v2569
        %v2571 = vpop.f32.mrb[0].mxu0
        %v2572 = vadd.f32 %v2316, %v2571
        %2573 = vmatprep.mubr.f32.mxu0 0.0
        %v2574 = vand.u32 %v1670, 4294901760
        %v2575 = vsub.f32 %v1670, %v2574
        %2576 = vmatmul.mubr.f32.gmra.mrb[0].mxu0 %v2575
        %v2577 = vpop.f32.mrb[0].mxu0
        %v2578 = vadd.f32 %v2321, %v2577
        %v2579 = vpop.f32.mrb[0].mxu0
        %v2580 = vadd.f32 %v2323, %v2579
        %2581 = vdwg.mxu0
        %v2582 = vand.u32 %v1672, 4294901760
        %2583 = vmatprep.subr.mxu0 %v2582
        %v2584 = vand.u32 %v1671, 4294901760
        %2585 = vmatpush1.msra.mxu0 %v2584
        %v2586 = vand.u32 %v1674, 4294901760
        %2587 = vmatprep.subr.mxu0 %v2586
        %v2588 = vand.u32 %v1673, 4294901760
        %2589 = vmatpush1.msra.mxu0 %v2588
        %v2590 = vand.u32 %v1676, 4294901760
        %2591 = vmatprep.subr.mxu0 %v2590
        %v2592 = vand.u32 %v1675, 4294901760
        %2593 = vmatpush1.msra.mxu0 %v2592
        %v2594 = vand.u32 %v1678, 4294901760
        %2595 = vmatprep.subr.mxu0 %v2594
        %v2596 = vand.u32 %v1677, 4294901760
        %2597 = vmatpush1.msra.mxu0 %v2596
        %v2598 = vand.u32 %v1680, 4294901760
        %2599 = vmatprep.subr.mxu0 %v2598
        %v2600 = vand.u32 %v1679, 4294901760
        %2601 = vmatpush1.msra.mxu0 %v2600
        %v2602 = vand.u32 %v1682, 4294901760
        %2603 = vmatprep.subr.mxu0 %v2602
        %v2604 = vand.u32 %v1681, 4294901760
        %2605 = vmatpush1.msra.mxu0 %v2604
        %v2606 = vand.u32 %v1684, 4294901760
        %2607 = vmatprep.subr.mxu0 %v2606
        %v2608 = vand.u32 %v1683, 4294901760
        %2609 = vmatpush1.msra.mxu0 %v2608
        %v2610 = vand.u32 %v1686, 4294901760
        %2611 = vmatprep.subr.mxu0 %v2610
        %v2612 = vand.u32 %v1685, 4294901760
        %2613 = vmatpush1.msra.mxu0 %v2612
        %v2614 = vand.u32 %v1688, 4294901760
        %2615 = vmatprep.subr.mxu0 %v2614
        %v2616 = vand.u32 %v1687, 4294901760
        %2617 = vmatpush1.msra.mxu0 %v2616
        %v2618 = vand.u32 %v1690, 4294901760
        %2619 = vmatprep.subr.mxu0 %v2618
        %v2620 = vand.u32 %v1689, 4294901760
        %2621 = vmatpush1.msra.mxu0 %v2620
        %v2622 = vand.u32 %v1692, 4294901760
        %2623 = vmatprep.subr.mxu0 %v2622
        %v2624 = vand.u32 %v1691, 4294901760
        %2625 = vmatpush1.msra.mxu0 %v2624
        %v2626 = vand.u32 %v1694, 4294901760
        %2627 = vmatprep.subr.mxu0 %v2626
        %v2628 = vand.u32 %v1693, 4294901760
        %2629 = vmatpush1.msra.mxu0 %v2628
        %v2630 = vand.u32 %v1696, 4294901760
        %2631 = vmatprep.subr.mxu0 %v2630
        %v2632 = vand.u32 %v1695, 4294901760
        %2633 = vmatpush1.msra.mxu0 %v2632
        %v2634 = vand.u32 %v1698, 4294901760
        %2635 = vmatprep.subr.mxu0 %v2634
        %v2636 = vand.u32 %v1697, 4294901760
        %2637 = vmatpush1.msra.mxu0 %v2636
        %v2638 = vand.u32 %v1700, 4294901760
        %2639 = vmatprep.subr.mxu0 %v2638
        %v2640 = vand.u32 %v1699, 4294901760
        %2641 = vmatpush1.msra.mxu0 %v2640
        %v2642 = vand.u32 %v1702, 4294901760
        %2643 = vmatprep.subr.mxu0 %v2642
        %v2644 = vand.u32 %v1701, 4294901760
        %2645 = vmatpush1.msra.mxu0 %v2644
        %2646 = vmatprep.subr.mxu0 0.0
        %2647 = vmatpush1.msra.mxu0 0.0
        %2648 = vmatprep.subr.mxu0 0.0
        %2649 = vmatpush1.msra.mxu0 0.0
        %2650 = vmatprep.subr.mxu0 0.0
        %2651 = vmatpush1.msra.mxu0 0.0
        %2652 = vmatprep.subr.mxu0 0.0
        %2653 = vmatpush1.msra.mxu0 0.0
        %2654 = vmatprep.subr.mxu0 0.0
        %2655 = vmatpush1.msra.mxu0 0.0
        %2656 = vmatprep.subr.mxu0 0.0
        %2657 = vmatpush1.msra.mxu0 0.0
        %2658 = vmatprep.subr.mxu0 0.0
        %2659 = vmatpush1.msra.mxu0 0.0
        %2660 = vmatprep.subr.mxu0 0.0
        %2661 = vmatpush1.msra.mxu0 0.0
        %2662 = vmatprep.subr.mxu0 0.0
        %2663 = vmatpush1.msra.mxu0 0.0
        %2664 = vmatprep.subr.mxu0 0.0
        %2665 = vmatpush1.msra.mxu0 0.0
        %2666 = vmatprep.subr.mxu0 0.0
        %2667 = vmatpush1.msra.mxu0 0.0
        %2668 = vmatprep.subr.mxu0 0.0
        %2669 = vmatpush1.msra.mxu0 0.0
        %2670 = vmatprep.subr.mxu0 0.0
        %2671 = vmatpush1.msra.mxu0 0.0
        %2672 = vmatprep.subr.mxu0 0.0
        %2673 = vmatpush1.msra.mxu0 0.0
        %2674 = vmatprep.subr.mxu0 0.0
        %2675 = vmatpush1.msra.mxu0 0.0
        %2676 = vmatprep.subr.mxu0 0.0
        %2677 = vmatpush1.msra.mxu0 0.0
        %2678 = vmatprep.mubr.f32.mxu0 0.0
        %v2679 = vand.u32 %v1655, 4294901760
        %v2680 = vsub.f32 %v1655, %v2679
        %v2681 = vand.u32 %v2680, 4294901760
        %2682 = vmatmul.mubr.f32.gmra.mrb[0].mxu0 %v2681
        %v2683 = vpop.f32.mrb[0].mxu0
        %v2684 = vadd.f32 %v2458, %v2683
        %v2685 = vpop.f32.mrb[0].mxu0
        %v2686 = vadd.f32 %v2460, %v2685
        %2687 = vmatprep.mubr.f32.mxu0 0.0
        %v2688 = vand.u32 %v1656, 4294901760
        %v2689 = vsub.f32 %v1656, %v2688
        %v2690 = vand.u32 %v2689, 4294901760
        %2691 = vmatmul.mubr.f32.gmra.mrb[0].mxu0 %v2690
        %v2692 = vpop.f32.mrb[0].mxu0
        %v2693 = vadd.f32 %v2466, %v2692
        %v2694 = vpop.f32.mrb[0].mxu0
        %v2695 = vadd.f32 %v2468, %v2694
        %2696 = vmatprep.mubr.f32.mxu0 0.0
        %v2697 = vand.u32 %v1657, 4294901760
        %v2698 = vsub.f32 %v1657, %v2697
        %v2699 = vand.u32 %v2698, 4294901760
        %2700 = vmatmul.mubr.f32.gmra.mrb[0].mxu0 %v2699
        %v2701 = vpop.f32.mrb[0].mxu0
        %v2702 = vadd.f32 %v2474, %v2701
        %v2703 = vpop.f32.mrb[0].mxu0
        %v2704 = vadd.f32 %v2476, %v2703
        %2705 = vmatprep.mubr.f32.mxu0 0.0
        %v2706 = vand.u32 %v1658, 4294901760
        %v2707 = vsub.f32 %v1658, %v2706
        %v2708 = vand.u32 %v2707, 4294901760
        %2709 = vmatmul.mubr.f32.gmra.mrb[0].mxu0 %v2708
        %v2710 = vpop.f32.mrb[0].mxu0
        %v2711 = vadd.f32 %v2482, %v2710
        %v2712 = vpop.f32.mrb[0].mxu0
        %v2713 = vadd.f32 %v2484, %v2712
        %2714 = vmatprep.mubr.f32.mxu0 0.0
        %v2715 = vand.u32 %v1659, 4294901760
        %v2716 = vsub.f32 %v1659, %v2715
        %v2717 = vand.u32 %v2716, 4294901760
        %2718 = vmatmul.mubr.f32.gmra.mrb[0].mxu0 %v2717
        %v2719 = vpop.f32.mrb[0].mxu0
        %v2720 = vadd.f32 %v2490, %v2719
        %v2721 = vpop.f32.mrb[0].mxu0
        %v2722 = vadd.f32 %v2492, %v2721
        %2723 = vmatprep.mubr.f32.mxu0 0.0
        %v2724 = vand.u32 %v1660, 4294901760
        %v2725 = vsub.f32 %v1660, %v2724
        %v2726 = vand.u32 %v2725, 4294901760
        %2727 = vmatmul.mubr.f32.gmra.mrb[0].mxu0 %v2726
        %v2728 = vpop.f32.mrb[0].mxu0
        %v2729 = vadd.f32 %v2498, %v2728
        %v2730 = vpop.f32.mrb[0].mxu0
        %v2731 = vadd.f32 %v2500, %v2730
        %2732 = vmatprep.mubr.f32.mxu0 0.0
        %v2733 = vand.u32 %v1661, 4294901760
        %v2734 = vsub.f32 %v1661, %v2733
        %v2735 = vand.u32 %v2734, 4294901760
        %2736 = vmatmul.mubr.f32.gmra.mrb[0].mxu0 %v2735
        %v2737 = vpop.f32.mrb[0].mxu0
        %v2738 = vadd.f32 %v2506, %v2737
        %v2739 = vpop.f32.mrb[0].mxu0
        %v2740 = vadd.f32 %v2508, %v2739
        %2741 = vmatprep.mubr.f32.mxu0 0.0
        %v2742 = vand.u32 %v1662, 4294901760
        %v2743 = vsub.f32 %v1662, %v2742
        %v2744 = vand.u32 %v2743, 4294901760
        %2745 = vmatmul.mubr.f32.gmra.mrb[0].mxu0 %v2744
        %v2746 = vpop.f32.mrb[0].mxu0
        %v2747 = vadd.f32 %v2514, %v2746
        %v2748 = vpop.f32.mrb[0].mxu0
        %v2749 = vadd.f32 %v2516, %v2748
        %2750 = vmatprep.mubr.f32.mxu0 0.0
        %v2751 = vand.u32 %v1663, 4294901760
        %v2752 = vsub.f32 %v1663, %v2751
        %v2753 = vand.u32 %v2752, 4294901760
        %2754 = vmatmul.mubr.f32.gmra.mrb[0].mxu0 %v2753
        %v2755 = vpop.f32.mrb[0].mxu0
        %v2756 = vadd.f32 %v2522, %v2755
        %v2757 = vpop.f32.mrb[0].mxu0
        %v2758 = vadd.f32 %v2524, %v2757
        %2759 = vmatprep.mubr.f32.mxu0 0.0
        %v2760 = vand.u32 %v1664, 4294901760
        %v2761 = vsub.f32 %v1664, %v2760
        %v2762 = vand.u32 %v2761, 4294901760
        %2763 = vmatmul.mubr.f32.gmra.mrb[0].mxu0 %v2762
        %v2764 = vpop.f32.mrb[0].mxu0
        %v2765 = vadd.f32 %v2530, %v2764
        %v2766 = vpop.f32.mrb[0].mxu0
        %v2767 = vadd.f32 %v2532, %v2766
        %2768 = vmatprep.mubr.f32.mxu0 0.0
        %v2769 = vand.u32 %v1665, 4294901760
        %v2770 = vsub.f32 %v1665, %v2769
        %v2771 = vand.u32 %v2770, 4294901760
        %2772 = vmatmul.mubr.f32.gmra.mrb[0].mxu0 %v2771
        %v2773 = vpop.f32.mrb[0].mxu0
        %v2774 = vadd.f32 %v2538, %v2773
        %v2775 = vpop.f32.mrb[0].mxu0
        %v2776 = vadd.f32 %v2540, %v2775
        %2777 = vmatprep.mubr.f32.mxu0 0.0
        %v2778 = vand.u32 %v1666, 4294901760
        %v2779 = vsub.f32 %v1666, %v2778
        %v2780 = vand.u32 %v2779, 4294901760
        %2781 = vmatmul.mubr.f32.gmra.mrb[0].mxu0 %v2780
        %v2782 = vpop.f32.mrb[0].mxu0
        %v2783 = vadd.f32 %v2546, %v2782
        %v2784 = vpop.f32.mrb[0].mxu0
        %v2785 = vadd.f32 %v2548, %v2784
        %2786 = vmatprep.mubr.f32.mxu0 0.0
        %v2787 = vand.u32 %v1667, 4294901760
        %v2788 = vsub.f32 %v1667, %v2787
        %v2789 = vand.u32 %v2788, 4294901760
        %2790 = vmatmul.mubr.f32.gmra.mrb[0].mxu0 %v2789
        %v2791 = vpop.f32.mrb[0].mxu0
        %v2792 = vadd.f32 %v2554, %v2791
        %v2793 = vpop.f32.mrb[0].mxu0
        %v2794 = vadd.f32 %v2556, %v2793
        %2795 = vmatprep.mubr.f32.mxu0 0.0
        %v2796 = vand.u32 %v1668, 4294901760
        %v2797 = vsub.f32 %v1668, %v2796
        %v2798 = vand.u32 %v2797, 4294901760
        %2799 = vmatmul.mubr.f32.gmra.mrb[0].mxu0 %v2798
        %v2800 = vpop.f32.mrb[0].mxu0
        %v2801 = vadd.f32 %v2562, %v2800
        %v2802 = vpop.f32.mrb[0].mxu0
        %v2803 = vadd.f32 %v2564, %v2802
        %2804 = vmatprep.mubr.f32.mxu0 0.0
        %v2805 = vand.u32 %v1669, 4294901760
        %v2806 = vsub.f32 %v1669, %v2805
        %v2807 = vand.u32 %v2806, 4294901760
        %2808 = vmatmul.mubr.f32.gmra.mrb[0].mxu0 %v2807
        %v2809 = vpop.f32.mrb[0].mxu0
        %v2810 = vadd.f32 %v2570, %v2809
        %v2811 = vpop.f32.mrb[0].mxu0
        %v2812 = vadd.f32 %v2572, %v2811
        %2813 = vmatprep.mubr.f32.mxu0 0.0
        %v2814 = vand.u32 %v1670, 4294901760
        %v2815 = vsub.f32 %v1670, %v2814
        %v2816 = vand.u32 %v2815, 4294901760
        %2817 = vmatmul.mubr.f32.gmra.mrb[0].mxu0 %v2816
        %v2818 = vpop.f32.mrb[0].mxu0
        %v2819 = vadd.f32 %v2578, %v2818
        %v2820 = vpop.f32.mrb[0].mxu0
        %v2821 = vadd.f32 %v2580, %v2820
        %2822 = vdwg.mxu0
        %v2823 = vand.u32 %v1672, 4294901760
        %v2824 = vsub.f32 %v1672, %v2823
        %v2825 = vand.u32 %v2824, 4294901760
        %2826 = vmatprep.subr.mxu0 %v2825
        %v2827 = vand.u32 %v1671, 4294901760
        %v2828 = vsub.f32 %v1671, %v2827
        %v2829 = vand.u32 %v2828, 4294901760
        %2830 = vmatpush1.msra.mxu0 %v2829
        %v2831 = vand.u32 %v1674, 4294901760
        %v2832 = vsub.f32 %v1674, %v2831
        %v2833 = vand.u32 %v2832, 4294901760
        %2834 = vmatprep.subr.mxu0 %v2833
        %v2835 = vand.u32 %v1673, 4294901760
        %v2836 = vsub.f32 %v1673, %v2835
        %v2837 = vand.u32 %v2836, 4294901760
        %2838 = vmatpush1.msra.mxu0 %v2837
        %v2839 = vand.u32 %v1676, 4294901760
        %v2840 = vsub.f32 %v1676, %v2839
        %v2841 = vand.u32 %v2840, 4294901760
        %2842 = vmatprep.subr.mxu0 %v2841
        %v2843 = vand.u32 %v1675, 4294901760
        %v2844 = vsub.f32 %v1675, %v2843
        %v2845 = vand.u32 %v2844, 4294901760
        %2846 = vmatpush1.msra.mxu0 %v2845
        %v2847 = vand.u32 %v1678, 4294901760
        %v2848 = vsub.f32 %v1678, %v2847
        %v2849 = vand.u32 %v2848, 4294901760
        %2850 = vmatprep.subr.mxu0 %v2849
        %v2851 = vand.u32 %v1677, 4294901760
        %v2852 = vsub.f32 %v1677, %v2851
        %v2853 = vand.u32 %v2852, 4294901760
        %2854 = vmatpush1.msra.mxu0 %v2853
        %v2855 = vand.u32 %v1680, 4294901760
        %v2856 = vsub.f32 %v1680, %v2855
        %v2857 = vand.u32 %v2856, 4294901760
        %2858 = vmatprep.subr.mxu0 %v2857
        %v2859 = vand.u32 %v1679, 4294901760
        %v2860 = vsub.f32 %v1679, %v2859
        %v2861 = vand.u32 %v2860, 4294901760
        %2862 = vmatpush1.msra.mxu0 %v2861
        %v2863 = vand.u32 %v1682, 4294901760
        %v2864 = vsub.f32 %v1682, %v2863
        %v2865 = vand.u32 %v2864, 4294901760
        %2866 = vmatprep.subr.mxu0 %v2865
        %v2867 = vand.u32 %v1681, 4294901760
        %v2868 = vsub.f32 %v1681, %v2867
        %v2869 = vand.u32 %v2868, 4294901760
        %2870 = vmatpush1.msra.mxu0 %v2869
        %v2871 = vand.u32 %v1684, 4294901760
        %v2872 = vsub.f32 %v1684, %v2871
        %v2873 = vand.u32 %v2872, 4294901760
        %2874 = vmatprep.subr.mxu0 %v2873
        %v2875 = vand.u32 %v1683, 4294901760
        %v2876 = vsub.f32 %v1683, %v2875
        %v2877 = vand.u32 %v2876, 4294901760
        %2878 = vmatpush1.msra.mxu0 %v2877
        %v2879 = vand.u32 %v1686, 4294901760
        %v2880 = vsub.f32 %v1686, %v2879
        %v2881 = vand.u32 %v2880, 4294901760
        %2882 = vmatprep.subr.mxu0 %v2881
        %v2883 = vand.u32 %v1685, 4294901760
        %v2884 = vsub.f32 %v1685, %v2883
        %v2885 = vand.u32 %v2884, 4294901760
        %2886 = vmatpush1.msra.mxu0 %v2885
        %v2887 = vand.u32 %v1688, 4294901760
        %v2888 = vsub.f32 %v1688, %v2887
        %v2889 = vand.u32 %v2888, 4294901760
        %2890 = vmatprep.subr.mxu0 %v2889
        %v2891 = vand.u32 %v1687, 4294901760
        %v2892 = vsub.f32 %v1687, %v2891
        %v2893 = vand.u32 %v2892, 4294901760
        %2894 = vmatpush1.msra.mxu0 %v2893
        %v2895 = vand.u32 %v1690, 4294901760
        %v2896 = vsub.f32 %v1690, %v2895
        %v2897 = vand.u32 %v2896, 4294901760
        %2898 = vmatprep.subr.mxu0 %v2897
        %v2899 = vand.u32 %v1689, 4294901760
        %v2900 = vsub.f32 %v1689, %v2899
        %v2901 = vand.u32 %v2900, 4294901760
        %2902 = vmatpush1.msra.mxu0 %v2901
        %v2903 = vand.u32 %v1692, 4294901760
        %v2904 = vsub.f32 %v1692, %v2903
        %v2905 = vand.u32 %v2904, 4294901760
        %2906 = vmatprep.subr.mxu0 %v2905
        %v2907 = vand.u32 %v1691, 4294901760
        %v2908 = vsub.f32 %v1691, %v2907
        %v2909 = vand.u32 %v2908, 4294901760
        %2910 = vmatpush1.msra.mxu0 %v2909
        %v2911 = vand.u32 %v1694, 4294901760
        %v2912 = vsub.f32 %v1694, %v2911
        %v2913 = vand.u32 %v2912, 4294901760
        %2914 = vmatprep.subr.mxu0 %v2913
        %v2915 = vand.u32 %v1693, 4294901760
        %v2916 = vsub.f32 %v1693, %v2915
        %v2917 = vand.u32 %v2916, 4294901760
        %2918 = vmatpush1.msra.mxu0 %v2917
        %v2919 = vand.u32 %v1696, 4294901760
        %v2920 = vsub.f32 %v1696, %v2919
        %v2921 = vand.u32 %v2920, 4294901760
        %2922 = vmatprep.subr.mxu0 %v2921
        %v2923 = vand.u32 %v1695, 4294901760
        %v2924 = vsub.f32 %v1695, %v2923
        %v2925 = vand.u32 %v2924, 4294901760
        %2926 = vmatpush1.msra.mxu0 %v2925
        %v2927 = vand.u32 %v1698, 4294901760
        %v2928 = vsub.f32 %v1698, %v2927
        %v2929 = vand.u32 %v2928, 4294901760
        %2930 = vmatprep.subr.mxu0 %v2929
        %v2931 = vand.u32 %v1697, 4294901760
        %v2932 = vsub.f32 %v1697, %v2931
        %v2933 = vand.u32 %v2932, 4294901760
        %2934 = vmatpush1.msra.mxu0 %v2933
        %v2935 = vand.u32 %v1700, 4294901760
        %v2936 = vsub.f32 %v1700, %v2935
        %v2937 = vand.u32 %v2936, 4294901760
        %2938 = vmatprep.subr.mxu0 %v2937
        %v2939 = vand.u32 %v1699, 4294901760
        %v2940 = vsub.f32 %v1699, %v2939
        %v2941 = vand.u32 %v2940, 4294901760
        %2942 = vmatpush1.msra.mxu0 %v2941
        %v2943 = vand.u32 %v1702, 4294901760
        %v2944 = vsub.f32 %v1702, %v2943
        %v2945 = vand.u32 %v2944, 4294901760
        %2946 = vmatprep.subr.mxu0 %v2945
        %v2947 = vand.u32 %v1701, 4294901760
        %v2948 = vsub.f32 %v1701, %v2947
        %v2949 = vand.u32 %v2948, 4294901760
        %2950 = vmatpush1.msra.mxu0 %v2949
        %2951 = vmatprep.subr.mxu0 0.0
        %2952 = vmatpush1.msra.mxu0 0.0
        %2953 = vmatprep.subr.mxu0 0.0
        %2954 = vmatpush1.msra.mxu0 0.0
        %2955 = vmatprep.subr.mxu0 0.0
        %2956 = vmatpush1.msra.mxu0 0.0
        %2957 = vmatprep.subr.mxu0 0.0
        %2958 = vmatpush1.msra.mxu0 0.0
        %2959 = vmatprep.subr.mxu0 0.0
        %2960 = vmatpush1.msra.mxu0 0.0
        %2961 = vmatprep.subr.mxu0 0.0
        %2962 = vmatpush1.msra.mxu0 0.0
        %2963 = vmatprep.subr.mxu0 0.0
        %2964 = vmatpush1.msra.mxu0 0.0
        %2965 = vmatprep.subr.mxu0 0.0
        %2966 = vmatpush1.msra.mxu0 0.0
        %2967 = vmatprep.subr.mxu0 0.0
        %2968 = vmatpush1.msra.mxu0 0.0
        %2969 = vmatprep.subr.mxu0 0.0
        %2970 = vmatpush1.msra.mxu0 0.0
        %2971 = vmatprep.subr.mxu0 0.0
        %2972 = vmatpush1.msra.mxu0 0.0
        %2973 = vmatprep.subr.mxu0 0.0
        %2974 = vmatpush1.msra.mxu0 0.0
        %2975 = vmatprep.subr.mxu0 0.0
        %2976 = vmatpush1.msra.mxu0 0.0
        %2977 = vmatprep.subr.mxu0 0.0
        %2978 = vmatpush1.msra.mxu0 0.0
        %2979 = vmatprep.subr.mxu0 0.0
        %2980 = vmatpush1.msra.mxu0 0.0
        %2981 = vmatprep.subr.mxu0 0.0
        %2982 = vmatpush1.msra.mxu0 0.0
        %2983 = vmatprep.mubr.f32.mxu0 0.0
        %v2984 = vand.u32 %v1655, 4294901760
        %2985 = vmatmul.mubr.f32.gmra.mrb[0].mxu0 %v2984
        %v2986 = vpop.f32.mrb[0].mxu0
        %v2987 = vadd.f32 %v2684, %v2986
        %v2988 = vpop.f32.mrb[0].mxu0
        %v2989 = vadd.f32 %v2686, %v2988
        %2990 = vmatprep.mubr.f32.mxu0 0.0
        %v2991 = vand.u32 %v1656, 4294901760
        %2992 = vmatmul.mubr.f32.gmra.mrb[0].mxu0 %v2991
        %v2993 = vpop.f32.mrb[0].mxu0
        %v2994 = vadd.f32 %v2693, %v2993
        %v2995 = vpop.f32.mrb[0].mxu0
        %v2996 = vadd.f32 %v2695, %v2995
        %2997 = vmatprep.mubr.f32.mxu0 0.0
        %v2998 = vand.u32 %v1657, 4294901760
        %2999 = vmatmul.mubr.f32.gmra.mrb[0].mxu0 %v2998
        %v3000 = vpop.f32.mrb[0].mxu0
        %v3001 = vadd.f32 %v2702, %v3000
        %v3002 = vpop.f32.mrb[0].mxu0
        %v3003 = vadd.f32 %v2704, %v3002
        %3004 = vmatprep.mubr.f32.mxu0 0.0
        %v3005 = vand.u32 %v1658, 4294901760
        %3006 = vmatmul.mubr.f32.gmra.mrb[0].mxu0 %v3005
        %v3007 = vpop.f32.mrb[0].mxu0
        %v3008 = vadd.f32 %v2711, %v3007
        %v3009 = vpop.f32.mrb[0].mxu0
        %v3010 = vadd.f32 %v2713, %v3009
        %3011 = vmatprep.mubr.f32.mxu0 0.0
        %v3012 = vand.u32 %v1659, 4294901760
        %3013 = vmatmul.mubr.f32.gmra.mrb[0].mxu0 %v3012
        %v3014 = vpop.f32.mrb[0].mxu0
        %v3015 = vadd.f32 %v2720, %v3014
        %v3016 = vpop.f32.mrb[0].mxu0
        %v3017 = vadd.f32 %v2722, %v3016
        %3018 = vmatprep.mubr.f32.mxu0 0.0
        %v3019 = vand.u32 %v1660, 4294901760
        %3020 = vmatmul.mubr.f32.gmra.mrb[0].mxu0 %v3019
        %v3021 = vpop.f32.mrb[0].mxu0
        %v3022 = vadd.f32 %v2729, %v3021
        %v3023 = vpop.f32.mrb[0].mxu0
        %v3024 = vadd.f32 %v2731, %v3023
        %3025 = vmatprep.mubr.f32.mxu0 0.0
        %v3026 = vand.u32 %v1661, 4294901760
        %3027 = vmatmul.mubr.f32.gmra.mrb[0].mxu0 %v3026
        %v3028 = vpop.f32.mrb[0].mxu0
        %v3029 = vadd.f32 %v2738, %v3028
        %v3030 = vpop.f32.mrb[0].mxu0
        %v3031 = vadd.f32 %v2740, %v3030
        %3032 = vmatprep.mubr.f32.mxu0 0.0
        %v3033 = vand.u32 %v1662, 4294901760
        %3034 = vmatmul.mubr.f32.gmra.mrb[0].mxu0 %v3033
        %v3035 = vpop.f32.mrb[0].mxu0
        %v3036 = vadd.f32 %v2747, %v3035
        %v3037 = vpop.f32.mrb[0].mxu0
        %v3038 = vadd.f32 %v2749, %v3037
        %3039 = vmatprep.mubr.f32.mxu0 0.0
        %v3040 = vand.u32 %v1663, 4294901760
        %3041 = vmatmul.mubr.f32.gmra.mrb[0].mxu0 %v3040
        %v3042 = vpop.f32.mrb[0].mxu0
        %v3043 = vadd.f32 %v2756, %v3042
        %v3044 = vpop.f32.mrb[0].mxu0
        %v3045 = vadd.f32 %v2758, %v3044
        %3046 = vmatprep.mubr.f32.mxu0 0.0
        %v3047 = vand.u32 %v1664, 4294901760
        %3048 = vmatmul.mubr.f32.gmra.mrb[0].mxu0 %v3047
        %v3049 = vpop.f32.mrb[0].mxu0
        %v3050 = vadd.f32 %v2765, %v3049
        %v3051 = vpop.f32.mrb[0].mxu0
        %v3052 = vadd.f32 %v2767, %v3051
        %3053 = vmatprep.mubr.f32.mxu0 0.0
        %v3054 = vand.u32 %v1665, 4294901760
        %3055 = vmatmul.mubr.f32.gmra.mrb[0].mxu0 %v3054
        %v3056 = vpop.f32.mrb[0].mxu0
        %v3057 = vadd.f32 %v2774, %v3056
        %v3058 = vpop.f32.mrb[0].mxu0
        %v3059 = vadd.f32 %v2776, %v3058
        %3060 = vmatprep.mubr.f32.mxu0 0.0
        %v3061 = vand.u32 %v1666, 4294901760
        %3062 = vmatmul.mubr.f32.gmra.mrb[0].mxu0 %v3061
        %v3063 = vpop.f32.mrb[0].mxu0
        %v3064 = vadd.f32 %v2783, %v3063
        %v3065 = vpop.f32.mrb[0].mxu0
        %v3066 = vadd.f32 %v2785, %v3065
        %3067 = vmatprep.mubr.f32.mxu0 0.0
        %v3068 = vand.u32 %v1667, 4294901760
        %3069 = vmatmul.mubr.f32.gmra.mrb[0].mxu0 %v3068
        %v3070 = vpop.f32.mrb[0].mxu0
        %v3071 = vadd.f32 %v2792, %v3070
        %v3072 = vpop.f32.mrb[0].mxu0
        %v3073 = vadd.f32 %v2794, %v3072
        %3074 = vmatprep.mubr.f32.mxu0 0.0
        %v3075 = vand.u32 %v1668, 4294901760
        %3076 = vmatmul.mubr.f32.gmra.mrb[0].mxu0 %v3075
        %v3077 = vpop.f32.mrb[0].mxu0
        %v3078 = vadd.f32 %v2801, %v3077
        %v3079 = vpop.f32.mrb[0].mxu0
        %v3080 = vadd.f32 %v2803, %v3079
        %3081 = vmatprep.mubr.f32.mxu0 0.0
        %v3082 = vand.u32 %v1669, 4294901760
        %3083 = vmatmul.mubr.f32.gmra.mrb[0].mxu0 %v3082
        %v3084 = vpop.f32.mrb[0].mxu0
        %v3085 = vadd.f32 %v2810, %v3084
        %v3086 = vpop.f32.mrb[0].mxu0
        %v3087 = vadd.f32 %v2812, %v3086
        %3088 = vmatprep.mubr.f32.mxu0 0.0
        %v3089 = vand.u32 %v1670, 4294901760
        %3090 = vmatmul.mubr.f32.gmra.mrb[0].mxu0 %v3089
        %v3091 = vpop.f32.mrb[0].mxu0
        %v3092 = vadd.f32 %v2819, %v3091
        %v3093 = vpop.f32.mrb[0].mxu0
        %v3094 = vadd.f32 %v2821, %v3093
        %3095 = vdwg.mxu0
        %v3096 = vand.u32 %v1672, 4294901760
        %3097 = vmatprep.subr.mxu0 %v3096
        %v3098 = vand.u32 %v1671, 4294901760
        %3099 = vmatpush1.msra.mxu0 %v3098
        %v3100 = vand.u32 %v1674, 4294901760
        %3101 = vmatprep.subr.mxu0 %v3100
        %v3102 = vand.u32 %v1673, 4294901760
        %3103 = vmatpush1.msra.mxu0 %v3102
        %v3104 = vand.u32 %v1676, 4294901760
        %3105 = vmatprep.subr.mxu0 %v3104
        %v3106 = vand.u32 %v1675, 4294901760
        %3107 = vmatpush1.msra.mxu0 %v3106
        %v3108 = vand.u32 %v1678, 4294901760
        %3109 = vmatprep.subr.mxu0 %v3108
        %v3110 = vand.u32 %v1677, 4294901760
        %3111 = vmatpush1.msra.mxu0 %v3110
        %v3112 = vand.u32 %v1680, 4294901760
        %3113 = vmatprep.subr.mxu0 %v3112
        %v3114 = vand.u32 %v1679, 4294901760
        %3115 = vmatpush1.msra.mxu0 %v3114
        %v3116 = vand.u32 %v1682, 4294901760
        %3117 = vmatprep.subr.mxu0 %v3116
        %v3118 = vand.u32 %v1681, 4294901760
        %3119 = vmatpush1.msra.mxu0 %v3118
        %v3120 = vand.u32 %v1684, 4294901760
        %3121 = vmatprep.subr.mxu0 %v3120
        %v3122 = vand.u32 %v1683, 4294901760
        %3123 = vmatpush1.msra.mxu0 %v3122
        %v3124 = vand.u32 %v1686, 4294901760
        %3125 = vmatprep.subr.mxu0 %v3124
        %v3126 = vand.u32 %v1685, 4294901760
        %3127 = vmatpush1.msra.mxu0 %v3126
        %v3128 = vand.u32 %v1688, 4294901760
        %3129 = vmatprep.subr.mxu0 %v3128
        %v3130 = vand.u32 %v1687, 4294901760
        %3131 = vmatpush1.msra.mxu0 %v3130
        %v3132 = vand.u32 %v1690, 4294901760
        %3133 = vmatprep.subr.mxu0 %v3132
        %v3134 = vand.u32 %v1689, 4294901760
        %3135 = vmatpush1.msra.mxu0 %v3134
        %v3136 = vand.u32 %v1692, 4294901760
        %3137 = vmatprep.subr.mxu0 %v3136
        %v3138 = vand.u32 %v1691, 4294901760
        %3139 = vmatpush1.msra.mxu0 %v3138
        %v3140 = vand.u32 %v1694, 4294901760
        %3141 = vmatprep.subr.mxu0 %v3140
        %v3142 = vand.u32 %v1693, 4294901760
        %3143 = vmatpush1.msra.mxu0 %v3142
        %v3144 = vand.u32 %v1696, 4294901760
        %3145 = vmatprep.subr.mxu0 %v3144
        %v3146 = vand.u32 %v1695, 4294901760
        %3147 = vmatpush1.msra.mxu0 %v3146
        %v3148 = vand.u32 %v1698, 4294901760
        %3149 = vmatprep.subr.mxu0 %v3148
        %v3150 = vand.u32 %v1697, 4294901760
        %3151 = vmatpush1.msra.mxu0 %v3150
        %v3152 = vand.u32 %v1700, 4294901760
        %3153 = vmatprep.subr.mxu0 %v3152
        %v3154 = vand.u32 %v1699, 4294901760
        %3155 = vmatpush1.msra.mxu0 %v3154
        %v3156 = vand.u32 %v1702, 4294901760
        %3157 = vmatprep.subr.mxu0 %v3156
        %v3158 = vand.u32 %v1701, 4294901760
        %3159 = vmatpush1.msra.mxu0 %v3158
        %3160 = vmatprep.subr.mxu0 0.0
        %3161 = vmatpush1.msra.mxu0 0.0
        %3162 = vmatprep.subr.mxu0 0.0
        %3163 = vmatpush1.msra.mxu0 0.0
        %3164 = vmatprep.subr.mxu0 0.0
        %3165 = vmatpush1.msra.mxu0 0.0
        %3166 = vmatprep.subr.mxu0 0.0
        %3167 = vmatpush1.msra.mxu0 0.0
        %3168 = vmatprep.subr.mxu0 0.0
        %3169 = vmatpush1.msra.mxu0 0.0
        %3170 = vmatprep.subr.mxu0 0.0
        %3171 = vmatpush1.msra.mxu0 0.0
        %3172 = vmatprep.subr.mxu0 0.0
        %3173 = vmatpush1.msra.mxu0 0.0
        %3174 = vmatprep.subr.mxu0 0.0
        %3175 = vmatpush1.msra.mxu0 0.0
        %3176 = vmatprep.subr.mxu0 0.0
        %3177 = vmatpush1.msra.mxu0 0.0
        %3178 = vmatprep.subr.mxu0 0.0
        %3179 = vmatpush1.msra.mxu0 0.0
        %3180 = vmatprep.subr.mxu0 0.0
        %3181 = vmatpush1.msra.mxu0 0.0
        %3182 = vmatprep.subr.mxu0 0.0
        %3183 = vmatpush1.msra.mxu0 0.0
        %3184 = vmatprep.subr.mxu0 0.0
        %3185 = vmatpush1.msra.mxu0 0.0
        %3186 = vmatprep.subr.mxu0 0.0
        %3187 = vmatpush1.msra.mxu0 0.0
        %3188 = vmatprep.subr.mxu0 0.0
        %3189 = vmatpush1.msra.mxu0 0.0
        %3190 = vmatprep.subr.mxu0 0.0
        %3191 = vmatpush1.msra.mxu0 0.0
        %3192 = vmatprep.mubr.f32.mxu0 0.0
        %v3193 = vand.u32 %v1655, 4294901760
        %3194 = vmatmul.mubr.f32.gmra.mrb[0].mxu0 %v3193
        %v3195 = vpop.f32.mrb[0].mxu0
        %v3196 = vadd.f32 %v2987, %v3195
        %v3197 = vpop.f32.mrb[0].mxu0
        %v3198 = vadd.f32 %v2989, %v3197
        %3199 = vmatprep.mubr.f32.mxu0 0.0
        %v3200 = vand.u32 %v1656, 4294901760
        %3201 = vmatmul.mubr.f32.gmra.mrb[0].mxu0 %v3200
        %v3202 = vpop.f32.mrb[0].mxu0
        %v3203 = vadd.f32 %v2994, %v3202
        %v3204 = vpop.f32.mrb[0].mxu0
        %v3205 = vadd.f32 %v2996, %v3204
        %3206 = vmatprep.mubr.f32.mxu0 0.0
        %v3207 = vand.u32 %v1657, 4294901760
        %3208 = vmatmul.mubr.f32.gmra.mrb[0].mxu0 %v3207
        %v3209 = vpop.f32.mrb[0].mxu0
        %v3210 = vadd.f32 %v3001, %v3209
        %v3211 = vpop.f32.mrb[0].mxu0
        %v3212 = vadd.f32 %v3003, %v3211
        %3213 = vmatprep.mubr.f32.mxu0 0.0
        %v3214 = vand.u32 %v1658, 4294901760
        %3215 = vmatmul.mubr.f32.gmra.mrb[0].mxu0 %v3214
        %v3216 = vpop.f32.mrb[0].mxu0
        %v3217 = vadd.f32 %v3008, %v3216
        %v3218 = vpop.f32.mrb[0].mxu0
        %v3219 = vadd.f32 %v3010, %v3218
        %3220 = vmatprep.mubr.f32.mxu0 0.0
        %v3221 = vand.u32 %v1659, 4294901760
        %3222 = vmatmul.mubr.f32.gmra.mrb[0].mxu0 %v3221
        %v3223 = vpop.f32.mrb[0].mxu0
        %v3224 = vadd.f32 %v3015, %v3223
        %v3225 = vpop.f32.mrb[0].mxu0
        %v3226 = vadd.f32 %v3017, %v3225
        %3227 = vmatprep.mubr.f32.mxu0 0.0
        %v3228 = vand.u32 %v1660, 4294901760
        %3229 = vmatmul.mubr.f32.gmra.mrb[0].mxu0 %v3228
        %v3230 = vpop.f32.mrb[0].mxu0
        %v3231 = vadd.f32 %v3022, %v3230
        %v3232 = vpop.f32.mrb[0].mxu0
        %v3233 = vadd.f32 %v3024, %v3232
        %3234 = vmatprep.mubr.f32.mxu0 0.0
        %v3235 = vand.u32 %v1661, 4294901760
        %3236 = vmatmul.mubr.f32.gmra.mrb[0].mxu0 %v3235
        %v3237 = vpop.f32.mrb[0].mxu0
        %v3238 = vadd.f32 %v3029, %v3237
        %v3239 = vpop.f32.mrb[0].mxu0
        %v3240 = vadd.f32 %v3031, %v3239
        %3241 = vmatprep.mubr.f32.mxu0 0.0
        %v3242 = vand.u32 %v1662, 4294901760
        %3243 = vmatmul.mubr.f32.gmra.mrb[0].mxu0 %v3242
        %v3244 = vpop.f32.mrb[0].mxu0
        %v3245 = vadd.f32 %v3036, %v3244
        %v3246 = vpop.f32.mrb[0].mxu0
        %v3247 = vadd.f32 %v3038, %v3246
        %3248 = vmatprep.mubr.f32.mxu0 0.0
        %v3249 = vand.u32 %v1663, 4294901760
        %3250 = vmatmul.mubr.f32.gmra.mrb[0].mxu0 %v3249
        %v3251 = vpop.f32.mrb[0].mxu0
        %v3252 = vadd.f32 %v3043, %v3251
        %v3253 = vpop.f32.mrb[0].mxu0
        %v3254 = vadd.f32 %v3045, %v3253
        %3255 = vmatprep.mubr.f32.mxu0 0.0
        %v3256 = vand.u32 %v1664, 4294901760
        %3257 = vmatmul.mubr.f32.gmra.mrb[0].mxu0 %v3256
        %v3258 = vpop.f32.mrb[0].mxu0
        %v3259 = vadd.f32 %v3050, %v3258
        %v3260 = vpop.f32.mrb[0].mxu0
        %v3261 = vadd.f32 %v3052, %v3260
        %3262 = vmatprep.mubr.f32.mxu0 0.0
        %v3263 = vand.u32 %v1665, 4294901760
        %3264 = vmatmul.mubr.f32.gmra.mrb[0].mxu0 %v3263
        %v3265 = vpop.f32.mrb[0].mxu0
        %v3266 = vadd.f32 %v3057, %v3265
        %v3267 = vpop.f32.mrb[0].mxu0
        %v3268 = vadd.f32 %v3059, %v3267
        %3269 = vmatprep.mubr.f32.mxu0 0.0
        %v3270 = vand.u32 %v1666, 4294901760
        %3271 = vmatmul.mubr.f32.gmra.mrb[0].mxu0 %v3270
        %v3272 = vpop.f32.mrb[0].mxu0
        %v3273 = vadd.f32 %v3064, %v3272
        %v3274 = vpop.f32.mrb[0].mxu0
        %v3275 = vadd.f32 %v3066, %v3274
        %3276 = vmatprep.mubr.f32.mxu0 0.0
        %v3277 = vand.u32 %v1667, 4294901760
        %3278 = vmatmul.mubr.f32.gmra.mrb[0].mxu0 %v3277
        %v3279 = vpop.f32.mrb[0].mxu0
        %v3280 = vadd.f32 %v3071, %v3279
        %v3281 = vpop.f32.mrb[0].mxu0
        %v3282 = vadd.f32 %v3073, %v3281
        %3283 = vmatprep.mubr.f32.mxu0 0.0
        %v3284 = vand.u32 %v1668, 4294901760
        %3285 = vmatmul.mubr.f32.gmra.mrb[0].mxu0 %v3284
        %v3286 = vpop.f32.mrb[0].mxu0
        %v3287 = vadd.f32 %v3078, %v3286
        %v3288 = vpop.f32.mrb[0].mxu0
        %v3289 = vadd.f32 %v3080, %v3288
        %3290 = vmatprep.mubr.f32.mxu0 0.0
        %v3291 = vand.u32 %v1669, 4294901760
        %3292 = vmatmul.mubr.f32.gmra.mrb[0].mxu0 %v3291
        %v3293 = vpop.f32.mrb[0].mxu0
        %v3294 = vadd.f32 %v3085, %v3293
        %v3295 = vpop.f32.mrb[0].mxu0
        %v3296 = vadd.f32 %v3087, %v3295
        %3297 = vmatprep.mubr.f32.mxu0 0.0
        %v3298 = vand.u32 %v1670, 4294901760
        %3299 = vmatmul.mubr.f32.gmra.mrb[0].mxu0 %v3298
        %v3300 = vpop.f32.mrb[0].mxu0
        %v3301 = vadd.f32 %v3092, %v3300
        %v3302 = vpop.f32.mrb[0].mxu0
        %v3303 = vadd.f32 %v3094, %v3302
        %3304 = vdwg.mxu0
        %v3305 = vtanh.pop %v3196
        %v3306 = vtanh.pop %v3203
        %v3307 = vtanh.pop %v3210
        %v3308 = vtanh.pop %v3217
        %v3309 = vtanh.pop %v3224
        %v3310 = vtanh.pop %v3231
        %v3311 = vtanh.pop %v3238
        %v3312 = vtanh.pop %v3245
        %v3313 = vtanh.pop %v3252
        %v3314 = vtanh.pop %v3259
        %v3315 = vtanh.pop %v3266
        %v3316 = vtanh.pop %v3273
        %v3317 = vtanh.pop %v3280
        %v3318 = vtanh.pop %v3287
        %v3319 = vtanh.pop %v3294
        %v3320 = vtanh.pop %v3301
        %v3321 = vmul.f32 %v3305, 1.442695
        %v3322 = vpow.pop %v3321
        %v3323 = vmul.f32 %v3306, 1.442695
        %v3324 = vpow.pop %v3323
        %v3325 = vmul.f32 %v3307, 1.442695
        %v3326 = vpow.pop %v3325
        %v3327 = vmul.f32 %v3308, 1.442695
        %v3328 = vpow.pop %v3327
        %v3329 = vmul.f32 %v3309, 1.442695
        %v3330 = vpow.pop %v3329
        %v3331 = vmul.f32 %v3310, 1.442695
        %v3332 = vpow.pop %v3331
        %v3333 = vmul.f32 %v3311, 1.442695
        %v3334 = vpow.pop %v3333
        %v3335 = vmul.f32 %v3312, 1.442695
        %v3336 = vpow.pop %v3335
        %v3337 = vmul.f32 %v3313, 1.442695
        %v3338 = vpow.pop %v3337
        %v3339 = vmul.f32 %v3314, 1.442695
        %v3340 = vpow.pop %v3339
        %v3341 = vmul.f32 %v3315, 1.442695
        %v3342 = vpow.pop %v3341
        %v3343 = vmul.f32 %v3316, 1.442695
        %v3344 = vpow.pop %v3343
        %v3345 = vmul.f32 %v3317, 1.442695
        %v3346 = vpow.pop %v3345
        %v3347 = vmul.f32 %v3318, 1.442695
        %v3348 = vpow.pop %v3347
        %v3349 = vmul.f32 %v3319, 1.442695
        %v3350 = vpow.pop %v3349
        %v3351 = vmul.f32 %v3320, 1.442695
        %v3352 = vpow.pop %v3351
        %v3353 = vmul.f32 %v317, %v3322
        %v3354 = vmul.f32 %v319, %v3324
        %v3355 = vmul.f32 %v321, %v3326
        %v3356 = vmul.f32 %v323, %v3328
        %v3357 = vmul.f32 %v325, %v3330
        %v3358 = vmul.f32 %v327, %v3332
        %v3359 = vmul.f32 %v329, %v3334
        %v3360 = vmul.f32 %v331, %v3336
        %v3361 = vmul.f32 %v333, %v3338
        %v3362 = vmul.f32 %v335, %v3340
        %v3363 = vmul.f32 %v337, %v3342
        %v3364 = vmul.f32 %v339, %v3344
        %v3365 = vmul.f32 %v341, %v3346
        %v3366 = vmul.f32 %v343, %v3348
        %v3367 = vmul.f32 %v345, %v3350
        %v3368 = vmul.f32 %v347, %v3352
        %v3369 = vadd.f32 %v3353, %v3198
        %v3370 = vadd.f32 %v3354, %v3205
        %v3371 = vadd.f32 %v3355, %v3212
        %v3372 = vadd.f32 %v3356, %v3219
        %v3373 = vadd.f32 %v3357, %v3226
        %v3374 = vadd.f32 %v3358, %v3233
        %v3375 = vadd.f32 %v3359, %v3240
        %v3376 = vadd.f32 %v3360, %v3247
        %v3377 = vadd.f32 %v3361, %v3254
        %v3378 = vadd.f32 %v3362, %v3261
        %v3379 = vadd.f32 %v3363, %v3268
        %v3380 = vadd.f32 %v3364, %v3275
        %v3381 = vadd.f32 %v3365, %v3282
        %v3382 = vadd.f32 %v3366, %v3289
        %v3383 = vadd.f32 %v3367, %v3296
        %v3384 = vadd.f32 %v3368, %v3303
        %v3385 = vadd.f32 %v3305, 0.0
        %v3386 = vadd.f32 %v3306, 0.0
        %v3387 = vadd.f32 %v3307, 0.0
        %v3388 = vadd.f32 %v3308, 0.0
        %v3389 = vadd.f32 %v3309, 0.0
        %v3390 = vadd.f32 %v3310, 0.0
        %v3391 = vadd.f32 %v3311, 0.0
        %v3392 = vadd.f32 %v3312, 0.0
        %v3393 = vadd.f32 %v3313, 0.0
        %v3394 = vadd.f32 %v3314, 0.0
        %v3395 = vadd.f32 %v3315, 0.0
        %v3396 = vadd.f32 %v3316, 0.0
        %v3397 = vadd.f32 %v3317, 0.0
        %v3398 = vadd.f32 %v3318, 0.0
        %v3399 = vadd.f32 %v3319, 0.0
        %v3400 = vadd.f32 %v3320, 0.0
        %s3401 = scalar_lea.vmem [#allocation5], 128
        %v3402 = vld [vmem:[%s3401] sm:$0xff]
        %v3403 = vld [vmem:[%s3401 + $0x8] sm:$0xff]
        %v3404 = vld [vmem:[%s3401 + $0x10] sm:$0xff]
        %v3405 = vld [vmem:[%s3401 + $0x18] sm:$0xff]
        %v3406 = vld [vmem:[%s3401 + $0x20] sm:$0xff]
        %v3407 = vld [vmem:[%s3401 + $0x28] sm:$0xff]
        %v3408 = vld [vmem:[%s3401 + $0x30] sm:$0xff]
        %v3409 = vld [vmem:[%s3401 + $0x38] sm:$0xff]
        %v3410 = vld [vmem:[%s3401 + $0x40] sm:$0xff]
        %v3411 = vld [vmem:[%s3401 + $0x48] sm:$0xff]
        %v3412 = vld [vmem:[%s3401 + $0x50] sm:$0xff]
        %v3413 = vld [vmem:[%s3401 + $0x58] sm:$0xff]
        %v3414 = vld [vmem:[%s3401 + $0x60] sm:$0xff]
        %v3415 = vld [vmem:[%s3401 + $0x68] sm:$0xff]
        %v3416 = vld [vmem:[%s3401 + $0x70] sm:$0xff]
        %v3417 = vld [vmem:[%s3401 + $0x78] sm:$0xff]
        %v3418 = vld [vmem:[%s2 + $0x1] sm:$0x1]
        %v3419 = vlaneseq
        %v3420 = vshrl.u32 %v3419, 7
        %v3421 = vsub.s32 0, %v3420
        %v3422 = vrot.slane %v3418, %v3421
        %3423 = vmatprep.subr.mxu0 0.0
        %v3424 = vand.u32 %v3402, 4294901760
        %3425 = vmatpush1.msra.mxu0 %v3424
        %3426 = vmatprep.subr.mxu0 0.0
        %v3427 = vand.u32 %v3403, 4294901760
        %3428 = vmatpush1.msra.mxu0 %v3427
        %3429 = vmatprep.subr.mxu0 0.0
        %v3430 = vand.u32 %v3404, 4294901760
        %3431 = vmatpush1.msra.mxu0 %v3430
        %3432 = vmatprep.subr.mxu0 0.0
        %v3433 = vand.u32 %v3405, 4294901760
        %3434 = vmatpush1.msra.mxu0 %v3433
        %3435 = vmatprep.subr.mxu0 0.0
        %v3436 = vand.u32 %v3406, 4294901760
        %3437 = vmatpush1.msra.mxu0 %v3436
        %3438 = vmatprep.subr.mxu0 0.0
        %v3439 = vand.u32 %v3407, 4294901760
        %3440 = vmatpush1.msra.mxu0 %v3439
        %3441 = vmatprep.subr.mxu0 0.0
        %v3442 = vand.u32 %v3408, 4294901760
        %3443 = vmatpush1.msra.mxu0 %v3442
        %3444 = vmatprep.subr.mxu0 0.0
        %v3445 = vand.u32 %v3409, 4294901760
        %3446 = vmatpush1.msra.mxu0 %v3445
        %3447 = vmatprep.subr.mxu0 0.0
        %v3448 = vand.u32 %v3410, 4294901760
        %3449 = vmatpush1.msra.mxu0 %v3448
        %3450 = vmatprep.subr.mxu0 0.0
        %v3451 = vand.u32 %v3411, 4294901760
        %3452 = vmatpush1.msra.mxu0 %v3451
        %3453 = vmatprep.subr.mxu0 0.0
        %v3454 = vand.u32 %v3412, 4294901760
        %3455 = vmatpush1.msra.mxu0 %v3454
        %3456 = vmatprep.subr.mxu0 0.0
        %v3457 = vand.u32 %v3413, 4294901760
        %3458 = vmatpush1.msra.mxu0 %v3457
        %3459 = vmatprep.subr.mxu0 0.0
        %v3460 = vand.u32 %v3414, 4294901760
        %3461 = vmatpush1.msra.mxu0 %v3460
        %3462 = vmatprep.subr.mxu0 0.0
        %v3463 = vand.u32 %v3415, 4294901760
        %3464 = vmatpush1.msra.mxu0 %v3463
        %3465 = vmatprep.subr.mxu0 0.0
        %v3466 = vand.u32 %v3416, 4294901760
        %3467 = vmatpush1.msra.mxu0 %v3466
        %3468 = vmatprep.subr.mxu0 0.0
        %v3469 = vand.u32 %v3417, 4294901760
        %3470 = vmatpush1.msra.mxu0 %v3469
        %3471 = vmatprep.subr.mxu0 0.0
        %3472 = vmatpush1.msra.mxu0 0.0
        %3473 = vmatprep.subr.mxu0 0.0
        %3474 = vmatpush1.msra.mxu0 0.0
        %3475 = vmatprep.subr.mxu0 0.0
        %3476 = vmatpush1.msra.mxu0 0.0
        %3477 = vmatprep.subr.mxu0 0.0
        %3478 = vmatpush1.msra.mxu0 0.0
        %3479 = vmatprep.subr.mxu0 0.0
        %3480 = vmatpush1.msra.mxu0 0.0
        %3481 = vmatprep.subr.mxu0 0.0
        %3482 = vmatpush1.msra.mxu0 0.0
        %3483 = vmatprep.subr.mxu0 0.0
        %3484 = vmatpush1.msra.mxu0 0.0
        %3485 = vmatprep.subr.mxu0 0.0
        %3486 = vmatpush1.msra.mxu0 0.0
        %3487 = vmatprep.subr.mxu0 0.0
        %3488 = vmatpush1.msra.mxu0 0.0
        %3489 = vmatprep.subr.mxu0 0.0
        %3490 = vmatpush1.msra.mxu0 0.0
        %3491 = vmatprep.subr.mxu0 0.0
        %3492 = vmatpush1.msra.mxu0 0.0
        %3493 = vmatprep.subr.mxu0 0.0
        %3494 = vmatpush1.msra.mxu0 0.0
        %3495 = vmatprep.subr.mxu0 0.0
        %3496 = vmatpush1.msra.mxu0 0.0
        %3497 = vmatprep.subr.mxu0 0.0
        %3498 = vmatpush1.msra.mxu0 0.0
        %3499 = vmatprep.subr.mxu0 0.0
        %3500 = vmatpush1.msra.mxu0 0.0
        %3501 = vmatprep.subr.mxu0 0.0
        %3502 = vmatpush1.msra.mxu0 0.0
        %3503 = vmatprep.mubr.f32.mxu0 0.0
        %v3504 = vand.u32 %v3369, 4294901760
        %v3505 = vsub.f32 %v3369, %v3504
        %v3506 = vand.u32 %v3505, 4294901760
        %v3507 = vsub.f32 %v3505, %v3506
        %v3508 = vand.u32 %v3507, 4294901760
        %3509 = vmatmul.mubr.f32.gmra.mrb[0].mxu0 %v3508
        %v3510 = vpop.f32.mrb[0].mxu0
        %v3511 = vadd.f32 %v3422, %v3510
        %v3512 = vpop.f32.mrb[0].mxu0
        %3513 = vmatprep.mubr.f32.mxu0 0.0
        %v3514 = vand.u32 %v3370, 4294901760
        %v3515 = vsub.f32 %v3370, %v3514
        %v3516 = vand.u32 %v3515, 4294901760
        %v3517 = vsub.f32 %v3515, %v3516
        %v3518 = vand.u32 %v3517, 4294901760
        %3519 = vmatmul.mubr.f32.gmra.mrb[0].mxu0 %v3518
        %v3520 = vpop.f32.mrb[0].mxu0
        %v3521 = vadd.f32 %v3422, %v3520
        %v3522 = vpop.f32.mrb[0].mxu0
        %3523 = vmatprep.mubr.f32.mxu0 0.0
        %v3524 = vand.u32 %v3371, 4294901760
        %v3525 = vsub.f32 %v3371, %v3524
        %v3526 = vand.u32 %v3525, 4294901760
        %v3527 = vsub.f32 %v3525, %v3526
        %v3528 = vand.u32 %v3527, 4294901760
        %3529 = vmatmul.mubr.f32.gmra.mrb[0].mxu0 %v3528
        %v3530 = vpop.f32.mrb[0].mxu0
        %v3531 = vadd.f32 %v3422, %v3530
        %v3532 = vpop.f32.mrb[0].mxu0
        %3533 = vmatprep.mubr.f32.mxu0 0.0
        %v3534 = vand.u32 %v3372, 4294901760
        %v3535 = vsub.f32 %v3372, %v3534
        %v3536 = vand.u32 %v3535, 4294901760
        %v3537 = vsub.f32 %v3535, %v3536
        %v3538 = vand.u32 %v3537, 4294901760
        %3539 = vmatmul.mubr.f32.gmra.mrb[0].mxu0 %v3538
        %v3540 = vpop.f32.mrb[0].mxu0
        %v3541 = vadd.f32 %v3422, %v3540
        %v3542 = vpop.f32.mrb[0].mxu0
        %3543 = vmatprep.mubr.f32.mxu0 0.0
        %v3544 = vand.u32 %v3373, 4294901760
        %v3545 = vsub.f32 %v3373, %v3544
        %v3546 = vand.u32 %v3545, 4294901760
        %v3547 = vsub.f32 %v3545, %v3546
        %v3548 = vand.u32 %v3547, 4294901760
        %3549 = vmatmul.mubr.f32.gmra.mrb[0].mxu0 %v3548
        %v3550 = vpop.f32.mrb[0].mxu0
        %v3551 = vadd.f32 %v3422, %v3550
        %v3552 = vpop.f32.mrb[0].mxu0
        %3553 = vmatprep.mubr.f32.mxu0 0.0
        %v3554 = vand.u32 %v3374, 4294901760
        %v3555 = vsub.f32 %v3374, %v3554
        %v3556 = vand.u32 %v3555, 4294901760
        %v3557 = vsub.f32 %v3555, %v3556
        %v3558 = vand.u32 %v3557, 4294901760
        %3559 = vmatmul.mubr.f32.gmra.mrb[0].mxu0 %v3558
        %v3560 = vpop.f32.mrb[0].mxu0
        %v3561 = vadd.f32 %v3422, %v3560
        %v3562 = vpop.f32.mrb[0].mxu0
        %3563 = vmatprep.mubr.f32.mxu0 0.0
        %v3564 = vand.u32 %v3375, 4294901760
        %v3565 = vsub.f32 %v3375, %v3564
        %v3566 = vand.u32 %v3565, 4294901760
        %v3567 = vsub.f32 %v3565, %v3566
        %v3568 = vand.u32 %v3567, 4294901760
        %3569 = vmatmul.mubr.f32.gmra.mrb[0].mxu0 %v3568
        %v3570 = vpop.f32.mrb[0].mxu0
        %v3571 = vadd.f32 %v3422, %v3570
        %v3572 = vpop.f32.mrb[0].mxu0
        %3573 = vmatprep.mubr.f32.mxu0 0.0
        %v3574 = vand.u32 %v3376, 4294901760
        %v3575 = vsub.f32 %v3376, %v3574
        %v3576 = vand.u32 %v3575, 4294901760
        %v3577 = vsub.f32 %v3575, %v3576
        %v3578 = vand.u32 %v3577, 4294901760
        %3579 = vmatmul.mubr.f32.gmra.mrb[0].mxu0 %v3578
        %v3580 = vpop.f32.mrb[0].mxu0
        %v3581 = vadd.f32 %v3422, %v3580
        %v3582 = vpop.f32.mrb[0].mxu0
        %3583 = vmatprep.mubr.f32.mxu0 0.0
        %v3584 = vand.u32 %v3377, 4294901760
        %v3585 = vsub.f32 %v3377, %v3584
        %v3586 = vand.u32 %v3585, 4294901760
        %v3587 = vsub.f32 %v3585, %v3586
        %v3588 = vand.u32 %v3587, 4294901760
        %3589 = vmatmul.mubr.f32.gmra.mrb[0].mxu0 %v3588
        %v3590 = vpop.f32.mrb[0].mxu0
        %v3591 = vadd.f32 %v3422, %v3590
        %v3592 = vpop.f32.mrb[0].mxu0
        %3593 = vmatprep.mubr.f32.mxu0 0.0
        %v3594 = vand.u32 %v3378, 4294901760
        %v3595 = vsub.f32 %v3378, %v3594
        %v3596 = vand.u32 %v3595, 4294901760
        %v3597 = vsub.f32 %v3595, %v3596
        %v3598 = vand.u32 %v3597, 4294901760
        %3599 = vmatmul.mubr.f32.gmra.mrb[0].mxu0 %v3598
        %v3600 = vpop.f32.mrb[0].mxu0
        %v3601 = vadd.f32 %v3422, %v3600
        %v3602 = vpop.f32.mrb[0].mxu0
        %3603 = vmatprep.mubr.f32.mxu0 0.0
        %v3604 = vand.u32 %v3379, 4294901760
        %v3605 = vsub.f32 %v3379, %v3604
        %v3606 = vand.u32 %v3605, 4294901760
        %v3607 = vsub.f32 %v3605, %v3606
        %v3608 = vand.u32 %v3607, 4294901760
        %3609 = vmatmul.mubr.f32.gmra.mrb[0].mxu0 %v3608
        %v3610 = vpop.f32.mrb[0].mxu0
        %v3611 = vadd.f32 %v3422, %v3610
        %v3612 = vpop.f32.mrb[0].mxu0
        %3613 = vmatprep.mubr.f32.mxu0 0.0
        %v3614 = vand.u32 %v3380, 4294901760
        %v3615 = vsub.f32 %v3380, %v3614
        %v3616 = vand.u32 %v3615, 4294901760
        %v3617 = vsub.f32 %v3615, %v3616
        %v3618 = vand.u32 %v3617, 4294901760
        %3619 = vmatmul.mubr.f32.gmra.mrb[0].mxu0 %v3618
        %v3620 = vpop.f32.mrb[0].mxu0
        %v3621 = vadd.f32 %v3422, %v3620
        %v3622 = vpop.f32.mrb[0].mxu0
        %3623 = vmatprep.mubr.f32.mxu0 0.0
        %v3624 = vand.u32 %v3381, 4294901760
        %v3625 = vsub.f32 %v3381, %v3624
        %v3626 = vand.u32 %v3625, 4294901760
        %v3627 = vsub.f32 %v3625, %v3626
        %v3628 = vand.u32 %v3627, 4294901760
        %3629 = vmatmul.mubr.f32.gmra.mrb[0].mxu0 %v3628
        %v3630 = vpop.f32.mrb[0].mxu0
        %v3631 = vadd.f32 %v3422, %v3630
        %v3632 = vpop.f32.mrb[0].mxu0
        %3633 = vmatprep.mubr.f32.mxu0 0.0
        %v3634 = vand.u32 %v3382, 4294901760
        %v3635 = vsub.f32 %v3382, %v3634
        %v3636 = vand.u32 %v3635, 4294901760
        %v3637 = vsub.f32 %v3635, %v3636
        %v3638 = vand.u32 %v3637, 4294901760
        %3639 = vmatmul.mubr.f32.gmra.mrb[0].mxu0 %v3638
        %v3640 = vpop.f32.mrb[0].mxu0
        %v3641 = vadd.f32 %v3422, %v3640
        %v3642 = vpop.f32.mrb[0].mxu0
        %3643 = vmatprep.mubr.f32.mxu0 0.0
        %v3644 = vand.u32 %v3383, 4294901760
        %v3645 = vsub.f32 %v3383, %v3644
        %v3646 = vand.u32 %v3645, 4294901760
        %v3647 = vsub.f32 %v3645, %v3646
        %v3648 = vand.u32 %v3647, 4294901760
        %3649 = vmatmul.mubr.f32.gmra.mrb[0].mxu0 %v3648
        %v3650 = vpop.f32.mrb[0].mxu0
        %v3651 = vadd.f32 %v3422, %v3650
        %v3652 = vpop.f32.mrb[0].mxu0
        %3653 = vmatprep.mubr.f32.mxu0 0.0
        %v3654 = vand.u32 %v3384, 4294901760
        %v3655 = vsub.f32 %v3384, %v3654
        %v3656 = vand.u32 %v3655, 4294901760
        %v3657 = vsub.f32 %v3655, %v3656
        %v3658 = vand.u32 %v3657, 4294901760
        %3659 = vmatmul.mubr.f32.gmra.mrb[0].mxu0 %v3658
        %v3660 = vpop.f32.mrb[0].mxu0
        %v3661 = vadd.f32 %v3422, %v3660
        %v3662 = vpop.f32.mrb[0].mxu0
        %3663 = vdwg.mxu0
        %3664 = vmatprep.subr.mxu0 0.0
        %v3665 = vand.u32 %v3402, 4294901760
        %v3666 = vsub.f32 %v3402, %v3665
        %v3667 = vand.u32 %v3666, 4294901760
        %v3668 = vsub.f32 %v3666, %v3667
        %v3669 = vand.u32 %v3668, 4294901760
        %3670 = vmatpush1.msra.mxu0 %v3669
        %3671 = vmatprep.subr.mxu0 0.0
        %v3672 = vand.u32 %v3403, 4294901760
        %v3673 = vsub.f32 %v3403, %v3672
        %v3674 = vand.u32 %v3673, 4294901760
        %v3675 = vsub.f32 %v3673, %v3674
        %v3676 = vand.u32 %v3675, 4294901760
        %3677 = vmatpush1.msra.mxu0 %v3676
        %3678 = vmatprep.subr.mxu0 0.0
        %v3679 = vand.u32 %v3404, 4294901760
        %v3680 = vsub.f32 %v3404, %v3679
        %v3681 = vand.u32 %v3680, 4294901760
        %v3682 = vsub.f32 %v3680, %v3681
        %v3683 = vand.u32 %v3682, 4294901760
        %3684 = vmatpush1.msra.mxu0 %v3683
        %3685 = vmatprep.subr.mxu0 0.0
        %v3686 = vand.u32 %v3405, 4294901760
        %v3687 = vsub.f32 %v3405, %v3686
        %v3688 = vand.u32 %v3687, 4294901760
        %v3689 = vsub.f32 %v3687, %v3688
        %v3690 = vand.u32 %v3689, 4294901760
        %3691 = vmatpush1.msra.mxu0 %v3690
        %3692 = vmatprep.subr.mxu0 0.0
        %v3693 = vand.u32 %v3406, 4294901760
        %v3694 = vsub.f32 %v3406, %v3693
        %v3695 = vand.u32 %v3694, 4294901760
        %v3696 = vsub.f32 %v3694, %v3695
        %v3697 = vand.u32 %v3696, 4294901760
        %3698 = vmatpush1.msra.mxu0 %v3697
        %3699 = vmatprep.subr.mxu0 0.0
        %v3700 = vand.u32 %v3407, 4294901760
        %v3701 = vsub.f32 %v3407, %v3700
        %v3702 = vand.u32 %v3701, 4294901760
        %v3703 = vsub.f32 %v3701, %v3702
        %v3704 = vand.u32 %v3703, 4294901760
        %3705 = vmatpush1.msra.mxu0 %v3704
        %3706 = vmatprep.subr.mxu0 0.0
        %v3707 = vand.u32 %v3408, 4294901760
        %v3708 = vsub.f32 %v3408, %v3707
        %v3709 = vand.u32 %v3708, 4294901760
        %v3710 = vsub.f32 %v3708, %v3709
        %v3711 = vand.u32 %v3710, 4294901760
        %3712 = vmatpush1.msra.mxu0 %v3711
        %3713 = vmatprep.subr.mxu0 0.0
        %v3714 = vand.u32 %v3409, 4294901760
        %v3715 = vsub.f32 %v3409, %v3714
        %v3716 = vand.u32 %v3715, 4294901760
        %v3717 = vsub.f32 %v3715, %v3716
        %v3718 = vand.u32 %v3717, 4294901760
        %3719 = vmatpush1.msra.mxu0 %v3718
        %3720 = vmatprep.subr.mxu0 0.0
        %v3721 = vand.u32 %v3410, 4294901760
        %v3722 = vsub.f32 %v3410, %v3721
        %v3723 = vand.u32 %v3722, 4294901760
        %v3724 = vsub.f32 %v3722, %v3723
        %v3725 = vand.u32 %v3724, 4294901760
        %3726 = vmatpush1.msra.mxu0 %v3725
        %3727 = vmatprep.subr.mxu0 0.0
        %v3728 = vand.u32 %v3411, 4294901760
        %v3729 = vsub.f32 %v3411, %v3728
        %v3730 = vand.u32 %v3729, 4294901760
        %v3731 = vsub.f32 %v3729, %v3730
        %v3732 = vand.u32 %v3731, 4294901760
        %3733 = vmatpush1.msra.mxu0 %v3732
        %3734 = vmatprep.subr.mxu0 0.0
        %v3735 = vand.u32 %v3412, 4294901760
        %v3736 = vsub.f32 %v3412, %v3735
        %v3737 = vand.u32 %v3736, 4294901760
        %v3738 = vsub.f32 %v3736, %v3737
        %v3739 = vand.u32 %v3738, 4294901760
        %3740 = vmatpush1.msra.mxu0 %v3739
        %3741 = vmatprep.subr.mxu0 0.0
        %v3742 = vand.u32 %v3413, 4294901760
        %v3743 = vsub.f32 %v3413, %v3742
        %v3744 = vand.u32 %v3743, 4294901760
        %v3745 = vsub.f32 %v3743, %v3744
        %v3746 = vand.u32 %v3745, 4294901760
        %3747 = vmatpush1.msra.mxu0 %v3746
        %3748 = vmatprep.subr.mxu0 0.0
        %v3749 = vand.u32 %v3414, 4294901760
        %v3750 = vsub.f32 %v3414, %v3749
        %v3751 = vand.u32 %v3750, 4294901760
        %v3752 = vsub.f32 %v3750, %v3751
        %v3753 = vand.u32 %v3752, 4294901760
        %3754 = vmatpush1.msra.mxu0 %v3753
        %3755 = vmatprep.subr.mxu0 0.0
        %v3756 = vand.u32 %v3415, 4294901760
        %v3757 = vsub.f32 %v3415, %v3756
        %v3758 = vand.u32 %v3757, 4294901760
        %v3759 = vsub.f32 %v3757, %v3758
        %v3760 = vand.u32 %v3759, 4294901760
        %3761 = vmatpush1.msra.mxu0 %v3760
        %3762 = vmatprep.subr.mxu0 0.0
        %v3763 = vand.u32 %v3416, 4294901760
        %v3764 = vsub.f32 %v3416, %v3763
        %v3765 = vand.u32 %v3764, 4294901760
        %v3766 = vsub.f32 %v3764, %v3765
        %v3767 = vand.u32 %v3766, 4294901760
        %3768 = vmatpush1.msra.mxu0 %v3767
        %3769 = vmatprep.subr.mxu0 0.0
        %v3770 = vand.u32 %v3417, 4294901760
        %v3771 = vsub.f32 %v3417, %v3770
        %v3772 = vand.u32 %v3771, 4294901760
        %v3773 = vsub.f32 %v3771, %v3772
        %v3774 = vand.u32 %v3773, 4294901760
        %3775 = vmatpush1.msra.mxu0 %v3774
        %3776 = vmatprep.subr.mxu0 0.0
        %3777 = vmatpush1.msra.mxu0 0.0
        %3778 = vmatprep.subr.mxu0 0.0
        %3779 = vmatpush1.msra.mxu0 0.0
        %3780 = vmatprep.subr.mxu0 0.0
        %3781 = vmatpush1.msra.mxu0 0.0
        %3782 = vmatprep.subr.mxu0 0.0
        %3783 = vmatpush1.msra.mxu0 0.0
        %3784 = vmatprep.subr.mxu0 0.0
        %3785 = vmatpush1.msra.mxu0 0.0
        %3786 = vmatprep.subr.mxu0 0.0
        %3787 = vmatpush1.msra.mxu0 0.0
        %3788 = vmatprep.subr.mxu0 0.0
        %3789 = vmatpush1.msra.mxu0 0.0
        %3790 = vmatprep.subr.mxu0 0.0
        %3791 = vmatpush1.msra.mxu0 0.0
        %3792 = vmatprep.subr.mxu0 0.0
        %3793 = vmatpush1.msra.mxu0 0.0
        %3794 = vmatprep.subr.mxu0 0.0
        %3795 = vmatpush1.msra.mxu0 0.0
        %3796 = vmatprep.subr.mxu0 0.0
        %3797 = vmatpush1.msra.mxu0 0.0
        %3798 = vmatprep.subr.mxu0 0.0
        %3799 = vmatpush1.msra.mxu0 0.0
        %3800 = vmatprep.subr.mxu0 0.0
        %3801 = vmatpush1.msra.mxu0 0.0
        %3802 = vmatprep.subr.mxu0 0.0
        %3803 = vmatpush1.msra.mxu0 0.0
        %3804 = vmatprep.subr.mxu0 0.0
        %3805 = vmatpush1.msra.mxu0 0.0
        %3806 = vmatprep.subr.mxu0 0.0
        %3807 = vmatpush1.msra.mxu0 0.0
        %3808 = vmatprep.mubr.f32.mxu0 0.0
        %v3809 = vand.u32 %v3369, 4294901760
        %3810 = vmatmul.mubr.f32.gmra.mrb[0].mxu0 %v3809
        %v3811 = vpop.f32.mrb[0].mxu0
        %v3812 = vadd.f32 %v3511, %v3811
        %v3813 = vpop.f32.mrb[0].mxu0
        %3814 = vmatprep.mubr.f32.mxu0 0.0
        %v3815 = vand.u32 %v3370, 4294901760
        %3816 = vmatmul.mubr.f32.gmra.mrb[0].mxu0 %v3815
        %v3817 = vpop.f32.mrb[0].mxu0
        %v3818 = vadd.f32 %v3521, %v3817
        %v3819 = vpop.f32.mrb[0].mxu0
        %3820 = vmatprep.mubr.f32.mxu0 0.0
        %v3821 = vand.u32 %v3371, 4294901760
        %3822 = vmatmul.mubr.f32.gmra.mrb[0].mxu0 %v3821
        %v3823 = vpop.f32.mrb[0].mxu0
        %v3824 = vadd.f32 %v3531, %v3823
        %v3825 = vpop.f32.mrb[0].mxu0
        %3826 = vmatprep.mubr.f32.mxu0 0.0
        %v3827 = vand.u32 %v3372, 4294901760
        %3828 = vmatmul.mubr.f32.gmra.mrb[0].mxu0 %v3827
        %v3829 = vpop.f32.mrb[0].mxu0
        %v3830 = vadd.f32 %v3541, %v3829
        %v3831 = vpop.f32.mrb[0].mxu0
        %3832 = vmatprep.mubr.f32.mxu0 0.0
        %v3833 = vand.u32 %v3373, 4294901760
        %3834 = vmatmul.mubr.f32.gmra.mrb[0].mxu0 %v3833
        %v3835 = vpop.f32.mrb[0].mxu0
        %v3836 = vadd.f32 %v3551, %v3835
        %v3837 = vpop.f32.mrb[0].mxu0
        %3838 = vmatprep.mubr.f32.mxu0 0.0
        %v3839 = vand.u32 %v3374, 4294901760
        %3840 = vmatmul.mubr.f32.gmra.mrb[0].mxu0 %v3839
        %v3841 = vpop.f32.mrb[0].mxu0
        %v3842 = vadd.f32 %v3561, %v3841
        %v3843 = vpop.f32.mrb[0].mxu0
        %3844 = vmatprep.mubr.f32.mxu0 0.0
        %v3845 = vand.u32 %v3375, 4294901760
        %3846 = vmatmul.mubr.f32.gmra.mrb[0].mxu0 %v3845
        %v3847 = vpop.f32.mrb[0].mxu0
        %v3848 = vadd.f32 %v3571, %v3847
        %v3849 = vpop.f32.mrb[0].mxu0
        %3850 = vmatprep.mubr.f32.mxu0 0.0
        %v3851 = vand.u32 %v3376, 4294901760
        %3852 = vmatmul.mubr.f32.gmra.mrb[0].mxu0 %v3851
        %v3853 = vpop.f32.mrb[0].mxu0
        %v3854 = vadd.f32 %v3581, %v3853
        %v3855 = vpop.f32.mrb[0].mxu0
        %3856 = vmatprep.mubr.f32.mxu0 0.0
        %v3857 = vand.u32 %v3377, 4294901760
        %3858 = vmatmul.mubr.f32.gmra.mrb[0].mxu0 %v3857
        %v3859 = vpop.f32.mrb[0].mxu0
        %v3860 = vadd.f32 %v3591, %v3859
        %v3861 = vpop.f32.mrb[0].mxu0
        %3862 = vmatprep.mubr.f32.mxu0 0.0
        %v3863 = vand.u32 %v3378, 4294901760
        %3864 = vmatmul.mubr.f32.gmra.mrb[0].mxu0 %v3863
        %v3865 = vpop.f32.mrb[0].mxu0
        %v3866 = vadd.f32 %v3601, %v3865
        %v3867 = vpop.f32.mrb[0].mxu0
        %3868 = vmatprep.mubr.f32.mxu0 0.0
        %v3869 = vand.u32 %v3379, 4294901760
        %3870 = vmatmul.mubr.f32.gmra.mrb[0].mxu0 %v3869
        %v3871 = vpop.f32.mrb[0].mxu0
        %v3872 = vadd.f32 %v3611, %v3871
        %v3873 = vpop.f32.mrb[0].mxu0
        %3874 = vmatprep.mubr.f32.mxu0 0.0
        %v3875 = vand.u32 %v3380, 4294901760
        %3876 = vmatmul.mubr.f32.gmra.mrb[0].mxu0 %v3875
        %v3877 = vpop.f32.mrb[0].mxu0
        %v3878 = vadd.f32 %v3621, %v3877
        %v3879 = vpop.f32.mrb[0].mxu0
        %3880 = vmatprep.mubr.f32.mxu0 0.0
        %v3881 = vand.u32 %v3381, 4294901760
        %3882 = vmatmul.mubr.f32.gmra.mrb[0].mxu0 %v3881
        %v3883 = vpop.f32.mrb[0].mxu0
        %v3884 = vadd.f32 %v3631, %v3883
        %v3885 = vpop.f32.mrb[0].mxu0
        %3886 = vmatprep.mubr.f32.mxu0 0.0
        %v3887 = vand.u32 %v3382, 4294901760
        %3888 = vmatmul.mubr.f32.gmra.mrb[0].mxu0 %v3887
        %v3889 = vpop.f32.mrb[0].mxu0
        %v3890 = vadd.f32 %v3641, %v3889
        %v3891 = vpop.f32.mrb[0].mxu0
        %3892 = vmatprep.mubr.f32.mxu0 0.0
        %v3893 = vand.u32 %v3383, 4294901760
        %3894 = vmatmul.mubr.f32.gmra.mrb[0].mxu0 %v3893
        %v3895 = vpop.f32.mrb[0].mxu0
        %v3896 = vadd.f32 %v3651, %v3895
        %v3897 = vpop.f32.mrb[0].mxu0
        %3898 = vmatprep.mubr.f32.mxu0 0.0
        %v3899 = vand.u32 %v3384, 4294901760
        %3900 = vmatmul.mubr.f32.gmra.mrb[0].mxu0 %v3899
        %v3901 = vpop.f32.mrb[0].mxu0
        %v3902 = vadd.f32 %v3661, %v3901
        %v3903 = vpop.f32.mrb[0].mxu0
        %3904 = vdwg.mxu0
        %3905 = vmatprep.subr.mxu0 0.0
        %v3906 = vand.u32 %v3402, 4294901760
        %v3907 = vsub.f32 %v3402, %v3906
        %3908 = vmatpush1.msra.mxu0 %v3907
        %3909 = vmatprep.subr.mxu0 0.0
        %v3910 = vand.u32 %v3403, 4294901760
        %v3911 = vsub.f32 %v3403, %v3910
        %3912 = vmatpush1.msra.mxu0 %v3911
        %3913 = vmatprep.subr.mxu0 0.0
        %v3914 = vand.u32 %v3404, 4294901760
        %v3915 = vsub.f32 %v3404, %v3914
        %3916 = vmatpush1.msra.mxu0 %v3915
        %3917 = vmatprep.subr.mxu0 0.0
        %v3918 = vand.u32 %v3405, 4294901760
        %v3919 = vsub.f32 %v3405, %v3918
        %3920 = vmatpush1.msra.mxu0 %v3919
        %3921 = vmatprep.subr.mxu0 0.0
        %v3922 = vand.u32 %v3406, 4294901760
        %v3923 = vsub.f32 %v3406, %v3922
        %3924 = vmatpush1.msra.mxu0 %v3923
        %3925 = vmatprep.subr.mxu0 0.0
        %v3926 = vand.u32 %v3407, 4294901760
        %v3927 = vsub.f32 %v3407, %v3926
        %3928 = vmatpush1.msra.mxu0 %v3927
        %3929 = vmatprep.subr.mxu0 0.0
        %v3930 = vand.u32 %v3408, 4294901760
        %v3931 = vsub.f32 %v3408, %v3930
        %3932 = vmatpush1.msra.mxu0 %v3931
        %3933 = vmatprep.subr.mxu0 0.0
        %v3934 = vand.u32 %v3409, 4294901760
        %v3935 = vsub.f32 %v3409, %v3934
        %3936 = vmatpush1.msra.mxu0 %v3935
        %3937 = vmatprep.subr.mxu0 0.0
        %v3938 = vand.u32 %v3410, 4294901760
        %v3939 = vsub.f32 %v3410, %v3938
        %3940 = vmatpush1.msra.mxu0 %v3939
        %3941 = vmatprep.subr.mxu0 0.0
        %v3942 = vand.u32 %v3411, 4294901760
        %v3943 = vsub.f32 %v3411, %v3942
        %3944 = vmatpush1.msra.mxu0 %v3943
        %3945 = vmatprep.subr.mxu0 0.0
        %v3946 = vand.u32 %v3412, 4294901760
        %v3947 = vsub.f32 %v3412, %v3946
        %3948 = vmatpush1.msra.mxu0 %v3947
        %3949 = vmatprep.subr.mxu0 0.0
        %v3950 = vand.u32 %v3413, 4294901760
        %v3951 = vsub.f32 %v3413, %v3950
        %3952 = vmatpush1.msra.mxu0 %v3951
        %3953 = vmatprep.subr.mxu0 0.0
        %v3954 = vand.u32 %v3414, 4294901760
        %v3955 = vsub.f32 %v3414, %v3954
        %3956 = vmatpush1.msra.mxu0 %v3955
        %3957 = vmatprep.subr.mxu0 0.0
        %v3958 = vand.u32 %v3415, 4294901760
        %v3959 = vsub.f32 %v3415, %v3958
        %3960 = vmatpush1.msra.mxu0 %v3959
        %3961 = vmatprep.subr.mxu0 0.0
        %v3962 = vand.u32 %v3416, 4294901760
        %v3963 = vsub.f32 %v3416, %v3962
        %3964 = vmatpush1.msra.mxu0 %v3963
        %3965 = vmatprep.subr.mxu0 0.0
        %v3966 = vand.u32 %v3417, 4294901760
        %v3967 = vsub.f32 %v3417, %v3966
        %3968 = vmatpush1.msra.mxu0 %v3967
        %3969 = vmatprep.subr.mxu0 0.0
        %3970 = vmatpush1.msra.mxu0 0.0
        %3971 = vmatprep.subr.mxu0 0.0
        %3972 = vmatpush1.msra.mxu0 0.0
        %3973 = vmatprep.subr.mxu0 0.0
        %3974 = vmatpush1.msra.mxu0 0.0
        %3975 = vmatprep.subr.mxu0 0.0
        %3976 = vmatpush1.msra.mxu0 0.0
        %3977 = vmatprep.subr.mxu0 0.0
        %3978 = vmatpush1.msra.mxu0 0.0
        %3979 = vmatprep.subr.mxu0 0.0
        %3980 = vmatpush1.msra.mxu0 0.0
        %3981 = vmatprep.subr.mxu0 0.0
        %3982 = vmatpush1.msra.mxu0 0.0
        %3983 = vmatprep.subr.mxu0 0.0
        %3984 = vmatpush1.msra.mxu0 0.0
        %3985 = vmatprep.subr.mxu0 0.0
        %3986 = vmatpush1.msra.mxu0 0.0
        %3987 = vmatprep.subr.mxu0 0.0
        %3988 = vmatpush1.msra.mxu0 0.0
        %3989 = vmatprep.subr.mxu0 0.0
        %3990 = vmatpush1.msra.mxu0 0.0
        %3991 = vmatprep.subr.mxu0 0.0
        %3992 = vmatpush1.msra.mxu0 0.0
        %3993 = vmatprep.subr.mxu0 0.0
        %3994 = vmatpush1.msra.mxu0 0.0
        %3995 = vmatprep.subr.mxu0 0.0
        %3996 = vmatpush1.msra.mxu0 0.0
        %3997 = vmatprep.subr.mxu0 0.0
        %3998 = vmatpush1.msra.mxu0 0.0
        %3999 = vmatprep.subr.mxu0 0.0
        %4000 = vmatpush1.msra.mxu0 0.0
        %4001 = vmatprep.mubr.f32.mxu0 0.0
        %v4002 = vand.u32 %v3369, 4294901760
        %v4003 = vsub.f32 %v3369, %v4002
        %4004 = vmatmul.mubr.f32.gmra.mrb[0].mxu0 %v4003
        %v4005 = vpop.f32.mrb[0].mxu0
        %v4006 = vadd.f32 %v3812, %v4005
        %v4007 = vpop.f32.mrb[0].mxu0
        %4008 = vmatprep.mubr.f32.mxu0 0.0
        %v4009 = vand.u32 %v3370, 4294901760
        %v4010 = vsub.f32 %v3370, %v4009
        %4011 = vmatmul.mubr.f32.gmra.mrb[0].mxu0 %v4010
        %v4012 = vpop.f32.mrb[0].mxu0
        %v4013 = vadd.f32 %v3818, %v4012
        %v4014 = vpop.f32.mrb[0].mxu0
        %4015 = vmatprep.mubr.f32.mxu0 0.0
        %v4016 = vand.u32 %v3371, 4294901760
        %v4017 = vsub.f32 %v3371, %v4016
        %4018 = vmatmul.mubr.f32.gmra.mrb[0].mxu0 %v4017
        %v4019 = vpop.f32.mrb[0].mxu0
        %v4020 = vadd.f32 %v3824, %v4019
        %v4021 = vpop.f32.mrb[0].mxu0
        %4022 = vmatprep.mubr.f32.mxu0 0.0
        %v4023 = vand.u32 %v3372, 4294901760
        %v4024 = vsub.f32 %v3372, %v4023
        %4025 = vmatmul.mubr.f32.gmra.mrb[0].mxu0 %v4024
        %v4026 = vpop.f32.mrb[0].mxu0
        %v4027 = vadd.f32 %v3830, %v4026
        %v4028 = vpop.f32.mrb[0].mxu0
        %4029 = vmatprep.mubr.f32.mxu0 0.0
        %v4030 = vand.u32 %v3373, 4294901760
        %v4031 = vsub.f32 %v3373, %v4030
        %4032 = vmatmul.mubr.f32.gmra.mrb[0].mxu0 %v4031
        %v4033 = vpop.f32.mrb[0].mxu0
        %v4034 = vadd.f32 %v3836, %v4033
        %v4035 = vpop.f32.mrb[0].mxu0
        %4036 = vmatprep.mubr.f32.mxu0 0.0
        %v4037 = vand.u32 %v3374, 4294901760
        %v4038 = vsub.f32 %v3374, %v4037
        %4039 = vmatmul.mubr.f32.gmra.mrb[0].mxu0 %v4038
        %v4040 = vpop.f32.mrb[0].mxu0
        %v4041 = vadd.f32 %v3842, %v4040
        %v4042 = vpop.f32.mrb[0].mxu0
        %4043 = vmatprep.mubr.f32.mxu0 0.0
        %v4044 = vand.u32 %v3375, 4294901760
        %v4045 = vsub.f32 %v3375, %v4044
        %4046 = vmatmul.mubr.f32.gmra.mrb[0].mxu0 %v4045
        %v4047 = vpop.f32.mrb[0].mxu0
        %v4048 = vadd.f32 %v3848, %v4047
        %v4049 = vpop.f32.mrb[0].mxu0
        %4050 = vmatprep.mubr.f32.mxu0 0.0
        %v4051 = vand.u32 %v3376, 4294901760
        %v4052 = vsub.f32 %v3376, %v4051
        %4053 = vmatmul.mubr.f32.gmra.mrb[0].mxu0 %v4052
        %v4054 = vpop.f32.mrb[0].mxu0
        %v4055 = vadd.f32 %v3854, %v4054
        %v4056 = vpop.f32.mrb[0].mxu0
        %4057 = vmatprep.mubr.f32.mxu0 0.0
        %v4058 = vand.u32 %v3377, 4294901760
        %v4059 = vsub.f32 %v3377, %v4058
        %4060 = vmatmul.mubr.f32.gmra.mrb[0].mxu0 %v4059
        %v4061 = vpop.f32.mrb[0].mxu0
        %v4062 = vadd.f32 %v3860, %v4061
        %v4063 = vpop.f32.mrb[0].mxu0
        %4064 = vmatprep.mubr.f32.mxu0 0.0
        %v4065 = vand.u32 %v3378, 4294901760
        %v4066 = vsub.f32 %v3378, %v4065
        %4067 = vmatmul.mubr.f32.gmra.mrb[0].mxu0 %v4066
        %v4068 = vpop.f32.mrb[0].mxu0
        %v4069 = vadd.f32 %v3866, %v4068
        %v4070 = vpop.f32.mrb[0].mxu0
        %4071 = vmatprep.mubr.f32.mxu0 0.0
        %v4072 = vand.u32 %v3379, 4294901760
        %v4073 = vsub.f32 %v3379, %v4072
        %4074 = vmatmul.mubr.f32.gmra.mrb[0].mxu0 %v4073
        %v4075 = vpop.f32.mrb[0].mxu0
        %v4076 = vadd.f32 %v3872, %v4075
        %v4077 = vpop.f32.mrb[0].mxu0
        %4078 = vmatprep.mubr.f32.mxu0 0.0
        %v4079 = vand.u32 %v3380, 4294901760
        %v4080 = vsub.f32 %v3380, %v4079
        %4081 = vmatmul.mubr.f32.gmra.mrb[0].mxu0 %v4080
        %v4082 = vpop.f32.mrb[0].mxu0
        %v4083 = vadd.f32 %v3878, %v4082
        %v4084 = vpop.f32.mrb[0].mxu0
        %4085 = vmatprep.mubr.f32.mxu0 0.0
        %v4086 = vand.u32 %v3381, 4294901760
        %v4087 = vsub.f32 %v3381, %v4086
        %4088 = vmatmul.mubr.f32.gmra.mrb[0].mxu0 %v4087
        %v4089 = vpop.f32.mrb[0].mxu0
        %v4090 = vadd.f32 %v3884, %v4089
        %v4091 = vpop.f32.mrb[0].mxu0
        %4092 = vmatprep.mubr.f32.mxu0 0.0
        %v4093 = vand.u32 %v3382, 4294901760
        %v4094 = vsub.f32 %v3382, %v4093
        %4095 = vmatmul.mubr.f32.gmra.mrb[0].mxu0 %v4094
        %v4096 = vpop.f32.mrb[0].mxu0
        %v4097 = vadd.f32 %v3890, %v4096
        %v4098 = vpop.f32.mrb[0].mxu0
        %4099 = vmatprep.mubr.f32.mxu0 0.0
        %v4100 = vand.u32 %v3383, 4294901760
        %v4101 = vsub.f32 %v3383, %v4100
        %4102 = vmatmul.mubr.f32.gmra.mrb[0].mxu0 %v4101
        %v4103 = vpop.f32.mrb[0].mxu0
        %v4104 = vadd.f32 %v3896, %v4103
        %v4105 = vpop.f32.mrb[0].mxu0
        %4106 = vmatprep.mubr.f32.mxu0 0.0
        %v4107 = vand.u32 %v3384, 4294901760
        %v4108 = vsub.f32 %v3384, %v4107
        %4109 = vmatmul.mubr.f32.gmra.mrb[0].mxu0 %v4108
        %v4110 = vpop.f32.mrb[0].mxu0
        %v4111 = vadd.f32 %v3902, %v4110
        %v4112 = vpop.f32.mrb[0].mxu0
        %4113 = vdwg.mxu0
        %4114 = vmatprep.subr.mxu0 0.0
        %v4115 = vand.u32 %v3402, 4294901760
        %4116 = vmatpush1.msra.mxu0 %v4115
        %4117 = vmatprep.subr.mxu0 0.0
        %v4118 = vand.u32 %v3403, 4294901760
        %4119 = vmatpush1.msra.mxu0 %v4118
        %4120 = vmatprep.subr.mxu0 0.0
        %v4121 = vand.u32 %v3404, 4294901760
        %4122 = vmatpush1.msra.mxu0 %v4121
        %4123 = vmatprep.subr.mxu0 0.0
        %v4124 = vand.u32 %v3405, 4294901760
        %4125 = vmatpush1.msra.mxu0 %v4124
        %4126 = vmatprep.subr.mxu0 0.0
        %v4127 = vand.u32 %v3406, 4294901760
        %4128 = vmatpush1.msra.mxu0 %v4127
        %4129 = vmatprep.subr.mxu0 0.0
        %v4130 = vand.u32 %v3407, 4294901760
        %4131 = vmatpush1.msra.mxu0 %v4130
        %4132 = vmatprep.subr.mxu0 0.0
        %v4133 = vand.u32 %v3408, 4294901760
        %4134 = vmatpush1.msra.mxu0 %v4133
        %4135 = vmatprep.subr.mxu0 0.0
        %v4136 = vand.u32 %v3409, 4294901760
        %4137 = vmatpush1.msra.mxu0 %v4136
        %4138 = vmatprep.subr.mxu0 0.0
        %v4139 = vand.u32 %v3410, 4294901760
        %4140 = vmatpush1.msra.mxu0 %v4139
        %4141 = vmatprep.subr.mxu0 0.0
        %v4142 = vand.u32 %v3411, 4294901760
        %4143 = vmatpush1.msra.mxu0 %v4142
        %4144 = vmatprep.subr.mxu0 0.0
        %v4145 = vand.u32 %v3412, 4294901760
        %4146 = vmatpush1.msra.mxu0 %v4145
        %4147 = vmatprep.subr.mxu0 0.0
        %v4148 = vand.u32 %v3413, 4294901760
        %4149 = vmatpush1.msra.mxu0 %v4148
        %4150 = vmatprep.subr.mxu0 0.0
        %v4151 = vand.u32 %v3414, 4294901760
        %4152 = vmatpush1.msra.mxu0 %v4151
        %4153 = vmatprep.subr.mxu0 0.0
        %v4154 = vand.u32 %v3415, 4294901760
        %4155 = vmatpush1.msra.mxu0 %v4154
        %4156 = vmatprep.subr.mxu0 0.0
        %v4157 = vand.u32 %v3416, 4294901760
        %4158 = vmatpush1.msra.mxu0 %v4157
        %4159 = vmatprep.subr.mxu0 0.0
        %v4160 = vand.u32 %v3417, 4294901760
        %4161 = vmatpush1.msra.mxu0 %v4160
        %4162 = vmatprep.subr.mxu0 0.0
        %4163 = vmatpush1.msra.mxu0 0.0
        %4164 = vmatprep.subr.mxu0 0.0
        %4165 = vmatpush1.msra.mxu0 0.0
        %4166 = vmatprep.subr.mxu0 0.0
        %4167 = vmatpush1.msra.mxu0 0.0
        %4168 = vmatprep.subr.mxu0 0.0
        %4169 = vmatpush1.msra.mxu0 0.0
        %4170 = vmatprep.subr.mxu0 0.0
        %4171 = vmatpush1.msra.mxu0 0.0
        %4172 = vmatprep.subr.mxu0 0.0
        %4173 = vmatpush1.msra.mxu0 0.0
        %4174 = vmatprep.subr.mxu0 0.0
        %4175 = vmatpush1.msra.mxu0 0.0
        %4176 = vmatprep.subr.mxu0 0.0
        %4177 = vmatpush1.msra.mxu0 0.0
        %4178 = vmatprep.subr.mxu0 0.0
        %4179 = vmatpush1.msra.mxu0 0.0
        %4180 = vmatprep.subr.mxu0 0.0
        %4181 = vmatpush1.msra.mxu0 0.0
        %4182 = vmatprep.subr.mxu0 0.0
        %4183 = vmatpush1.msra.mxu0 0.0
        %4184 = vmatprep.subr.mxu0 0.0
        %4185 = vmatpush1.msra.mxu0 0.0
        %4186 = vmatprep.subr.mxu0 0.0
        %4187 = vmatpush1.msra.mxu0 0.0
        %4188 = vmatprep.subr.mxu0 0.0
        %4189 = vmatpush1.msra.mxu0 0.0
        %4190 = vmatprep.subr.mxu0 0.0
        %4191 = vmatpush1.msra.mxu0 0.0
        %4192 = vmatprep.subr.mxu0 0.0
        %4193 = vmatpush1.msra.mxu0 0.0
        %4194 = vmatprep.mubr.f32.mxu0 0.0
        %v4195 = vand.u32 %v3369, 4294901760
        %v4196 = vsub.f32 %v3369, %v4195
        %v4197 = vand.u32 %v4196, 4294901760
        %4198 = vmatmul.mubr.f32.gmra.mrb[0].mxu0 %v4197
        %v4199 = vpop.f32.mrb[0].mxu0
        %v4200 = vadd.f32 %v4006, %v4199
        %v4201 = vpop.f32.mrb[0].mxu0
        %4202 = vmatprep.mubr.f32.mxu0 0.0
        %v4203 = vand.u32 %v3370, 4294901760
        %v4204 = vsub.f32 %v3370, %v4203
        %v4205 = vand.u32 %v4204, 4294901760
        %4206 = vmatmul.mubr.f32.gmra.mrb[0].mxu0 %v4205
        %v4207 = vpop.f32.mrb[0].mxu0
        %v4208 = vadd.f32 %v4013, %v4207
        %v4209 = vpop.f32.mrb[0].mxu0
        %4210 = vmatprep.mubr.f32.mxu0 0.0
        %v4211 = vand.u32 %v3371, 4294901760
        %v4212 = vsub.f32 %v3371, %v4211
        %v4213 = vand.u32 %v4212, 4294901760
        %4214 = vmatmul.mubr.f32.gmra.mrb[0].mxu0 %v4213
        %v4215 = vpop.f32.mrb[0].mxu0
        %v4216 = vadd.f32 %v4020, %v4215
        %v4217 = vpop.f32.mrb[0].mxu0
        %4218 = vmatprep.mubr.f32.mxu0 0.0
        %v4219 = vand.u32 %v3372, 4294901760
        %v4220 = vsub.f32 %v3372, %v4219
        %v4221 = vand.u32 %v4220, 4294901760
        %4222 = vmatmul.mubr.f32.gmra.mrb[0].mxu0 %v4221
        %v4223 = vpop.f32.mrb[0].mxu0
        %v4224 = vadd.f32 %v4027, %v4223
        %v4225 = vpop.f32.mrb[0].mxu0
        %4226 = vmatprep.mubr.f32.mxu0 0.0
        %v4227 = vand.u32 %v3373, 4294901760
        %v4228 = vsub.f32 %v3373, %v4227
        %v4229 = vand.u32 %v4228, 4294901760
        %4230 = vmatmul.mubr.f32.gmra.mrb[0].mxu0 %v4229
        %v4231 = vpop.f32.mrb[0].mxu0
        %v4232 = vadd.f32 %v4034, %v4231
        %v4233 = vpop.f32.mrb[0].mxu0
        %4234 = vmatprep.mubr.f32.mxu0 0.0
        %v4235 = vand.u32 %v3374, 4294901760
        %v4236 = vsub.f32 %v3374, %v4235
        %v4237 = vand.u32 %v4236, 4294901760
        %4238 = vmatmul.mubr.f32.gmra.mrb[0].mxu0 %v4237
        %v4239 = vpop.f32.mrb[0].mxu0
        %v4240 = vadd.f32 %v4041, %v4239
        %v4241 = vpop.f32.mrb[0].mxu0
        %4242 = vmatprep.mubr.f32.mxu0 0.0
        %v4243 = vand.u32 %v3375, 4294901760
        %v4244 = vsub.f32 %v3375, %v4243
        %v4245 = vand.u32 %v4244, 4294901760
        %4246 = vmatmul.mubr.f32.gmra.mrb[0].mxu0 %v4245
        %v4247 = vpop.f32.mrb[0].mxu0
        %v4248 = vadd.f32 %v4048, %v4247
        %v4249 = vpop.f32.mrb[0].mxu0
        %4250 = vmatprep.mubr.f32.mxu0 0.0
        %v4251 = vand.u32 %v3376, 4294901760
        %v4252 = vsub.f32 %v3376, %v4251
        %v4253 = vand.u32 %v4252, 4294901760
        %4254 = vmatmul.mubr.f32.gmra.mrb[0].mxu0 %v4253
        %v4255 = vpop.f32.mrb[0].mxu0
        %v4256 = vadd.f32 %v4055, %v4255
        %v4257 = vpop.f32.mrb[0].mxu0
        %4258 = vmatprep.mubr.f32.mxu0 0.0
        %v4259 = vand.u32 %v3377, 4294901760
        %v4260 = vsub.f32 %v3377, %v4259
        %v4261 = vand.u32 %v4260, 4294901760
        %4262 = vmatmul.mubr.f32.gmra.mrb[0].mxu0 %v4261
        %v4263 = vpop.f32.mrb[0].mxu0
        %v4264 = vadd.f32 %v4062, %v4263
        %v4265 = vpop.f32.mrb[0].mxu0
        %4266 = vmatprep.mubr.f32.mxu0 0.0
        %v4267 = vand.u32 %v3378, 4294901760
        %v4268 = vsub.f32 %v3378, %v4267
        %v4269 = vand.u32 %v4268, 4294901760
        %4270 = vmatmul.mubr.f32.gmra.mrb[0].mxu0 %v4269
        %v4271 = vpop.f32.mrb[0].mxu0
        %v4272 = vadd.f32 %v4069, %v4271
        %v4273 = vpop.f32.mrb[0].mxu0
        %4274 = vmatprep.mubr.f32.mxu0 0.0
        %v4275 = vand.u32 %v3379, 4294901760
        %v4276 = vsub.f32 %v3379, %v4275
        %v4277 = vand.u32 %v4276, 4294901760
        %4278 = vmatmul.mubr.f32.gmra.mrb[0].mxu0 %v4277
        %v4279 = vpop.f32.mrb[0].mxu0
        %v4280 = vadd.f32 %v4076, %v4279
        %v4281 = vpop.f32.mrb[0].mxu0
        %4282 = vmatprep.mubr.f32.mxu0 0.0
        %v4283 = vand.u32 %v3380, 4294901760
        %v4284 = vsub.f32 %v3380, %v4283
        %v4285 = vand.u32 %v4284, 4294901760
        %4286 = vmatmul.mubr.f32.gmra.mrb[0].mxu0 %v4285
        %v4287 = vpop.f32.mrb[0].mxu0
        %v4288 = vadd.f32 %v4083, %v4287
        %v4289 = vpop.f32.mrb[0].mxu0
        %4290 = vmatprep.mubr.f32.mxu0 0.0
        %v4291 = vand.u32 %v3381, 4294901760
        %v4292 = vsub.f32 %v3381, %v4291
        %v4293 = vand.u32 %v4292, 4294901760
        %4294 = vmatmul.mubr.f32.gmra.mrb[0].mxu0 %v4293
        %v4295 = vpop.f32.mrb[0].mxu0
        %v4296 = vadd.f32 %v4090, %v4295
        %v4297 = vpop.f32.mrb[0].mxu0
        %4298 = vmatprep.mubr.f32.mxu0 0.0
        %v4299 = vand.u32 %v3382, 4294901760
        %v4300 = vsub.f32 %v3382, %v4299
        %v4301 = vand.u32 %v4300, 4294901760
        %4302 = vmatmul.mubr.f32.gmra.mrb[0].mxu0 %v4301
        %v4303 = vpop.f32.mrb[0].mxu0
        %v4304 = vadd.f32 %v4097, %v4303
        %v4305 = vpop.f32.mrb[0].mxu0
        %4306 = vmatprep.mubr.f32.mxu0 0.0
        %v4307 = vand.u32 %v3383, 4294901760
        %v4308 = vsub.f32 %v3383, %v4307
        %v4309 = vand.u32 %v4308, 4294901760
        %4310 = vmatmul.mubr.f32.gmra.mrb[0].mxu0 %v4309
        %v4311 = vpop.f32.mrb[0].mxu0
        %v4312 = vadd.f32 %v4104, %v4311
        %v4313 = vpop.f32.mrb[0].mxu0
        %4314 = vmatprep.mubr.f32.mxu0 0.0
        %v4315 = vand.u32 %v3384, 4294901760
        %v4316 = vsub.f32 %v3384, %v4315
        %v4317 = vand.u32 %v4316, 4294901760
        %4318 = vmatmul.mubr.f32.gmra.mrb[0].mxu0 %v4317
        %v4319 = vpop.f32.mrb[0].mxu0
        %v4320 = vadd.f32 %v4111, %v4319
        %v4321 = vpop.f32.mrb[0].mxu0
        %4322 = vdwg.mxu0
        %4323 = vmatprep.subr.mxu0 0.0
        %v4324 = vand.u32 %v3402, 4294901760
        %v4325 = vsub.f32 %v3402, %v4324
        %v4326 = vand.u32 %v4325, 4294901760
        %4327 = vmatpush1.msra.mxu0 %v4326
        %4328 = vmatprep.subr.mxu0 0.0
        %v4329 = vand.u32 %v3403, 4294901760
        %v4330 = vsub.f32 %v3403, %v4329
        %v4331 = vand.u32 %v4330, 4294901760
        %4332 = vmatpush1.msra.mxu0 %v4331
        %4333 = vmatprep.subr.mxu0 0.0
        %v4334 = vand.u32 %v3404, 4294901760
        %v4335 = vsub.f32 %v3404, %v4334
        %v4336 = vand.u32 %v4335, 4294901760
        %4337 = vmatpush1.msra.mxu0 %v4336
        %4338 = vmatprep.subr.mxu0 0.0
        %v4339 = vand.u32 %v3405, 4294901760
        %v4340 = vsub.f32 %v3405, %v4339
        %v4341 = vand.u32 %v4340, 4294901760
        %4342 = vmatpush1.msra.mxu0 %v4341
        %4343 = vmatprep.subr.mxu0 0.0
        %v4344 = vand.u32 %v3406, 4294901760
        %v4345 = vsub.f32 %v3406, %v4344
        %v4346 = vand.u32 %v4345, 4294901760
        %4347 = vmatpush1.msra.mxu0 %v4346
        %4348 = vmatprep.subr.mxu0 0.0
        %v4349 = vand.u32 %v3407, 4294901760
        %v4350 = vsub.f32 %v3407, %v4349
        %v4351 = vand.u32 %v4350, 4294901760
        %4352 = vmatpush1.msra.mxu0 %v4351
        %4353 = vmatprep.subr.mxu0 0.0
        %v4354 = vand.u32 %v3408, 4294901760
        %v4355 = vsub.f32 %v3408, %v4354
        %v4356 = vand.u32 %v4355, 4294901760
        %4357 = vmatpush1.msra.mxu0 %v4356
        %4358 = vmatprep.subr.mxu0 0.0
        %v4359 = vand.u32 %v3409, 4294901760
        %v4360 = vsub.f32 %v3409, %v4359
        %v4361 = vand.u32 %v4360, 4294901760
        %4362 = vmatpush1.msra.mxu0 %v4361
        %4363 = vmatprep.subr.mxu0 0.0
        %v4364 = vand.u32 %v3410, 4294901760
        %v4365 = vsub.f32 %v3410, %v4364
        %v4366 = vand.u32 %v4365, 4294901760
        %4367 = vmatpush1.msra.mxu0 %v4366
        %4368 = vmatprep.subr.mxu0 0.0
        %v4369 = vand.u32 %v3411, 4294901760
        %v4370 = vsub.f32 %v3411, %v4369
        %v4371 = vand.u32 %v4370, 4294901760
        %4372 = vmatpush1.msra.mxu0 %v4371
        %4373 = vmatprep.subr.mxu0 0.0
        %v4374 = vand.u32 %v3412, 4294901760
        %v4375 = vsub.f32 %v3412, %v4374
        %v4376 = vand.u32 %v4375, 4294901760
        %4377 = vmatpush1.msra.mxu0 %v4376
        %4378 = vmatprep.subr.mxu0 0.0
        %v4379 = vand.u32 %v3413, 4294901760
        %v4380 = vsub.f32 %v3413, %v4379
        %v4381 = vand.u32 %v4380, 4294901760
        %4382 = vmatpush1.msra.mxu0 %v4381
        %4383 = vmatprep.subr.mxu0 0.0
        %v4384 = vand.u32 %v3414, 4294901760
        %v4385 = vsub.f32 %v3414, %v4384
        %v4386 = vand.u32 %v4385, 4294901760
        %4387 = vmatpush1.msra.mxu0 %v4386
        %4388 = vmatprep.subr.mxu0 0.0
        %v4389 = vand.u32 %v3415, 4294901760
        %v4390 = vsub.f32 %v3415, %v4389
        %v4391 = vand.u32 %v4390, 4294901760
        %4392 = vmatpush1.msra.mxu0 %v4391
        %4393 = vmatprep.subr.mxu0 0.0
        %v4394 = vand.u32 %v3416, 4294901760
        %v4395 = vsub.f32 %v3416, %v4394
        %v4396 = vand.u32 %v4395, 4294901760
        %4397 = vmatpush1.msra.mxu0 %v4396
        %4398 = vmatprep.subr.mxu0 0.0
        %v4399 = vand.u32 %v3417, 4294901760
        %v4400 = vsub.f32 %v3417, %v4399
        %v4401 = vand.u32 %v4400, 4294901760
        %4402 = vmatpush1.msra.mxu0 %v4401
        %4403 = vmatprep.subr.mxu0 0.0
        %4404 = vmatpush1.msra.mxu0 0.0
        %4405 = vmatprep.subr.mxu0 0.0
        %4406 = vmatpush1.msra.mxu0 0.0
        %4407 = vmatprep.subr.mxu0 0.0
        %4408 = vmatpush1.msra.mxu0 0.0
        %4409 = vmatprep.subr.mxu0 0.0
        %4410 = vmatpush1.msra.mxu0 0.0
        %4411 = vmatprep.subr.mxu0 0.0
        %4412 = vmatpush1.msra.mxu0 0.0
        %4413 = vmatprep.subr.mxu0 0.0
        %4414 = vmatpush1.msra.mxu0 0.0
        %4415 = vmatprep.subr.mxu0 0.0
        %4416 = vmatpush1.msra.mxu0 0.0
        %4417 = vmatprep.subr.mxu0 0.0
        %4418 = vmatpush1.msra.mxu0 0.0
        %4419 = vmatprep.subr.mxu0 0.0
        %4420 = vmatpush1.msra.mxu0 0.0
        %4421 = vmatprep.subr.mxu0 0.0
        %4422 = vmatpush1.msra.mxu0 0.0
        %4423 = vmatprep.subr.mxu0 0.0
        %4424 = vmatpush1.msra.mxu0 0.0
        %4425 = vmatprep.subr.mxu0 0.0
        %4426 = vmatpush1.msra.mxu0 0.0
        %4427 = vmatprep.subr.mxu0 0.0
        %4428 = vmatpush1.msra.mxu0 0.0
        %4429 = vmatprep.subr.mxu0 0.0
        %4430 = vmatpush1.msra.mxu0 0.0
        %4431 = vmatprep.subr.mxu0 0.0
        %4432 = vmatpush1.msra.mxu0 0.0
        %4433 = vmatprep.subr.mxu0 0.0
        %4434 = vmatpush1.msra.mxu0 0.0
        %4435 = vmatprep.mubr.f32.mxu0 0.0
        %v4436 = vand.u32 %v3369, 4294901760
        %4437 = vmatmul.mubr.f32.gmra.mrb[0].mxu0 %v4436
        %v4438 = vpop.f32.mrb[0].mxu0
        %v4439 = vadd.f32 %v4200, %v4438
        %v4440 = vpop.f32.mrb[0].mxu0
        %4441 = vmatprep.mubr.f32.mxu0 0.0
        %v4442 = vand.u32 %v3370, 4294901760
        %4443 = vmatmul.mubr.f32.gmra.mrb[0].mxu0 %v4442
        %v4444 = vpop.f32.mrb[0].mxu0
        %v4445 = vadd.f32 %v4208, %v4444
        %v4446 = vpop.f32.mrb[0].mxu0
        %4447 = vmatprep.mubr.f32.mxu0 0.0
        %v4448 = vand.u32 %v3371, 4294901760
        %4449 = vmatmul.mubr.f32.gmra.mrb[0].mxu0 %v4448
        %v4450 = vpop.f32.mrb[0].mxu0
        %v4451 = vadd.f32 %v4216, %v4450
        %v4452 = vpop.f32.mrb[0].mxu0
        %4453 = vmatprep.mubr.f32.mxu0 0.0
        %v4454 = vand.u32 %v3372, 4294901760
        %4455 = vmatmul.mubr.f32.gmra.mrb[0].mxu0 %v4454
        %v4456 = vpop.f32.mrb[0].mxu0
        %v4457 = vadd.f32 %v4224, %v4456
        %v4458 = vpop.f32.mrb[0].mxu0
        %4459 = vmatprep.mubr.f32.mxu0 0.0
        %v4460 = vand.u32 %v3373, 4294901760
        %4461 = vmatmul.mubr.f32.gmra.mrb[0].mxu0 %v4460
        %v4462 = vpop.f32.mrb[0].mxu0
        %v4463 = vadd.f32 %v4232, %v4462
        %v4464 = vpop.f32.mrb[0].mxu0
        %4465 = vmatprep.mubr.f32.mxu0 0.0
        %v4466 = vand.u32 %v3374, 4294901760
        %4467 = vmatmul.mubr.f32.gmra.mrb[0].mxu0 %v4466
        %v4468 = vpop.f32.mrb[0].mxu0
        %v4469 = vadd.f32 %v4240, %v4468
        %v4470 = vpop.f32.mrb[0].mxu0
        %4471 = vmatprep.mubr.f32.mxu0 0.0
        %v4472 = vand.u32 %v3375, 4294901760
        %4473 = vmatmul.mubr.f32.gmra.mrb[0].mxu0 %v4472
        %v4474 = vpop.f32.mrb[0].mxu0
        %v4475 = vadd.f32 %v4248, %v4474
        %v4476 = vpop.f32.mrb[0].mxu0
        %4477 = vmatprep.mubr.f32.mxu0 0.0
        %v4478 = vand.u32 %v3376, 4294901760
        %4479 = vmatmul.mubr.f32.gmra.mrb[0].mxu0 %v4478
        %v4480 = vpop.f32.mrb[0].mxu0
        %v4481 = vadd.f32 %v4256, %v4480
        %v4482 = vpop.f32.mrb[0].mxu0
        %4483 = vmatprep.mubr.f32.mxu0 0.0
        %v4484 = vand.u32 %v3377, 4294901760
        %4485 = vmatmul.mubr.f32.gmra.mrb[0].mxu0 %v4484
        %v4486 = vpop.f32.mrb[0].mxu0
        %v4487 = vadd.f32 %v4264, %v4486
        %v4488 = vpop.f32.mrb[0].mxu0
        %4489 = vmatprep.mubr.f32.mxu0 0.0
        %v4490 = vand.u32 %v3378, 4294901760
        %4491 = vmatmul.mubr.f32.gmra.mrb[0].mxu0 %v4490
        %v4492 = vpop.f32.mrb[0].mxu0
        %v4493 = vadd.f32 %v4272, %v4492
        %v4494 = vpop.f32.mrb[0].mxu0
        %4495 = vmatprep.mubr.f32.mxu0 0.0
        %v4496 = vand.u32 %v3379, 4294901760
        %4497 = vmatmul.mubr.f32.gmra.mrb[0].mxu0 %v4496
        %v4498 = vpop.f32.mrb[0].mxu0
        %v4499 = vadd.f32 %v4280, %v4498
        %v4500 = vpop.f32.mrb[0].mxu0
        %4501 = vmatprep.mubr.f32.mxu0 0.0
        %v4502 = vand.u32 %v3380, 4294901760
        %4503 = vmatmul.mubr.f32.gmra.mrb[0].mxu0 %v4502
        %v4504 = vpop.f32.mrb[0].mxu0
        %v4505 = vadd.f32 %v4288, %v4504
        %v4506 = vpop.f32.mrb[0].mxu0
        %4507 = vmatprep.mubr.f32.mxu0 0.0
        %v4508 = vand.u32 %v3381, 4294901760
        %4509 = vmatmul.mubr.f32.gmra.mrb[0].mxu0 %v4508
        %v4510 = vpop.f32.mrb[0].mxu0
        %v4511 = vadd.f32 %v4296, %v4510
        %v4512 = vpop.f32.mrb[0].mxu0
        %4513 = vmatprep.mubr.f32.mxu0 0.0
        %v4514 = vand.u32 %v3382, 4294901760
        %4515 = vmatmul.mubr.f32.gmra.mrb[0].mxu0 %v4514
        %v4516 = vpop.f32.mrb[0].mxu0
        %v4517 = vadd.f32 %v4304, %v4516
        %v4518 = vpop.f32.mrb[0].mxu0
        %4519 = vmatprep.mubr.f32.mxu0 0.0
        %v4520 = vand.u32 %v3383, 4294901760
        %4521 = vmatmul.mubr.f32.gmra.mrb[0].mxu0 %v4520
        %v4522 = vpop.f32.mrb[0].mxu0
        %v4523 = vadd.f32 %v4312, %v4522
        %v4524 = vpop.f32.mrb[0].mxu0
        %4525 = vmatprep.mubr.f32.mxu0 0.0
        %v4526 = vand.u32 %v3384, 4294901760
        %4527 = vmatmul.mubr.f32.gmra.mrb[0].mxu0 %v4526
        %v4528 = vpop.f32.mrb[0].mxu0
        %v4529 = vadd.f32 %v4320, %v4528
        %v4530 = vpop.f32.mrb[0].mxu0
        %4531 = vdwg.mxu0
        %4532 = vmatprep.subr.mxu0 0.0
        %v4533 = vand.u32 %v3402, 4294901760
        %4534 = vmatpush1.msra.mxu0 %v4533
        %4535 = vmatprep.subr.mxu0 0.0
        %v4536 = vand.u32 %v3403, 4294901760
        %4537 = vmatpush1.msra.mxu0 %v4536
        %4538 = vmatprep.subr.mxu0 0.0
        %v4539 = vand.u32 %v3404, 4294901760
        %4540 = vmatpush1.msra.mxu0 %v4539
        %4541 = vmatprep.subr.mxu0 0.0
        %v4542 = vand.u32 %v3405, 4294901760
        %4543 = vmatpush1.msra.mxu0 %v4542
        %4544 = vmatprep.subr.mxu0 0.0
        %v4545 = vand.u32 %v3406, 4294901760
        %4546 = vmatpush1.msra.mxu0 %v4545
        %4547 = vmatprep.subr.mxu0 0.0
        %v4548 = vand.u32 %v3407, 4294901760
        %4549 = vmatpush1.msra.mxu0 %v4548
        %4550 = vmatprep.subr.mxu0 0.0
        %v4551 = vand.u32 %v3408, 4294901760
        %4552 = vmatpush1.msra.mxu0 %v4551
        %4553 = vmatprep.subr.mxu0 0.0
        %v4554 = vand.u32 %v3409, 4294901760
        %4555 = vmatpush1.msra.mxu0 %v4554
        %4556 = vmatprep.subr.mxu0 0.0
        %v4557 = vand.u32 %v3410, 4294901760
        %4558 = vmatpush1.msra.mxu0 %v4557
        %4559 = vmatprep.subr.mxu0 0.0
        %v4560 = vand.u32 %v3411, 4294901760
        %4561 = vmatpush1.msra.mxu0 %v4560
        %4562 = vmatprep.subr.mxu0 0.0
        %v4563 = vand.u32 %v3412, 4294901760
        %4564 = vmatpush1.msra.mxu0 %v4563
        %4565 = vmatprep.subr.mxu0 0.0
        %v4566 = vand.u32 %v3413, 4294901760
        %4567 = vmatpush1.msra.mxu0 %v4566
        %4568 = vmatprep.subr.mxu0 0.0
        %v4569 = vand.u32 %v3414, 4294901760
        %4570 = vmatpush1.msra.mxu0 %v4569
        %4571 = vmatprep.subr.mxu0 0.0
        %v4572 = vand.u32 %v3415, 4294901760
        %4573 = vmatpush1.msra.mxu0 %v4572
        %4574 = vmatprep.subr.mxu0 0.0
        %v4575 = vand.u32 %v3416, 4294901760
        %4576 = vmatpush1.msra.mxu0 %v4575
        %4577 = vmatprep.subr.mxu0 0.0
        %v4578 = vand.u32 %v3417, 4294901760
        %4579 = vmatpush1.msra.mxu0 %v4578
        %4580 = vmatprep.subr.mxu0 0.0
        %4581 = vmatpush1.msra.mxu0 0.0
        %4582 = vmatprep.subr.mxu0 0.0
        %4583 = vmatpush1.msra.mxu0 0.0
        %4584 = vmatprep.subr.mxu0 0.0
        %4585 = vmatpush1.msra.mxu0 0.0
        %4586 = vmatprep.subr.mxu0 0.0
        %4587 = vmatpush1.msra.mxu0 0.0
        %4588 = vmatprep.subr.mxu0 0.0
        %4589 = vmatpush1.msra.mxu0 0.0
        %4590 = vmatprep.subr.mxu0 0.0
        %4591 = vmatpush1.msra.mxu0 0.0
        %4592 = vmatprep.subr.mxu0 0.0
        %4593 = vmatpush1.msra.mxu0 0.0
        %4594 = vmatprep.subr.mxu0 0.0
        %4595 = vmatpush1.msra.mxu0 0.0
        %4596 = vmatprep.subr.mxu0 0.0
        %4597 = vmatpush1.msra.mxu0 0.0
        %4598 = vmatprep.subr.mxu0 0.0
        %4599 = vmatpush1.msra.mxu0 0.0
        %4600 = vmatprep.subr.mxu0 0.0
        %4601 = vmatpush1.msra.mxu0 0.0
        %4602 = vmatprep.subr.mxu0 0.0
        %4603 = vmatpush1.msra.mxu0 0.0
        %4604 = vmatprep.subr.mxu0 0.0
        %4605 = vmatpush1.msra.mxu0 0.0
        %4606 = vmatprep.subr.mxu0 0.0
        %4607 = vmatpush1.msra.mxu0 0.0
        %4608 = vmatprep.subr.mxu0 0.0
        %4609 = vmatpush1.msra.mxu0 0.0
        %4610 = vmatprep.subr.mxu0 0.0
        %4611 = vmatpush1.msra.mxu0 0.0
        %4612 = vmatprep.mubr.f32.mxu0 0.0
        %v4613 = vand.u32 %v3369, 4294901760
        %4614 = vmatmul.mubr.f32.gmra.mrb[0].mxu0 %v4613
        %v4615 = vpop.f32.mrb[0].mxu0
        %v4616 = vadd.f32 %v4439, %v4615
        %v4617 = vpop.f32.mrb[0].mxu0
        %4618 = vmatprep.mubr.f32.mxu0 0.0
        %v4619 = vand.u32 %v3370, 4294901760
        %4620 = vmatmul.mubr.f32.gmra.mrb[0].mxu0 %v4619
        %v4621 = vpop.f32.mrb[0].mxu0
        %v4622 = vadd.f32 %v4445, %v4621
        %v4623 = vpop.f32.mrb[0].mxu0
        %4624 = vmatprep.mubr.f32.mxu0 0.0
        %v4625 = vand.u32 %v3371, 4294901760
        %4626 = vmatmul.mubr.f32.gmra.mrb[0].mxu0 %v4625
        %v4627 = vpop.f32.mrb[0].mxu0
        %v4628 = vadd.f32 %v4451, %v4627
        %v4629 = vpop.f32.mrb[0].mxu0
        %4630 = vmatprep.mubr.f32.mxu0 0.0
        %v4631 = vand.u32 %v3372, 4294901760
        %4632 = vmatmul.mubr.f32.gmra.mrb[0].mxu0 %v4631
        %v4633 = vpop.f32.mrb[0].mxu0
        %v4634 = vadd.f32 %v4457, %v4633
        %v4635 = vpop.f32.mrb[0].mxu0
        %4636 = vmatprep.mubr.f32.mxu0 0.0
        %v4637 = vand.u32 %v3373, 4294901760
        %4638 = vmatmul.mubr.f32.gmra.mrb[0].mxu0 %v4637
        %v4639 = vpop.f32.mrb[0].mxu0
        %v4640 = vadd.f32 %v4463, %v4639
        %v4641 = vpop.f32.mrb[0].mxu0
        %4642 = vmatprep.mubr.f32.mxu0 0.0
        %v4643 = vand.u32 %v3374, 4294901760
        %4644 = vmatmul.mubr.f32.gmra.mrb[0].mxu0 %v4643
        %v4645 = vpop.f32.mrb[0].mxu0
        %v4646 = vadd.f32 %v4469, %v4645
        %v4647 = vpop.f32.mrb[0].mxu0
        %4648 = vmatprep.mubr.f32.mxu0 0.0
        %v4649 = vand.u32 %v3375, 4294901760
        %4650 = vmatmul.mubr.f32.gmra.mrb[0].mxu0 %v4649
        %v4651 = vpop.f32.mrb[0].mxu0
        %v4652 = vadd.f32 %v4475, %v4651
        %v4653 = vpop.f32.mrb[0].mxu0
        %4654 = vmatprep.mubr.f32.mxu0 0.0
        %v4655 = vand.u32 %v3376, 4294901760
        %4656 = vmatmul.mubr.f32.gmra.mrb[0].mxu0 %v4655
        %v4657 = vpop.f32.mrb[0].mxu0
        %v4658 = vadd.f32 %v4481, %v4657
        %v4659 = vpop.f32.mrb[0].mxu0
        %4660 = vmatprep.mubr.f32.mxu0 0.0
        %v4661 = vand.u32 %v3377, 4294901760
        %4662 = vmatmul.mubr.f32.gmra.mrb[0].mxu0 %v4661
        %v4663 = vpop.f32.mrb[0].mxu0
        %v4664 = vadd.f32 %v4487, %v4663
        %v4665 = vpop.f32.mrb[0].mxu0
        %4666 = vmatprep.mubr.f32.mxu0 0.0
        %v4667 = vand.u32 %v3378, 4294901760
        %4668 = vmatmul.mubr.f32.gmra.mrb[0].mxu0 %v4667
        %v4669 = vpop.f32.mrb[0].mxu0
        %v4670 = vadd.f32 %v4493, %v4669
        %v4671 = vpop.f32.mrb[0].mxu0
        %4672 = vmatprep.mubr.f32.mxu0 0.0
        %v4673 = vand.u32 %v3379, 4294901760
        %4674 = vmatmul.mubr.f32.gmra.mrb[0].mxu0 %v4673
        %v4675 = vpop.f32.mrb[0].mxu0
        %v4676 = vadd.f32 %v4499, %v4675
        %v4677 = vpop.f32.mrb[0].mxu0
        %4678 = vmatprep.mubr.f32.mxu0 0.0
        %v4679 = vand.u32 %v3380, 4294901760
        %4680 = vmatmul.mubr.f32.gmra.mrb[0].mxu0 %v4679
        %v4681 = vpop.f32.mrb[0].mxu0
        %v4682 = vadd.f32 %v4505, %v4681
        %v4683 = vpop.f32.mrb[0].mxu0
        %4684 = vmatprep.mubr.f32.mxu0 0.0
        %v4685 = vand.u32 %v3381, 4294901760
        %4686 = vmatmul.mubr.f32.gmra.mrb[0].mxu0 %v4685
        %v4687 = vpop.f32.mrb[0].mxu0
        %v4688 = vadd.f32 %v4511, %v4687
        %v4689 = vpop.f32.mrb[0].mxu0
        %4690 = vmatprep.mubr.f32.mxu0 0.0
        %v4691 = vand.u32 %v3382, 4294901760
        %4692 = vmatmul.mubr.f32.gmra.mrb[0].mxu0 %v4691
        %v4693 = vpop.f32.mrb[0].mxu0
        %v4694 = vadd.f32 %v4517, %v4693
        %v4695 = vpop.f32.mrb[0].mxu0
        %4696 = vmatprep.mubr.f32.mxu0 0.0
        %v4697 = vand.u32 %v3383, 4294901760
        %4698 = vmatmul.mubr.f32.gmra.mrb[0].mxu0 %v4697
        %v4699 = vpop.f32.mrb[0].mxu0
        %v4700 = vadd.f32 %v4523, %v4699
        %v4701 = vpop.f32.mrb[0].mxu0
        %4702 = vmatprep.mubr.f32.mxu0 0.0
        %v4703 = vand.u32 %v3384, 4294901760
        %4704 = vmatmul.mubr.f32.gmra.mrb[0].mxu0 %v4703
        %v4705 = vpop.f32.mrb[0].mxu0
        %v4706 = vadd.f32 %v4529, %v4705
        %v4707 = vpop.f32.mrb[0].mxu0
        %4708 = vdwg.mxu0
        %v4709 = vmax.f32 %v4616, 0.0
        %v4710 = vmax.f32 %v4622, 0.0
        %v4711 = vmax.f32 %v4628, 0.0
        %v4712 = vmax.f32 %v4634, 0.0
        %v4713 = vmax.f32 %v4640, 0.0
        %v4714 = vmax.f32 %v4646, 0.0
        %v4715 = vmax.f32 %v4652, 0.0
        %v4716 = vmax.f32 %v4658, 0.0
        %v4717 = vmax.f32 %v4664, 0.0
        %v4718 = vmax.f32 %v4670, 0.0
        %v4719 = vmax.f32 %v4676, 0.0
        %v4720 = vmax.f32 %v4682, 0.0
        %v4721 = vmax.f32 %v4688, 0.0
        %v4722 = vmax.f32 %v4694, 0.0
        %v4723 = vmax.f32 %v4700, 0.0
        %v4724 = vmax.f32 %v4706, 0.0
        %s4725 = scalar_lea.vmem [#allocation7], 256
        %v4726 = vld [vmem:[%s4725] sm:$0xff]
        %v4727 = vld [vmem:[%s4725 + $0x8] sm:$0xff]
        %v4728 = vld [vmem:[%s4725 + $0x10] sm:$0xff]
        %v4729 = vld [vmem:[%s4725 + $0x18] sm:$0xff]
        %v4730 = vld [vmem:[%s4725 + $0x20] sm:$0xff]
        %v4731 = vld [vmem:[%s4725 + $0x28] sm:$0xff]
        %v4732 = vld [vmem:[%s4725 + $0x30] sm:$0xff]
        %v4733 = vld [vmem:[%s4725 + $0x38] sm:$0xff]
        %v4734 = vld [vmem:[%s4725 + $0x40] sm:$0xff]
        %v4735 = vld [vmem:[%s4725 + $0x48] sm:$0xff]
        %v4736 = vld [vmem:[%s4725 + $0x50] sm:$0xff]
        %v4737 = vld [vmem:[%s4725 + $0x58] sm:$0xff]
        %v4738 = vld [vmem:[%s4725 + $0x60] sm:$0xff]
        %v4739 = vld [vmem:[%s4725 + $0x68] sm:$0xff]
        %v4740 = vld [vmem:[%s4725 + $0x70] sm:$0xff]
        %v4741 = vld [vmem:[%s4725 + $0x78] sm:$0xff]
        %v4742 = vld [vmem:[%s4725 + $0x80] sm:$0xff]
        %v4743 = vld [vmem:[%s4725 + $0x88] sm:$0xff]
        %v4744 = vld [vmem:[%s4725 + $0x90] sm:$0xff]
        %v4745 = vld [vmem:[%s4725 + $0x98] sm:$0xff]
        %v4746 = vld [vmem:[%s4725 + $0xa0] sm:$0xff]
        %v4747 = vld [vmem:[%s4725 + $0xa8] sm:$0xff]
        %v4748 = vld [vmem:[%s4725 + $0xb0] sm:$0xff]
        %v4749 = vld [vmem:[%s4725 + $0xb8] sm:$0xff]
        %v4750 = vld [vmem:[%s4725 + $0xc0] sm:$0xff]
        %v4751 = vld [vmem:[%s4725 + $0xc8] sm:$0xff]
        %v4752 = vld [vmem:[%s4725 + $0xd0] sm:$0xff]
        %v4753 = vld [vmem:[%s4725 + $0xd8] sm:$0xff]
        %v4754 = vld [vmem:[%s4725 + $0xe0] sm:$0xff]
        %v4755 = vld [vmem:[%s4725 + $0xe8] sm:$0xff]
        %v4756 = vld [vmem:[%s4725 + $0xf0] sm:$0xff]
        %v4757 = vld [vmem:[%s4725 + $0xf8] sm:$0xff]
        %s4758 = scalar_lea.vmem %s4, 1
        %v4759 = vld [vmem:[%s4758] ss:$4 sm:$0x3]
        %v4761 = vlaneseq
        %v4762 = vshrl.u32 %v4761, 7
        %v4763 = vsub.s32 0, %v4762
        %v4764 = vrot.slane %v4759, %v4763
        %v4765 = vlaneseq
        %v4766 = vshrl.u32 %v4765, 7
        %v4767 = vsub.s32 1, %v4766
        %v4768 = vrot.slane %v4759, %v4767
        %v4771 = vand.u32 %v4727, 4294901760
        %4772 = vmatprep.subr.mxu0 %v4771
        %v4773 = vand.u32 %v4726, 4294901760
        %4774 = vmatpush1.msra.mxu0 %v4773
        %v4775 = vand.u32 %v4729, 4294901760
        %4776 = vmatprep.subr.mxu0 %v4775
        %v4777 = vand.u32 %v4728, 4294901760
        %4778 = vmatpush1.msra.mxu0 %v4777
        %v4779 = vand.u32 %v4731, 4294901760
        %4780 = vmatprep.subr.mxu0 %v4779
        %v4781 = vand.u32 %v4730, 4294901760
        %4782 = vmatpush1.msra.mxu0 %v4781
        %v4783 = vand.u32 %v4733, 4294901760
        %4784 = vmatprep.subr.mxu0 %v4783
        %v4785 = vand.u32 %v4732, 4294901760
        %4786 = vmatpush1.msra.mxu0 %v4785
        %v4787 = vand.u32 %v4735, 4294901760
        %4788 = vmatprep.subr.mxu0 %v4787
        %v4789 = vand.u32 %v4734, 4294901760
        %4790 = vmatpush1.msra.mxu0 %v4789
        %v4791 = vand.u32 %v4737, 4294901760
        %4792 = vmatprep.subr.mxu0 %v4791
        %v4793 = vand.u32 %v4736, 4294901760
        %4794 = vmatpush1.msra.mxu0 %v4793
        %v4795 = vand.u32 %v4739, 4294901760
        %4796 = vmatprep.subr.mxu0 %v4795
        %v4797 = vand.u32 %v4738, 4294901760
        %4798 = vmatpush1.msra.mxu0 %v4797
        %v4799 = vand.u32 %v4741, 4294901760
        %4800 = vmatprep.subr.mxu0 %v4799
        %v4801 = vand.u32 %v4740, 4294901760
        %4802 = vmatpush1.msra.mxu0 %v4801
        %v4803 = vand.u32 %v4743, 4294901760
        %4804 = vmatprep.subr.mxu0 %v4803
        %v4805 = vand.u32 %v4742, 4294901760
        %4806 = vmatpush1.msra.mxu0 %v4805
        %v4807 = vand.u32 %v4745, 4294901760
        %4808 = vmatprep.subr.mxu0 %v4807
        %v4809 = vand.u32 %v4744, 4294901760
        %4810 = vmatpush1.msra.mxu0 %v4809
        %v4811 = vand.u32 %v4747, 4294901760
        %4812 = vmatprep.subr.mxu0 %v4811
        %v4813 = vand.u32 %v4746, 4294901760
        %4814 = vmatpush1.msra.mxu0 %v4813
        %v4815 = vand.u32 %v4749, 4294901760
        %4816 = vmatprep.subr.mxu0 %v4815
        %v4817 = vand.u32 %v4748, 4294901760
        %4818 = vmatpush1.msra.mxu0 %v4817
        %v4819 = vand.u32 %v4751, 4294901760
        %4820 = vmatprep.subr.mxu0 %v4819
        %v4821 = vand.u32 %v4750, 4294901760
        %4822 = vmatpush1.msra.mxu0 %v4821
        %v4823 = vand.u32 %v4753, 4294901760
        %4824 = vmatprep.subr.mxu0 %v4823
        %v4825 = vand.u32 %v4752, 4294901760
        %4826 = vmatpush1.msra.mxu0 %v4825
        %v4827 = vand.u32 %v4755, 4294901760
        %4828 = vmatprep.subr.mxu0 %v4827
        %v4829 = vand.u32 %v4754, 4294901760
        %4830 = vmatpush1.msra.mxu0 %v4829
        %v4831 = vand.u32 %v4757, 4294901760
        %4832 = vmatprep.subr.mxu0 %v4831
        %v4833 = vand.u32 %v4756, 4294901760
        %4834 = vmatpush1.msra.mxu0 %v4833
        %4835 = vmatprep.subr.mxu0 0.0
        %4836 = vmatpush1.msra.mxu0 0.0
        %4837 = vmatprep.subr.mxu0 0.0
        %4838 = vmatpush1.msra.mxu0 0.0
        %4839 = vmatprep.subr.mxu0 0.0
        %4840 = vmatpush1.msra.mxu0 0.0
        %4841 = vmatprep.subr.mxu0 0.0
        %4842 = vmatpush1.msra.mxu0 0.0
        %4843 = vmatprep.subr.mxu0 0.0
        %4844 = vmatpush1.msra.mxu0 0.0
        %4845 = vmatprep.subr.mxu0 0.0
        %4846 = vmatpush1.msra.mxu0 0.0
        %4847 = vmatprep.subr.mxu0 0.0
        %4848 = vmatpush1.msra.mxu0 0.0
        %4849 = vmatprep.subr.mxu0 0.0
        %4850 = vmatpush1.msra.mxu0 0.0
        %4851 = vmatprep.subr.mxu0 0.0
        %4852 = vmatpush1.msra.mxu0 0.0
        %4853 = vmatprep.subr.mxu0 0.0
        %4854 = vmatpush1.msra.mxu0 0.0
        %4855 = vmatprep.subr.mxu0 0.0
        %4856 = vmatpush1.msra.mxu0 0.0
        %4857 = vmatprep.subr.mxu0 0.0
        %4858 = vmatpush1.msra.mxu0 0.0
        %4859 = vmatprep.subr.mxu0 0.0
        %4860 = vmatpush1.msra.mxu0 0.0
        %4861 = vmatprep.subr.mxu0 0.0
        %4862 = vmatpush1.msra.mxu0 0.0
        %4863 = vmatprep.subr.mxu0 0.0
        %4864 = vmatpush1.msra.mxu0 0.0
        %4865 = vmatprep.subr.mxu0 0.0
        %4866 = vmatpush1.msra.mxu0 0.0
        %4867 = vmatprep.mubr.f32.mxu0 0.0
        %v4868 = vand.u32 %v4709, 4294901760
        %v4869 = vsub.f32 %v4709, %v4868
        %v4870 = vand.u32 %v4869, 4294901760
        %v4871 = vsub.f32 %v4869, %v4870
        %v4872 = vand.u32 %v4871, 4294901760
        %4873 = vmatmul.mubr.f32.gmra.mrb[0].mxu0 %v4872
        %v4874 = vpop.f32.mrb[0].mxu0
        %v4875 = vadd.f32 %v4764, %v4874
        %v4876 = vpop.f32.mrb[0].mxu0
        %v4877 = vadd.f32 %v4768, %v4876
        %4878 = vmatprep.mubr.f32.mxu0 0.0
        %v4879 = vand.u32 %v4710, 4294901760
        %v4880 = vsub.f32 %v4710, %v4879
        %v4881 = vand.u32 %v4880, 4294901760
        %v4882 = vsub.f32 %v4880, %v4881
        %v4883 = vand.u32 %v4882, 4294901760
        %4884 = vmatmul.mubr.f32.gmra.mrb[0].mxu0 %v4883
        %v4885 = vpop.f32.mrb[0].mxu0
        %v4886 = vadd.f32 %v4764, %v4885
        %v4887 = vpop.f32.mrb[0].mxu0
        %v4888 = vadd.f32 %v4768, %v4887
        %4889 = vmatprep.mubr.f32.mxu0 0.0
        %v4890 = vand.u32 %v4711, 4294901760
        %v4891 = vsub.f32 %v4711, %v4890
        %v4892 = vand.u32 %v4891, 4294901760
        %v4893 = vsub.f32 %v4891, %v4892
        %v4894 = vand.u32 %v4893, 4294901760
        %4895 = vmatmul.mubr.f32.gmra.mrb[0].mxu0 %v4894
        %v4896 = vpop.f32.mrb[0].mxu0
        %v4897 = vadd.f32 %v4764, %v4896
        %v4898 = vpop.f32.mrb[0].mxu0
        %v4899 = vadd.f32 %v4768, %v4898
        %4900 = vmatprep.mubr.f32.mxu0 0.0
        %v4901 = vand.u32 %v4712, 4294901760
        %v4902 = vsub.f32 %v4712, %v4901
        %v4903 = vand.u32 %v4902, 4294901760
        %v4904 = vsub.f32 %v4902, %v4903
        %v4905 = vand.u32 %v4904, 4294901760
        %4906 = vmatmul.mubr.f32.gmra.mrb[0].mxu0 %v4905
        %v4907 = vpop.f32.mrb[0].mxu0
        %v4908 = vadd.f32 %v4764, %v4907
        %v4909 = vpop.f32.mrb[0].mxu0
        %v4910 = vadd.f32 %v4768, %v4909
        %4911 = vmatprep.mubr.f32.mxu0 0.0
        %v4912 = vand.u32 %v4713, 4294901760
        %v4913 = vsub.f32 %v4713, %v4912
        %v4914 = vand.u32 %v4913, 4294901760
        %v4915 = vsub.f32 %v4913, %v4914
        %v4916 = vand.u32 %v4915, 4294901760
        %4917 = vmatmul.mubr.f32.gmra.mrb[0].mxu0 %v4916
        %v4918 = vpop.f32.mrb[0].mxu0
        %v4919 = vadd.f32 %v4764, %v4918
        %v4920 = vpop.f32.mrb[0].mxu0
        %v4921 = vadd.f32 %v4768, %v4920
        %4922 = vmatprep.mubr.f32.mxu0 0.0
        %v4923 = vand.u32 %v4714, 4294901760
        %v4924 = vsub.f32 %v4714, %v4923
        %v4925 = vand.u32 %v4924, 4294901760
        %v4926 = vsub.f32 %v4924, %v4925
        %v4927 = vand.u32 %v4926, 4294901760
        %4928 = vmatmul.mubr.f32.gmra.mrb[0].mxu0 %v4927
        %v4929 = vpop.f32.mrb[0].mxu0
        %v4930 = vadd.f32 %v4764, %v4929
        %v4931 = vpop.f32.mrb[0].mxu0
        %v4932 = vadd.f32 %v4768, %v4931
        %4933 = vmatprep.mubr.f32.mxu0 0.0
        %v4934 = vand.u32 %v4715, 4294901760
        %v4935 = vsub.f32 %v4715, %v4934
        %v4936 = vand.u32 %v4935, 4294901760
        %v4937 = vsub.f32 %v4935, %v4936
        %v4938 = vand.u32 %v4937, 4294901760
        %4939 = vmatmul.mubr.f32.gmra.mrb[0].mxu0 %v4938
        %v4940 = vpop.f32.mrb[0].mxu0
        %v4941 = vadd.f32 %v4764, %v4940
        %v4942 = vpop.f32.mrb[0].mxu0
        %v4943 = vadd.f32 %v4768, %v4942
        %4944 = vmatprep.mubr.f32.mxu0 0.0
        %v4945 = vand.u32 %v4716, 4294901760
        %v4946 = vsub.f32 %v4716, %v4945
        %v4947 = vand.u32 %v4946, 4294901760
        %v4948 = vsub.f32 %v4946, %v4947
        %v4949 = vand.u32 %v4948, 4294901760
        %4950 = vmatmul.mubr.f32.gmra.mrb[0].mxu0 %v4949
        %v4951 = vpop.f32.mrb[0].mxu0
        %v4952 = vadd.f32 %v4764, %v4951
        %v4953 = vpop.f32.mrb[0].mxu0
        %v4954 = vadd.f32 %v4768, %v4953
        %4955 = vmatprep.mubr.f32.mxu0 0.0
        %v4956 = vand.u32 %v4717, 4294901760
        %v4957 = vsub.f32 %v4717, %v4956
        %v4958 = vand.u32 %v4957, 4294901760
        %v4959 = vsub.f32 %v4957, %v4958
        %v4960 = vand.u32 %v4959, 4294901760
        %4961 = vmatmul.mubr.f32.gmra.mrb[0].mxu0 %v4960
        %v4962 = vpop.f32.mrb[0].mxu0
        %v4963 = vadd.f32 %v4764, %v4962
        %v4964 = vpop.f32.mrb[0].mxu0
        %v4965 = vadd.f32 %v4768, %v4964
        %4966 = vmatprep.mubr.f32.mxu0 0.0
        %v4967 = vand.u32 %v4718, 4294901760
        %v4968 = vsub.f32 %v4718, %v4967
        %v4969 = vand.u32 %v4968, 4294901760
        %v4970 = vsub.f32 %v4968, %v4969
        %v4971 = vand.u32 %v4970, 4294901760
        %4972 = vmatmul.mubr.f32.gmra.mrb[0].mxu0 %v4971
        %v4973 = vpop.f32.mrb[0].mxu0
        %v4974 = vadd.f32 %v4764, %v4973
        %v4975 = vpop.f32.mrb[0].mxu0
        %v4976 = vadd.f32 %v4768, %v4975
        %4977 = vmatprep.mubr.f32.mxu0 0.0
        %v4978 = vand.u32 %v4719, 4294901760
        %v4979 = vsub.f32 %v4719, %v4978
        %v4980 = vand.u32 %v4979, 4294901760
        %v4981 = vsub.f32 %v4979, %v4980
        %v4982 = vand.u32 %v4981, 4294901760
        %4983 = vmatmul.mubr.f32.gmra.mrb[0].mxu0 %v4982
        %v4984 = vpop.f32.mrb[0].mxu0
        %v4985 = vadd.f32 %v4764, %v4984
        %v4986 = vpop.f32.mrb[0].mxu0
        %v4987 = vadd.f32 %v4768, %v4986
        %4988 = vmatprep.mubr.f32.mxu0 0.0
        %v4989 = vand.u32 %v4720, 4294901760
        %v4990 = vsub.f32 %v4720, %v4989
        %v4991 = vand.u32 %v4990, 4294901760
        %v4992 = vsub.f32 %v4990, %v4991
        %v4993 = vand.u32 %v4992, 4294901760
        %4994 = vmatmul.mubr.f32.gmra.mrb[0].mxu0 %v4993
        %v4995 = vpop.f32.mrb[0].mxu0
        %v4996 = vadd.f32 %v4764, %v4995
        %v4997 = vpop.f32.mrb[0].mxu0
        %v4998 = vadd.f32 %v4768, %v4997
        %4999 = vmatprep.mubr.f32.mxu0 0.0
        %v5000 = vand.u32 %v4721, 4294901760
        %v5001 = vsub.f32 %v4721, %v5000
        %v5002 = vand.u32 %v5001, 4294901760
        %v5003 = vsub.f32 %v5001, %v5002
        %v5004 = vand.u32 %v5003, 4294901760
        %5005 = vmatmul.mubr.f32.gmra.mrb[0].mxu0 %v5004
        %v5006 = vpop.f32.mrb[0].mxu0
        %v5007 = vadd.f32 %v4764, %v5006
        %v5008 = vpop.f32.mrb[0].mxu0
        %v5009 = vadd.f32 %v4768, %v5008
        %5010 = vmatprep.mubr.f32.mxu0 0.0
        %v5011 = vand.u32 %v4722, 4294901760
        %v5012 = vsub.f32 %v4722, %v5011
        %v5013 = vand.u32 %v5012, 4294901760
        %v5014 = vsub.f32 %v5012, %v5013
        %v5015 = vand.u32 %v5014, 4294901760
        %5016 = vmatmul.mubr.f32.gmra.mrb[0].mxu0 %v5015
        %v5017 = vpop.f32.mrb[0].mxu0
        %v5018 = vadd.f32 %v4764, %v5017
        %v5019 = vpop.f32.mrb[0].mxu0
        %v5020 = vadd.f32 %v4768, %v5019
        %5021 = vmatprep.mubr.f32.mxu0 0.0
        %v5022 = vand.u32 %v4723, 4294901760
        %v5023 = vsub.f32 %v4723, %v5022
        %v5024 = vand.u32 %v5023, 4294901760
        %v5025 = vsub.f32 %v5023, %v5024
        %v5026 = vand.u32 %v5025, 4294901760
        %5027 = vmatmul.mubr.f32.gmra.mrb[0].mxu0 %v5026
        %v5028 = vpop.f32.mrb[0].mxu0
        %v5029 = vadd.f32 %v4764, %v5028
        %v5030 = vpop.f32.mrb[0].mxu0
        %v5031 = vadd.f32 %v4768, %v5030
        %5032 = vmatprep.mubr.f32.mxu0 0.0
        %v5033 = vand.u32 %v4724, 4294901760
        %v5034 = vsub.f32 %v4724, %v5033
        %v5035 = vand.u32 %v5034, 4294901760
        %v5036 = vsub.f32 %v5034, %v5035
        %v5037 = vand.u32 %v5036, 4294901760
        %5038 = vmatmul.mubr.f32.gmra.mrb[0].mxu0 %v5037
        %v5039 = vpop.f32.mrb[0].mxu0
        %v5040 = vadd.f32 %v4764, %v5039
        %v5041 = vpop.f32.mrb[0].mxu0
        %v5042 = vadd.f32 %v4768, %v5041
        %5043 = vdwg.mxu0
        %v5044 = vand.u32 %v4727, 4294901760
        %v5045 = vsub.f32 %v4727, %v5044
        %v5046 = vand.u32 %v5045, 4294901760
        %v5047 = vsub.f32 %v5045, %v5046
        %v5048 = vand.u32 %v5047, 4294901760
        %5049 = vmatprep.subr.mxu0 %v5048
        %v5050 = vand.u32 %v4726, 4294901760
        %v5051 = vsub.f32 %v4726, %v5050
        %v5052 = vand.u32 %v5051, 4294901760
        %v5053 = vsub.f32 %v5051, %v5052
        %v5054 = vand.u32 %v5053, 4294901760
        %5055 = vmatpush1.msra.mxu0 %v5054
        %v5056 = vand.u32 %v4729, 4294901760
        %v5057 = vsub.f32 %v4729, %v5056
        %v5058 = vand.u32 %v5057, 4294901760
        %v5059 = vsub.f32 %v5057, %v5058
        %v5060 = vand.u32 %v5059, 4294901760
        %5061 = vmatprep.subr.mxu0 %v5060
        %v5062 = vand.u32 %v4728, 4294901760
        %v5063 = vsub.f32 %v4728, %v5062
        %v5064 = vand.u32 %v5063, 4294901760
        %v5065 = vsub.f32 %v5063, %v5064
        %v5066 = vand.u32 %v5065, 4294901760
        %5067 = vmatpush1.msra.mxu0 %v5066
        %v5068 = vand.u32 %v4731, 4294901760
        %v5069 = vsub.f32 %v4731, %v5068
        %v5070 = vand.u32 %v5069, 4294901760
        %v5071 = vsub.f32 %v5069, %v5070
        %v5072 = vand.u32 %v5071, 4294901760
        %5073 = vmatprep.subr.mxu0 %v5072
        %v5074 = vand.u32 %v4730, 4294901760
        %v5075 = vsub.f32 %v4730, %v5074
        %v5076 = vand.u32 %v5075, 4294901760
        %v5077 = vsub.f32 %v5075, %v5076
        %v5078 = vand.u32 %v5077, 4294901760
        %5079 = vmatpush1.msra.mxu0 %v5078
        %v5080 = vand.u32 %v4733, 4294901760
        %v5081 = vsub.f32 %v4733, %v5080
        %v5082 = vand.u32 %v5081, 4294901760
        %v5083 = vsub.f32 %v5081, %v5082
        %v5084 = vand.u32 %v5083, 4294901760
        %5085 = vmatprep.subr.mxu0 %v5084
        %v5086 = vand.u32 %v4732, 4294901760
        %v5087 = vsub.f32 %v4732, %v5086
        %v5088 = vand.u32 %v5087, 4294901760
        %v5089 = vsub.f32 %v5087, %v5088
        %v5090 = vand.u32 %v5089, 4294901760
        %5091 = vmatpush1.msra.mxu0 %v5090
        %v5092 = vand.u32 %v4735, 4294901760
        %v5093 = vsub.f32 %v4735, %v5092
        %v5094 = vand.u32 %v5093, 4294901760
        %v5095 = vsub.f32 %v5093, %v5094
        %v5096 = vand.u32 %v5095, 4294901760
        %5097 = vmatprep.subr.mxu0 %v5096
        %v5098 = vand.u32 %v4734, 4294901760
        %v5099 = vsub.f32 %v4734, %v5098
        %v5100 = vand.u32 %v5099, 4294901760
        %v5101 = vsub.f32 %v5099, %v5100
        %v5102 = vand.u32 %v5101, 4294901760
        %5103 = vmatpush1.msra.mxu0 %v5102
        %v5104 = vand.u32 %v4737, 4294901760
        %v5105 = vsub.f32 %v4737, %v5104
        %v5106 = vand.u32 %v5105, 4294901760
        %v5107 = vsub.f32 %v5105, %v5106
        %v5108 = vand.u32 %v5107, 4294901760
        %5109 = vmatprep.subr.mxu0 %v5108
        %v5110 = vand.u32 %v4736, 4294901760
        %v5111 = vsub.f32 %v4736, %v5110
        %v5112 = vand.u32 %v5111, 4294901760
        %v5113 = vsub.f32 %v5111, %v5112
        %v5114 = vand.u32 %v5113, 4294901760
        %5115 = vmatpush1.msra.mxu0 %v5114
        %v5116 = vand.u32 %v4739, 4294901760
        %v5117 = vsub.f32 %v4739, %v5116
        %v5118 = vand.u32 %v5117, 4294901760
        %v5119 = vsub.f32 %v5117, %v5118
        %v5120 = vand.u32 %v5119, 4294901760
        %5121 = vmatprep.subr.mxu0 %v5120
        %v5122 = vand.u32 %v4738, 4294901760
        %v5123 = vsub.f32 %v4738, %v5122
        %v5124 = vand.u32 %v5123, 4294901760
        %v5125 = vsub.f32 %v5123, %v5124
        %v5126 = vand.u32 %v5125, 4294901760
        %5127 = vmatpush1.msra.mxu0 %v5126
        %v5128 = vand.u32 %v4741, 4294901760
        %v5129 = vsub.f32 %v4741, %v5128
        %v5130 = vand.u32 %v5129, 4294901760
        %v5131 = vsub.f32 %v5129, %v5130
        %v5132 = vand.u32 %v5131, 4294901760
        %5133 = vmatprep.subr.mxu0 %v5132
        %v5134 = vand.u32 %v4740, 4294901760
        %v5135 = vsub.f32 %v4740, %v5134
        %v5136 = vand.u32 %v5135, 4294901760
        %v5137 = vsub.f32 %v5135, %v5136
        %v5138 = vand.u32 %v5137, 4294901760
        %5139 = vmatpush1.msra.mxu0 %v5138
        %v5140 = vand.u32 %v4743, 4294901760
        %v5141 = vsub.f32 %v4743, %v5140
        %v5142 = vand.u32 %v5141, 4294901760
        %v5143 = vsub.f32 %v5141, %v5142
        %v5144 = vand.u32 %v5143, 4294901760
        %5145 = vmatprep.subr.mxu0 %v5144
        %v5146 = vand.u32 %v4742, 4294901760
        %v5147 = vsub.f32 %v4742, %v5146
        %v5148 = vand.u32 %v5147, 4294901760
        %v5149 = vsub.f32 %v5147, %v5148
        %v5150 = vand.u32 %v5149, 4294901760
        %5151 = vmatpush1.msra.mxu0 %v5150
        %v5152 = vand.u32 %v4745, 4294901760
        %v5153 = vsub.f32 %v4745, %v5152
        %v5154 = vand.u32 %v5153, 4294901760
        %v5155 = vsub.f32 %v5153, %v5154
        %v5156 = vand.u32 %v5155, 4294901760
        %5157 = vmatprep.subr.mxu0 %v5156
        %v5158 = vand.u32 %v4744, 4294901760
        %v5159 = vsub.f32 %v4744, %v5158
        %v5160 = vand.u32 %v5159, 4294901760
        %v5161 = vsub.f32 %v5159, %v5160
        %v5162 = vand.u32 %v5161, 4294901760
        %5163 = vmatpush1.msra.mxu0 %v5162
        %v5164 = vand.u32 %v4747, 4294901760
        %v5165 = vsub.f32 %v4747, %v5164
        %v5166 = vand.u32 %v5165, 4294901760
        %v5167 = vsub.f32 %v5165, %v5166
        %v5168 = vand.u32 %v5167, 4294901760
        %5169 = vmatprep.subr.mxu0 %v5168
        %v5170 = vand.u32 %v4746, 4294901760
        %v5171 = vsub.f32 %v4746, %v5170
        %v5172 = vand.u32 %v5171, 4294901760
        %v5173 = vsub.f32 %v5171, %v5172
        %v5174 = vand.u32 %v5173, 4294901760
        %5175 = vmatpush1.msra.mxu0 %v5174
        %v5176 = vand.u32 %v4749, 4294901760
        %v5177 = vsub.f32 %v4749, %v5176
        %v5178 = vand.u32 %v5177, 4294901760
        %v5179 = vsub.f32 %v5177, %v5178
        %v5180 = vand.u32 %v5179, 4294901760
        %5181 = vmatprep.subr.mxu0 %v5180
        %v5182 = vand.u32 %v4748, 4294901760
        %v5183 = vsub.f32 %v4748, %v5182
        %v5184 = vand.u32 %v5183, 4294901760
        %v5185 = vsub.f32 %v5183, %v5184
        %v5186 = vand.u32 %v5185, 4294901760
        %5187 = vmatpush1.msra.mxu0 %v5186
        %v5188 = vand.u32 %v4751, 4294901760
        %v5189 = vsub.f32 %v4751, %v5188
        %v5190 = vand.u32 %v5189, 4294901760
        %v5191 = vsub.f32 %v5189, %v5190
        %v5192 = vand.u32 %v5191, 4294901760
        %5193 = vmatprep.subr.mxu0 %v5192
        %v5194 = vand.u32 %v4750, 4294901760
        %v5195 = vsub.f32 %v4750, %v5194
        %v5196 = vand.u32 %v5195, 4294901760
        %v5197 = vsub.f32 %v5195, %v5196
        %v5198 = vand.u32 %v5197, 4294901760
        %5199 = vmatpush1.msra.mxu0 %v5198
        %v5200 = vand.u32 %v4753, 4294901760
        %v5201 = vsub.f32 %v4753, %v5200
        %v5202 = vand.u32 %v5201, 4294901760
        %v5203 = vsub.f32 %v5201, %v5202
        %v5204 = vand.u32 %v5203, 4294901760
        %5205 = vmatprep.subr.mxu0 %v5204
        %v5206 = vand.u32 %v4752, 4294901760
        %v5207 = vsub.f32 %v4752, %v5206
        %v5208 = vand.u32 %v5207, 4294901760
        %v5209 = vsub.f32 %v5207, %v5208
        %v5210 = vand.u32 %v5209, 4294901760
        %5211 = vmatpush1.msra.mxu0 %v5210
        %v5212 = vand.u32 %v4755, 4294901760
        %v5213 = vsub.f32 %v4755, %v5212
        %v5214 = vand.u32 %v5213, 4294901760
        %v5215 = vsub.f32 %v5213, %v5214
        %v5216 = vand.u32 %v5215, 4294901760
        %5217 = vmatprep.subr.mxu0 %v5216
        %v5218 = vand.u32 %v4754, 4294901760
        %v5219 = vsub.f32 %v4754, %v5218
        %v5220 = vand.u32 %v5219, 4294901760
        %v5221 = vsub.f32 %v5219, %v5220
        %v5222 = vand.u32 %v5221, 4294901760
        %5223 = vmatpush1.msra.mxu0 %v5222
        %v5224 = vand.u32 %v4757, 4294901760
        %v5225 = vsub.f32 %v4757, %v5224
        %v5226 = vand.u32 %v5225, 4294901760
        %v5227 = vsub.f32 %v5225, %v5226
        %v5228 = vand.u32 %v5227, 4294901760
        %5229 = vmatprep.subr.mxu0 %v5228
        %v5230 = vand.u32 %v4756, 4294901760
        %v5231 = vsub.f32 %v4756, %v5230
        %v5232 = vand.u32 %v5231, 4294901760
        %v5233 = vsub.f32 %v5231, %v5232
        %v5234 = vand.u32 %v5233, 4294901760
        %5235 = vmatpush1.msra.mxu0 %v5234
        %5236 = vmatprep.subr.mxu0 0.0
        %5237 = vmatpush1.msra.mxu0 0.0
        %5238 = vmatprep.subr.mxu0 0.0
        %5239 = vmatpush1.msra.mxu0 0.0
        %5240 = vmatprep.subr.mxu0 0.0
        %5241 = vmatpush1.msra.mxu0 0.0
        %5242 = vmatprep.subr.mxu0 0.0
        %5243 = vmatpush1.msra.mxu0 0.0
        %5244 = vmatprep.subr.mxu0 0.0
        %5245 = vmatpush1.msra.mxu0 0.0
        %5246 = vmatprep.subr.mxu0 0.0
        %5247 = vmatpush1.msra.mxu0 0.0
        %5248 = vmatprep.subr.mxu0 0.0
        %5249 = vmatpush1.msra.mxu0 0.0
        %5250 = vmatprep.subr.mxu0 0.0
        %5251 = vmatpush1.msra.mxu0 0.0
        %5252 = vmatprep.subr.mxu0 0.0
        %5253 = vmatpush1.msra.mxu0 0.0
        %5254 = vmatprep.subr.mxu0 0.0
        %5255 = vmatpush1.msra.mxu0 0.0
        %5256 = vmatprep.subr.mxu0 0.0
        %5257 = vmatpush1.msra.mxu0 0.0
        %5258 = vmatprep.subr.mxu0 0.0
        %5259 = vmatpush1.msra.mxu0 0.0
        %5260 = vmatprep.subr.mxu0 0.0
        %5261 = vmatpush1.msra.mxu0 0.0
        %5262 = vmatprep.subr.mxu0 0.0
        %5263 = vmatpush1.msra.mxu0 0.0
        %5264 = vmatprep.subr.mxu0 0.0
        %5265 = vmatpush1.msra.mxu0 0.0
        %5266 = vmatprep.subr.mxu0 0.0
        %5267 = vmatpush1.msra.mxu0 0.0
        %5268 = vmatprep.mubr.f32.mxu0 0.0
        %v5269 = vand.u32 %v4709, 4294901760
        %5270 = vmatmul.mubr.f32.gmra.mrb[0].mxu0 %v5269
        %v5271 = vpop.f32.mrb[0].mxu0
        %v5272 = vadd.f32 %v4875, %v5271
        %v5273 = vpop.f32.mrb[0].mxu0
        %v5274 = vadd.f32 %v4877, %v5273
        %5275 = vmatprep.mubr.f32.mxu0 0.0
        %v5276 = vand.u32 %v4710, 4294901760
        %5277 = vmatmul.mubr.f32.gmra.mrb[0].mxu0 %v5276
        %v5278 = vpop.f32.mrb[0].mxu0
        %v5279 = vadd.f32 %v4886, %v5278
        %v5280 = vpop.f32.mrb[0].mxu0
        %v5281 = vadd.f32 %v4888, %v5280
        %5282 = vmatprep.mubr.f32.mxu0 0.0
        %v5283 = vand.u32 %v4711, 4294901760
        %5284 = vmatmul.mubr.f32.gmra.mrb[0].mxu0 %v5283
        %v5285 = vpop.f32.mrb[0].mxu0
        %v5286 = vadd.f32 %v4897, %v5285
        %v5287 = vpop.f32.mrb[0].mxu0
        %v5288 = vadd.f32 %v4899, %v5287
        %5289 = vmatprep.mubr.f32.mxu0 0.0
        %v5290 = vand.u32 %v4712, 4294901760
        %5291 = vmatmul.mubr.f32.gmra.mrb[0].mxu0 %v5290
        %v5292 = vpop.f32.mrb[0].mxu0
        %v5293 = vadd.f32 %v4908, %v5292
        %v5294 = vpop.f32.mrb[0].mxu0
        %v5295 = vadd.f32 %v4910, %v5294
        %5296 = vmatprep.mubr.f32.mxu0 0.0
        %v5297 = vand.u32 %v4713, 4294901760
        %5298 = vmatmul.mubr.f32.gmra.mrb[0].mxu0 %v5297
        %v5299 = vpop.f32.mrb[0].mxu0
        %v5300 = vadd.f32 %v4919, %v5299
        %v5301 = vpop.f32.mrb[0].mxu0
        %v5302 = vadd.f32 %v4921, %v5301
        %5303 = vmatprep.mubr.f32.mxu0 0.0
        %v5304 = vand.u32 %v4714, 4294901760
        %5305 = vmatmul.mubr.f32.gmra.mrb[0].mxu0 %v5304
        %v5306 = vpop.f32.mrb[0].mxu0
        %v5307 = vadd.f32 %v4930, %v5306
        %v5308 = vpop.f32.mrb[0].mxu0
        %v5309 = vadd.f32 %v4932, %v5308
        %5310 = vmatprep.mubr.f32.mxu0 0.0
        %v5311 = vand.u32 %v4715, 4294901760
        %5312 = vmatmul.mubr.f32.gmra.mrb[0].mxu0 %v5311
        %v5313 = vpop.f32.mrb[0].mxu0
        %v5314 = vadd.f32 %v4941, %v5313
        %v5315 = vpop.f32.mrb[0].mxu0
        %v5316 = vadd.f32 %v4943, %v5315
        %5317 = vmatprep.mubr.f32.mxu0 0.0
        %v5318 = vand.u32 %v4716, 4294901760
        %5319 = vmatmul.mubr.f32.gmra.mrb[0].mxu0 %v5318
        %v5320 = vpop.f32.mrb[0].mxu0
        %v5321 = vadd.f32 %v4952, %v5320
        %v5322 = vpop.f32.mrb[0].mxu0
        %v5323 = vadd.f32 %v4954, %v5322
        %5324 = vmatprep.mubr.f32.mxu0 0.0
        %v5325 = vand.u32 %v4717, 4294901760
        %5326 = vmatmul.mubr.f32.gmra.mrb[0].mxu0 %v5325
        %v5327 = vpop.f32.mrb[0].mxu0
        %v5328 = vadd.f32 %v4963, %v5327
        %v5329 = vpop.f32.mrb[0].mxu0
        %v5330 = vadd.f32 %v4965, %v5329
        %5331 = vmatprep.mubr.f32.mxu0 0.0
        %v5332 = vand.u32 %v4718, 4294901760
        %5333 = vmatmul.mubr.f32.gmra.mrb[0].mxu0 %v5332
        %v5334 = vpop.f32.mrb[0].mxu0
        %v5335 = vadd.f32 %v4974, %v5334
        %v5336 = vpop.f32.mrb[0].mxu0
        %v5337 = vadd.f32 %v4976, %v5336
        %5338 = vmatprep.mubr.f32.mxu0 0.0
        %v5339 = vand.u32 %v4719, 4294901760
        %5340 = vmatmul.mubr.f32.gmra.mrb[0].mxu0 %v5339
        %v5341 = vpop.f32.mrb[0].mxu0
        %v5342 = vadd.f32 %v4985, %v5341
        %v5343 = vpop.f32.mrb[0].mxu0
        %v5344 = vadd.f32 %v4987, %v5343
        %5345 = vmatprep.mubr.f32.mxu0 0.0
        %v5346 = vand.u32 %v4720, 4294901760
        %5347 = vmatmul.mubr.f32.gmra.mrb[0].mxu0 %v5346
        %v5348 = vpop.f32.mrb[0].mxu0
        %v5349 = vadd.f32 %v4996, %v5348
        %v5350 = vpop.f32.mrb[0].mxu0
        %v5351 = vadd.f32 %v4998, %v5350
        %5352 = vmatprep.mubr.f32.mxu0 0.0
        %v5353 = vand.u32 %v4721, 4294901760
        %5354 = vmatmul.mubr.f32.gmra.mrb[0].mxu0 %v5353
        %v5355 = vpop.f32.mrb[0].mxu0
        %v5356 = vadd.f32 %v5007, %v5355
        %v5357 = vpop.f32.mrb[0].mxu0
        %v5358 = vadd.f32 %v5009, %v5357
        %5359 = vmatprep.mubr.f32.mxu0 0.0
        %v5360 = vand.u32 %v4722, 4294901760
        %5361 = vmatmul.mubr.f32.gmra.mrb[0].mxu0 %v5360
        %v5362 = vpop.f32.mrb[0].mxu0
        %v5363 = vadd.f32 %v5018, %v5362
        %v5364 = vpop.f32.mrb[0].mxu0
        %v5365 = vadd.f32 %v5020, %v5364
        %5366 = vmatprep.mubr.f32.mxu0 0.0
        %v5367 = vand.u32 %v4723, 4294901760
        %5368 = vmatmul.mubr.f32.gmra.mrb[0].mxu0 %v5367
        %v5369 = vpop.f32.mrb[0].mxu0
        %v5370 = vadd.f32 %v5029, %v5369
        %v5371 = vpop.f32.mrb[0].mxu0
        %v5372 = vadd.f32 %v5031, %v5371
        %5373 = vmatprep.mubr.f32.mxu0 0.0
        %v5374 = vand.u32 %v4724, 4294901760
        %5375 = vmatmul.mubr.f32.gmra.mrb[0].mxu0 %v5374
        %v5376 = vpop.f32.mrb[0].mxu0
        %v5377 = vadd.f32 %v5040, %v5376
        %v5378 = vpop.f32.mrb[0].mxu0
        %v5379 = vadd.f32 %v5042, %v5378
        %5380 = vdwg.mxu0
        %v5381 = vand.u32 %v4727, 4294901760
        %v5382 = vsub.f32 %v4727, %v5381
        %5383 = vmatprep.subr.mxu0 %v5382
        %v5384 = vand.u32 %v4726, 4294901760
        %v5385 = vsub.f32 %v4726, %v5384
        %5386 = vmatpush1.msra.mxu0 %v5385
        %v5387 = vand.u32 %v4729, 4294901760
        %v5388 = vsub.f32 %v4729, %v5387
        %5389 = vmatprep.subr.mxu0 %v5388
        %v5390 = vand.u32 %v4728, 4294901760
        %v5391 = vsub.f32 %v4728, %v5390
        %5392 = vmatpush1.msra.mxu0 %v5391
        %v5393 = vand.u32 %v4731, 4294901760
        %v5394 = vsub.f32 %v4731, %v5393
        %5395 = vmatprep.subr.mxu0 %v5394
        %v5396 = vand.u32 %v4730, 4294901760
        %v5397 = vsub.f32 %v4730, %v5396
        %5398 = vmatpush1.msra.mxu0 %v5397
        %v5399 = vand.u32 %v4733, 4294901760
        %v5400 = vsub.f32 %v4733, %v5399
        %5401 = vmatprep.subr.mxu0 %v5400
        %v5402 = vand.u32 %v4732, 4294901760
        %v5403 = vsub.f32 %v4732, %v5402
        %5404 = vmatpush1.msra.mxu0 %v5403
        %v5405 = vand.u32 %v4735, 4294901760
        %v5406 = vsub.f32 %v4735, %v5405
        %5407 = vmatprep.subr.mxu0 %v5406
        %v5408 = vand.u32 %v4734, 4294901760
        %v5409 = vsub.f32 %v4734, %v5408
        %5410 = vmatpush1.msra.mxu0 %v5409
        %v5411 = vand.u32 %v4737, 4294901760
        %v5412 = vsub.f32 %v4737, %v5411
        %5413 = vmatprep.subr.mxu0 %v5412
        %v5414 = vand.u32 %v4736, 4294901760
        %v5415 = vsub.f32 %v4736, %v5414
        %5416 = vmatpush1.msra.mxu0 %v5415
        %v5417 = vand.u32 %v4739, 4294901760
        %v5418 = vsub.f32 %v4739, %v5417
        %5419 = vmatprep.subr.mxu0 %v5418
        %v5420 = vand.u32 %v4738, 4294901760
        %v5421 = vsub.f32 %v4738, %v5420
        %5422 = vmatpush1.msra.mxu0 %v5421
        %v5423 = vand.u32 %v4741, 4294901760
        %v5424 = vsub.f32 %v4741, %v5423
        %5425 = vmatprep.subr.mxu0 %v5424
        %v5426 = vand.u32 %v4740, 4294901760
        %v5427 = vsub.f32 %v4740, %v5426
        %5428 = vmatpush1.msra.mxu0 %v5427
        %v5429 = vand.u32 %v4743, 4294901760
        %v5430 = vsub.f32 %v4743, %v5429
        %5431 = vmatprep.subr.mxu0 %v5430
        %v5432 = vand.u32 %v4742, 4294901760
        %v5433 = vsub.f32 %v4742, %v5432
        %5434 = vmatpush1.msra.mxu0 %v5433
        %v5435 = vand.u32 %v4745, 4294901760
        %v5436 = vsub.f32 %v4745, %v5435
        %5437 = vmatprep.subr.mxu0 %v5436
        %v5438 = vand.u32 %v4744, 4294901760
        %v5439 = vsub.f32 %v4744, %v5438
        %5440 = vmatpush1.msra.mxu0 %v5439
        %v5441 = vand.u32 %v4747, 4294901760
        %v5442 = vsub.f32 %v4747, %v5441
        %5443 = vmatprep.subr.mxu0 %v5442
        %v5444 = vand.u32 %v4746, 4294901760
        %v5445 = vsub.f32 %v4746, %v5444
        %5446 = vmatpush1.msra.mxu0 %v5445
        %v5447 = vand.u32 %v4749, 4294901760
        %v5448 = vsub.f32 %v4749, %v5447
        %5449 = vmatprep.subr.mxu0 %v5448
        %v5450 = vand.u32 %v4748, 4294901760
        %v5451 = vsub.f32 %v4748, %v5450
        %5452 = vmatpush1.msra.mxu0 %v5451
        %v5453 = vand.u32 %v4751, 4294901760
        %v5454 = vsub.f32 %v4751, %v5453
        %5455 = vmatprep.subr.mxu0 %v5454
        %v5456 = vand.u32 %v4750, 4294901760
        %v5457 = vsub.f32 %v4750, %v5456
        %5458 = vmatpush1.msra.mxu0 %v5457
        %v5459 = vand.u32 %v4753, 4294901760
        %v5460 = vsub.f32 %v4753, %v5459
        %5461 = vmatprep.subr.mxu0 %v5460
        %v5462 = vand.u32 %v4752, 4294901760
        %v5463 = vsub.f32 %v4752, %v5462
        %5464 = vmatpush1.msra.mxu0 %v5463
        %v5465 = vand.u32 %v4755, 4294901760
        %v5466 = vsub.f32 %v4755, %v5465
        %5467 = vmatprep.subr.mxu0 %v5466
        %v5468 = vand.u32 %v4754, 4294901760
        %v5469 = vsub.f32 %v4754, %v5468
        %5470 = vmatpush1.msra.mxu0 %v5469
        %v5471 = vand.u32 %v4757, 4294901760
        %v5472 = vsub.f32 %v4757, %v5471
        %5473 = vmatprep.subr.mxu0 %v5472
        %v5474 = vand.u32 %v4756, 4294901760
        %v5475 = vsub.f32 %v4756, %v5474
        %5476 = vmatpush1.msra.mxu0 %v5475
        %5477 = vmatprep.subr.mxu0 0.0
        %5478 = vmatpush1.msra.mxu0 0.0
        %5479 = vmatprep.subr.mxu0 0.0
        %5480 = vmatpush1.msra.mxu0 0.0
        %5481 = vmatprep.subr.mxu0 0.0
        %5482 = vmatpush1.msra.mxu0 0.0
        %5483 = vmatprep.subr.mxu0 0.0
        %5484 = vmatpush1.msra.mxu0 0.0
        %5485 = vmatprep.subr.mxu0 0.0
        %5486 = vmatpush1.msra.mxu0 0.0
        %5487 = vmatprep.subr.mxu0 0.0
        %5488 = vmatpush1.msra.mxu0 0.0
        %5489 = vmatprep.subr.mxu0 0.0
        %5490 = vmatpush1.msra.mxu0 0.0
        %5491 = vmatprep.subr.mxu0 0.0
        %5492 = vmatpush1.msra.mxu0 0.0
        %5493 = vmatprep.subr.mxu0 0.0
        %5494 = vmatpush1.msra.mxu0 0.0
        %5495 = vmatprep.subr.mxu0 0.0
        %5496 = vmatpush1.msra.mxu0 0.0
        %5497 = vmatprep.subr.mxu0 0.0
        %5498 = vmatpush1.msra.mxu0 0.0
        %5499 = vmatprep.subr.mxu0 0.0
        %5500 = vmatpush1.msra.mxu0 0.0
        %5501 = vmatprep.subr.mxu0 0.0
        %5502 = vmatpush1.msra.mxu0 0.0
        %5503 = vmatprep.subr.mxu0 0.0
        %5504 = vmatpush1.msra.mxu0 0.0
        %5505 = vmatprep.subr.mxu0 0.0
        %5506 = vmatpush1.msra.mxu0 0.0
        %5507 = vmatprep.subr.mxu0 0.0
        %5508 = vmatpush1.msra.mxu0 0.0
        %5509 = vmatprep.mubr.f32.mxu0 0.0
        %v5510 = vand.u32 %v4709, 4294901760
        %v5511 = vsub.f32 %v4709, %v5510
        %5512 = vmatmul.mubr.f32.gmra.mrb[0].mxu0 %v5511
        %v5513 = vpop.f32.mrb[0].mxu0
        %v5514 = vadd.f32 %v5272, %v5513
        %v5515 = vpop.f32.mrb[0].mxu0
        %v5516 = vadd.f32 %v5274, %v5515
        %5517 = vmatprep.mubr.f32.mxu0 0.0
        %v5518 = vand.u32 %v4710, 4294901760
        %v5519 = vsub.f32 %v4710, %v5518
        %5520 = vmatmul.mubr.f32.gmra.mrb[0].mxu0 %v5519
        %v5521 = vpop.f32.mrb[0].mxu0
        %v5522 = vadd.f32 %v5279, %v5521
        %v5523 = vpop.f32.mrb[0].mxu0
        %v5524 = vadd.f32 %v5281, %v5523
        %5525 = vmatprep.mubr.f32.mxu0 0.0
        %v5526 = vand.u32 %v4711, 4294901760
        %v5527 = vsub.f32 %v4711, %v5526
        %5528 = vmatmul.mubr.f32.gmra.mrb[0].mxu0 %v5527
        %v5529 = vpop.f32.mrb[0].mxu0
        %v5530 = vadd.f32 %v5286, %v5529
        %v5531 = vpop.f32.mrb[0].mxu0
        %v5532 = vadd.f32 %v5288, %v5531
        %5533 = vmatprep.mubr.f32.mxu0 0.0
        %v5534 = vand.u32 %v4712, 4294901760
        %v5535 = vsub.f32 %v4712, %v5534
        %5536 = vmatmul.mubr.f32.gmra.mrb[0].mxu0 %v5535
        %v5537 = vpop.f32.mrb[0].mxu0
        %v5538 = vadd.f32 %v5293, %v5537
        %v5539 = vpop.f32.mrb[0].mxu0
        %v5540 = vadd.f32 %v5295, %v5539
        %5541 = vmatprep.mubr.f32.mxu0 0.0
        %v5542 = vand.u32 %v4713, 4294901760
        %v5543 = vsub.f32 %v4713, %v5542
        %5544 = vmatmul.mubr.f32.gmra.mrb[0].mxu0 %v5543
        %v5545 = vpop.f32.mrb[0].mxu0
        %v5546 = vadd.f32 %v5300, %v5545
        %v5547 = vpop.f32.mrb[0].mxu0
        %v5548 = vadd.f32 %v5302, %v5547
        %5549 = vmatprep.mubr.f32.mxu0 0.0
        %v5550 = vand.u32 %v4714, 4294901760
        %v5551 = vsub.f32 %v4714, %v5550
        %5552 = vmatmul.mubr.f32.gmra.mrb[0].mxu0 %v5551
        %v5553 = vpop.f32.mrb[0].mxu0
        %v5554 = vadd.f32 %v5307, %v5553
        %v5555 = vpop.f32.mrb[0].mxu0
        %v5556 = vadd.f32 %v5309, %v5555
        %5557 = vmatprep.mubr.f32.mxu0 0.0
        %v5558 = vand.u32 %v4715, 4294901760
        %v5559 = vsub.f32 %v4715, %v5558
        %5560 = vmatmul.mubr.f32.gmra.mrb[0].mxu0 %v5559
        %v5561 = vpop.f32.mrb[0].mxu0
        %v5562 = vadd.f32 %v5314, %v5561
        %v5563 = vpop.f32.mrb[0].mxu0
        %v5564 = vadd.f32 %v5316, %v5563
        %5565 = vmatprep.mubr.f32.mxu0 0.0
        %v5566 = vand.u32 %v4716, 4294901760
        %v5567 = vsub.f32 %v4716, %v5566
        %5568 = vmatmul.mubr.f32.gmra.mrb[0].mxu0 %v5567
        %v5569 = vpop.f32.mrb[0].mxu0
        %v5570 = vadd.f32 %v5321, %v5569
        %v5571 = vpop.f32.mrb[0].mxu0
        %v5572 = vadd.f32 %v5323, %v5571
        %5573 = vmatprep.mubr.f32.mxu0 0.0
        %v5574 = vand.u32 %v4717, 4294901760
        %v5575 = vsub.f32 %v4717, %v5574
        %5576 = vmatmul.mubr.f32.gmra.mrb[0].mxu0 %v5575
        %v5577 = vpop.f32.mrb[0].mxu0
        %v5578 = vadd.f32 %v5328, %v5577
        %v5579 = vpop.f32.mrb[0].mxu0
        %v5580 = vadd.f32 %v5330, %v5579
        %5581 = vmatprep.mubr.f32.mxu0 0.0
        %v5582 = vand.u32 %v4718, 4294901760
        %v5583 = vsub.f32 %v4718, %v5582
        %5584 = vmatmul.mubr.f32.gmra.mrb[0].mxu0 %v5583
        %v5585 = vpop.f32.mrb[0].mxu0
        %v5586 = vadd.f32 %v5335, %v5585
        %v5587 = vpop.f32.mrb[0].mxu0
        %v5588 = vadd.f32 %v5337, %v5587
        %5589 = vmatprep.mubr.f32.mxu0 0.0
        %v5590 = vand.u32 %v4719, 4294901760
        %v5591 = vsub.f32 %v4719, %v5590
        %5592 = vmatmul.mubr.f32.gmra.mrb[0].mxu0 %v5591
        %v5593 = vpop.f32.mrb[0].mxu0
        %v5594 = vadd.f32 %v5342, %v5593
        %v5595 = vpop.f32.mrb[0].mxu0
        %v5596 = vadd.f32 %v5344, %v5595
        %5597 = vmatprep.mubr.f32.mxu0 0.0
        %v5598 = vand.u32 %v4720, 4294901760
        %v5599 = vsub.f32 %v4720, %v5598
        %5600 = vmatmul.mubr.f32.gmra.mrb[0].mxu0 %v5599
        %v5601 = vpop.f32.mrb[0].mxu0
        %v5602 = vadd.f32 %v5349, %v5601
        %v5603 = vpop.f32.mrb[0].mxu0
        %v5604 = vadd.f32 %v5351, %v5603
        %5605 = vmatprep.mubr.f32.mxu0 0.0
        %v5606 = vand.u32 %v4721, 4294901760
        %v5607 = vsub.f32 %v4721, %v5606
        %5608 = vmatmul.mubr.f32.gmra.mrb[0].mxu0 %v5607
        %v5609 = vpop.f32.mrb[0].mxu0
        %v5610 = vadd.f32 %v5356, %v5609
        %v5611 = vpop.f32.mrb[0].mxu0
        %v5612 = vadd.f32 %v5358, %v5611
        %5613 = vmatprep.mubr.f32.mxu0 0.0
        %v5614 = vand.u32 %v4722, 4294901760
        %v5615 = vsub.f32 %v4722, %v5614
        %5616 = vmatmul.mubr.f32.gmra.mrb[0].mxu0 %v5615
        %v5617 = vpop.f32.mrb[0].mxu0
        %v5618 = vadd.f32 %v5363, %v5617
        %v5619 = vpop.f32.mrb[0].mxu0
        %v5620 = vadd.f32 %v5365, %v5619
        %5621 = vmatprep.mubr.f32.mxu0 0.0
        %v5622 = vand.u32 %v4723, 4294901760
        %v5623 = vsub.f32 %v4723, %v5622
        %5624 = vmatmul.mubr.f32.gmra.mrb[0].mxu0 %v5623
        %v5625 = vpop.f32.mrb[0].mxu0
        %v5626 = vadd.f32 %v5370, %v5625
        %v5627 = vpop.f32.mrb[0].mxu0
        %v5628 = vadd.f32 %v5372, %v5627
        %5629 = vmatprep.mubr.f32.mxu0 0.0
        %v5630 = vand.u32 %v4724, 4294901760
        %v5631 = vsub.f32 %v4724, %v5630
        %5632 = vmatmul.mubr.f32.gmra.mrb[0].mxu0 %v5631
        %v5633 = vpop.f32.mrb[0].mxu0
        %v5634 = vadd.f32 %v5377, %v5633
        %v5635 = vpop.f32.mrb[0].mxu0
        %v5636 = vadd.f32 %v5379, %v5635
        %5637 = vdwg.mxu0
        %v5638 = vand.u32 %v4727, 4294901760
        %5639 = vmatprep.subr.mxu0 %v5638
        %v5640 = vand.u32 %v4726, 4294901760
        %5641 = vmatpush1.msra.mxu0 %v5640
        %v5642 = vand.u32 %v4729, 4294901760
        %5643 = vmatprep.subr.mxu0 %v5642
        %v5644 = vand.u32 %v4728, 4294901760
        %5645 = vmatpush1.msra.mxu0 %v5644
        %v5646 = vand.u32 %v4731, 4294901760
        %5647 = vmatprep.subr.mxu0 %v5646
        %v5648 = vand.u32 %v4730, 4294901760
        %5649 = vmatpush1.msra.mxu0 %v5648
        %v5650 = vand.u32 %v4733, 4294901760
        %5651 = vmatprep.subr.mxu0 %v5650
        %v5652 = vand.u32 %v4732, 4294901760
        %5653 = vmatpush1.msra.mxu0 %v5652
        %v5654 = vand.u32 %v4735, 4294901760
        %5655 = vmatprep.subr.mxu0 %v5654
        %v5656 = vand.u32 %v4734, 4294901760
        %5657 = vmatpush1.msra.mxu0 %v5656
        %v5658 = vand.u32 %v4737, 4294901760
        %5659 = vmatprep.subr.mxu0 %v5658
        %v5660 = vand.u32 %v4736, 4294901760
        %5661 = vmatpush1.msra.mxu0 %v5660
        %v5662 = vand.u32 %v4739, 4294901760
        %5663 = vmatprep.subr.mxu0 %v5662
        %v5664 = vand.u32 %v4738, 4294901760
        %5665 = vmatpush1.msra.mxu0 %v5664
        %v5666 = vand.u32 %v4741, 4294901760
        %5667 = vmatprep.subr.mxu0 %v5666
        %v5668 = vand.u32 %v4740, 4294901760
        %5669 = vmatpush1.msra.mxu0 %v5668
        %v5670 = vand.u32 %v4743, 4294901760
        %5671 = vmatprep.subr.mxu0 %v5670
        %v5672 = vand.u32 %v4742, 4294901760
        %5673 = vmatpush1.msra.mxu0 %v5672
        %v5674 = vand.u32 %v4745, 4294901760
        %5675 = vmatprep.subr.mxu0 %v5674
        %v5676 = vand.u32 %v4744, 4294901760
        %5677 = vmatpush1.msra.mxu0 %v5676
        %v5678 = vand.u32 %v4747, 4294901760
        %5679 = vmatprep.subr.mxu0 %v5678
        %v5680 = vand.u32 %v4746, 4294901760
        %5681 = vmatpush1.msra.mxu0 %v5680
        %v5682 = vand.u32 %v4749, 4294901760
        %5683 = vmatprep.subr.mxu0 %v5682
        %v5684 = vand.u32 %v4748, 4294901760
        %5685 = vmatpush1.msra.mxu0 %v5684
        %v5686 = vand.u32 %v4751, 4294901760
        %5687 = vmatprep.subr.mxu0 %v5686
        %v5688 = vand.u32 %v4750, 4294901760
        %5689 = vmatpush1.msra.mxu0 %v5688
        %v5690 = vand.u32 %v4753, 4294901760
        %5691 = vmatprep.subr.mxu0 %v5690
        %v5692 = vand.u32 %v4752, 4294901760
        %5693 = vmatpush1.msra.mxu0 %v5692
        %v5694 = vand.u32 %v4755, 4294901760
        %5695 = vmatprep.subr.mxu0 %v5694
        %v5696 = vand.u32 %v4754, 4294901760
        %5697 = vmatpush1.msra.mxu0 %v5696
        %v5698 = vand.u32 %v4757, 4294901760
        %5699 = vmatprep.subr.mxu0 %v5698
        %v5700 = vand.u32 %v4756, 4294901760
        %5701 = vmatpush1.msra.mxu0 %v5700
        %5702 = vmatprep.subr.mxu0 0.0
        %5703 = vmatpush1.msra.mxu0 0.0
        %5704 = vmatprep.subr.mxu0 0.0
        %5705 = vmatpush1.msra.mxu0 0.0
        %5706 = vmatprep.subr.mxu0 0.0
        %5707 = vmatpush1.msra.mxu0 0.0
        %5708 = vmatprep.subr.mxu0 0.0
        %5709 = vmatpush1.msra.mxu0 0.0
        %5710 = vmatprep.subr.mxu0 0.0
        %5711 = vmatpush1.msra.mxu0 0.0
        %5712 = vmatprep.subr.mxu0 0.0
        %5713 = vmatpush1.msra.mxu0 0.0
        %5714 = vmatprep.subr.mxu0 0.0
        %5715 = vmatpush1.msra.mxu0 0.0
        %5716 = vmatprep.subr.mxu0 0.0
        %5717 = vmatpush1.msra.mxu0 0.0
        %5718 = vmatprep.subr.mxu0 0.0
        %5719 = vmatpush1.msra.mxu0 0.0
        %5720 = vmatprep.subr.mxu0 0.0
        %5721 = vmatpush1.msra.mxu0 0.0
        %5722 = vmatprep.subr.mxu0 0.0
        %5723 = vmatpush1.msra.mxu0 0.0
        %5724 = vmatprep.subr.mxu0 0.0
        %5725 = vmatpush1.msra.mxu0 0.0
        %5726 = vmatprep.subr.mxu0 0.0
        %5727 = vmatpush1.msra.mxu0 0.0
        %5728 = vmatprep.subr.mxu0 0.0
        %5729 = vmatpush1.msra.mxu0 0.0
        %5730 = vmatprep.subr.mxu0 0.0
        %5731 = vmatpush1.msra.mxu0 0.0
        %5732 = vmatprep.subr.mxu0 0.0
        %5733 = vmatpush1.msra.mxu0 0.0
        %5734 = vmatprep.mubr.f32.mxu0 0.0
        %v5735 = vand.u32 %v4709, 4294901760
        %v5736 = vsub.f32 %v4709, %v5735
        %v5737 = vand.u32 %v5736, 4294901760
        %5738 = vmatmul.mubr.f32.gmra.mrb[0].mxu0 %v5737
        %v5739 = vpop.f32.mrb[0].mxu0
        %v5740 = vadd.f32 %v5514, %v5739
        %v5741 = vpop.f32.mrb[0].mxu0
        %v5742 = vadd.f32 %v5516, %v5741
        %5743 = vmatprep.mubr.f32.mxu0 0.0
        %v5744 = vand.u32 %v4710, 4294901760
        %v5745 = vsub.f32 %v4710, %v5744
        %v5746 = vand.u32 %v5745, 4294901760
        %5747 = vmatmul.mubr.f32.gmra.mrb[0].mxu0 %v5746
        %v5748 = vpop.f32.mrb[0].mxu0
        %v5749 = vadd.f32 %v5522, %v5748
        %v5750 = vpop.f32.mrb[0].mxu0
        %v5751 = vadd.f32 %v5524, %v5750
        %5752 = vmatprep.mubr.f32.mxu0 0.0
        %v5753 = vand.u32 %v4711, 4294901760
        %v5754 = vsub.f32 %v4711, %v5753
        %v5755 = vand.u32 %v5754, 4294901760
        %5756 = vmatmul.mubr.f32.gmra.mrb[0].mxu0 %v5755
        %v5757 = vpop.f32.mrb[0].mxu0
        %v5758 = vadd.f32 %v5530, %v5757
        %v5759 = vpop.f32.mrb[0].mxu0
        %v5760 = vadd.f32 %v5532, %v5759
        %5761 = vmatprep.mubr.f32.mxu0 0.0
        %v5762 = vand.u32 %v4712, 4294901760
        %v5763 = vsub.f32 %v4712, %v5762
        %v5764 = vand.u32 %v5763, 4294901760
        %5765 = vmatmul.mubr.f32.gmra.mrb[0].mxu0 %v5764
        %v5766 = vpop.f32.mrb[0].mxu0
        %v5767 = vadd.f32 %v5538, %v5766
        %v5768 = vpop.f32.mrb[0].mxu0
        %v5769 = vadd.f32 %v5540, %v5768
        %5770 = vmatprep.mubr.f32.mxu0 0.0
        %v5771 = vand.u32 %v4713, 4294901760
        %v5772 = vsub.f32 %v4713, %v5771
        %v5773 = vand.u32 %v5772, 4294901760
        %5774 = vmatmul.mubr.f32.gmra.mrb[0].mxu0 %v5773
        %v5775 = vpop.f32.mrb[0].mxu0
        %v5776 = vadd.f32 %v5546, %v5775
        %v5777 = vpop.f32.mrb[0].mxu0
        %v5778 = vadd.f32 %v5548, %v5777
        %5779 = vmatprep.mubr.f32.mxu0 0.0
        %v5780 = vand.u32 %v4714, 4294901760
        %v5781 = vsub.f32 %v4714, %v5780
        %v5782 = vand.u32 %v5781, 4294901760
        %5783 = vmatmul.mubr.f32.gmra.mrb[0].mxu0 %v5782
        %v5784 = vpop.f32.mrb[0].mxu0
        %v5785 = vadd.f32 %v5554, %v5784
        %v5786 = vpop.f32.mrb[0].mxu0
        %v5787 = vadd.f32 %v5556, %v5786
        %5788 = vmatprep.mubr.f32.mxu0 0.0
        %v5789 = vand.u32 %v4715, 4294901760
        %v5790 = vsub.f32 %v4715, %v5789
        %v5791 = vand.u32 %v5790, 4294901760
        %5792 = vmatmul.mubr.f32.gmra.mrb[0].mxu0 %v5791
        %v5793 = vpop.f32.mrb[0].mxu0
        %v5794 = vadd.f32 %v5562, %v5793
        %v5795 = vpop.f32.mrb[0].mxu0
        %v5796 = vadd.f32 %v5564, %v5795
        %5797 = vmatprep.mubr.f32.mxu0 0.0
        %v5798 = vand.u32 %v4716, 4294901760
        %v5799 = vsub.f32 %v4716, %v5798
        %v5800 = vand.u32 %v5799, 4294901760
        %5801 = vmatmul.mubr.f32.gmra.mrb[0].mxu0 %v5800
        %v5802 = vpop.f32.mrb[0].mxu0
        %v5803 = vadd.f32 %v5570, %v5802
        %v5804 = vpop.f32.mrb[0].mxu0
        %v5805 = vadd.f32 %v5572, %v5804
        %5806 = vmatprep.mubr.f32.mxu0 0.0
        %v5807 = vand.u32 %v4717, 4294901760
        %v5808 = vsub.f32 %v4717, %v5807
        %v5809 = vand.u32 %v5808, 4294901760
        %5810 = vmatmul.mubr.f32.gmra.mrb[0].mxu0 %v5809
        %v5811 = vpop.f32.mrb[0].mxu0
        %v5812 = vadd.f32 %v5578, %v5811
        %v5813 = vpop.f32.mrb[0].mxu0
        %v5814 = vadd.f32 %v5580, %v5813
        %5815 = vmatprep.mubr.f32.mxu0 0.0
        %v5816 = vand.u32 %v4718, 4294901760
        %v5817 = vsub.f32 %v4718, %v5816
        %v5818 = vand.u32 %v5817, 4294901760
        %5819 = vmatmul.mubr.f32.gmra.mrb[0].mxu0 %v5818
        %v5820 = vpop.f32.mrb[0].mxu0
        %v5821 = vadd.f32 %v5586, %v5820
        %v5822 = vpop.f32.mrb[0].mxu0
        %v5823 = vadd.f32 %v5588, %v5822
        %5824 = vmatprep.mubr.f32.mxu0 0.0
        %v5825 = vand.u32 %v4719, 4294901760
        %v5826 = vsub.f32 %v4719, %v5825
        %v5827 = vand.u32 %v5826, 4294901760
        %5828 = vmatmul.mubr.f32.gmra.mrb[0].mxu0 %v5827
        %v5829 = vpop.f32.mrb[0].mxu0
        %v5830 = vadd.f32 %v5594, %v5829
        %v5831 = vpop.f32.mrb[0].mxu0
        %v5832 = vadd.f32 %v5596, %v5831
        %5833 = vmatprep.mubr.f32.mxu0 0.0
        %v5834 = vand.u32 %v4720, 4294901760
        %v5835 = vsub.f32 %v4720, %v5834
        %v5836 = vand.u32 %v5835, 4294901760
        %5837 = vmatmul.mubr.f32.gmra.mrb[0].mxu0 %v5836
        %v5838 = vpop.f32.mrb[0].mxu0
        %v5839 = vadd.f32 %v5602, %v5838
        %v5840 = vpop.f32.mrb[0].mxu0
        %v5841 = vadd.f32 %v5604, %v5840
        %5842 = vmatprep.mubr.f32.mxu0 0.0
        %v5843 = vand.u32 %v4721, 4294901760
        %v5844 = vsub.f32 %v4721, %v5843
        %v5845 = vand.u32 %v5844, 4294901760
        %5846 = vmatmul.mubr.f32.gmra.mrb[0].mxu0 %v5845
        %v5847 = vpop.f32.mrb[0].mxu0
        %v5848 = vadd.f32 %v5610, %v5847
        %v5849 = vpop.f32.mrb[0].mxu0
        %v5850 = vadd.f32 %v5612, %v5849
        %5851 = vmatprep.mubr.f32.mxu0 0.0
        %v5852 = vand.u32 %v4722, 4294901760
        %v5853 = vsub.f32 %v4722, %v5852
        %v5854 = vand.u32 %v5853, 4294901760
        %5855 = vmatmul.mubr.f32.gmra.mrb[0].mxu0 %v5854
        %v5856 = vpop.f32.mrb[0].mxu0
        %v5857 = vadd.f32 %v5618, %v5856
        %v5858 = vpop.f32.mrb[0].mxu0
        %v5859 = vadd.f32 %v5620, %v5858
        %5860 = vmatprep.mubr.f32.mxu0 0.0
        %v5861 = vand.u32 %v4723, 4294901760
        %v5862 = vsub.f32 %v4723, %v5861
        %v5863 = vand.u32 %v5862, 4294901760
        %5864 = vmatmul.mubr.f32.gmra.mrb[0].mxu0 %v5863
        %v5865 = vpop.f32.mrb[0].mxu0
        %v5866 = vadd.f32 %v5626, %v5865
        %v5867 = vpop.f32.mrb[0].mxu0
        %v5868 = vadd.f32 %v5628, %v5867
        %5869 = vmatprep.mubr.f32.mxu0 0.0
        %v5870 = vand.u32 %v4724, 4294901760
        %v5871 = vsub.f32 %v4724, %v5870
        %v5872 = vand.u32 %v5871, 4294901760
        %5873 = vmatmul.mubr.f32.gmra.mrb[0].mxu0 %v5872
        %v5874 = vpop.f32.mrb[0].mxu0
        %v5875 = vadd.f32 %v5634, %v5874
        %v5876 = vpop.f32.mrb[0].mxu0
        %v5877 = vadd.f32 %v5636, %v5876
        %5878 = vdwg.mxu0
        %v5879 = vand.u32 %v4727, 4294901760
        %v5880 = vsub.f32 %v4727, %v5879
        %v5881 = vand.u32 %v5880, 4294901760
        %5882 = vmatprep.subr.mxu0 %v5881
        %v5883 = vand.u32 %v4726, 4294901760
        %v5884 = vsub.f32 %v4726, %v5883
        %v5885 = vand.u32 %v5884, 4294901760
        %5886 = vmatpush1.msra.mxu0 %v5885
        %v5887 = vand.u32 %v4729, 4294901760
        %v5888 = vsub.f32 %v4729, %v5887
        %v5889 = vand.u32 %v5888, 4294901760
        %5890 = vmatprep.subr.mxu0 %v5889
        %v5891 = vand.u32 %v4728, 4294901760
        %v5892 = vsub.f32 %v4728, %v5891
        %v5893 = vand.u32 %v5892, 4294901760
        %5894 = vmatpush1.msra.mxu0 %v5893
        %v5895 = vand.u32 %v4731, 4294901760
        %v5896 = vsub.f32 %v4731, %v5895
        %v5897 = vand.u32 %v5896, 4294901760
        %5898 = vmatprep.subr.mxu0 %v5897
        %v5899 = vand.u32 %v4730, 4294901760
        %v5900 = vsub.f32 %v4730, %v5899
        %v5901 = vand.u32 %v5900, 4294901760
        %5902 = vmatpush1.msra.mxu0 %v5901
        %v5903 = vand.u32 %v4733, 4294901760
        %v5904 = vsub.f32 %v4733, %v5903
        %v5905 = vand.u32 %v5904, 4294901760
        %5906 = vmatprep.subr.mxu0 %v5905
        %v5907 = vand.u32 %v4732, 4294901760
        %v5908 = vsub.f32 %v4732, %v5907
        %v5909 = vand.u32 %v5908, 4294901760
        %5910 = vmatpush1.msra.mxu0 %v5909
        %v5911 = vand.u32 %v4735, 4294901760
        %v5912 = vsub.f32 %v4735, %v5911
        %v5913 = vand.u32 %v5912, 4294901760
        %5914 = vmatprep.subr.mxu0 %v5913
        %v5915 = vand.u32 %v4734, 4294901760
        %v5916 = vsub.f32 %v4734, %v5915
        %v5917 = vand.u32 %v5916, 4294901760
        %5918 = vmatpush1.msra.mxu0 %v5917
        %v5919 = vand.u32 %v4737, 4294901760
        %v5920 = vsub.f32 %v4737, %v5919
        %v5921 = vand.u32 %v5920, 4294901760
        %5922 = vmatprep.subr.mxu0 %v5921
        %v5923 = vand.u32 %v4736, 4294901760
        %v5924 = vsub.f32 %v4736, %v5923
        %v5925 = vand.u32 %v5924, 4294901760
        %5926 = vmatpush1.msra.mxu0 %v5925
        %v5927 = vand.u32 %v4739, 4294901760
        %v5928 = vsub.f32 %v4739, %v5927
        %v5929 = vand.u32 %v5928, 4294901760
        %5930 = vmatprep.subr.mxu0 %v5929
        %v5931 = vand.u32 %v4738, 4294901760
        %v5932 = vsub.f32 %v4738, %v5931
        %v5933 = vand.u32 %v5932, 4294901760
        %5934 = vmatpush1.msra.mxu0 %v5933
        %v5935 = vand.u32 %v4741, 4294901760
        %v5936 = vsub.f32 %v4741, %v5935
        %v5937 = vand.u32 %v5936, 4294901760
        %5938 = vmatprep.subr.mxu0 %v5937
        %v5939 = vand.u32 %v4740, 4294901760
        %v5940 = vsub.f32 %v4740, %v5939
        %v5941 = vand.u32 %v5940, 4294901760
        %5942 = vmatpush1.msra.mxu0 %v5941
        %v5943 = vand.u32 %v4743, 4294901760
        %v5944 = vsub.f32 %v4743, %v5943
        %v5945 = vand.u32 %v5944, 4294901760
        %5946 = vmatprep.subr.mxu0 %v5945
        %v5947 = vand.u32 %v4742, 4294901760
        %v5948 = vsub.f32 %v4742, %v5947
        %v5949 = vand.u32 %v5948, 4294901760
        %5950 = vmatpush1.msra.mxu0 %v5949
        %v5951 = vand.u32 %v4745, 4294901760
        %v5952 = vsub.f32 %v4745, %v5951
        %v5953 = vand.u32 %v5952, 4294901760
        %5954 = vmatprep.subr.mxu0 %v5953
        %v5955 = vand.u32 %v4744, 4294901760
        %v5956 = vsub.f32 %v4744, %v5955
        %v5957 = vand.u32 %v5956, 4294901760
        %5958 = vmatpush1.msra.mxu0 %v5957
        %v5959 = vand.u32 %v4747, 4294901760
        %v5960 = vsub.f32 %v4747, %v5959
        %v5961 = vand.u32 %v5960, 4294901760
        %5962 = vmatprep.subr.mxu0 %v5961
        %v5963 = vand.u32 %v4746, 4294901760
        %v5964 = vsub.f32 %v4746, %v5963
        %v5965 = vand.u32 %v5964, 4294901760
        %5966 = vmatpush1.msra.mxu0 %v5965
        %v5967 = vand.u32 %v4749, 4294901760
        %v5968 = vsub.f32 %v4749, %v5967
        %v5969 = vand.u32 %v5968, 4294901760
        %5970 = vmatprep.subr.mxu0 %v5969
        %v5971 = vand.u32 %v4748, 4294901760
        %v5972 = vsub.f32 %v4748, %v5971
        %v5973 = vand.u32 %v5972, 4294901760
        %5974 = vmatpush1.msra.mxu0 %v5973
        %v5975 = vand.u32 %v4751, 4294901760
        %v5976 = vsub.f32 %v4751, %v5975
        %v5977 = vand.u32 %v5976, 4294901760
        %5978 = vmatprep.subr.mxu0 %v5977
        %v5979 = vand.u32 %v4750, 4294901760
        %v5980 = vsub.f32 %v4750, %v5979
        %v5981 = vand.u32 %v5980, 4294901760
        %5982 = vmatpush1.msra.mxu0 %v5981
        %v5983 = vand.u32 %v4753, 4294901760
        %v5984 = vsub.f32 %v4753, %v5983
        %v5985 = vand.u32 %v5984, 4294901760
        %5986 = vmatprep.subr.mxu0 %v5985
        %v5987 = vand.u32 %v4752, 4294901760
        %v5988 = vsub.f32 %v4752, %v5987
        %v5989 = vand.u32 %v5988, 4294901760
        %5990 = vmatpush1.msra.mxu0 %v5989
        %v5991 = vand.u32 %v4755, 4294901760
        %v5992 = vsub.f32 %v4755, %v5991
        %v5993 = vand.u32 %v5992, 4294901760
        %5994 = vmatprep.subr.mxu0 %v5993
        %v5995 = vand.u32 %v4754, 4294901760
        %v5996 = vsub.f32 %v4754, %v5995
        %v5997 = vand.u32 %v5996, 4294901760
        %5998 = vmatpush1.msra.mxu0 %v5997
        %v5999 = vand.u32 %v4757, 4294901760
        %v6000 = vsub.f32 %v4757, %v5999
        %v6001 = vand.u32 %v6000, 4294901760
        %6002 = vmatprep.subr.mxu0 %v6001
        %v6003 = vand.u32 %v4756, 4294901760
        %v6004 = vsub.f32 %v4756, %v6003
        %v6005 = vand.u32 %v6004, 4294901760
        %6006 = vmatpush1.msra.mxu0 %v6005
        %6007 = vmatprep.subr.mxu0 0.0
        %6008 = vmatpush1.msra.mxu0 0.0
        %6009 = vmatprep.subr.mxu0 0.0
        %6010 = vmatpush1.msra.mxu0 0.0
        %6011 = vmatprep.subr.mxu0 0.0
        %6012 = vmatpush1.msra.mxu0 0.0
        %6013 = vmatprep.subr.mxu0 0.0
        %6014 = vmatpush1.msra.mxu0 0.0
        %6015 = vmatprep.subr.mxu0 0.0
        %6016 = vmatpush1.msra.mxu0 0.0
        %6017 = vmatprep.subr.mxu0 0.0
        %6018 = vmatpush1.msra.mxu0 0.0
        %6019 = vmatprep.subr.mxu0 0.0
        %6020 = vmatpush1.msra.mxu0 0.0
        %6021 = vmatprep.subr.mxu0 0.0
        %6022 = vmatpush1.msra.mxu0 0.0
        %6023 = vmatprep.subr.mxu0 0.0
        %6024 = vmatpush1.msra.mxu0 0.0
        %6025 = vmatprep.subr.mxu0 0.0
        %6026 = vmatpush1.msra.mxu0 0.0
        %6027 = vmatprep.subr.mxu0 0.0
        %6028 = vmatpush1.msra.mxu0 0.0
        %6029 = vmatprep.subr.mxu0 0.0
        %6030 = vmatpush1.msra.mxu0 0.0
        %6031 = vmatprep.subr.mxu0 0.0
        %6032 = vmatpush1.msra.mxu0 0.0
        %6033 = vmatprep.subr.mxu0 0.0
        %6034 = vmatpush1.msra.mxu0 0.0
        %6035 = vmatprep.subr.mxu0 0.0
        %6036 = vmatpush1.msra.mxu0 0.0
        %6037 = vmatprep.subr.mxu0 0.0
        %6038 = vmatpush1.msra.mxu0 0.0
        %6039 = vmatprep.mubr.f32.mxu0 0.0
        %v6040 = vand.u32 %v4709, 4294901760
        %6041 = vmatmul.mubr.f32.gmra.mrb[0].mxu0 %v6040
        %v6042 = vpop.f32.mrb[0].mxu0
        %v6043 = vadd.f32 %v5740, %v6042
        %v6044 = vpop.f32.mrb[0].mxu0
        %v6045 = vadd.f32 %v5742, %v6044
        %6046 = vmatprep.mubr.f32.mxu0 0.0
        %v6047 = vand.u32 %v4710, 4294901760
        %6048 = vmatmul.mubr.f32.gmra.mrb[0].mxu0 %v6047
        %v6049 = vpop.f32.mrb[0].mxu0
        %v6050 = vadd.f32 %v5749, %v6049
        %v6051 = vpop.f32.mrb[0].mxu0
        %v6052 = vadd.f32 %v5751, %v6051
        %6053 = vmatprep.mubr.f32.mxu0 0.0
        %v6054 = vand.u32 %v4711, 4294901760
        %6055 = vmatmul.mubr.f32.gmra.mrb[0].mxu0 %v6054
        %v6056 = vpop.f32.mrb[0].mxu0
        %v6057 = vadd.f32 %v5758, %v6056
        %v6058 = vpop.f32.mrb[0].mxu0
        %v6059 = vadd.f32 %v5760, %v6058
        %6060 = vmatprep.mubr.f32.mxu0 0.0
        %v6061 = vand.u32 %v4712, 4294901760
        %6062 = vmatmul.mubr.f32.gmra.mrb[0].mxu0 %v6061
        %v6063 = vpop.f32.mrb[0].mxu0
        %v6064 = vadd.f32 %v5767, %v6063
        %v6065 = vpop.f32.mrb[0].mxu0
        %v6066 = vadd.f32 %v5769, %v6065
        %6067 = vmatprep.mubr.f32.mxu0 0.0
        %v6068 = vand.u32 %v4713, 4294901760
        %6069 = vmatmul.mubr.f32.gmra.mrb[0].mxu0 %v6068
        %v6070 = vpop.f32.mrb[0].mxu0
        %v6071 = vadd.f32 %v5776, %v6070
        %v6072 = vpop.f32.mrb[0].mxu0
        %v6073 = vadd.f32 %v5778, %v6072
        %6074 = vmatprep.mubr.f32.mxu0 0.0
        %v6075 = vand.u32 %v4714, 4294901760
        %6076 = vmatmul.mubr.f32.gmra.mrb[0].mxu0 %v6075
        %v6077 = vpop.f32.mrb[0].mxu0
        %v6078 = vadd.f32 %v5785, %v6077
        %v6079 = vpop.f32.mrb[0].mxu0
        %v6080 = vadd.f32 %v5787, %v6079
        %6081 = vmatprep.mubr.f32.mxu0 0.0
        %v6082 = vand.u32 %v4715, 4294901760
        %6083 = vmatmul.mubr.f32.gmra.mrb[0].mxu0 %v6082
        %v6084 = vpop.f32.mrb[0].mxu0
        %v6085 = vadd.f32 %v5794, %v6084
        %v6086 = vpop.f32.mrb[0].mxu0
        %v6087 = vadd.f32 %v5796, %v6086
        %6088 = vmatprep.mubr.f32.mxu0 0.0
        %v6089 = vand.u32 %v4716, 4294901760
        %6090 = vmatmul.mubr.f32.gmra.mrb[0].mxu0 %v6089
        %v6091 = vpop.f32.mrb[0].mxu0
        %v6092 = vadd.f32 %v5803, %v6091
        %v6093 = vpop.f32.mrb[0].mxu0
        %v6094 = vadd.f32 %v5805, %v6093
        %6095 = vmatprep.mubr.f32.mxu0 0.0
        %v6096 = vand.u32 %v4717, 4294901760
        %6097 = vmatmul.mubr.f32.gmra.mrb[0].mxu0 %v6096
        %v6098 = vpop.f32.mrb[0].mxu0
        %v6099 = vadd.f32 %v5812, %v6098
        %v6100 = vpop.f32.mrb[0].mxu0
        %v6101 = vadd.f32 %v5814, %v6100
        %6102 = vmatprep.mubr.f32.mxu0 0.0
        %v6103 = vand.u32 %v4718, 4294901760
        %6104 = vmatmul.mubr.f32.gmra.mrb[0].mxu0 %v6103
        %v6105 = vpop.f32.mrb[0].mxu0
        %v6106 = vadd.f32 %v5821, %v6105
        %v6107 = vpop.f32.mrb[0].mxu0
        %v6108 = vadd.f32 %v5823, %v6107
        %6109 = vmatprep.mubr.f32.mxu0 0.0
        %v6110 = vand.u32 %v4719, 4294901760
        %6111 = vmatmul.mubr.f32.gmra.mrb[0].mxu0 %v6110
        %v6112 = vpop.f32.mrb[0].mxu0
        %v6113 = vadd.f32 %v5830, %v6112
        %v6114 = vpop.f32.mrb[0].mxu0
        %v6115 = vadd.f32 %v5832, %v6114
        %6116 = vmatprep.mubr.f32.mxu0 0.0
        %v6117 = vand.u32 %v4720, 4294901760
        %6118 = vmatmul.mubr.f32.gmra.mrb[0].mxu0 %v6117
        %v6119 = vpop.f32.mrb[0].mxu0
        %v6120 = vadd.f32 %v5839, %v6119
        %v6121 = vpop.f32.mrb[0].mxu0
        %v6122 = vadd.f32 %v5841, %v6121
        %6123 = vmatprep.mubr.f32.mxu0 0.0
        %v6124 = vand.u32 %v4721, 4294901760
        %6125 = vmatmul.mubr.f32.gmra.mrb[0].mxu0 %v6124
        %v6126 = vpop.f32.mrb[0].mxu0
        %v6127 = vadd.f32 %v5848, %v6126
        %v6128 = vpop.f32.mrb[0].mxu0
        %v6129 = vadd.f32 %v5850, %v6128
        %6130 = vmatprep.mubr.f32.mxu0 0.0
        %v6131 = vand.u32 %v4722, 4294901760
        %6132 = vmatmul.mubr.f32.gmra.mrb[0].mxu0 %v6131
        %v6133 = vpop.f32.mrb[0].mxu0
        %v6134 = vadd.f32 %v5857, %v6133
        %v6135 = vpop.f32.mrb[0].mxu0
        %v6136 = vadd.f32 %v5859, %v6135
        %6137 = vmatprep.mubr.f32.mxu0 0.0
        %v6138 = vand.u32 %v4723, 4294901760
        %6139 = vmatmul.mubr.f32.gmra.mrb[0].mxu0 %v6138
        %v6140 = vpop.f32.mrb[0].mxu0
        %v6141 = vadd.f32 %v5866, %v6140
        %v6142 = vpop.f32.mrb[0].mxu0
        %v6143 = vadd.f32 %v5868, %v6142
        %6144 = vmatprep.mubr.f32.mxu0 0.0
        %v6145 = vand.u32 %v4724, 4294901760
        %6146 = vmatmul.mubr.f32.gmra.mrb[0].mxu0 %v6145
        %v6147 = vpop.f32.mrb[0].mxu0
        %v6148 = vadd.f32 %v5875, %v6147
        %v6149 = vpop.f32.mrb[0].mxu0
        %v6150 = vadd.f32 %v5877, %v6149
        %6151 = vdwg.mxu0
        %v6152 = vand.u32 %v4727, 4294901760
        %6153 = vmatprep.subr.mxu0 %v6152
        %v6154 = vand.u32 %v4726, 4294901760
        %6155 = vmatpush1.msra.mxu0 %v6154
        %v6156 = vand.u32 %v4729, 4294901760
        %6157 = vmatprep.subr.mxu0 %v6156
        %v6158 = vand.u32 %v4728, 4294901760
        %6159 = vmatpush1.msra.mxu0 %v6158
        %v6160 = vand.u32 %v4731, 4294901760
        %6161 = vmatprep.subr.mxu0 %v6160
        %v6162 = vand.u32 %v4730, 4294901760
        %6163 = vmatpush1.msra.mxu0 %v6162
        %v6164 = vand.u32 %v4733, 4294901760
        %6165 = vmatprep.subr.mxu0 %v6164
        %v6166 = vand.u32 %v4732, 4294901760
        %6167 = vmatpush1.msra.mxu0 %v6166
        %v6168 = vand.u32 %v4735, 4294901760
        %6169 = vmatprep.subr.mxu0 %v6168
        %v6170 = vand.u32 %v4734, 4294901760
        %6171 = vmatpush1.msra.mxu0 %v6170
        %v6172 = vand.u32 %v4737, 4294901760
        %6173 = vmatprep.subr.mxu0 %v6172
        %v6174 = vand.u32 %v4736, 4294901760
        %6175 = vmatpush1.msra.mxu0 %v6174
        %v6176 = vand.u32 %v4739, 4294901760
        %6177 = vmatprep.subr.mxu0 %v6176
        %v6178 = vand.u32 %v4738, 4294901760
        %6179 = vmatpush1.msra.mxu0 %v6178
        %v6180 = vand.u32 %v4741, 4294901760
        %6181 = vmatprep.subr.mxu0 %v6180
        %v6182 = vand.u32 %v4740, 4294901760
        %6183 = vmatpush1.msra.mxu0 %v6182
        %v6184 = vand.u32 %v4743, 4294901760
        %6185 = vmatprep.subr.mxu0 %v6184
        %v6186 = vand.u32 %v4742, 4294901760
        %6187 = vmatpush1.msra.mxu0 %v6186
        %v6188 = vand.u32 %v4745, 4294901760
        %6189 = vmatprep.subr.mxu0 %v6188
        %v6190 = vand.u32 %v4744, 4294901760
        %6191 = vmatpush1.msra.mxu0 %v6190
        %v6192 = vand.u32 %v4747, 4294901760
        %6193 = vmatprep.subr.mxu0 %v6192
        %v6194 = vand.u32 %v4746, 4294901760
        %6195 = vmatpush1.msra.mxu0 %v6194
        %v6196 = vand.u32 %v4749, 4294901760
        %6197 = vmatprep.subr.mxu0 %v6196
        %v6198 = vand.u32 %v4748, 4294901760
        %6199 = vmatpush1.msra.mxu0 %v6198
        %v6200 = vand.u32 %v4751, 4294901760
        %6201 = vmatprep.subr.mxu0 %v6200
        %v6202 = vand.u32 %v4750, 4294901760
        %6203 = vmatpush1.msra.mxu0 %v6202
        %v6204 = vand.u32 %v4753, 4294901760
        %6205 = vmatprep.subr.mxu0 %v6204
        %v6206 = vand.u32 %v4752, 4294901760
        %6207 = vmatpush1.msra.mxu0 %v6206
        %v6208 = vand.u32 %v4755, 4294901760
        %6209 = vmatprep.subr.mxu0 %v6208
        %v6210 = vand.u32 %v4754, 4294901760
        %6211 = vmatpush1.msra.mxu0 %v6210
        %v6212 = vand.u32 %v4757, 4294901760
        %6213 = vmatprep.subr.mxu0 %v6212
        %v6214 = vand.u32 %v4756, 4294901760
        %6215 = vmatpush1.msra.mxu0 %v6214
        %6216 = vmatprep.subr.mxu0 0.0
        %6217 = vmatpush1.msra.mxu0 0.0
        %6218 = vmatprep.subr.mxu0 0.0
        %6219 = vmatpush1.msra.mxu0 0.0
        %6220 = vmatprep.subr.mxu0 0.0
        %6221 = vmatpush1.msra.mxu0 0.0
        %6222 = vmatprep.subr.mxu0 0.0
        %6223 = vmatpush1.msra.mxu0 0.0
        %6224 = vmatprep.subr.mxu0 0.0
        %6225 = vmatpush1.msra.mxu0 0.0
        %6226 = vmatprep.subr.mxu0 0.0
        %6227 = vmatpush1.msra.mxu0 0.0
        %6228 = vmatprep.subr.mxu0 0.0
        %6229 = vmatpush1.msra.mxu0 0.0
        %6230 = vmatprep.subr.mxu0 0.0
        %6231 = vmatpush1.msra.mxu0 0.0
        %6232 = vmatprep.subr.mxu0 0.0
        %6233 = vmatpush1.msra.mxu0 0.0
        %6234 = vmatprep.subr.mxu0 0.0
        %6235 = vmatpush1.msra.mxu0 0.0
        %6236 = vmatprep.subr.mxu0 0.0
        %6237 = vmatpush1.msra.mxu0 0.0
        %6238 = vmatprep.subr.mxu0 0.0
        %6239 = vmatpush1.msra.mxu0 0.0
        %6240 = vmatprep.subr.mxu0 0.0
        %6241 = vmatpush1.msra.mxu0 0.0
        %6242 = vmatprep.subr.mxu0 0.0
        %6243 = vmatpush1.msra.mxu0 0.0
        %6244 = vmatprep.subr.mxu0 0.0
        %6245 = vmatpush1.msra.mxu0 0.0
        %6246 = vmatprep.subr.mxu0 0.0
        %6247 = vmatpush1.msra.mxu0 0.0
        %6248 = vmatprep.mubr.f32.mxu0 0.0
        %v6249 = vand.u32 %v4709, 4294901760
        %6250 = vmatmul.mubr.f32.gmra.mrb[0].mxu0 %v6249
        %v6251 = vpop.f32.mrb[0].mxu0
        %v6252 = vadd.f32 %v6043, %v6251
        %v6253 = vpop.f32.mrb[0].mxu0
        %v6254 = vadd.f32 %v6045, %v6253
        %6255 = vmatprep.mubr.f32.mxu0 0.0
        %v6256 = vand.u32 %v4710, 4294901760
        %6257 = vmatmul.mubr.f32.gmra.mrb[0].mxu0 %v6256
        %v6258 = vpop.f32.mrb[0].mxu0
        %v6259 = vadd.f32 %v6050, %v6258
        %v6260 = vpop.f32.mrb[0].mxu0
        %v6261 = vadd.f32 %v6052, %v6260
        %6262 = vmatprep.mubr.f32.mxu0 0.0
        %v6263 = vand.u32 %v4711, 4294901760
        %6264 = vmatmul.mubr.f32.gmra.mrb[0].mxu0 %v6263
        %v6265 = vpop.f32.mrb[0].mxu0
        %v6266 = vadd.f32 %v6057, %v6265
        %v6267 = vpop.f32.mrb[0].mxu0
        %v6268 = vadd.f32 %v6059, %v6267
        %6269 = vmatprep.mubr.f32.mxu0 0.0
        %v6270 = vand.u32 %v4712, 4294901760
        %6271 = vmatmul.mubr.f32.gmra.mrb[0].mxu0 %v6270
        %v6272 = vpop.f32.mrb[0].mxu0
        %v6273 = vadd.f32 %v6064, %v6272
        %v6274 = vpop.f32.mrb[0].mxu0
        %v6275 = vadd.f32 %v6066, %v6274
        %6276 = vmatprep.mubr.f32.mxu0 0.0
        %v6277 = vand.u32 %v4713, 4294901760
        %6278 = vmatmul.mubr.f32.gmra.mrb[0].mxu0 %v6277
        %v6279 = vpop.f32.mrb[0].mxu0
        %v6280 = vadd.f32 %v6071, %v6279
        %v6281 = vpop.f32.mrb[0].mxu0
        %v6282 = vadd.f32 %v6073, %v6281
        %6283 = vmatprep.mubr.f32.mxu0 0.0
        %v6284 = vand.u32 %v4714, 4294901760
        %6285 = vmatmul.mubr.f32.gmra.mrb[0].mxu0 %v6284
        %v6286 = vpop.f32.mrb[0].mxu0
        %v6287 = vadd.f32 %v6078, %v6286
        %v6288 = vpop.f32.mrb[0].mxu0
        %v6289 = vadd.f32 %v6080, %v6288
        %6290 = vmatprep.mubr.f32.mxu0 0.0
        %v6291 = vand.u32 %v4715, 4294901760
        %6292 = vmatmul.mubr.f32.gmra.mrb[0].mxu0 %v6291
        %v6293 = vpop.f32.mrb[0].mxu0
        %v6294 = vadd.f32 %v6085, %v6293
        %v6295 = vpop.f32.mrb[0].mxu0
        %v6296 = vadd.f32 %v6087, %v6295
        %6297 = vmatprep.mubr.f32.mxu0 0.0
        %v6298 = vand.u32 %v4716, 4294901760
        %6299 = vmatmul.mubr.f32.gmra.mrb[0].mxu0 %v6298
        %v6300 = vpop.f32.mrb[0].mxu0
        %v6301 = vadd.f32 %v6092, %v6300
        %v6302 = vpop.f32.mrb[0].mxu0
        %v6303 = vadd.f32 %v6094, %v6302
        %6304 = vmatprep.mubr.f32.mxu0 0.0
        %v6305 = vand.u32 %v4717, 4294901760
        %6306 = vmatmul.mubr.f32.gmra.mrb[0].mxu0 %v6305
        %v6307 = vpop.f32.mrb[0].mxu0
        %v6308 = vadd.f32 %v6099, %v6307
        %v6309 = vpop.f32.mrb[0].mxu0
        %v6310 = vadd.f32 %v6101, %v6309
        %6311 = vmatprep.mubr.f32.mxu0 0.0
        %v6312 = vand.u32 %v4718, 4294901760
        %6313 = vmatmul.mubr.f32.gmra.mrb[0].mxu0 %v6312
        %v6314 = vpop.f32.mrb[0].mxu0
        %v6315 = vadd.f32 %v6106, %v6314
        %v6316 = vpop.f32.mrb[0].mxu0
        %v6317 = vadd.f32 %v6108, %v6316
        %6318 = vmatprep.mubr.f32.mxu0 0.0
        %v6319 = vand.u32 %v4719, 4294901760
        %6320 = vmatmul.mubr.f32.gmra.mrb[0].mxu0 %v6319
        %v6321 = vpop.f32.mrb[0].mxu0
        %v6322 = vadd.f32 %v6113, %v6321
        %v6323 = vpop.f32.mrb[0].mxu0
        %v6324 = vadd.f32 %v6115, %v6323
        %6325 = vmatprep.mubr.f32.mxu0 0.0
        %v6326 = vand.u32 %v4720, 4294901760
        %6327 = vmatmul.mubr.f32.gmra.mrb[0].mxu0 %v6326
        %v6328 = vpop.f32.mrb[0].mxu0
        %v6329 = vadd.f32 %v6120, %v6328
        %v6330 = vpop.f32.mrb[0].mxu0
        %v6331 = vadd.f32 %v6122, %v6330
        %6332 = vmatprep.mubr.f32.mxu0 0.0
        %v6333 = vand.u32 %v4721, 4294901760
        %6334 = vmatmul.mubr.f32.gmra.mrb[0].mxu0 %v6333
        %v6335 = vpop.f32.mrb[0].mxu0
        %v6336 = vadd.f32 %v6127, %v6335
        %v6337 = vpop.f32.mrb[0].mxu0
        %v6338 = vadd.f32 %v6129, %v6337
        %6339 = vmatprep.mubr.f32.mxu0 0.0
        %v6340 = vand.u32 %v4722, 4294901760
        %6341 = vmatmul.mubr.f32.gmra.mrb[0].mxu0 %v6340
        %v6342 = vpop.f32.mrb[0].mxu0
        %v6343 = vadd.f32 %v6134, %v6342
        %v6344 = vpop.f32.mrb[0].mxu0
        %v6345 = vadd.f32 %v6136, %v6344
        %6346 = vmatprep.mubr.f32.mxu0 0.0
        %v6347 = vand.u32 %v4723, 4294901760
        %6348 = vmatmul.mubr.f32.gmra.mrb[0].mxu0 %v6347
        %v6349 = vpop.f32.mrb[0].mxu0
        %v6350 = vadd.f32 %v6141, %v6349
        %v6351 = vpop.f32.mrb[0].mxu0
        %v6352 = vadd.f32 %v6143, %v6351
        %6353 = vmatprep.mubr.f32.mxu0 0.0
        %v6354 = vand.u32 %v4724, 4294901760
        %6355 = vmatmul.mubr.f32.gmra.mrb[0].mxu0 %v6354
        %v6356 = vpop.f32.mrb[0].mxu0
        %v6357 = vadd.f32 %v6148, %v6356
        %v6358 = vpop.f32.mrb[0].mxu0
        %v6359 = vadd.f32 %v6150, %v6358
        %6360 = vdwg.mxu0
        %v6361 = vtanh.pop %v6252
        %v6362 = vtanh.pop %v6259
        %v6363 = vtanh.pop %v6266
        %v6364 = vtanh.pop %v6273
        %v6365 = vtanh.pop %v6280
        %v6366 = vtanh.pop %v6287
        %v6367 = vtanh.pop %v6294
        %v6368 = vtanh.pop %v6301
        %v6369 = vtanh.pop %v6308
        %v6370 = vtanh.pop %v6315
        %v6371 = vtanh.pop %v6322
        %v6372 = vtanh.pop %v6329
        %v6373 = vtanh.pop %v6336
        %v6374 = vtanh.pop %v6343
        %v6375 = vtanh.pop %v6350
        %v6376 = vtanh.pop %v6357
        %v6377 = vmul.f32 %v6361, 1.442695
        %v6378 = vpow.pop %v6377
        %v6379 = vmul.f32 %v6362, 1.442695
        %v6380 = vpow.pop %v6379
        %v6381 = vmul.f32 %v6363, 1.442695
        %v6382 = vpow.pop %v6381
        %v6383 = vmul.f32 %v6364, 1.442695
        %v6384 = vpow.pop %v6383
        %v6385 = vmul.f32 %v6365, 1.442695
        %v6386 = vpow.pop %v6385
        %v6387 = vmul.f32 %v6366, 1.442695
        %v6388 = vpow.pop %v6387
        %v6389 = vmul.f32 %v6367, 1.442695
        %v6390 = vpow.pop %v6389
        %v6391 = vmul.f32 %v6368, 1.442695
        %v6392 = vpow.pop %v6391
        %v6393 = vmul.f32 %v6369, 1.442695
        %v6394 = vpow.pop %v6393
        %v6395 = vmul.f32 %v6370, 1.442695
        %v6396 = vpow.pop %v6395
        %v6397 = vmul.f32 %v6371, 1.442695
        %v6398 = vpow.pop %v6397
        %v6399 = vmul.f32 %v6372, 1.442695
        %v6400 = vpow.pop %v6399
        %v6401 = vmul.f32 %v6373, 1.442695
        %v6402 = vpow.pop %v6401
        %v6403 = vmul.f32 %v6374, 1.442695
        %v6404 = vpow.pop %v6403
        %v6405 = vmul.f32 %v6375, 1.442695
        %v6406 = vpow.pop %v6405
        %v6407 = vmul.f32 %v6376, 1.442695
        %v6408 = vpow.pop %v6407
        %v6409 = vmul.f32 %v316, %v6378
        %v6410 = vmul.f32 %v318, %v6380
        %v6411 = vmul.f32 %v320, %v6382
        %v6412 = vmul.f32 %v322, %v6384
        %v6413 = vmul.f32 %v324, %v6386
        %v6414 = vmul.f32 %v326, %v6388
        %v6415 = vmul.f32 %v328, %v6390
        %v6416 = vmul.f32 %v330, %v6392
        %v6417 = vmul.f32 %v332, %v6394
        %v6418 = vmul.f32 %v334, %v6396
        %v6419 = vmul.f32 %v336, %v6398
        %v6420 = vmul.f32 %v338, %v6400
        %v6421 = vmul.f32 %v340, %v6402
        %v6422 = vmul.f32 %v342, %v6404
        %v6423 = vmul.f32 %v344, %v6406
        %v6424 = vmul.f32 %v346, %v6408
        %v6425 = vadd.f32 %v6409, %v6254
        %v6426 = vadd.f32 %v6410, %v6261
        %v6427 = vadd.f32 %v6411, %v6268
        %v6428 = vadd.f32 %v6412, %v6275
        %v6429 = vadd.f32 %v6413, %v6282
        %v6430 = vadd.f32 %v6414, %v6289
        %v6431 = vadd.f32 %v6415, %v6296
        %v6432 = vadd.f32 %v6416, %v6303
        %v6433 = vadd.f32 %v6417, %v6310
        %v6434 = vadd.f32 %v6418, %v6317
        %v6435 = vadd.f32 %v6419, %v6324
        %v6436 = vadd.f32 %v6420, %v6331
        %v6437 = vadd.f32 %v6421, %v6338
        %v6438 = vadd.f32 %v6422, %v6345
        %v6439 = vadd.f32 %v6423, %v6352
        %v6440 = vadd.f32 %v6424, %v6359
        %v6441 = vadd.f32 %v3385, %v6361
        %v6442 = vadd.f32 %v3386, %v6362
        %v6443 = vadd.f32 %v3387, %v6363
        %v6444 = vadd.f32 %v3388, %v6364
        %v6445 = vadd.f32 %v3389, %v6365
        %v6446 = vadd.f32 %v3390, %v6366
        %v6447 = vadd.f32 %v3391, %v6367
        %v6448 = vadd.f32 %v3392, %v6368
        %v6449 = vadd.f32 %v3393, %v6369
        %v6450 = vadd.f32 %v3394, %v6370
        %v6451 = vadd.f32 %v3395, %v6371
        %v6452 = vadd.f32 %v3396, %v6372
        %v6453 = vadd.f32 %v3397, %v6373
        %v6454 = vadd.f32 %v3398, %v6374
        %v6455 = vadd.f32 %v3399, %v6375
        %v6456 = vadd.f32 %v3400, %v6376
        %s6457 = scalar_lea.vmem [#allocation5], 256
        %v6458 = vld [vmem:[%s6457] sm:$0xff]
        %v6459 = vld [vmem:[%s6457 + $0x8] sm:$0xff]
        %v6460 = vld [vmem:[%s6457 + $0x10] sm:$0xff]
        %v6461 = vld [vmem:[%s6457 + $0x18] sm:$0xff]
        %v6462 = vld [vmem:[%s6457 + $0x20] sm:$0xff]
        %v6463 = vld [vmem:[%s6457 + $0x28] sm:$0xff]
        %v6464 = vld [vmem:[%s6457 + $0x30] sm:$0xff]
        %v6465 = vld [vmem:[%s6457 + $0x38] sm:$0xff]
        %v6466 = vld [vmem:[%s6457 + $0x40] sm:$0xff]
        %v6467 = vld [vmem:[%s6457 + $0x48] sm:$0xff]
        %v6468 = vld [vmem:[%s6457 + $0x50] sm:$0xff]
        %v6469 = vld [vmem:[%s6457 + $0x58] sm:$0xff]
        %v6470 = vld [vmem:[%s6457 + $0x60] sm:$0xff]
        %v6471 = vld [vmem:[%s6457 + $0x68] sm:$0xff]
        %v6472 = vld [vmem:[%s6457 + $0x70] sm:$0xff]
        %v6473 = vld [vmem:[%s6457 + $0x78] sm:$0xff]
        %v6474 = vld [vmem:[%s2 + $0x2] sm:$0x1]
        %v6475 = vlaneseq
        %v6476 = vshrl.u32 %v6475, 7
        %v6477 = vsub.s32 0, %v6476
        %v6478 = vrot.slane %v6474, %v6477
        %6479 = vmatprep.subr.mxu0 0.0
        %v6480 = vand.u32 %v6458, 4294901760
        %6481 = vmatpush1.msra.mxu0 %v6480
        %6482 = vmatprep.subr.mxu0 0.0
        %v6483 = vand.u32 %v6459, 4294901760
        %6484 = vmatpush1.msra.mxu0 %v6483
        %6485 = vmatprep.subr.mxu0 0.0
        %v6486 = vand.u32 %v6460, 4294901760
        %6487 = vmatpush1.msra.mxu0 %v6486
        %6488 = vmatprep.subr.mxu0 0.0
        %v6489 = vand.u32 %v6461, 4294901760
        %6490 = vmatpush1.msra.mxu0 %v6489
        %6491 = vmatprep.subr.mxu0 0.0
        %v6492 = vand.u32 %v6462, 4294901760
        %6493 = vmatpush1.msra.mxu0 %v6492
        %6494 = vmatprep.subr.mxu0 0.0
        %v6495 = vand.u32 %v6463, 4294901760
        %6496 = vmatpush1.msra.mxu0 %v6495
        %6497 = vmatprep.subr.mxu0 0.0
        %v6498 = vand.u32 %v6464, 4294901760
        %6499 = vmatpush1.msra.mxu0 %v6498
        %6500 = vmatprep.subr.mxu0 0.0
        %v6501 = vand.u32 %v6465, 4294901760
        %6502 = vmatpush1.msra.mxu0 %v6501
        %6503 = vmatprep.subr.mxu0 0.0
        %v6504 = vand.u32 %v6466, 4294901760
        %6505 = vmatpush1.msra.mxu0 %v6504
        %6506 = vmatprep.subr.mxu0 0.0
        %v6507 = vand.u32 %v6467, 4294901760
        %6508 = vmatpush1.msra.mxu0 %v6507
        %6509 = vmatprep.subr.mxu0 0.0
        %v6510 = vand.u32 %v6468, 4294901760
        %6511 = vmatpush1.msra.mxu0 %v6510
        %6512 = vmatprep.subr.mxu0 0.0
        %v6513 = vand.u32 %v6469, 4294901760
        %6514 = vmatpush1.msra.mxu0 %v6513
        %6515 = vmatprep.subr.mxu0 0.0
        %v6516 = vand.u32 %v6470, 4294901760
        %6517 = vmatpush1.msra.mxu0 %v6516
        %6518 = vmatprep.subr.mxu0 0.0
        %v6519 = vand.u32 %v6471, 4294901760
        %6520 = vmatpush1.msra.mxu0 %v6519
        %6521 = vmatprep.subr.mxu0 0.0
        %v6522 = vand.u32 %v6472, 4294901760
        %6523 = vmatpush1.msra.mxu0 %v6522
        %6524 = vmatprep.subr.mxu0 0.0
        %v6525 = vand.u32 %v6473, 4294901760
        %6526 = vmatpush1.msra.mxu0 %v6525
        %6527 = vmatprep.subr.mxu0 0.0
        %6528 = vmatpush1.msra.mxu0 0.0
        %6529 = vmatprep.subr.mxu0 0.0
        %6530 = vmatpush1.msra.mxu0 0.0
        %6531 = vmatprep.subr.mxu0 0.0
        %6532 = vmatpush1.msra.mxu0 0.0
        %6533 = vmatprep.subr.mxu0 0.0
        %6534 = vmatpush1.msra.mxu0 0.0
        %6535 = vmatprep.subr.mxu0 0.0
        %6536 = vmatpush1.msra.mxu0 0.0
        %6537 = vmatprep.subr.mxu0 0.0
        %6538 = vmatpush1.msra.mxu0 0.0
        %6539 = vmatprep.subr.mxu0 0.0
        %6540 = vmatpush1.msra.mxu0 0.0
        %6541 = vmatprep.subr.mxu0 0.0
        %6542 = vmatpush1.msra.mxu0 0.0
        %6543 = vmatprep.subr.mxu0 0.0
        %6544 = vmatpush1.msra.mxu0 0.0
        %6545 = vmatprep.subr.mxu0 0.0
        %6546 = vmatpush1.msra.mxu0 0.0
        %6547 = vmatprep.subr.mxu0 0.0
        %6548 = vmatpush1.msra.mxu0 0.0
        %6549 = vmatprep.subr.mxu0 0.0
        %6550 = vmatpush1.msra.mxu0 0.0
        %6551 = vmatprep.subr.mxu0 0.0
        %6552 = vmatpush1.msra.mxu0 0.0
        %6553 = vmatprep.subr.mxu0 0.0
        %6554 = vmatpush1.msra.mxu0 0.0
        %6555 = vmatprep.subr.mxu0 0.0
        %6556 = vmatpush1.msra.mxu0 0.0
        %6557 = vmatprep.subr.mxu0 0.0
        %6558 = vmatpush1.msra.mxu0 0.0
        %6559 = vmatprep.mubr.f32.mxu0 0.0
        %v6560 = vand.u32 %v6425, 4294901760
        %v6561 = vsub.f32 %v6425, %v6560
        %v6562 = vand.u32 %v6561, 4294901760
        %v6563 = vsub.f32 %v6561, %v6562
        %v6564 = vand.u32 %v6563, 4294901760
        %6565 = vmatmul.mubr.f32.gmra.mrb[0].mxu0 %v6564
        %v6566 = vpop.f32.mrb[0].mxu0
        %v6567 = vadd.f32 %v6478, %v6566
        %v6568 = vpop.f32.mrb[0].mxu0
        %6569 = vmatprep.mubr.f32.mxu0 0.0
        %v6570 = vand.u32 %v6426, 4294901760
        %v6571 = vsub.f32 %v6426, %v6570
        %v6572 = vand.u32 %v6571, 4294901760
        %v6573 = vsub.f32 %v6571, %v6572
        %v6574 = vand.u32 %v6573, 4294901760
        %6575 = vmatmul.mubr.f32.gmra.mrb[0].mxu0 %v6574
        %v6576 = vpop.f32.mrb[0].mxu0
        %v6577 = vadd.f32 %v6478, %v6576
        %v6578 = vpop.f32.mrb[0].mxu0
        %6579 = vmatprep.mubr.f32.mxu0 0.0
        %v6580 = vand.u32 %v6427, 4294901760
        %v6581 = vsub.f32 %v6427, %v6580
        %v6582 = vand.u32 %v6581, 4294901760
        %v6583 = vsub.f32 %v6581, %v6582
        %v6584 = vand.u32 %v6583, 4294901760
        %6585 = vmatmul.mubr.f32.gmra.mrb[0].mxu0 %v6584
        %v6586 = vpop.f32.mrb[0].mxu0
        %v6587 = vadd.f32 %v6478, %v6586
        %v6588 = vpop.f32.mrb[0].mxu0
        %6589 = vmatprep.mubr.f32.mxu0 0.0
        %v6590 = vand.u32 %v6428, 4294901760
        %v6591 = vsub.f32 %v6428, %v6590
        %v6592 = vand.u32 %v6591, 4294901760
        %v6593 = vsub.f32 %v6591, %v6592
        %v6594 = vand.u32 %v6593, 4294901760
        %6595 = vmatmul.mubr.f32.gmra.mrb[0].mxu0 %v6594
        %v6596 = vpop.f32.mrb[0].mxu0
        %v6597 = vadd.f32 %v6478, %v6596
        %v6598 = vpop.f32.mrb[0].mxu0
        %6599 = vmatprep.mubr.f32.mxu0 0.0
        %v6600 = vand.u32 %v6429, 4294901760
        %v6601 = vsub.f32 %v6429, %v6600
        %v6602 = vand.u32 %v6601, 4294901760
        %v6603 = vsub.f32 %v6601, %v6602
        %v6604 = vand.u32 %v6603, 4294901760
        %6605 = vmatmul.mubr.f32.gmra.mrb[0].mxu0 %v6604
        %v6606 = vpop.f32.mrb[0].mxu0
        %v6607 = vadd.f32 %v6478, %v6606
        %v6608 = vpop.f32.mrb[0].mxu0
        %6609 = vmatprep.mubr.f32.mxu0 0.0
        %v6610 = vand.u32 %v6430, 4294901760
        %v6611 = vsub.f32 %v6430, %v6610
        %v6612 = vand.u32 %v6611, 4294901760
        %v6613 = vsub.f32 %v6611, %v6612
        %v6614 = vand.u32 %v6613, 4294901760
        %6615 = vmatmul.mubr.f32.gmra.mrb[0].mxu0 %v6614
        %v6616 = vpop.f32.mrb[0].mxu0
        %v6617 = vadd.f32 %v6478, %v6616
        %v6618 = vpop.f32.mrb[0].mxu0
        %6619 = vmatprep.mubr.f32.mxu0 0.0
        %v6620 = vand.u32 %v6431, 4294901760
        %v6621 = vsub.f32 %v6431, %v6620
        %v6622 = vand.u32 %v6621, 4294901760
        %v6623 = vsub.f32 %v6621, %v6622
        %v6624 = vand.u32 %v6623, 4294901760
        %6625 = vmatmul.mubr.f32.gmra.mrb[0].mxu0 %v6624
        %v6626 = vpop.f32.mrb[0].mxu0
        %v6627 = vadd.f32 %v6478, %v6626
        %v6628 = vpop.f32.mrb[0].mxu0
        %6629 = vmatprep.mubr.f32.mxu0 0.0
        %v6630 = vand.u32 %v6432, 4294901760
        %v6631 = vsub.f32 %v6432, %v6630
        %v6632 = vand.u32 %v6631, 4294901760
        %v6633 = vsub.f32 %v6631, %v6632
        %v6634 = vand.u32 %v6633, 4294901760
        %6635 = vmatmul.mubr.f32.gmra.mrb[0].mxu0 %v6634
        %v6636 = vpop.f32.mrb[0].mxu0
        %v6637 = vadd.f32 %v6478, %v6636
        %v6638 = vpop.f32.mrb[0].mxu0
        %6639 = vmatprep.mubr.f32.mxu0 0.0
        %v6640 = vand.u32 %v6433, 4294901760
        %v6641 = vsub.f32 %v6433, %v6640
        %v6642 = vand.u32 %v6641, 4294901760
        %v6643 = vsub.f32 %v6641, %v6642
        %v6644 = vand.u32 %v6643, 4294901760
        %6645 = vmatmul.mubr.f32.gmra.mrb[0].mxu0 %v6644
        %v6646 = vpop.f32.mrb[0].mxu0
        %v6647 = vadd.f32 %v6478, %v6646
        %v6648 = vpop.f32.mrb[0].mxu0
        %6649 = vmatprep.mubr.f32.mxu0 0.0
        %v6650 = vand.u32 %v6434, 4294901760
        %v6651 = vsub.f32 %v6434, %v6650
        %v6652 = vand.u32 %v6651, 4294901760
        %v6653 = vsub.f32 %v6651, %v6652
        %v6654 = vand.u32 %v6653, 4294901760
        %6655 = vmatmul.mubr.f32.gmra.mrb[0].mxu0 %v6654
        %v6656 = vpop.f32.mrb[0].mxu0
        %v6657 = vadd.f32 %v6478, %v6656
        %v6658 = vpop.f32.mrb[0].mxu0
        %6659 = vmatprep.mubr.f32.mxu0 0.0
        %v6660 = vand.u32 %v6435, 4294901760
        %v6661 = vsub.f32 %v6435, %v6660
        %v6662 = vand.u32 %v6661, 4294901760
        %v6663 = vsub.f32 %v6661, %v6662
        %v6664 = vand.u32 %v6663, 4294901760
        %6665 = vmatmul.mubr.f32.gmra.mrb[0].mxu0 %v6664
        %v6666 = vpop.f32.mrb[0].mxu0
        %v6667 = vadd.f32 %v6478, %v6666
        %v6668 = vpop.f32.mrb[0].mxu0
        %6669 = vmatprep.mubr.f32.mxu0 0.0
        %v6670 = vand.u32 %v6436, 4294901760
        %v6671 = vsub.f32 %v6436, %v6670
        %v6672 = vand.u32 %v6671, 4294901760
        %v6673 = vsub.f32 %v6671, %v6672
        %v6674 = vand.u32 %v6673, 4294901760
        %6675 = vmatmul.mubr.f32.gmra.mrb[0].mxu0 %v6674
        %v6676 = vpop.f32.mrb[0].mxu0
        %v6677 = vadd.f32 %v6478, %v6676
        %v6678 = vpop.f32.mrb[0].mxu0
        %6679 = vmatprep.mubr.f32.mxu0 0.0
        %v6680 = vand.u32 %v6437, 4294901760
        %v6681 = vsub.f32 %v6437, %v6680
        %v6682 = vand.u32 %v6681, 4294901760
        %v6683 = vsub.f32 %v6681, %v6682
        %v6684 = vand.u32 %v6683, 4294901760
        %6685 = vmatmul.mubr.f32.gmra.mrb[0].mxu0 %v6684
        %v6686 = vpop.f32.mrb[0].mxu0
        %v6687 = vadd.f32 %v6478, %v6686
        %v6688 = vpop.f32.mrb[0].mxu0
        %6689 = vmatprep.mubr.f32.mxu0 0.0
        %v6690 = vand.u32 %v6438, 4294901760
        %v6691 = vsub.f32 %v6438, %v6690
        %v6692 = vand.u32 %v6691, 4294901760
        %v6693 = vsub.f32 %v6691, %v6692
        %v6694 = vand.u32 %v6693, 4294901760
        %6695 = vmatmul.mubr.f32.gmra.mrb[0].mxu0 %v6694
        %v6696 = vpop.f32.mrb[0].mxu0
        %v6697 = vadd.f32 %v6478, %v6696
        %v6698 = vpop.f32.mrb[0].mxu0
        %6699 = vmatprep.mubr.f32.mxu0 0.0
        %v6700 = vand.u32 %v6439, 4294901760
        %v6701 = vsub.f32 %v6439, %v6700
        %v6702 = vand.u32 %v6701, 4294901760
        %v6703 = vsub.f32 %v6701, %v6702
        %v6704 = vand.u32 %v6703, 4294901760
        %6705 = vmatmul.mubr.f32.gmra.mrb[0].mxu0 %v6704
        %v6706 = vpop.f32.mrb[0].mxu0
        %v6707 = vadd.f32 %v6478, %v6706
        %v6708 = vpop.f32.mrb[0].mxu0
        %6709 = vmatprep.mubr.f32.mxu0 0.0
        %v6710 = vand.u32 %v6440, 4294901760
        %v6711 = vsub.f32 %v6440, %v6710
        %v6712 = vand.u32 %v6711, 4294901760
        %v6713 = vsub.f32 %v6711, %v6712
        %v6714 = vand.u32 %v6713, 4294901760
        %6715 = vmatmul.mubr.f32.gmra.mrb[0].mxu0 %v6714
        %v6716 = vpop.f32.mrb[0].mxu0
        %v6717 = vadd.f32 %v6478, %v6716
        %v6718 = vpop.f32.mrb[0].mxu0
        %6719 = vdwg.mxu0
        %6720 = vmatprep.subr.mxu0 0.0
        %v6721 = vand.u32 %v6458, 4294901760
        %v6722 = vsub.f32 %v6458, %v6721
        %v6723 = vand.u32 %v6722, 4294901760
        %v6724 = vsub.f32 %v6722, %v6723
        %v6725 = vand.u32 %v6724, 4294901760
        %6726 = vmatpush1.msra.mxu0 %v6725
        %6727 = vmatprep.subr.mxu0 0.0
        %v6728 = vand.u32 %v6459, 4294901760
        %v6729 = vsub.f32 %v6459, %v6728
        %v6730 = vand.u32 %v6729, 4294901760
        %v6731 = vsub.f32 %v6729, %v6730
        %v6732 = vand.u32 %v6731, 4294901760
        %6733 = vmatpush1.msra.mxu0 %v6732
        %6734 = vmatprep.subr.mxu0 0.0
        %v6735 = vand.u32 %v6460, 4294901760
        %v6736 = vsub.f32 %v6460, %v6735
        %v6737 = vand.u32 %v6736, 4294901760
        %v6738 = vsub.f32 %v6736, %v6737
        %v6739 = vand.u32 %v6738, 4294901760
        %6740 = vmatpush1.msra.mxu0 %v6739
        %6741 = vmatprep.subr.mxu0 0.0
        %v6742 = vand.u32 %v6461, 4294901760
        %v6743 = vsub.f32 %v6461, %v6742
        %v6744 = vand.u32 %v6743, 4294901760
        %v6745 = vsub.f32 %v6743, %v6744
        %v6746 = vand.u32 %v6745, 4294901760
        %6747 = vmatpush1.msra.mxu0 %v6746
        %6748 = vmatprep.subr.mxu0 0.0
        %v6749 = vand.u32 %v6462, 4294901760
        %v6750 = vsub.f32 %v6462, %v6749
        %v6751 = vand.u32 %v6750, 4294901760
        %v6752 = vsub.f32 %v6750, %v6751
        %v6753 = vand.u32 %v6752, 4294901760
        %6754 = vmatpush1.msra.mxu0 %v6753
        %6755 = vmatprep.subr.mxu0 0.0
        %v6756 = vand.u32 %v6463, 4294901760
        %v6757 = vsub.f32 %v6463, %v6756
        %v6758 = vand.u32 %v6757, 4294901760
        %v6759 = vsub.f32 %v6757, %v6758
        %v6760 = vand.u32 %v6759, 4294901760
        %6761 = vmatpush1.msra.mxu0 %v6760
        %6762 = vmatprep.subr.mxu0 0.0
        %v6763 = vand.u32 %v6464, 4294901760
        %v6764 = vsub.f32 %v6464, %v6763
        %v6765 = vand.u32 %v6764, 4294901760
        %v6766 = vsub.f32 %v6764, %v6765
        %v6767 = vand.u32 %v6766, 4294901760
        %6768 = vmatpush1.msra.mxu0 %v6767
        %6769 = vmatprep.subr.mxu0 0.0
        %v6770 = vand.u32 %v6465, 4294901760
        %v6771 = vsub.f32 %v6465, %v6770
        %v6772 = vand.u32 %v6771, 4294901760
        %v6773 = vsub.f32 %v6771, %v6772
        %v6774 = vand.u32 %v6773, 4294901760
        %6775 = vmatpush1.msra.mxu0 %v6774
        %6776 = vmatprep.subr.mxu0 0.0
        %v6777 = vand.u32 %v6466, 4294901760
        %v6778 = vsub.f32 %v6466, %v6777
        %v6779 = vand.u32 %v6778, 4294901760
        %v6780 = vsub.f32 %v6778, %v6779
        %v6781 = vand.u32 %v6780, 4294901760
        %6782 = vmatpush1.msra.mxu0 %v6781
        %6783 = vmatprep.subr.mxu0 0.0
        %v6784 = vand.u32 %v6467, 4294901760
        %v6785 = vsub.f32 %v6467, %v6784
        %v6786 = vand.u32 %v6785, 4294901760
        %v6787 = vsub.f32 %v6785, %v6786
        %v6788 = vand.u32 %v6787, 4294901760
        %6789 = vmatpush1.msra.mxu0 %v6788
        %6790 = vmatprep.subr.mxu0 0.0
        %v6791 = vand.u32 %v6468, 4294901760
        %v6792 = vsub.f32 %v6468, %v6791
        %v6793 = vand.u32 %v6792, 4294901760
        %v6794 = vsub.f32 %v6792, %v6793
        %v6795 = vand.u32 %v6794, 4294901760
        %6796 = vmatpush1.msra.mxu0 %v6795
        %6797 = vmatprep.subr.mxu0 0.0
        %v6798 = vand.u32 %v6469, 4294901760
        %v6799 = vsub.f32 %v6469, %v6798
        %v6800 = vand.u32 %v6799, 4294901760
        %v6801 = vsub.f32 %v6799, %v6800
        %v6802 = vand.u32 %v6801, 4294901760
        %6803 = vmatpush1.msra.mxu0 %v6802
        %6804 = vmatprep.subr.mxu0 0.0
        %v6805 = vand.u32 %v6470, 4294901760
        %v6806 = vsub.f32 %v6470, %v6805
        %v6807 = vand.u32 %v6806, 4294901760
        %v6808 = vsub.f32 %v6806, %v6807
        %v6809 = vand.u32 %v6808, 4294901760
        %6810 = vmatpush1.msra.mxu0 %v6809
        %6811 = vmatprep.subr.mxu0 0.0
        %v6812 = vand.u32 %v6471, 4294901760
        %v6813 = vsub.f32 %v6471, %v6812
        %v6814 = vand.u32 %v6813, 4294901760
        %v6815 = vsub.f32 %v6813, %v6814
        %v6816 = vand.u32 %v6815, 4294901760
        %6817 = vmatpush1.msra.mxu0 %v6816
        %6818 = vmatprep.subr.mxu0 0.0
        %v6819 = vand.u32 %v6472, 4294901760
        %v6820 = vsub.f32 %v6472, %v6819
        %v6821 = vand.u32 %v6820, 4294901760
        %v6822 = vsub.f32 %v6820, %v6821
        %v6823 = vand.u32 %v6822, 4294901760
        %6824 = vmatpush1.msra.mxu0 %v6823
        %6825 = vmatprep.subr.mxu0 0.0
        %v6826 = vand.u32 %v6473, 4294901760
        %v6827 = vsub.f32 %v6473, %v6826
        %v6828 = vand.u32 %v6827, 4294901760
        %v6829 = vsub.f32 %v6827, %v6828
        %v6830 = vand.u32 %v6829, 4294901760
        %6831 = vmatpush1.msra.mxu0 %v6830
        %6832 = vmatprep.subr.mxu0 0.0
        %6833 = vmatpush1.msra.mxu0 0.0
        %6834 = vmatprep.subr.mxu0 0.0
        %6835 = vmatpush1.msra.mxu0 0.0
        %6836 = vmatprep.subr.mxu0 0.0
        %6837 = vmatpush1.msra.mxu0 0.0
        %6838 = vmatprep.subr.mxu0 0.0
        %6839 = vmatpush1.msra.mxu0 0.0
        %6840 = vmatprep.subr.mxu0 0.0
        %6841 = vmatpush1.msra.mxu0 0.0
        %6842 = vmatprep.subr.mxu0 0.0
        %6843 = vmatpush1.msra.mxu0 0.0
        %6844 = vmatprep.subr.mxu0 0.0
        %6845 = vmatpush1.msra.mxu0 0.0
        %6846 = vmatprep.subr.mxu0 0.0
        %6847 = vmatpush1.msra.mxu0 0.0
        %6848 = vmatprep.subr.mxu0 0.0
        %6849 = vmatpush1.msra.mxu0 0.0
        %6850 = vmatprep.subr.mxu0 0.0
        %6851 = vmatpush1.msra.mxu0 0.0
        %6852 = vmatprep.subr.mxu0 0.0
        %6853 = vmatpush1.msra.mxu0 0.0
        %6854 = vmatprep.subr.mxu0 0.0
        %6855 = vmatpush1.msra.mxu0 0.0
        %6856 = vmatprep.subr.mxu0 0.0
        %6857 = vmatpush1.msra.mxu0 0.0
        %6858 = vmatprep.subr.mxu0 0.0
        %6859 = vmatpush1.msra.mxu0 0.0
        %6860 = vmatprep.subr.mxu0 0.0
        %6861 = vmatpush1.msra.mxu0 0.0
        %6862 = vmatprep.subr.mxu0 0.0
        %6863 = vmatpush1.msra.mxu0 0.0
        %6864 = vmatprep.mubr.f32.mxu0 0.0
        %v6865 = vand.u32 %v6425, 4294901760
        %6866 = vmatmul.mubr.f32.gmra.mrb[0].mxu0 %v6865
        %v6867 = vpop.f32.mrb[0].mxu0
        %v6868 = vadd.f32 %v6567, %v6867
        %v6869 = vpop.f32.mrb[0].mxu0
        %6870 = vmatprep.mubr.f32.mxu0 0.0
        %v6871 = vand.u32 %v6426, 4294901760
        %6872 = vmatmul.mubr.f32.gmra.mrb[0].mxu0 %v6871
        %v6873 = vpop.f32.mrb[0].mxu0
        %v6874 = vadd.f32 %v6577, %v6873
        %v6875 = vpop.f32.mrb[0].mxu0
        %6876 = vmatprep.mubr.f32.mxu0 0.0
        %v6877 = vand.u32 %v6427, 4294901760
        %6878 = vmatmul.mubr.f32.gmra.mrb[0].mxu0 %v6877
        %v6879 = vpop.f32.mrb[0].mxu0
        %v6880 = vadd.f32 %v6587, %v6879
        %v6881 = vpop.f32.mrb[0].mxu0
        %6882 = vmatprep.mubr.f32.mxu0 0.0
        %v6883 = vand.u32 %v6428, 4294901760
        %6884 = vmatmul.mubr.f32.gmra.mrb[0].mxu0 %v6883
        %v6885 = vpop.f32.mrb[0].mxu0
        %v6886 = vadd.f32 %v6597, %v6885
        %v6887 = vpop.f32.mrb[0].mxu0
        %6888 = vmatprep.mubr.f32.mxu0 0.0
        %v6889 = vand.u32 %v6429, 4294901760
        %6890 = vmatmul.mubr.f32.gmra.mrb[0].mxu0 %v6889
        %v6891 = vpop.f32.mrb[0].mxu0
        %v6892 = vadd.f32 %v6607, %v6891
        %v6893 = vpop.f32.mrb[0].mxu0
        %6894 = vmatprep.mubr.f32.mxu0 0.0
        %v6895 = vand.u32 %v6430, 4294901760
        %6896 = vmatmul.mubr.f32.gmra.mrb[0].mxu0 %v6895
        %v6897 = vpop.f32.mrb[0].mxu0
        %v6898 = vadd.f32 %v6617, %v6897
        %v6899 = vpop.f32.mrb[0].mxu0
        %6900 = vmatprep.mubr.f32.mxu0 0.0
        %v6901 = vand.u32 %v6431, 4294901760
        %6902 = vmatmul.mubr.f32.gmra.mrb[0].mxu0 %v6901
        %v6903 = vpop.f32.mrb[0].mxu0
        %v6904 = vadd.f32 %v6627, %v6903
        %v6905 = vpop.f32.mrb[0].mxu0
        %6906 = vmatprep.mubr.f32.mxu0 0.0
        %v6907 = vand.u32 %v6432, 4294901760
        %6908 = vmatmul.mubr.f32.gmra.mrb[0].mxu0 %v6907
        %v6909 = vpop.f32.mrb[0].mxu0
        %v6910 = vadd.f32 %v6637, %v6909
        %v6911 = vpop.f32.mrb[0].mxu0
        %6912 = vmatprep.mubr.f32.mxu0 0.0
        %v6913 = vand.u32 %v6433, 4294901760
        %6914 = vmatmul.mubr.f32.gmra.mrb[0].mxu0 %v6913
        %v6915 = vpop.f32.mrb[0].mxu0
        %v6916 = vadd.f32 %v6647, %v6915
        %v6917 = vpop.f32.mrb[0].mxu0
        %6918 = vmatprep.mubr.f32.mxu0 0.0
        %v6919 = vand.u32 %v6434, 4294901760
        %6920 = vmatmul.mubr.f32.gmra.mrb[0].mxu0 %v6919
        %v6921 = vpop.f32.mrb[0].mxu0
        %v6922 = vadd.f32 %v6657, %v6921
        %v6923 = vpop.f32.mrb[0].mxu0
        %6924 = vmatprep.mubr.f32.mxu0 0.0
        %v6925 = vand.u32 %v6435, 4294901760
        %6926 = vmatmul.mubr.f32.gmra.mrb[0].mxu0 %v6925
        %v6927 = vpop.f32.mrb[0].mxu0
        %v6928 = vadd.f32 %v6667, %v6927
        %v6929 = vpop.f32.mrb[0].mxu0
        %6930 = vmatprep.mubr.f32.mxu0 0.0
        %v6931 = vand.u32 %v6436, 4294901760
        %6932 = vmatmul.mubr.f32.gmra.mrb[0].mxu0 %v6931
        %v6933 = vpop.f32.mrb[0].mxu0
        %v6934 = vadd.f32 %v6677, %v6933
        %v6935 = vpop.f32.mrb[0].mxu0
        %6936 = vmatprep.mubr.f32.mxu0 0.0
        %v6937 = vand.u32 %v6437, 4294901760
        %6938 = vmatmul.mubr.f32.gmra.mrb[0].mxu0 %v6937
        %v6939 = vpop.f32.mrb[0].mxu0
        %v6940 = vadd.f32 %v6687, %v6939
        %v6941 = vpop.f32.mrb[0].mxu0
        %6942 = vmatprep.mubr.f32.mxu0 0.0
        %v6943 = vand.u32 %v6438, 4294901760
        %6944 = vmatmul.mubr.f32.gmra.mrb[0].mxu0 %v6943
        %v6945 = vpop.f32.mrb[0].mxu0
        %v6946 = vadd.f32 %v6697, %v6945
        %v6947 = vpop.f32.mrb[0].mxu0
        %6948 = vmatprep.mubr.f32.mxu0 0.0
        %v6949 = vand.u32 %v6439, 4294901760
        %6950 = vmatmul.mubr.f32.gmra.mrb[0].mxu0 %v6949
        %v6951 = vpop.f32.mrb[0].mxu0
        %v6952 = vadd.f32 %v6707, %v6951
        %v6953 = vpop.f32.mrb[0].mxu0
        %6954 = vmatprep.mubr.f32.mxu0 0.0
        %v6955 = vand.u32 %v6440, 4294901760
        %6956 = vmatmul.mubr.f32.gmra.mrb[0].mxu0 %v6955
        %v6957 = vpop.f32.mrb[0].mxu0
        %v6958 = vadd.f32 %v6717, %v6957
        %v6959 = vpop.f32.mrb[0].mxu0
        %6960 = vdwg.mxu0
        %6961 = vmatprep.subr.mxu0 0.0
        %v6962 = vand.u32 %v6458, 4294901760
        %v6963 = vsub.f32 %v6458, %v6962
        %6964 = vmatpush1.msra.mxu0 %v6963
        %6965 = vmatprep.subr.mxu0 0.0
        %v6966 = vand.u32 %v6459, 4294901760
        %v6967 = vsub.f32 %v6459, %v6966
        %6968 = vmatpush1.msra.mxu0 %v6967
        %6969 = vmatprep.subr.mxu0 0.0
        %v6970 = vand.u32 %v6460, 4294901760
        %v6971 = vsub.f32 %v6460, %v6970
        %6972 = vmatpush1.msra.mxu0 %v6971
        %6973 = vmatprep.subr.mxu0 0.0
        %v6974 = vand.u32 %v6461, 4294901760
        %v6975 = vsub.f32 %v6461, %v6974
        %6976 = vmatpush1.msra.mxu0 %v6975
        %6977 = vmatprep.subr.mxu0 0.0
        %v6978 = vand.u32 %v6462, 4294901760
        %v6979 = vsub.f32 %v6462, %v6978
        %6980 = vmatpush1.msra.mxu0 %v6979
        %6981 = vmatprep.subr.mxu0 0.0
        %v6982 = vand.u32 %v6463, 4294901760
        %v6983 = vsub.f32 %v6463, %v6982
        %6984 = vmatpush1.msra.mxu0 %v6983
        %6985 = vmatprep.subr.mxu0 0.0
        %v6986 = vand.u32 %v6464, 4294901760
        %v6987 = vsub.f32 %v6464, %v6986
        %6988 = vmatpush1.msra.mxu0 %v6987
        %6989 = vmatprep.subr.mxu0 0.0
        %v6990 = vand.u32 %v6465, 4294901760
        %v6991 = vsub.f32 %v6465, %v6990
        %6992 = vmatpush1.msra.mxu0 %v6991
        %6993 = vmatprep.subr.mxu0 0.0
        %v6994 = vand.u32 %v6466, 4294901760
        %v6995 = vsub.f32 %v6466, %v6994
        %6996 = vmatpush1.msra.mxu0 %v6995
        %6997 = vmatprep.subr.mxu0 0.0
        %v6998 = vand.u32 %v6467, 4294901760
        %v6999 = vsub.f32 %v6467, %v6998
        %7000 = vmatpush1.msra.mxu0 %v6999
        %7001 = vmatprep.subr.mxu0 0.0
        %v7002 = vand.u32 %v6468, 4294901760
        %v7003 = vsub.f32 %v6468, %v7002
        %7004 = vmatpush1.msra.mxu0 %v7003
        %7005 = vmatprep.subr.mxu0 0.0
        %v7006 = vand.u32 %v6469, 4294901760
        %v7007 = vsub.f32 %v6469, %v7006
        %7008 = vmatpush1.msra.mxu0 %v7007
        %7009 = vmatprep.subr.mxu0 0.0
        %v7010 = vand.u32 %v6470, 4294901760
        %v7011 = vsub.f32 %v6470, %v7010
        %7012 = vmatpush1.msra.mxu0 %v7011
        %7013 = vmatprep.subr.mxu0 0.0
        %v7014 = vand.u32 %v6471, 4294901760
        %v7015 = vsub.f32 %v6471, %v7014
        %7016 = vmatpush1.msra.mxu0 %v7015
        %7017 = vmatprep.subr.mxu0 0.0
        %v7018 = vand.u32 %v6472, 4294901760
        %v7019 = vsub.f32 %v6472, %v7018
        %7020 = vmatpush1.msra.mxu0 %v7019
        %7021 = vmatprep.subr.mxu0 0.0
        %v7022 = vand.u32 %v6473, 4294901760
        %v7023 = vsub.f32 %v6473, %v7022
        %7024 = vmatpush1.msra.mxu0 %v7023
        %7025 = vmatprep.subr.mxu0 0.0
        %7026 = vmatpush1.msra.mxu0 0.0
        %7027 = vmatprep.subr.mxu0 0.0
        %7028 = vmatpush1.msra.mxu0 0.0
        %7029 = vmatprep.subr.mxu0 0.0
        %7030 = vmatpush1.msra.mxu0 0.0
        %7031 = vmatprep.subr.mxu0 0.0
        %7032 = vmatpush1.msra.mxu0 0.0
        %7033 = vmatprep.subr.mxu0 0.0
        %7034 = vmatpush1.msra.mxu0 0.0
        %7035 = vmatprep.subr.mxu0 0.0
        %7036 = vmatpush1.msra.mxu0 0.0
        %7037 = vmatprep.subr.mxu0 0.0
        %7038 = vmatpush1.msra.mxu0 0.0
        %7039 = vmatprep.subr.mxu0 0.0
        %7040 = vmatpush1.msra.mxu0 0.0
        %7041 = vmatprep.subr.mxu0 0.0
        %7042 = vmatpush1.msra.mxu0 0.0
        %7043 = vmatprep.subr.mxu0 0.0
        %7044 = vmatpush1.msra.mxu0 0.0
        %7045 = vmatprep.subr.mxu0 0.0
        %7046 = vmatpush1.msra.mxu0 0.0
        %7047 = vmatprep.subr.mxu0 0.0
        %7048 = vmatpush1.msra.mxu0 0.0
        %7049 = vmatprep.subr.mxu0 0.0
        %7050 = vmatpush1.msra.mxu0 0.0
        %7051 = vmatprep.subr.mxu0 0.0
        %7052 = vmatpush1.msra.mxu0 0.0
        %7053 = vmatprep.subr.mxu0 0.0
        %7054 = vmatpush1.msra.mxu0 0.0
        %7055 = vmatprep.subr.mxu0 0.0
        %7056 = vmatpush1.msra.mxu0 0.0
        %7057 = vmatprep.mubr.f32.mxu0 0.0
        %v7058 = vand.u32 %v6425, 4294901760
        %v7059 = vsub.f32 %v6425, %v7058
        %7060 = vmatmul.mubr.f32.gmra.mrb[0].mxu0 %v7059
        %v7061 = vpop.f32.mrb[0].mxu0
        %v7062 = vadd.f32 %v6868, %v7061
        %v7063 = vpop.f32.mrb[0].mxu0
        %7064 = vmatprep.mubr.f32.mxu0 0.0
        %v7065 = vand.u32 %v6426, 4294901760
        %v7066 = vsub.f32 %v6426, %v7065
        %7067 = vmatmul.mubr.f32.gmra.mrb[0].mxu0 %v7066
        %v7068 = vpop.f32.mrb[0].mxu0
        %v7069 = vadd.f32 %v6874, %v7068
        %v7070 = vpop.f32.mrb[0].mxu0
        %7071 = vmatprep.mubr.f32.mxu0 0.0
        %v7072 = vand.u32 %v6427, 4294901760
        %v7073 = vsub.f32 %v6427, %v7072
        %7074 = vmatmul.mubr.f32.gmra.mrb[0].mxu0 %v7073
        %v7075 = vpop.f32.mrb[0].mxu0
        %v7076 = vadd.f32 %v6880, %v7075
        %v7077 = vpop.f32.mrb[0].mxu0
        %7078 = vmatprep.mubr.f32.mxu0 0.0
        %v7079 = vand.u32 %v6428, 4294901760
        %v7080 = vsub.f32 %v6428, %v7079
        %7081 = vmatmul.mubr.f32.gmra.mrb[0].mxu0 %v7080
        %v7082 = vpop.f32.mrb[0].mxu0
        %v7083 = vadd.f32 %v6886, %v7082
        %v7084 = vpop.f32.mrb[0].mxu0
        %7085 = vmatprep.mubr.f32.mxu0 0.0
        %v7086 = vand.u32 %v6429, 4294901760
        %v7087 = vsub.f32 %v6429, %v7086
        %7088 = vmatmul.mubr.f32.gmra.mrb[0].mxu0 %v7087
        %v7089 = vpop.f32.mrb[0].mxu0
        %v7090 = vadd.f32 %v6892, %v7089
        %v7091 = vpop.f32.mrb[0].mxu0
        %7092 = vmatprep.mubr.f32.mxu0 0.0
        %v7093 = vand.u32 %v6430, 4294901760
        %v7094 = vsub.f32 %v6430, %v7093
        %7095 = vmatmul.mubr.f32.gmra.mrb[0].mxu0 %v7094
        %v7096 = vpop.f32.mrb[0].mxu0
        %v7097 = vadd.f32 %v6898, %v7096
        %v7098 = vpop.f32.mrb[0].mxu0
        %7099 = vmatprep.mubr.f32.mxu0 0.0
        %v7100 = vand.u32 %v6431, 4294901760
        %v7101 = vsub.f32 %v6431, %v7100
        %7102 = vmatmul.mubr.f32.gmra.mrb[0].mxu0 %v7101
        %v7103 = vpop.f32.mrb[0].mxu0
        %v7104 = vadd.f32 %v6904, %v7103
        %v7105 = vpop.f32.mrb[0].mxu0
        %7106 = vmatprep.mubr.f32.mxu0 0.0
        %v7107 = vand.u32 %v6432, 4294901760
        %v7108 = vsub.f32 %v6432, %v7107
        %7109 = vmatmul.mubr.f32.gmra.mrb[0].mxu0 %v7108
        %v7110 = vpop.f32.mrb[0].mxu0
        %v7111 = vadd.f32 %v6910, %v7110
        %v7112 = vpop.f32.mrb[0].mxu0
        %7113 = vmatprep.mubr.f32.mxu0 0.0
        %v7114 = vand.u32 %v6433, 4294901760
        %v7115 = vsub.f32 %v6433, %v7114
        %7116 = vmatmul.mubr.f32.gmra.mrb[0].mxu0 %v7115
        %v7117 = vpop.f32.mrb[0].mxu0
        %v7118 = vadd.f32 %v6916, %v7117
        %v7119 = vpop.f32.mrb[0].mxu0
        %7120 = vmatprep.mubr.f32.mxu0 0.0
        %v7121 = vand.u32 %v6434, 4294901760
        %v7122 = vsub.f32 %v6434, %v7121
        %7123 = vmatmul.mubr.f32.gmra.mrb[0].mxu0 %v7122
        %v7124 = vpop.f32.mrb[0].mxu0
        %v7125 = vadd.f32 %v6922, %v7124
        %v7126 = vpop.f32.mrb[0].mxu0
        %7127 = vmatprep.mubr.f32.mxu0 0.0
        %v7128 = vand.u32 %v6435, 4294901760
        %v7129 = vsub.f32 %v6435, %v7128
        %7130 = vmatmul.mubr.f32.gmra.mrb[0].mxu0 %v7129
        %v7131 = vpop.f32.mrb[0].mxu0
        %v7132 = vadd.f32 %v6928, %v7131
        %v7133 = vpop.f32.mrb[0].mxu0
        %7134 = vmatprep.mubr.f32.mxu0 0.0
        %v7135 = vand.u32 %v6436, 4294901760
        %v7136 = vsub.f32 %v6436, %v7135
        %7137 = vmatmul.mubr.f32.gmra.mrb[0].mxu0 %v7136
        %v7138 = vpop.f32.mrb[0].mxu0
        %v7139 = vadd.f32 %v6934, %v7138
        %v7140 = vpop.f32.mrb[0].mxu0
        %7141 = vmatprep.mubr.f32.mxu0 0.0
        %v7142 = vand.u32 %v6437, 4294901760
        %v7143 = vsub.f32 %v6437, %v7142
        %7144 = vmatmul.mubr.f32.gmra.mrb[0].mxu0 %v7143
        %v7145 = vpop.f32.mrb[0].mxu0
        %v7146 = vadd.f32 %v6940, %v7145
        %v7147 = vpop.f32.mrb[0].mxu0
        %7148 = vmatprep.mubr.f32.mxu0 0.0
        %v7149 = vand.u32 %v6438, 4294901760
        %v7150 = vsub.f32 %v6438, %v7149
        %7151 = vmatmul.mubr.f32.gmra.mrb[0].mxu0 %v7150
        %v7152 = vpop.f32.mrb[0].mxu0
        %v7153 = vadd.f32 %v6946, %v7152
        %v7154 = vpop.f32.mrb[0].mxu0
        %7155 = vmatprep.mubr.f32.mxu0 0.0
        %v7156 = vand.u32 %v6439, 4294901760
        %v7157 = vsub.f32 %v6439, %v7156
        %7158 = vmatmul.mubr.f32.gmra.mrb[0].mxu0 %v7157
        %v7159 = vpop.f32.mrb[0].mxu0
        %v7160 = vadd.f32 %v6952, %v7159
        %v7161 = vpop.f32.mrb[0].mxu0
        %7162 = vmatprep.mubr.f32.mxu0 0.0
        %v7163 = vand.u32 %v6440, 4294901760
        %v7164 = vsub.f32 %v6440, %v7163
        %7165 = vmatmul.mubr.f32.gmra.mrb[0].mxu0 %v7164
        %v7166 = vpop.f32.mrb[0].mxu0
        %v7167 = vadd.f32 %v6958, %v7166
        %v7168 = vpop.f32.mrb[0].mxu0
        %7169 = vdwg.mxu0
        %7170 = vmatprep.subr.mxu0 0.0
        %v7171 = vand.u32 %v6458, 4294901760
        %7172 = vmatpush1.msra.mxu0 %v7171
        %7173 = vmatprep.subr.mxu0 0.0
        %v7174 = vand.u32 %v6459, 4294901760
        %7175 = vmatpush1.msra.mxu0 %v7174
        %7176 = vmatprep.subr.mxu0 0.0
        %v7177 = vand.u32 %v6460, 4294901760
        %7178 = vmatpush1.msra.mxu0 %v7177
        %7179 = vmatprep.subr.mxu0 0.0
        %v7180 = vand.u32 %v6461, 4294901760
        %7181 = vmatpush1.msra.mxu0 %v7180
        %7182 = vmatprep.subr.mxu0 0.0
        %v7183 = vand.u32 %v6462, 4294901760
        %7184 = vmatpush1.msra.mxu0 %v7183
        %7185 = vmatprep.subr.mxu0 0.0
        %v7186 = vand.u32 %v6463, 4294901760
        %7187 = vmatpush1.msra.mxu0 %v7186
        %7188 = vmatprep.subr.mxu0 0.0
        %v7189 = vand.u32 %v6464, 4294901760
        %7190 = vmatpush1.msra.mxu0 %v7189
        %7191 = vmatprep.subr.mxu0 0.0
        %v7192 = vand.u32 %v6465, 4294901760
        %7193 = vmatpush1.msra.mxu0 %v7192
        %7194 = vmatprep.subr.mxu0 0.0
        %v7195 = vand.u32 %v6466, 4294901760
        %7196 = vmatpush1.msra.mxu0 %v7195
        %7197 = vmatprep.subr.mxu0 0.0
        %v7198 = vand.u32 %v6467, 4294901760
        %7199 = vmatpush1.msra.mxu0 %v7198
        %7200 = vmatprep.subr.mxu0 0.0
        %v7201 = vand.u32 %v6468, 4294901760
        %7202 = vmatpush1.msra.mxu0 %v7201
        %7203 = vmatprep.subr.mxu0 0.0
        %v7204 = vand.u32 %v6469, 4294901760
        %7205 = vmatpush1.msra.mxu0 %v7204
        %7206 = vmatprep.subr.mxu0 0.0
        %v7207 = vand.u32 %v6470, 4294901760
        %7208 = vmatpush1.msra.mxu0 %v7207
        %7209 = vmatprep.subr.mxu0 0.0
        %v7210 = vand.u32 %v6471, 4294901760
        %7211 = vmatpush1.msra.mxu0 %v7210
        %7212 = vmatprep.subr.mxu0 0.0
        %v7213 = vand.u32 %v6472, 4294901760
        %7214 = vmatpush1.msra.mxu0 %v7213
        %7215 = vmatprep.subr.mxu0 0.0
        %v7216 = vand.u32 %v6473, 4294901760
        %7217 = vmatpush1.msra.mxu0 %v7216
        %7218 = vmatprep.subr.mxu0 0.0
        %7219 = vmatpush1.msra.mxu0 0.0
        %7220 = vmatprep.subr.mxu0 0.0
        %7221 = vmatpush1.msra.mxu0 0.0
        %7222 = vmatprep.subr.mxu0 0.0
        %7223 = vmatpush1.msra.mxu0 0.0
        %7224 = vmatprep.subr.mxu0 0.0
        %7225 = vmatpush1.msra.mxu0 0.0
        %7226 = vmatprep.subr.mxu0 0.0
        %7227 = vmatpush1.msra.mxu0 0.0
        %7228 = vmatprep.subr.mxu0 0.0
        %7229 = vmatpush1.msra.mxu0 0.0
        %7230 = vmatprep.subr.mxu0 0.0
        %7231 = vmatpush1.msra.mxu0 0.0
        %7232 = vmatprep.subr.mxu0 0.0
        %7233 = vmatpush1.msra.mxu0 0.0
        %7234 = vmatprep.subr.mxu0 0.0
        %7235 = vmatpush1.msra.mxu0 0.0
        %7236 = vmatprep.subr.mxu0 0.0
        %7237 = vmatpush1.msra.mxu0 0.0
        %7238 = vmatprep.subr.mxu0 0.0
        %7239 = vmatpush1.msra.mxu0 0.0
        %7240 = vmatprep.subr.mxu0 0.0
        %7241 = vmatpush1.msra.mxu0 0.0
        %7242 = vmatprep.subr.mxu0 0.0
        %7243 = vmatpush1.msra.mxu0 0.0
        %7244 = vmatprep.subr.mxu0 0.0
        %7245 = vmatpush1.msra.mxu0 0.0
        %7246 = vmatprep.subr.mxu0 0.0
        %7247 = vmatpush1.msra.mxu0 0.0
        %7248 = vmatprep.subr.mxu0 0.0
        %7249 = vmatpush1.msra.mxu0 0.0
        %7250 = vmatprep.mubr.f32.mxu0 0.0
        %v7251 = vand.u32 %v6425, 4294901760
        %v7252 = vsub.f32 %v6425, %v7251
        %v7253 = vand.u32 %v7252, 4294901760
        %7254 = vmatmul.mubr.f32.gmra.mrb[0].mxu0 %v7253
        %v7255 = vpop.f32.mrb[0].mxu0
        %v7256 = vadd.f32 %v7062, %v7255
        %v7257 = vpop.f32.mrb[0].mxu0
        %7258 = vmatprep.mubr.f32.mxu0 0.0
        %v7259 = vand.u32 %v6426, 4294901760
        %v7260 = vsub.f32 %v6426, %v7259
        %v7261 = vand.u32 %v7260, 4294901760
        %7262 = vmatmul.mubr.f32.gmra.mrb[0].mxu0 %v7261
        %v7263 = vpop.f32.mrb[0].mxu0
        %v7264 = vadd.f32 %v7069, %v7263
        %v7265 = vpop.f32.mrb[0].mxu0
        %7266 = vmatprep.mubr.f32.mxu0 0.0
        %v7267 = vand.u32 %v6427, 4294901760
        %v7268 = vsub.f32 %v6427, %v7267
        %v7269 = vand.u32 %v7268, 4294901760
        %7270 = vmatmul.mubr.f32.gmra.mrb[0].mxu0 %v7269
        %v7271 = vpop.f32.mrb[0].mxu0
        %v7272 = vadd.f32 %v7076, %v7271
        %v7273 = vpop.f32.mrb[0].mxu0
        %7274 = vmatprep.mubr.f32.mxu0 0.0
        %v7275 = vand.u32 %v6428, 4294901760
        %v7276 = vsub.f32 %v6428, %v7275
        %v7277 = vand.u32 %v7276, 4294901760
        %7278 = vmatmul.mubr.f32.gmra.mrb[0].mxu0 %v7277
        %v7279 = vpop.f32.mrb[0].mxu0
        %v7280 = vadd.f32 %v7083, %v7279
        %v7281 = vpop.f32.mrb[0].mxu0
        %7282 = vmatprep.mubr.f32.mxu0 0.0
        %v7283 = vand.u32 %v6429, 4294901760
        %v7284 = vsub.f32 %v6429, %v7283
        %v7285 = vand.u32 %v7284, 4294901760
        %7286 = vmatmul.mubr.f32.gmra.mrb[0].mxu0 %v7285
        %v7287 = vpop.f32.mrb[0].mxu0
        %v7288 = vadd.f32 %v7090, %v7287
        %v7289 = vpop.f32.mrb[0].mxu0
        %7290 = vmatprep.mubr.f32.mxu0 0.0
        %v7291 = vand.u32 %v6430, 4294901760
        %v7292 = vsub.f32 %v6430, %v7291
        %v7293 = vand.u32 %v7292, 4294901760
        %7294 = vmatmul.mubr.f32.gmra.mrb[0].mxu0 %v7293
        %v7295 = vpop.f32.mrb[0].mxu0
        %v7296 = vadd.f32 %v7097, %v7295
        %v7297 = vpop.f32.mrb[0].mxu0
        %7298 = vmatprep.mubr.f32.mxu0 0.0
        %v7299 = vand.u32 %v6431, 4294901760
        %v7300 = vsub.f32 %v6431, %v7299
        %v7301 = vand.u32 %v7300, 4294901760
        %7302 = vmatmul.mubr.f32.gmra.mrb[0].mxu0 %v7301
        %v7303 = vpop.f32.mrb[0].mxu0
        %v7304 = vadd.f32 %v7104, %v7303
        %v7305 = vpop.f32.mrb[0].mxu0
        %7306 = vmatprep.mubr.f32.mxu0 0.0
        %v7307 = vand.u32 %v6432, 4294901760
        %v7308 = vsub.f32 %v6432, %v7307
        %v7309 = vand.u32 %v7308, 4294901760
        %7310 = vmatmul.mubr.f32.gmra.mrb[0].mxu0 %v7309
        %v7311 = vpop.f32.mrb[0].mxu0
        %v7312 = vadd.f32 %v7111, %v7311
        %v7313 = vpop.f32.mrb[0].mxu0
        %7314 = vmatprep.mubr.f32.mxu0 0.0
        %v7315 = vand.u32 %v6433, 4294901760
        %v7316 = vsub.f32 %v6433, %v7315
        %v7317 = vand.u32 %v7316, 4294901760
        %7318 = vmatmul.mubr.f32.gmra.mrb[0].mxu0 %v7317
        %v7319 = vpop.f32.mrb[0].mxu0
        %v7320 = vadd.f32 %v7118, %v7319
        %v7321 = vpop.f32.mrb[0].mxu0
        %7322 = vmatprep.mubr.f32.mxu0 0.0
        %v7323 = vand.u32 %v6434, 4294901760
        %v7324 = vsub.f32 %v6434, %v7323
        %v7325 = vand.u32 %v7324, 4294901760
        %7326 = vmatmul.mubr.f32.gmra.mrb[0].mxu0 %v7325
        %v7327 = vpop.f32.mrb[0].mxu0
        %v7328 = vadd.f32 %v7125, %v7327
        %v7329 = vpop.f32.mrb[0].mxu0
        %7330 = vmatprep.mubr.f32.mxu0 0.0
        %v7331 = vand.u32 %v6435, 4294901760
        %v7332 = vsub.f32 %v6435, %v7331
        %v7333 = vand.u32 %v7332, 4294901760
        %7334 = vmatmul.mubr.f32.gmra.mrb[0].mxu0 %v7333
        %v7335 = vpop.f32.mrb[0].mxu0
        %v7336 = vadd.f32 %v7132, %v7335
        %v7337 = vpop.f32.mrb[0].mxu0
        %7338 = vmatprep.mubr.f32.mxu0 0.0
        %v7339 = vand.u32 %v6436, 4294901760
        %v7340 = vsub.f32 %v6436, %v7339
        %v7341 = vand.u32 %v7340, 4294901760
        %7342 = vmatmul.mubr.f32.gmra.mrb[0].mxu0 %v7341
        %v7343 = vpop.f32.mrb[0].mxu0
        %v7344 = vadd.f32 %v7139, %v7343
        %v7345 = vpop.f32.mrb[0].mxu0
        %7346 = vmatprep.mubr.f32.mxu0 0.0
        %v7347 = vand.u32 %v6437, 4294901760
        %v7348 = vsub.f32 %v6437, %v7347
        %v7349 = vand.u32 %v7348, 4294901760
        %7350 = vmatmul.mubr.f32.gmra.mrb[0].mxu0 %v7349
        %v7351 = vpop.f32.mrb[0].mxu0
        %v7352 = vadd.f32 %v7146, %v7351
        %v7353 = vpop.f32.mrb[0].mxu0
        %7354 = vmatprep.mubr.f32.mxu0 0.0
        %v7355 = vand.u32 %v6438, 4294901760
        %v7356 = vsub.f32 %v6438, %v7355
        %v7357 = vand.u32 %v7356, 4294901760
        %7358 = vmatmul.mubr.f32.gmra.mrb[0].mxu0 %v7357
        %v7359 = vpop.f32.mrb[0].mxu0
        %v7360 = vadd.f32 %v7153, %v7359
        %v7361 = vpop.f32.mrb[0].mxu0
        %7362 = vmatprep.mubr.f32.mxu0 0.0
        %v7363 = vand.u32 %v6439, 4294901760
        %v7364 = vsub.f32 %v6439, %v7363
        %v7365 = vand.u32 %v7364, 4294901760
        %7366 = vmatmul.mubr.f32.gmra.mrb[0].mxu0 %v7365
        %v7367 = vpop.f32.mrb[0].mxu0
        %v7368 = vadd.f32 %v7160, %v7367
        %v7369 = vpop.f32.mrb[0].mxu0
        %7370 = vmatprep.mubr.f32.mxu0 0.0
        %v7371 = vand.u32 %v6440, 4294901760
        %v7372 = vsub.f32 %v6440, %v7371
        %v7373 = vand.u32 %v7372, 4294901760
        %7374 = vmatmul.mubr.f32.gmra.mrb[0].mxu0 %v7373
        %v7375 = vpop.f32.mrb[0].mxu0
        %v7376 = vadd.f32 %v7167, %v7375
        %v7377 = vpop.f32.mrb[0].mxu0
        %7378 = vdwg.mxu0
        %7379 = vmatprep.subr.mxu0 0.0
        %v7380 = vand.u32 %v6458, 4294901760
        %v7381 = vsub.f32 %v6458, %v7380
        %v7382 = vand.u32 %v7381, 4294901760
        %7383 = vmatpush1.msra.mxu0 %v7382
        %7384 = vmatprep.subr.mxu0 0.0
        %v7385 = vand.u32 %v6459, 4294901760
        %v7386 = vsub.f32 %v6459, %v7385
        %v7387 = vand.u32 %v7386, 4294901760
        %7388 = vmatpush1.msra.mxu0 %v7387
        %7389 = vmatprep.subr.mxu0 0.0
        %v7390 = vand.u32 %v6460, 4294901760
        %v7391 = vsub.f32 %v6460, %v7390
        %v7392 = vand.u32 %v7391, 4294901760
        %7393 = vmatpush1.msra.mxu0 %v7392
        %7394 = vmatprep.subr.mxu0 0.0
        %v7395 = vand.u32 %v6461, 4294901760
        %v7396 = vsub.f32 %v6461, %v7395
        %v7397 = vand.u32 %v7396, 4294901760
        %7398 = vmatpush1.msra.mxu0 %v7397
        %7399 = vmatprep.subr.mxu0 0.0
        %v7400 = vand.u32 %v6462, 4294901760
        %v7401 = vsub.f32 %v6462, %v7400
        %v7402 = vand.u32 %v7401, 4294901760
        %7403 = vmatpush1.msra.mxu0 %v7402
        %7404 = vmatprep.subr.mxu0 0.0
        %v7405 = vand.u32 %v6463, 4294901760
        %v7406 = vsub.f32 %v6463, %v7405
        %v7407 = vand.u32 %v7406, 4294901760
        %7408 = vmatpush1.msra.mxu0 %v7407
        %7409 = vmatprep.subr.mxu0 0.0
        %v7410 = vand.u32 %v6464, 4294901760
        %v7411 = vsub.f32 %v6464, %v7410
        %v7412 = vand.u32 %v7411, 4294901760
        %7413 = vmatpush1.msra.mxu0 %v7412
        %7414 = vmatprep.subr.mxu0 0.0
        %v7415 = vand.u32 %v6465, 4294901760
        %v7416 = vsub.f32 %v6465, %v7415
        %v7417 = vand.u32 %v7416, 4294901760
        %7418 = vmatpush1.msra.mxu0 %v7417
        %7419 = vmatprep.subr.mxu0 0.0
        %v7420 = vand.u32 %v6466, 4294901760
        %v7421 = vsub.f32 %v6466, %v7420
        %v7422 = vand.u32 %v7421, 4294901760
        %7423 = vmatpush1.msra.mxu0 %v7422
        %7424 = vmatprep.subr.mxu0 0.0
        %v7425 = vand.u32 %v6467, 4294901760
        %v7426 = vsub.f32 %v6467, %v7425
        %v7427 = vand.u32 %v7426, 4294901760
        %7428 = vmatpush1.msra.mxu0 %v7427
        %7429 = vmatprep.subr.mxu0 0.0
        %v7430 = vand.u32 %v6468, 4294901760
        %v7431 = vsub.f32 %v6468, %v7430
        %v7432 = vand.u32 %v7431, 4294901760
        %7433 = vmatpush1.msra.mxu0 %v7432
        %7434 = vmatprep.subr.mxu0 0.0
        %v7435 = vand.u32 %v6469, 4294901760
        %v7436 = vsub.f32 %v6469, %v7435
        %v7437 = vand.u32 %v7436, 4294901760
        %7438 = vmatpush1.msra.mxu0 %v7437
        %7439 = vmatprep.subr.mxu0 0.0
        %v7440 = vand.u32 %v6470, 4294901760
        %v7441 = vsub.f32 %v6470, %v7440
        %v7442 = vand.u32 %v7441, 4294901760
        %7443 = vmatpush1.msra.mxu0 %v7442
        %7444 = vmatprep.subr.mxu0 0.0
        %v7445 = vand.u32 %v6471, 4294901760
        %v7446 = vsub.f32 %v6471, %v7445
        %v7447 = vand.u32 %v7446, 4294901760
        %7448 = vmatpush1.msra.mxu0 %v7447
        %7449 = vmatprep.subr.mxu0 0.0
        %v7450 = vand.u32 %v6472, 4294901760
        %v7451 = vsub.f32 %v6472, %v7450
        %v7452 = vand.u32 %v7451, 4294901760
        %7453 = vmatpush1.msra.mxu0 %v7452
        %7454 = vmatprep.subr.mxu0 0.0
        %v7455 = vand.u32 %v6473, 4294901760
        %v7456 = vsub.f32 %v6473, %v7455
        %v7457 = vand.u32 %v7456, 4294901760
        %7458 = vmatpush1.msra.mxu0 %v7457
        %7459 = vmatprep.subr.mxu0 0.0
        %7460 = vmatpush1.msra.mxu0 0.0
        %7461 = vmatprep.subr.mxu0 0.0
        %7462 = vmatpush1.msra.mxu0 0.0
        %7463 = vmatprep.subr.mxu0 0.0
        %7464 = vmatpush1.msra.mxu0 0.0
        %7465 = vmatprep.subr.mxu0 0.0
        %7466 = vmatpush1.msra.mxu0 0.0
        %7467 = vmatprep.subr.mxu0 0.0
        %7468 = vmatpush1.msra.mxu0 0.0
        %7469 = vmatprep.subr.mxu0 0.0
        %7470 = vmatpush1.msra.mxu0 0.0
        %7471 = vmatprep.subr.mxu0 0.0
        %7472 = vmatpush1.msra.mxu0 0.0
        %7473 = vmatprep.subr.mxu0 0.0
        %7474 = vmatpush1.msra.mxu0 0.0
        %7475 = vmatprep.subr.mxu0 0.0
        %7476 = vmatpush1.msra.mxu0 0.0
        %7477 = vmatprep.subr.mxu0 0.0
        %7478 = vmatpush1.msra.mxu0 0.0
        %7479 = vmatprep.subr.mxu0 0.0
        %7480 = vmatpush1.msra.mxu0 0.0
        %7481 = vmatprep.subr.mxu0 0.0
        %7482 = vmatpush1.msra.mxu0 0.0
        %7483 = vmatprep.subr.mxu0 0.0
        %7484 = vmatpush1.msra.mxu0 0.0
        %7485 = vmatprep.subr.mxu0 0.0
        %7486 = vmatpush1.msra.mxu0 0.0
        %7487 = vmatprep.subr.mxu0 0.0
        %7488 = vmatpush1.msra.mxu0 0.0
        %7489 = vmatprep.subr.mxu0 0.0
        %7490 = vmatpush1.msra.mxu0 0.0
        %7491 = vmatprep.mubr.f32.mxu0 0.0
        %v7492 = vand.u32 %v6425, 4294901760
        %7493 = vmatmul.mubr.f32.gmra.mrb[0].mxu0 %v7492
        %v7494 = vpop.f32.mrb[0].mxu0
        %v7495 = vadd.f32 %v7256, %v7494
        %v7496 = vpop.f32.mrb[0].mxu0
        %7497 = vmatprep.mubr.f32.mxu0 0.0
        %v7498 = vand.u32 %v6426, 4294901760
        %7499 = vmatmul.mubr.f32.gmra.mrb[0].mxu0 %v7498
        %v7500 = vpop.f32.mrb[0].mxu0
        %v7501 = vadd.f32 %v7264, %v7500
        %v7502 = vpop.f32.mrb[0].mxu0
        %7503 = vmatprep.mubr.f32.mxu0 0.0
        %v7504 = vand.u32 %v6427, 4294901760
        %7505 = vmatmul.mubr.f32.gmra.mrb[0].mxu0 %v7504
        %v7506 = vpop.f32.mrb[0].mxu0
        %v7507 = vadd.f32 %v7272, %v7506
        %v7508 = vpop.f32.mrb[0].mxu0
        %7509 = vmatprep.mubr.f32.mxu0 0.0
        %v7510 = vand.u32 %v6428, 4294901760
        %7511 = vmatmul.mubr.f32.gmra.mrb[0].mxu0 %v7510
        %v7512 = vpop.f32.mrb[0].mxu0
        %v7513 = vadd.f32 %v7280, %v7512
        %v7514 = vpop.f32.mrb[0].mxu0
        %7515 = vmatprep.mubr.f32.mxu0 0.0
        %v7516 = vand.u32 %v6429, 4294901760
        %7517 = vmatmul.mubr.f32.gmra.mrb[0].mxu0 %v7516
        %v7518 = vpop.f32.mrb[0].mxu0
        %v7519 = vadd.f32 %v7288, %v7518
        %v7520 = vpop.f32.mrb[0].mxu0
        %7521 = vmatprep.mubr.f32.mxu0 0.0
        %v7522 = vand.u32 %v6430, 4294901760
        %7523 = vmatmul.mubr.f32.gmra.mrb[0].mxu0 %v7522
        %v7524 = vpop.f32.mrb[0].mxu0
        %v7525 = vadd.f32 %v7296, %v7524
        %v7526 = vpop.f32.mrb[0].mxu0
        %7527 = vmatprep.mubr.f32.mxu0 0.0
        %v7528 = vand.u32 %v6431, 4294901760
        %7529 = vmatmul.mubr.f32.gmra.mrb[0].mxu0 %v7528
        %v7530 = vpop.f32.mrb[0].mxu0
        %v7531 = vadd.f32 %v7304, %v7530
        %v7532 = vpop.f32.mrb[0].mxu0
        %7533 = vmatprep.mubr.f32.mxu0 0.0
        %v7534 = vand.u32 %v6432, 4294901760
        %7535 = vmatmul.mubr.f32.gmra.mrb[0].mxu0 %v7534
        %v7536 = vpop.f32.mrb[0].mxu0
        %v7537 = vadd.f32 %v7312, %v7536
        %v7538 = vpop.f32.mrb[0].mxu0
        %7539 = vmatprep.mubr.f32.mxu0 0.0
        %v7540 = vand.u32 %v6433, 4294901760
        %7541 = vmatmul.mubr.f32.gmra.mrb[0].mxu0 %v7540
        %v7542 = vpop.f32.mrb[0].mxu0
        %v7543 = vadd.f32 %v7320, %v7542
        %v7544 = vpop.f32.mrb[0].mxu0
        %7545 = vmatprep.mubr.f32.mxu0 0.0
        %v7546 = vand.u32 %v6434, 4294901760
        %7547 = vmatmul.mubr.f32.gmra.mrb[0].mxu0 %v7546
        %v7548 = vpop.f32.mrb[0].mxu0
        %v7549 = vadd.f32 %v7328, %v7548
        %v7550 = vpop.f32.mrb[0].mxu0
        %7551 = vmatprep.mubr.f32.mxu0 0.0
        %v7552 = vand.u32 %v6435, 4294901760
        %7553 = vmatmul.mubr.f32.gmra.mrb[0].mxu0 %v7552
        %v7554 = vpop.f32.mrb[0].mxu0
        %v7555 = vadd.f32 %v7336, %v7554
        %v7556 = vpop.f32.mrb[0].mxu0
        %7557 = vmatprep.mubr.f32.mxu0 0.0
        %v7558 = vand.u32 %v6436, 4294901760
        %7559 = vmatmul.mubr.f32.gmra.mrb[0].mxu0 %v7558
        %v7560 = vpop.f32.mrb[0].mxu0
        %v7561 = vadd.f32 %v7344, %v7560
        %v7562 = vpop.f32.mrb[0].mxu0
        %7563 = vmatprep.mubr.f32.mxu0 0.0
        %v7564 = vand.u32 %v6437, 4294901760
        %7565 = vmatmul.mubr.f32.gmra.mrb[0].mxu0 %v7564
        %v7566 = vpop.f32.mrb[0].mxu0
        %v7567 = vadd.f32 %v7352, %v7566
        %v7568 = vpop.f32.mrb[0].mxu0
        %7569 = vmatprep.mubr.f32.mxu0 0.0
        %v7570 = vand.u32 %v6438, 4294901760
        %7571 = vmatmul.mubr.f32.gmra.mrb[0].mxu0 %v7570
        %v7572 = vpop.f32.mrb[0].mxu0
        %v7573 = vadd.f32 %v7360, %v7572
        %v7574 = vpop.f32.mrb[0].mxu0
        %7575 = vmatprep.mubr.f32.mxu0 0.0
        %v7576 = vand.u32 %v6439, 4294901760
        %7577 = vmatmul.mubr.f32.gmra.mrb[0].mxu0 %v7576
        %v7578 = vpop.f32.mrb[0].mxu0
        %v7579 = vadd.f32 %v7368, %v7578
        %v7580 = vpop.f32.mrb[0].mxu0
        %7581 = vmatprep.mubr.f32.mxu0 0.0
        %v7582 = vand.u32 %v6440, 4294901760
        %7583 = vmatmul.mubr.f32.gmra.mrb[0].mxu0 %v7582
        %v7584 = vpop.f32.mrb[0].mxu0
        %v7585 = vadd.f32 %v7376, %v7584
        %v7586 = vpop.f32.mrb[0].mxu0
        %7587 = vdwg.mxu0
        %7588 = vmatprep.subr.mxu0 0.0
        %v7589 = vand.u32 %v6458, 4294901760
        %7590 = vmatpush1.msra.mxu0 %v7589
        %7591 = vmatprep.subr.mxu0 0.0
        %v7592 = vand.u32 %v6459, 4294901760
        %7593 = vmatpush1.msra.mxu0 %v7592
        %7594 = vmatprep.subr.mxu0 0.0
        %v7595 = vand.u32 %v6460, 4294901760
        %7596 = vmatpush1.msra.mxu0 %v7595
        %7597 = vmatprep.subr.mxu0 0.0
        %v7598 = vand.u32 %v6461, 4294901760
        %7599 = vmatpush1.msra.mxu0 %v7598
        %7600 = vmatprep.subr.mxu0 0.0
        %v7601 = vand.u32 %v6462, 4294901760
        %7602 = vmatpush1.msra.mxu0 %v7601
        %7603 = vmatprep.subr.mxu0 0.0
        %v7604 = vand.u32 %v6463, 4294901760
        %7605 = vmatpush1.msra.mxu0 %v7604
        %7606 = vmatprep.subr.mxu0 0.0
        %v7607 = vand.u32 %v6464, 4294901760
        %7608 = vmatpush1.msra.mxu0 %v7607
        %7609 = vmatprep.subr.mxu0 0.0
        %v7610 = vand.u32 %v6465, 4294901760
        %7611 = vmatpush1.msra.mxu0 %v7610
        %7612 = vmatprep.subr.mxu0 0.0
        %v7613 = vand.u32 %v6466, 4294901760
        %7614 = vmatpush1.msra.mxu0 %v7613
        %7615 = vmatprep.subr.mxu0 0.0
        %v7616 = vand.u32 %v6467, 4294901760
        %7617 = vmatpush1.msra.mxu0 %v7616
        %7618 = vmatprep.subr.mxu0 0.0
        %v7619 = vand.u32 %v6468, 4294901760
        %7620 = vmatpush1.msra.mxu0 %v7619
        %7621 = vmatprep.subr.mxu0 0.0
        %v7622 = vand.u32 %v6469, 4294901760
        %7623 = vmatpush1.msra.mxu0 %v7622
        %7624 = vmatprep.subr.mxu0 0.0
        %v7625 = vand.u32 %v6470, 4294901760
        %7626 = vmatpush1.msra.mxu0 %v7625
        %7627 = vmatprep.subr.mxu0 0.0
        %v7628 = vand.u32 %v6471, 4294901760
        %7629 = vmatpush1.msra.mxu0 %v7628
        %7630 = vmatprep.subr.mxu0 0.0
        %v7631 = vand.u32 %v6472, 4294901760
        %7632 = vmatpush1.msra.mxu0 %v7631
        %7633 = vmatprep.subr.mxu0 0.0
        %v7634 = vand.u32 %v6473, 4294901760
        %7635 = vmatpush1.msra.mxu0 %v7634
        %7636 = vmatprep.subr.mxu0 0.0
        %7637 = vmatpush1.msra.mxu0 0.0
        %7638 = vmatprep.subr.mxu0 0.0
        %7639 = vmatpush1.msra.mxu0 0.0
        %7640 = vmatprep.subr.mxu0 0.0
        %7641 = vmatpush1.msra.mxu0 0.0
        %7642 = vmatprep.subr.mxu0 0.0
        %7643 = vmatpush1.msra.mxu0 0.0
        %7644 = vmatprep.subr.mxu0 0.0
        %7645 = vmatpush1.msra.mxu0 0.0
        %7646 = vmatprep.subr.mxu0 0.0
        %7647 = vmatpush1.msra.mxu0 0.0
        %7648 = vmatprep.subr.mxu0 0.0
        %7649 = vmatpush1.msra.mxu0 0.0
        %7650 = vmatprep.subr.mxu0 0.0
        %7651 = vmatpush1.msra.mxu0 0.0
        %7652 = vmatprep.subr.mxu0 0.0
        %7653 = vmatpush1.msra.mxu0 0.0
        %7654 = vmatprep.subr.mxu0 0.0
        %7655 = vmatpush1.msra.mxu0 0.0
        %7656 = vmatprep.subr.mxu0 0.0
        %7657 = vmatpush1.msra.mxu0 0.0
        %7658 = vmatprep.subr.mxu0 0.0
        %7659 = vmatpush1.msra.mxu0 0.0
        %7660 = vmatprep.subr.mxu0 0.0
        %7661 = vmatpush1.msra.mxu0 0.0
        %7662 = vmatprep.subr.mxu0 0.0
        %7663 = vmatpush1.msra.mxu0 0.0
        %7664 = vmatprep.subr.mxu0 0.0
        %7665 = vmatpush1.msra.mxu0 0.0
        %7666 = vmatprep.subr.mxu0 0.0
        %7667 = vmatpush1.msra.mxu0 0.0
        %7668 = vmatprep.mubr.f32.mxu0 0.0
        %v7669 = vand.u32 %v6425, 4294901760
        %7670 = vmatmul.mubr.f32.gmra.mrb[0].mxu0 %v7669
        %v7671 = vpop.f32.mrb[0].mxu0
        %v7672 = vadd.f32 %v7495, %v7671
        %v7673 = vpop.f32.mrb[0].mxu0
        %7674 = vmatprep.mubr.f32.mxu0 0.0
        %v7675 = vand.u32 %v6426, 4294901760
        %7676 = vmatmul.mubr.f32.gmra.mrb[0].mxu0 %v7675
        %v7677 = vpop.f32.mrb[0].mxu0
        %v7678 = vadd.f32 %v7501, %v7677
        %v7679 = vpop.f32.mrb[0].mxu0
        %7680 = vmatprep.mubr.f32.mxu0 0.0
        %v7681 = vand.u32 %v6427, 4294901760
        %7682 = vmatmul.mubr.f32.gmra.mrb[0].mxu0 %v7681
        %v7683 = vpop.f32.mrb[0].mxu0
        %v7684 = vadd.f32 %v7507, %v7683
        %v7685 = vpop.f32.mrb[0].mxu0
        %7686 = vmatprep.mubr.f32.mxu0 0.0
        %v7687 = vand.u32 %v6428, 4294901760
        %7688 = vmatmul.mubr.f32.gmra.mrb[0].mxu0 %v7687
        %v7689 = vpop.f32.mrb[0].mxu0
        %v7690 = vadd.f32 %v7513, %v7689
        %v7691 = vpop.f32.mrb[0].mxu0
        %7692 = vmatprep.mubr.f32.mxu0 0.0
        %v7693 = vand.u32 %v6429, 4294901760
        %7694 = vmatmul.mubr.f32.gmra.mrb[0].mxu0 %v7693
        %v7695 = vpop.f32.mrb[0].mxu0
        %v7696 = vadd.f32 %v7519, %v7695
        %v7697 = vpop.f32.mrb[0].mxu0
        %7698 = vmatprep.mubr.f32.mxu0 0.0
        %v7699 = vand.u32 %v6430, 4294901760
        %7700 = vmatmul.mubr.f32.gmra.mrb[0].mxu0 %v7699
        %v7701 = vpop.f32.mrb[0].mxu0
        %v7702 = vadd.f32 %v7525, %v7701
        %v7703 = vpop.f32.mrb[0].mxu0
        %7704 = vmatprep.mubr.f32.mxu0 0.0
        %v7705 = vand.u32 %v6431, 4294901760
        %7706 = vmatmul.mubr.f32.gmra.mrb[0].mxu0 %v7705
        %v7707 = vpop.f32.mrb[0].mxu0
        %v7708 = vadd.f32 %v7531, %v7707
        %v7709 = vpop.f32.mrb[0].mxu0
        %7710 = vmatprep.mubr.f32.mxu0 0.0
        %v7711 = vand.u32 %v6432, 4294901760
        %7712 = vmatmul.mubr.f32.gmra.mrb[0].mxu0 %v7711
        %v7713 = vpop.f32.mrb[0].mxu0
        %v7714 = vadd.f32 %v7537, %v7713
        %v7715 = vpop.f32.mrb[0].mxu0
        %7716 = vmatprep.mubr.f32.mxu0 0.0
        %v7717 = vand.u32 %v6433, 4294901760
        %7718 = vmatmul.mubr.f32.gmra.mrb[0].mxu0 %v7717
        %v7719 = vpop.f32.mrb[0].mxu0
        %v7720 = vadd.f32 %v7543, %v7719
        %v7721 = vpop.f32.mrb[0].mxu0
        %7722 = vmatprep.mubr.f32.mxu0 0.0
        %v7723 = vand.u32 %v6434, 4294901760
        %7724 = vmatmul.mubr.f32.gmra.mrb[0].mxu0 %v7723
        %v7725 = vpop.f32.mrb[0].mxu0
        %v7726 = vadd.f32 %v7549, %v7725
        %v7727 = vpop.f32.mrb[0].mxu0
        %7728 = vmatprep.mubr.f32.mxu0 0.0
        %v7729 = vand.u32 %v6435, 4294901760
        %7730 = vmatmul.mubr.f32.gmra.mrb[0].mxu0 %v7729
        %v7731 = vpop.f32.mrb[0].mxu0
        %v7732 = vadd.f32 %v7555, %v7731
        %v7733 = vpop.f32.mrb[0].mxu0
        %7734 = vmatprep.mubr.f32.mxu0 0.0
        %v7735 = vand.u32 %v6436, 4294901760
        %7736 = vmatmul.mubr.f32.gmra.mrb[0].mxu0 %v7735
        %v7737 = vpop.f32.mrb[0].mxu0
        %v7738 = vadd.f32 %v7561, %v7737
        %v7739 = vpop.f32.mrb[0].mxu0
        %7740 = vmatprep.mubr.f32.mxu0 0.0
        %v7741 = vand.u32 %v6437, 4294901760
        %7742 = vmatmul.mubr.f32.gmra.mrb[0].mxu0 %v7741
        %v7743 = vpop.f32.mrb[0].mxu0
        %v7744 = vadd.f32 %v7567, %v7743
        %v7745 = vpop.f32.mrb[0].mxu0
        %7746 = vmatprep.mubr.f32.mxu0 0.0
        %v7747 = vand.u32 %v6438, 4294901760
        %7748 = vmatmul.mubr.f32.gmra.mrb[0].mxu0 %v7747
        %v7749 = vpop.f32.mrb[0].mxu0
        %v7750 = vadd.f32 %v7573, %v7749
        %v7751 = vpop.f32.mrb[0].mxu0
        %7752 = vmatprep.mubr.f32.mxu0 0.0
        %v7753 = vand.u32 %v6439, 4294901760
        %7754 = vmatmul.mubr.f32.gmra.mrb[0].mxu0 %v7753
        %v7755 = vpop.f32.mrb[0].mxu0
        %v7756 = vadd.f32 %v7579, %v7755
        %v7757 = vpop.f32.mrb[0].mxu0
        %7758 = vmatprep.mubr.f32.mxu0 0.0
        %v7759 = vand.u32 %v6440, 4294901760
        %7760 = vmatmul.mubr.f32.gmra.mrb[0].mxu0 %v7759
        %v7761 = vpop.f32.mrb[0].mxu0
        %v7762 = vadd.f32 %v7585, %v7761
        %v7763 = vpop.f32.mrb[0].mxu0
        %7764 = vdwg.mxu0
        %v7765 = vmax.f32 %v7672, 0.0
        %v7766 = vmax.f32 %v7678, 0.0
        %v7767 = vmax.f32 %v7684, 0.0
        %v7768 = vmax.f32 %v7690, 0.0
        %v7769 = vmax.f32 %v7696, 0.0
        %v7770 = vmax.f32 %v7702, 0.0
        %v7771 = vmax.f32 %v7708, 0.0
        %v7772 = vmax.f32 %v7714, 0.0
        %v7773 = vmax.f32 %v7720, 0.0
        %v7774 = vmax.f32 %v7726, 0.0
        %v7775 = vmax.f32 %v7732, 0.0
        %v7776 = vmax.f32 %v7738, 0.0
        %v7777 = vmax.f32 %v7744, 0.0
        %v7778 = vmax.f32 %v7750, 0.0
        %v7779 = vmax.f32 %v7756, 0.0
        %v7780 = vmax.f32 %v7762, 0.0
        %s7781 = scalar_lea.vmem [#allocation7], 512
        %v7782 = vld [vmem:[%s7781] sm:$0xff]
        %v7783 = vld [vmem:[%s7781 + $0x8] sm:$0xff]
        %v7784 = vld [vmem:[%s7781 + $0x10] sm:$0xff]
        %v7785 = vld [vmem:[%s7781 + $0x18] sm:$0xff]
        %v7786 = vld [vmem:[%s7781 + $0x20] sm:$0xff]
        %v7787 = vld [vmem:[%s7781 + $0x28] sm:$0xff]
        %v7788 = vld [vmem:[%s7781 + $0x30] sm:$0xff]
        %v7789 = vld [vmem:[%s7781 + $0x38] sm:$0xff]
        %v7790 = vld [vmem:[%s7781 + $0x40] sm:$0xff]
        %v7791 = vld [vmem:[%s7781 + $0x48] sm:$0xff]
        %v7792 = vld [vmem:[%s7781 + $0x50] sm:$0xff]
        %v7793 = vld [vmem:[%s7781 + $0x58] sm:$0xff]
        %v7794 = vld [vmem:[%s7781 + $0x60] sm:$0xff]
        %v7795 = vld [vmem:[%s7781 + $0x68] sm:$0xff]
        %v7796 = vld [vmem:[%s7781 + $0x70] sm:$0xff]
        %v7797 = vld [vmem:[%s7781 + $0x78] sm:$0xff]
        %v7798 = vld [vmem:[%s7781 + $0x80] sm:$0xff]
        %v7799 = vld [vmem:[%s7781 + $0x88] sm:$0xff]
        %v7800 = vld [vmem:[%s7781 + $0x90] sm:$0xff]
        %v7801 = vld [vmem:[%s7781 + $0x98] sm:$0xff]
        %v7802 = vld [vmem:[%s7781 + $0xa0] sm:$0xff]
        %v7803 = vld [vmem:[%s7781 + $0xa8] sm:$0xff]
        %v7804 = vld [vmem:[%s7781 + $0xb0] sm:$0xff]
        %v7805 = vld [vmem:[%s7781 + $0xb8] sm:$0xff]
        %v7806 = vld [vmem:[%s7781 + $0xc0] sm:$0xff]
        %v7807 = vld [vmem:[%s7781 + $0xc8] sm:$0xff]
        %v7808 = vld [vmem:[%s7781 + $0xd0] sm:$0xff]
        %v7809 = vld [vmem:[%s7781 + $0xd8] sm:$0xff]
        %v7810 = vld [vmem:[%s7781 + $0xe0] sm:$0xff]
        %v7811 = vld [vmem:[%s7781 + $0xe8] sm:$0xff]
        %v7812 = vld [vmem:[%s7781 + $0xf0] sm:$0xff]
        %v7813 = vld [vmem:[%s7781 + $0xf8] sm:$0xff]
        %s7814 = scalar_lea.vmem %s4, 2
        %v7815 = vld [vmem:[%s7814] ss:$4 sm:$0x3]
        %v7817 = vlaneseq
        %v7818 = vshrl.u32 %v7817, 7
        %v7819 = vsub.s32 0, %v7818
        %v7820 = vrot.slane %v7815, %v7819
        %v7821 = vlaneseq
        %v7822 = vshrl.u32 %v7821, 7
        %v7823 = vsub.s32 1, %v7822
        %v7824 = vrot.slane %v7815, %v7823
        %v7827 = vand.u32 %v7783, 4294901760
        %7828 = vmatprep.subr.mxu0 %v7827
        %v7829 = vand.u32 %v7782, 4294901760
        %7830 = vmatpush1.msra.mxu0 %v7829
        %v7831 = vand.u32 %v7785, 4294901760
        %7832 = vmatprep.subr.mxu0 %v7831
        %v7833 = vand.u32 %v7784, 4294901760
        %7834 = vmatpush1.msra.mxu0 %v7833
        %v7835 = vand.u32 %v7787, 4294901760
        %7836 = vmatprep.subr.mxu0 %v7835
        %v7837 = vand.u32 %v7786, 4294901760
        %7838 = vmatpush1.msra.mxu0 %v7837
        %v7839 = vand.u32 %v7789, 4294901760
        %7840 = vmatprep.subr.mxu0 %v7839
        %v7841 = vand.u32 %v7788, 4294901760
        %7842 = vmatpush1.msra.mxu0 %v7841
        %v7843 = vand.u32 %v7791, 4294901760
        %7844 = vmatprep.subr.mxu0 %v7843
        %v7845 = vand.u32 %v7790, 4294901760
        %7846 = vmatpush1.msra.mxu0 %v7845
        %v7847 = vand.u32 %v7793, 4294901760
        %7848 = vmatprep.subr.mxu0 %v7847
        %v7849 = vand.u32 %v7792, 4294901760
        %7850 = vmatpush1.msra.mxu0 %v7849
        %v7851 = vand.u32 %v7795, 4294901760
        %7852 = vmatprep.subr.mxu0 %v7851
        %v7853 = vand.u32 %v7794, 4294901760
        %7854 = vmatpush1.msra.mxu0 %v7853
        %v7855 = vand.u32 %v7797, 4294901760
        %7856 = vmatprep.subr.mxu0 %v7855
        %v7857 = vand.u32 %v7796, 4294901760
        %7858 = vmatpush1.msra.mxu0 %v7857
        %v7859 = vand.u32 %v7799, 4294901760
        %7860 = vmatprep.subr.mxu0 %v7859
        %v7861 = vand.u32 %v7798, 4294901760
        %7862 = vmatpush1.msra.mxu0 %v7861
        %v7863 = vand.u32 %v7801, 4294901760
        %7864 = vmatprep.subr.mxu0 %v7863
        %v7865 = vand.u32 %v7800, 4294901760
        %7866 = vmatpush1.msra.mxu0 %v7865
        %v7867 = vand.u32 %v7803, 4294901760
        %7868 = vmatprep.subr.mxu0 %v7867
        %v7869 = vand.u32 %v7802, 4294901760
        %7870 = vmatpush1.msra.mxu0 %v7869
        %v7871 = vand.u32 %v7805, 4294901760
        %7872 = vmatprep.subr.mxu0 %v7871
        %v7873 = vand.u32 %v7804, 4294901760
        %7874 = vmatpush1.msra.mxu0 %v7873
        %v7875 = vand.u32 %v7807, 4294901760
        %7876 = vmatprep.subr.mxu0 %v7875
        %v7877 = vand.u32 %v7806, 4294901760
        %7878 = vmatpush1.msra.mxu0 %v7877
        %v7879 = vand.u32 %v7809, 4294901760
        %7880 = vmatprep.subr.mxu0 %v7879
        %v7881 = vand.u32 %v7808, 4294901760
        %7882 = vmatpush1.msra.mxu0 %v7881
        %v7883 = vand.u32 %v7811, 4294901760
        %7884 = vmatprep.subr.mxu0 %v7883
        %v7885 = vand.u32 %v7810, 4294901760
        %7886 = vmatpush1.msra.mxu0 %v7885
        %v7887 = vand.u32 %v7813, 4294901760
        %7888 = vmatprep.subr.mxu0 %v7887
        %v7889 = vand.u32 %v7812, 4294901760
        %7890 = vmatpush1.msra.mxu0 %v7889
        %7891 = vmatprep.subr.mxu0 0.0
        %7892 = vmatpush1.msra.mxu0 0.0
        %7893 = vmatprep.subr.mxu0 0.0
        %7894 = vmatpush1.msra.mxu0 0.0
        %7895 = vmatprep.subr.mxu0 0.0
        %7896 = vmatpush1.msra.mxu0 0.0
        %7897 = vmatprep.subr.mxu0 0.0
        %7898 = vmatpush1.msra.mxu0 0.0
        %7899 = vmatprep.subr.mxu0 0.0
        %7900 = vmatpush1.msra.mxu0 0.0
        %7901 = vmatprep.subr.mxu0 0.0
        %7902 = vmatpush1.msra.mxu0 0.0
        %7903 = vmatprep.subr.mxu0 0.0
        %7904 = vmatpush1.msra.mxu0 0.0
        %7905 = vmatprep.subr.mxu0 0.0
        %7906 = vmatpush1.msra.mxu0 0.0
        %7907 = vmatprep.subr.mxu0 0.0
        %7908 = vmatpush1.msra.mxu0 0.0
        %7909 = vmatprep.subr.mxu0 0.0
        %7910 = vmatpush1.msra.mxu0 0.0
        %7911 = vmatprep.subr.mxu0 0.0
        %7912 = vmatpush1.msra.mxu0 0.0
        %7913 = vmatprep.subr.mxu0 0.0
        %7914 = vmatpush1.msra.mxu0 0.0
        %7915 = vmatprep.subr.mxu0 0.0
        %7916 = vmatpush1.msra.mxu0 0.0
        %7917 = vmatprep.subr.mxu0 0.0
        %7918 = vmatpush1.msra.mxu0 0.0
        %7919 = vmatprep.subr.mxu0 0.0
        %7920 = vmatpush1.msra.mxu0 0.0
        %7921 = vmatprep.subr.mxu0 0.0
        %7922 = vmatpush1.msra.mxu0 0.0
        %7923 = vmatprep.mubr.f32.mxu0 0.0
        %v7924 = vand.u32 %v7765, 4294901760
        %v7925 = vsub.f32 %v7765, %v7924
        %v7926 = vand.u32 %v7925, 4294901760
        %v7927 = vsub.f32 %v7925, %v7926
        %v7928 = vand.u32 %v7927, 4294901760
        %7929 = vmatmul.mubr.f32.gmra.mrb[0].mxu0 %v7928
        %v7930 = vpop.f32.mrb[0].mxu0
        %v7931 = vadd.f32 %v7820, %v7930
        %v7932 = vpop.f32.mrb[0].mxu0
        %v7933 = vadd.f32 %v7824, %v7932
        %7934 = vmatprep.mubr.f32.mxu0 0.0
        %v7935 = vand.u32 %v7766, 4294901760
        %v7936 = vsub.f32 %v7766, %v7935
        %v7937 = vand.u32 %v7936, 4294901760
        %v7938 = vsub.f32 %v7936, %v7937
        %v7939 = vand.u32 %v7938, 4294901760
        %7940 = vmatmul.mubr.f32.gmra.mrb[0].mxu0 %v7939
        %v7941 = vpop.f32.mrb[0].mxu0
        %v7942 = vadd.f32 %v7820, %v7941
        %v7943 = vpop.f32.mrb[0].mxu0
        %v7944 = vadd.f32 %v7824, %v7943
        %7945 = vmatprep.mubr.f32.mxu0 0.0
        %v7946 = vand.u32 %v7767, 4294901760
        %v7947 = vsub.f32 %v7767, %v7946
        %v7948 = vand.u32 %v7947, 4294901760
        %v7949 = vsub.f32 %v7947, %v7948
        %v7950 = vand.u32 %v7949, 4294901760
        %7951 = vmatmul.mubr.f32.gmra.mrb[0].mxu0 %v7950
        %v7952 = vpop.f32.mrb[0].mxu0
        %v7953 = vadd.f32 %v7820, %v7952
        %v7954 = vpop.f32.mrb[0].mxu0
        %v7955 = vadd.f32 %v7824, %v7954
        %7956 = vmatprep.mubr.f32.mxu0 0.0
        %v7957 = vand.u32 %v7768, 4294901760
        %v7958 = vsub.f32 %v7768, %v7957
        %v7959 = vand.u32 %v7958, 4294901760
        %v7960 = vsub.f32 %v7958, %v7959
        %v7961 = vand.u32 %v7960, 4294901760
        %7962 = vmatmul.mubr.f32.gmra.mrb[0].mxu0 %v7961
        %v7963 = vpop.f32.mrb[0].mxu0
        %v7964 = vadd.f32 %v7820, %v7963
        %v7965 = vpop.f32.mrb[0].mxu0
        %v7966 = vadd.f32 %v7824, %v7965
        %7967 = vmatprep.mubr.f32.mxu0 0.0
        %v7968 = vand.u32 %v7769, 4294901760
        %v7969 = vsub.f32 %v7769, %v7968
        %v7970 = vand.u32 %v7969, 4294901760
        %v7971 = vsub.f32 %v7969, %v7970
        %v7972 = vand.u32 %v7971, 4294901760
        %7973 = vmatmul.mubr.f32.gmra.mrb[0].mxu0 %v7972
        %v7974 = vpop.f32.mrb[0].mxu0
        %v7975 = vadd.f32 %v7820, %v7974
        %v7976 = vpop.f32.mrb[0].mxu0
        %v7977 = vadd.f32 %v7824, %v7976
        %7978 = vmatprep.mubr.f32.mxu0 0.0
        %v7979 = vand.u32 %v7770, 4294901760
        %v7980 = vsub.f32 %v7770, %v7979
        %v7981 = vand.u32 %v7980, 4294901760
        %v7982 = vsub.f32 %v7980, %v7981
        %v7983 = vand.u32 %v7982, 4294901760
        %7984 = vmatmul.mubr.f32.gmra.mrb[0].mxu0 %v7983
        %v7985 = vpop.f32.mrb[0].mxu0
        %v7986 = vadd.f32 %v7820, %v7985
        %v7987 = vpop.f32.mrb[0].mxu0
        %v7988 = vadd.f32 %v7824, %v7987
        %7989 = vmatprep.mubr.f32.mxu0 0.0
        %v7990 = vand.u32 %v7771, 4294901760
        %v7991 = vsub.f32 %v7771, %v7990
        %v7992 = vand.u32 %v7991, 4294901760
        %v7993 = vsub.f32 %v7991, %v7992
        %v7994 = vand.u32 %v7993, 4294901760
        %7995 = vmatmul.mubr.f32.gmra.mrb[0].mxu0 %v7994
        %v7996 = vpop.f32.mrb[0].mxu0
        %v7997 = vadd.f32 %v7820, %v7996
        %v7998 = vpop.f32.mrb[0].mxu0
        %v7999 = vadd.f32 %v7824, %v7998
        %8000 = vmatprep.mubr.f32.mxu0 0.0
        %v8001 = vand.u32 %v7772, 4294901760
        %v8002 = vsub.f32 %v7772, %v8001
        %v8003 = vand.u32 %v8002, 4294901760
        %v8004 = vsub.f32 %v8002, %v8003
        %v8005 = vand.u32 %v8004, 4294901760
        %8006 = vmatmul.mubr.f32.gmra.mrb[0].mxu0 %v8005
        %v8007 = vpop.f32.mrb[0].mxu0
        %v8008 = vadd.f32 %v7820, %v8007
        %v8009 = vpop.f32.mrb[0].mxu0
        %v8010 = vadd.f32 %v7824, %v8009
        %8011 = vmatprep.mubr.f32.mxu0 0.0
        %v8012 = vand.u32 %v7773, 4294901760
        %v8013 = vsub.f32 %v7773, %v8012
        %v8014 = vand.u32 %v8013, 4294901760
        %v8015 = vsub.f32 %v8013, %v8014
        %v8016 = vand.u32 %v8015, 4294901760
        %8017 = vmatmul.mubr.f32.gmra.mrb[0].mxu0 %v8016
        %v8018 = vpop.f32.mrb[0].mxu0
        %v8019 = vadd.f32 %v7820, %v8018
        %v8020 = vpop.f32.mrb[0].mxu0
        %v8021 = vadd.f32 %v7824, %v8020
        %8022 = vmatprep.mubr.f32.mxu0 0.0
        %v8023 = vand.u32 %v7774, 4294901760
        %v8024 = vsub.f32 %v7774, %v8023
        %v8025 = vand.u32 %v8024, 4294901760
        %v8026 = vsub.f32 %v8024, %v8025
        %v8027 = vand.u32 %v8026, 4294901760
        %8028 = vmatmul.mubr.f32.gmra.mrb[0].mxu0 %v8027
        %v8029 = vpop.f32.mrb[0].mxu0
        %v8030 = vadd.f32 %v7820, %v8029
        %v8031 = vpop.f32.mrb[0].mxu0
        %v8032 = vadd.f32 %v7824, %v8031
        %8033 = vmatprep.mubr.f32.mxu0 0.0
        %v8034 = vand.u32 %v7775, 4294901760
        %v8035 = vsub.f32 %v7775, %v8034
        %v8036 = vand.u32 %v8035, 4294901760
        %v8037 = vsub.f32 %v8035, %v8036
        %v8038 = vand.u32 %v8037, 4294901760
        %8039 = vmatmul.mubr.f32.gmra.mrb[0].mxu0 %v8038
        %v8040 = vpop.f32.mrb[0].mxu0
        %v8041 = vadd.f32 %v7820, %v8040
        %v8042 = vpop.f32.mrb[0].mxu0
        %v8043 = vadd.f32 %v7824, %v8042
        %8044 = vmatprep.mubr.f32.mxu0 0.0
        %v8045 = vand.u32 %v7776, 4294901760
        %v8046 = vsub.f32 %v7776, %v8045
        %v8047 = vand.u32 %v8046, 4294901760
        %v8048 = vsub.f32 %v8046, %v8047
        %v8049 = vand.u32 %v8048, 4294901760
        %8050 = vmatmul.mubr.f32.gmra.mrb[0].mxu0 %v8049
        %v8051 = vpop.f32.mrb[0].mxu0
        %v8052 = vadd.f32 %v7820, %v8051
        %v8053 = vpop.f32.mrb[0].mxu0
        %v8054 = vadd.f32 %v7824, %v8053
        %8055 = vmatprep.mubr.f32.mxu0 0.0
        %v8056 = vand.u32 %v7777, 4294901760
        %v8057 = vsub.f32 %v7777, %v8056
        %v8058 = vand.u32 %v8057, 4294901760
        %v8059 = vsub.f32 %v8057, %v8058
        %v8060 = vand.u32 %v8059, 4294901760
        %8061 = vmatmul.mubr.f32.gmra.mrb[0].mxu0 %v8060
        %v8062 = vpop.f32.mrb[0].mxu0
        %v8063 = vadd.f32 %v7820, %v8062
        %v8064 = vpop.f32.mrb[0].mxu0
        %v8065 = vadd.f32 %v7824, %v8064
        %8066 = vmatprep.mubr.f32.mxu0 0.0
        %v8067 = vand.u32 %v7778, 4294901760
        %v8068 = vsub.f32 %v7778, %v8067
        %v8069 = vand.u32 %v8068, 4294901760
        %v8070 = vsub.f32 %v8068, %v8069
        %v8071 = vand.u32 %v8070, 4294901760
        %8072 = vmatmul.mubr.f32.gmra.mrb[0].mxu0 %v8071
        %v8073 = vpop.f32.mrb[0].mxu0
        %v8074 = vadd.f32 %v7820, %v8073
        %v8075 = vpop.f32.mrb[0].mxu0
        %v8076 = vadd.f32 %v7824, %v8075
        %8077 = vmatprep.mubr.f32.mxu0 0.0
        %v8078 = vand.u32 %v7779, 4294901760
        %v8079 = vsub.f32 %v7779, %v8078
        %v8080 = vand.u32 %v8079, 4294901760
        %v8081 = vsub.f32 %v8079, %v8080
        %v8082 = vand.u32 %v8081, 4294901760
        %8083 = vmatmul.mubr.f32.gmra.mrb[0].mxu0 %v8082
        %v8084 = vpop.f32.mrb[0].mxu0
        %v8085 = vadd.f32 %v7820, %v8084
        %v8086 = vpop.f32.mrb[0].mxu0
        %v8087 = vadd.f32 %v7824, %v8086
        %8088 = vmatprep.mubr.f32.mxu0 0.0
        %v8089 = vand.u32 %v7780, 4294901760
        %v8090 = vsub.f32 %v7780, %v8089
        %v8091 = vand.u32 %v8090, 4294901760
        %v8092 = vsub.f32 %v8090, %v8091
        %v8093 = vand.u32 %v8092, 4294901760
        %8094 = vmatmul.mubr.f32.gmra.mrb[0].mxu0 %v8093
        %v8095 = vpop.f32.mrb[0].mxu0
        %v8096 = vadd.f32 %v7820, %v8095
        %v8097 = vpop.f32.mrb[0].mxu0
        %v8098 = vadd.f32 %v7824, %v8097
        %8099 = vdwg.mxu0
        %v8100 = vand.u32 %v7783, 4294901760
        %v8101 = vsub.f32 %v7783, %v8100
        %v8102 = vand.u32 %v8101, 4294901760
        %v8103 = vsub.f32 %v8101, %v8102
        %v8104 = vand.u32 %v8103, 4294901760
        %8105 = vmatprep.subr.mxu0 %v8104
        %v8106 = vand.u32 %v7782, 4294901760
        %v8107 = vsub.f32 %v7782, %v8106
        %v8108 = vand.u32 %v8107, 4294901760
        %v8109 = vsub.f32 %v8107, %v8108
        %v8110 = vand.u32 %v8109, 4294901760
        %8111 = vmatpush1.msra.mxu0 %v8110
        %v8112 = vand.u32 %v7785, 4294901760
        %v8113 = vsub.f32 %v7785, %v8112
        %v8114 = vand.u32 %v8113, 4294901760
        %v8115 = vsub.f32 %v8113, %v8114
        %v8116 = vand.u32 %v8115, 4294901760
        %8117 = vmatprep.subr.mxu0 %v8116
        %v8118 = vand.u32 %v7784, 4294901760
        %v8119 = vsub.f32 %v7784, %v8118
        %v8120 = vand.u32 %v8119, 4294901760
        %v8121 = vsub.f32 %v8119, %v8120
        %v8122 = vand.u32 %v8121, 4294901760
        %8123 = vmatpush1.msra.mxu0 %v8122
        %v8124 = vand.u32 %v7787, 4294901760
        %v8125 = vsub.f32 %v7787, %v8124
        %v8126 = vand.u32 %v8125, 4294901760
        %v8127 = vsub.f32 %v8125, %v8126
        %v8128 = vand.u32 %v8127, 4294901760
        %8129 = vmatprep.subr.mxu0 %v8128
        %v8130 = vand.u32 %v7786, 4294901760
        %v8131 = vsub.f32 %v7786, %v8130
        %v8132 = vand.u32 %v8131, 4294901760
        %v8133 = vsub.f32 %v8131, %v8132
        %v8134 = vand.u32 %v8133, 4294901760
        %8135 = vmatpush1.msra.mxu0 %v8134
        %v8136 = vand.u32 %v7789, 4294901760
        %v8137 = vsub.f32 %v7789, %v8136
        %v8138 = vand.u32 %v8137, 4294901760
        %v8139 = vsub.f32 %v8137, %v8138
        %v8140 = vand.u32 %v8139, 4294901760
        %8141 = vmatprep.subr.mxu0 %v8140
        %v8142 = vand.u32 %v7788, 4294901760
        %v8143 = vsub.f32 %v7788, %v8142
        %v8144 = vand.u32 %v8143, 4294901760
        %v8145 = vsub.f32 %v8143, %v8144
        %v8146 = vand.u32 %v8145, 4294901760
        %8147 = vmatpush1.msra.mxu0 %v8146
        %v8148 = vand.u32 %v7791, 4294901760
        %v8149 = vsub.f32 %v7791, %v8148
        %v8150 = vand.u32 %v8149, 4294901760
        %v8151 = vsub.f32 %v8149, %v8150
        %v8152 = vand.u32 %v8151, 4294901760
        %8153 = vmatprep.subr.mxu0 %v8152
        %v8154 = vand.u32 %v7790, 4294901760
        %v8155 = vsub.f32 %v7790, %v8154
        %v8156 = vand.u32 %v8155, 4294901760
        %v8157 = vsub.f32 %v8155, %v8156
        %v8158 = vand.u32 %v8157, 4294901760
        %8159 = vmatpush1.msra.mxu0 %v8158
        %v8160 = vand.u32 %v7793, 4294901760
        %v8161 = vsub.f32 %v7793, %v8160
        %v8162 = vand.u32 %v8161, 4294901760
        %v8163 = vsub.f32 %v8161, %v8162
        %v8164 = vand.u32 %v8163, 4294901760
        %8165 = vmatprep.subr.mxu0 %v8164
        %v8166 = vand.u32 %v7792, 4294901760
        %v8167 = vsub.f32 %v7792, %v8166
        %v8168 = vand.u32 %v8167, 4294901760
        %v8169 = vsub.f32 %v8167, %v8168
        %v8170 = vand.u32 %v8169, 4294901760
        %8171 = vmatpush1.msra.mxu0 %v8170
        %v8172 = vand.u32 %v7795, 4294901760
        %v8173 = vsub.f32 %v7795, %v8172
        %v8174 = vand.u32 %v8173, 4294901760
        %v8175 = vsub.f32 %v8173, %v8174
        %v8176 = vand.u32 %v8175, 4294901760
        %8177 = vmatprep.subr.mxu0 %v8176
        %v8178 = vand.u32 %v7794, 4294901760
        %v8179 = vsub.f32 %v7794, %v8178
        %v8180 = vand.u32 %v8179, 4294901760
        %v8181 = vsub.f32 %v8179, %v8180
        %v8182 = vand.u32 %v8181, 4294901760
        %8183 = vmatpush1.msra.mxu0 %v8182
        %v8184 = vand.u32 %v7797, 4294901760
        %v8185 = vsub.f32 %v7797, %v8184
        %v8186 = vand.u32 %v8185, 4294901760
        %v8187 = vsub.f32 %v8185, %v8186
        %v8188 = vand.u32 %v8187, 4294901760
        %8189 = vmatprep.subr.mxu0 %v8188
        %v8190 = vand.u32 %v7796, 4294901760
        %v8191 = vsub.f32 %v7796, %v8190
        %v8192 = vand.u32 %v8191, 4294901760
        %v8193 = vsub.f32 %v8191, %v8192
        %v8194 = vand.u32 %v8193, 4294901760
        %8195 = vmatpush1.msra.mxu0 %v8194
        %v8196 = vand.u32 %v7799, 4294901760
        %v8197 = vsub.f32 %v7799, %v8196
        %v8198 = vand.u32 %v8197, 4294901760
        %v8199 = vsub.f32 %v8197, %v8198
        %v8200 = vand.u32 %v8199, 4294901760
        %8201 = vmatprep.subr.mxu0 %v8200
        %v8202 = vand.u32 %v7798, 4294901760
        %v8203 = vsub.f32 %v7798, %v8202
        %v8204 = vand.u32 %v8203, 4294901760
        %v8205 = vsub.f32 %v8203, %v8204
        %v8206 = vand.u32 %v8205, 4294901760
        %8207 = vmatpush1.msra.mxu0 %v8206
        %v8208 = vand.u32 %v7801, 4294901760
        %v8209 = vsub.f32 %v7801, %v8208
        %v8210 = vand.u32 %v8209, 4294901760
        %v8211 = vsub.f32 %v8209, %v8210
        %v8212 = vand.u32 %v8211, 4294901760
        %8213 = vmatprep.subr.mxu0 %v8212
        %v8214 = vand.u32 %v7800, 4294901760
        %v8215 = vsub.f32 %v7800, %v8214
        %v8216 = vand.u32 %v8215, 4294901760
        %v8217 = vsub.f32 %v8215, %v8216
        %v8218 = vand.u32 %v8217, 4294901760
        %8219 = vmatpush1.msra.mxu0 %v8218
        %v8220 = vand.u32 %v7803, 4294901760
        %v8221 = vsub.f32 %v7803, %v8220
        %v8222 = vand.u32 %v8221, 4294901760
        %v8223 = vsub.f32 %v8221, %v8222
        %v8224 = vand.u32 %v8223, 4294901760
        %8225 = vmatprep.subr.mxu0 %v8224
        %v8226 = vand.u32 %v7802, 4294901760
        %v8227 = vsub.f32 %v7802, %v8226
        %v8228 = vand.u32 %v8227, 4294901760
        %v8229 = vsub.f32 %v8227, %v8228
        %v8230 = vand.u32 %v8229, 4294901760
        %8231 = vmatpush1.msra.mxu0 %v8230
        %v8232 = vand.u32 %v7805, 4294901760
        %v8233 = vsub.f32 %v7805, %v8232
        %v8234 = vand.u32 %v8233, 4294901760
        %v8235 = vsub.f32 %v8233, %v8234
        %v8236 = vand.u32 %v8235, 4294901760
        %8237 = vmatprep.subr.mxu0 %v8236
        %v8238 = vand.u32 %v7804, 4294901760
        %v8239 = vsub.f32 %v7804, %v8238
        %v8240 = vand.u32 %v8239, 4294901760
        %v8241 = vsub.f32 %v8239, %v8240
        %v8242 = vand.u32 %v8241, 4294901760
        %8243 = vmatpush1.msra.mxu0 %v8242
        %v8244 = vand.u32 %v7807, 4294901760
        %v8245 = vsub.f32 %v7807, %v8244
        %v8246 = vand.u32 %v8245, 4294901760
        %v8247 = vsub.f32 %v8245, %v8246
        %v8248 = vand.u32 %v8247, 4294901760
        %8249 = vmatprep.subr.mxu0 %v8248
        %v8250 = vand.u32 %v7806, 4294901760
        %v8251 = vsub.f32 %v7806, %v8250
        %v8252 = vand.u32 %v8251, 4294901760
        %v8253 = vsub.f32 %v8251, %v8252
        %v8254 = vand.u32 %v8253, 4294901760
        %8255 = vmatpush1.msra.mxu0 %v8254
        %v8256 = vand.u32 %v7809, 4294901760
        %v8257 = vsub.f32 %v7809, %v8256
        %v8258 = vand.u32 %v8257, 4294901760
        %v8259 = vsub.f32 %v8257, %v8258
        %v8260 = vand.u32 %v8259, 4294901760
        %8261 = vmatprep.subr.mxu0 %v8260
        %v8262 = vand.u32 %v7808, 4294901760
        %v8263 = vsub.f32 %v7808, %v8262
        %v8264 = vand.u32 %v8263, 4294901760
        %v8265 = vsub.f32 %v8263, %v8264
        %v8266 = vand.u32 %v8265, 4294901760
        %8267 = vmatpush1.msra.mxu0 %v8266
        %v8268 = vand.u32 %v7811, 4294901760
        %v8269 = vsub.f32 %v7811, %v8268
        %v8270 = vand.u32 %v8269, 4294901760
        %v8271 = vsub.f32 %v8269, %v8270
        %v8272 = vand.u32 %v8271, 4294901760
        %8273 = vmatprep.subr.mxu0 %v8272
        %v8274 = vand.u32 %v7810, 4294901760
        %v8275 = vsub.f32 %v7810, %v8274
        %v8276 = vand.u32 %v8275, 4294901760
        %v8277 = vsub.f32 %v8275, %v8276
        %v8278 = vand.u32 %v8277, 4294901760
        %8279 = vmatpush1.msra.mxu0 %v8278
        %v8280 = vand.u32 %v7813, 4294901760
        %v8281 = vsub.f32 %v7813, %v8280
        %v8282 = vand.u32 %v8281, 4294901760
        %v8283 = vsub.f32 %v8281, %v8282
        %v8284 = vand.u32 %v8283, 4294901760
        %8285 = vmatprep.subr.mxu0 %v8284
        %v8286 = vand.u32 %v7812, 4294901760
        %v8287 = vsub.f32 %v7812, %v8286
        %v8288 = vand.u32 %v8287, 4294901760
        %v8289 = vsub.f32 %v8287, %v8288
        %v8290 = vand.u32 %v8289, 4294901760
        %8291 = vmatpush1.msra.mxu0 %v8290
        %8292 = vmatprep.subr.mxu0 0.0
        %8293 = vmatpush1.msra.mxu0 0.0
        %8294 = vmatprep.subr.mxu0 0.0
        %8295 = vmatpush1.msra.mxu0 0.0
        %8296 = vmatprep.subr.mxu0 0.0
        %8297 = vmatpush1.msra.mxu0 0.0
        %8298 = vmatprep.subr.mxu0 0.0
        %8299 = vmatpush1.msra.mxu0 0.0
        %8300 = vmatprep.subr.mxu0 0.0
        %8301 = vmatpush1.msra.mxu0 0.0
        %8302 = vmatprep.subr.mxu0 0.0
        %8303 = vmatpush1.msra.mxu0 0.0
        %8304 = vmatprep.subr.mxu0 0.0
        %8305 = vmatpush1.msra.mxu0 0.0
        %8306 = vmatprep.subr.mxu0 0.0
        %8307 = vmatpush1.msra.mxu0 0.0
        %8308 = vmatprep.subr.mxu0 0.0
        %8309 = vmatpush1.msra.mxu0 0.0
        %8310 = vmatprep.subr.mxu0 0.0
        %8311 = vmatpush1.msra.mxu0 0.0
        %8312 = vmatprep.subr.mxu0 0.0
        %8313 = vmatpush1.msra.mxu0 0.0
        %8314 = vmatprep.subr.mxu0 0.0
        %8315 = vmatpush1.msra.mxu0 0.0
        %8316 = vmatprep.subr.mxu0 0.0
        %8317 = vmatpush1.msra.mxu0 0.0
        %8318 = vmatprep.subr.mxu0 0.0
        %8319 = vmatpush1.msra.mxu0 0.0
        %8320 = vmatprep.subr.mxu0 0.0
        %8321 = vmatpush1.msra.mxu0 0.0
        %8322 = vmatprep.subr.mxu0 0.0
        %8323 = vmatpush1.msra.mxu0 0.0
        %8324 = vmatprep.mubr.f32.mxu0 0.0
        %v8325 = vand.u32 %v7765, 4294901760
        %8326 = vmatmul.mubr.f32.gmra.mrb[0].mxu0 %v8325
        %v8327 = vpop.f32.mrb[0].mxu0
        %v8328 = vadd.f32 %v7931, %v8327
        %v8329 = vpop.f32.mrb[0].mxu0
        %v8330 = vadd.f32 %v7933, %v8329
        %8331 = vmatprep.mubr.f32.mxu0 0.0
        %v8332 = vand.u32 %v7766, 4294901760
        %8333 = vmatmul.mubr.f32.gmra.mrb[0].mxu0 %v8332
        %v8334 = vpop.f32.mrb[0].mxu0
        %v8335 = vadd.f32 %v7942, %v8334
        %v8336 = vpop.f32.mrb[0].mxu0
        %v8337 = vadd.f32 %v7944, %v8336
        %8338 = vmatprep.mubr.f32.mxu0 0.0
        %v8339 = vand.u32 %v7767, 4294901760
        %8340 = vmatmul.mubr.f32.gmra.mrb[0].mxu0 %v8339
        %v8341 = vpop.f32.mrb[0].mxu0
        %v8342 = vadd.f32 %v7953, %v8341
        %v8343 = vpop.f32.mrb[0].mxu0
        %v8344 = vadd.f32 %v7955, %v8343
        %8345 = vmatprep.mubr.f32.mxu0 0.0
        %v8346 = vand.u32 %v7768, 4294901760
        %8347 = vmatmul.mubr.f32.gmra.mrb[0].mxu0 %v8346
        %v8348 = vpop.f32.mrb[0].mxu0
        %v8349 = vadd.f32 %v7964, %v8348
        %v8350 = vpop.f32.mrb[0].mxu0
        %v8351 = vadd.f32 %v7966, %v8350
        %8352 = vmatprep.mubr.f32.mxu0 0.0
        %v8353 = vand.u32 %v7769, 4294901760
        %8354 = vmatmul.mubr.f32.gmra.mrb[0].mxu0 %v8353
        %v8355 = vpop.f32.mrb[0].mxu0
        %v8356 = vadd.f32 %v7975, %v8355
        %v8357 = vpop.f32.mrb[0].mxu0
        %v8358 = vadd.f32 %v7977, %v8357
        %8359 = vmatprep.mubr.f32.mxu0 0.0
        %v8360 = vand.u32 %v7770, 4294901760
        %8361 = vmatmul.mubr.f32.gmra.mrb[0].mxu0 %v8360
        %v8362 = vpop.f32.mrb[0].mxu0
        %v8363 = vadd.f32 %v7986, %v8362
        %v8364 = vpop.f32.mrb[0].mxu0
        %v8365 = vadd.f32 %v7988, %v8364
        %8366 = vmatprep.mubr.f32.mxu0 0.0
        %v8367 = vand.u32 %v7771, 4294901760
        %8368 = vmatmul.mubr.f32.gmra.mrb[0].mxu0 %v8367
        %v8369 = vpop.f32.mrb[0].mxu0
        %v8370 = vadd.f32 %v7997, %v8369
        %v8371 = vpop.f32.mrb[0].mxu0
        %v8372 = vadd.f32 %v7999, %v8371
        %8373 = vmatprep.mubr.f32.mxu0 0.0
        %v8374 = vand.u32 %v7772, 4294901760
        %8375 = vmatmul.mubr.f32.gmra.mrb[0].mxu0 %v8374
        %v8376 = vpop.f32.mrb[0].mxu0
        %v8377 = vadd.f32 %v8008, %v8376
        %v8378 = vpop.f32.mrb[0].mxu0
        %v8379 = vadd.f32 %v8010, %v8378
        %8380 = vmatprep.mubr.f32.mxu0 0.0
        %v8381 = vand.u32 %v7773, 4294901760
        %8382 = vmatmul.mubr.f32.gmra.mrb[0].mxu0 %v8381
        %v8383 = vpop.f32.mrb[0].mxu0
        %v8384 = vadd.f32 %v8019, %v8383
        %v8385 = vpop.f32.mrb[0].mxu0
        %v8386 = vadd.f32 %v8021, %v8385
        %8387 = vmatprep.mubr.f32.mxu0 0.0
        %v8388 = vand.u32 %v7774, 4294901760
        %8389 = vmatmul.mubr.f32.gmra.mrb[0].mxu0 %v8388
        %v8390 = vpop.f32.mrb[0].mxu0
        %v8391 = vadd.f32 %v8030, %v8390
        %v8392 = vpop.f32.mrb[0].mxu0
        %v8393 = vadd.f32 %v8032, %v8392
        %8394 = vmatprep.mubr.f32.mxu0 0.0
        %v8395 = vand.u32 %v7775, 4294901760
        %8396 = vmatmul.mubr.f32.gmra.mrb[0].mxu0 %v8395
        %v8397 = vpop.f32.mrb[0].mxu0
        %v8398 = vadd.f32 %v8041, %v8397
        %v8399 = vpop.f32.mrb[0].mxu0
        %v8400 = vadd.f32 %v8043, %v8399
        %8401 = vmatprep.mubr.f32.mxu0 0.0
        %v8402 = vand.u32 %v7776, 4294901760
        %8403 = vmatmul.mubr.f32.gmra.mrb[0].mxu0 %v8402
        %v8404 = vpop.f32.mrb[0].mxu0
        %v8405 = vadd.f32 %v8052, %v8404
        %v8406 = vpop.f32.mrb[0].mxu0
        %v8407 = vadd.f32 %v8054, %v8406
        %8408 = vmatprep.mubr.f32.mxu0 0.0
        %v8409 = vand.u32 %v7777, 4294901760
        %8410 = vmatmul.mubr.f32.gmra.mrb[0].mxu0 %v8409
        %v8411 = vpop.f32.mrb[0].mxu0
        %v8412 = vadd.f32 %v8063, %v8411
        %v8413 = vpop.f32.mrb[0].mxu0
        %v8414 = vadd.f32 %v8065, %v8413
        %8415 = vmatprep.mubr.f32.mxu0 0.0
        %v8416 = vand.u32 %v7778, 4294901760
        %8417 = vmatmul.mubr.f32.gmra.mrb[0].mxu0 %v8416
        %v8418 = vpop.f32.mrb[0].mxu0
        %v8419 = vadd.f32 %v8074, %v8418
        %v8420 = vpop.f32.mrb[0].mxu0
        %v8421 = vadd.f32 %v8076, %v8420
        %8422 = vmatprep.mubr.f32.mxu0 0.0
        %v8423 = vand.u32 %v7779, 4294901760
        %8424 = vmatmul.mubr.f32.gmra.mrb[0].mxu0 %v8423
        %v8425 = vpop.f32.mrb[0].mxu0
        %v8426 = vadd.f32 %v8085, %v8425
        %v8427 = vpop.f32.mrb[0].mxu0
        %v8428 = vadd.f32 %v8087, %v8427
        %8429 = vmatprep.mubr.f32.mxu0 0.0
        %v8430 = vand.u32 %v7780, 4294901760
        %8431 = vmatmul.mubr.f32.gmra.mrb[0].mxu0 %v8430
        %v8432 = vpop.f32.mrb[0].mxu0
        %v8433 = vadd.f32 %v8096, %v8432
        %v8434 = vpop.f32.mrb[0].mxu0
        %v8435 = vadd.f32 %v8098, %v8434
        %8436 = vdwg.mxu0
        %v8437 = vand.u32 %v7783, 4294901760
        %v8438 = vsub.f32 %v7783, %v8437
        %8439 = vmatprep.subr.mxu0 %v8438
        %v8440 = vand.u32 %v7782, 4294901760
        %v8441 = vsub.f32 %v7782, %v8440
        %8442 = vmatpush1.msra.mxu0 %v8441
        %v8443 = vand.u32 %v7785, 4294901760
        %v8444 = vsub.f32 %v7785, %v8443
        %8445 = vmatprep.subr.mxu0 %v8444
        %v8446 = vand.u32 %v7784, 4294901760
        %v8447 = vsub.f32 %v7784, %v8446
        %8448 = vmatpush1.msra.mxu0 %v8447
        %v8449 = vand.u32 %v7787, 4294901760
        %v8450 = vsub.f32 %v7787, %v8449
        %8451 = vmatprep.subr.mxu0 %v8450
        %v8452 = vand.u32 %v7786, 4294901760
        %v8453 = vsub.f32 %v7786, %v8452
        %8454 = vmatpush1.msra.mxu0 %v8453
        %v8455 = vand.u32 %v7789, 4294901760
        %v8456 = vsub.f32 %v7789, %v8455
        %8457 = vmatprep.subr.mxu0 %v8456
        %v8458 = vand.u32 %v7788, 4294901760
        %v8459 = vsub.f32 %v7788, %v8458
        %8460 = vmatpush1.msra.mxu0 %v8459
        %v8461 = vand.u32 %v7791, 4294901760
        %v8462 = vsub.f32 %v7791, %v8461
        %8463 = vmatprep.subr.mxu0 %v8462
        %v8464 = vand.u32 %v7790, 4294901760
        %v8465 = vsub.f32 %v7790, %v8464
        %8466 = vmatpush1.msra.mxu0 %v8465
        %v8467 = vand.u32 %v7793, 4294901760
        %v8468 = vsub.f32 %v7793, %v8467
        %8469 = vmatprep.subr.mxu0 %v8468
        %v8470 = vand.u32 %v7792, 4294901760
        %v8471 = vsub.f32 %v7792, %v8470
        %8472 = vmatpush1.msra.mxu0 %v8471
        %v8473 = vand.u32 %v7795, 4294901760
        %v8474 = vsub.f32 %v7795, %v8473
        %8475 = vmatprep.subr.mxu0 %v8474
        %v8476 = vand.u32 %v7794, 4294901760
        %v8477 = vsub.f32 %v7794, %v8476
        %8478 = vmatpush1.msra.mxu0 %v8477
        %v8479 = vand.u32 %v7797, 4294901760
        %v8480 = vsub.f32 %v7797, %v8479
        %8481 = vmatprep.subr.mxu0 %v8480
        %v8482 = vand.u32 %v7796, 4294901760
        %v8483 = vsub.f32 %v7796, %v8482
        %8484 = vmatpush1.msra.mxu0 %v8483
        %v8485 = vand.u32 %v7799, 4294901760
        %v8486 = vsub.f32 %v7799, %v8485
        %8487 = vmatprep.subr.mxu0 %v8486
        %v8488 = vand.u32 %v7798, 4294901760
        %v8489 = vsub.f32 %v7798, %v8488
        %8490 = vmatpush1.msra.mxu0 %v8489
        %v8491 = vand.u32 %v7801, 4294901760
        %v8492 = vsub.f32 %v7801, %v8491
        %8493 = vmatprep.subr.mxu0 %v8492
        %v8494 = vand.u32 %v7800, 4294901760
        %v8495 = vsub.f32 %v7800, %v8494
        %8496 = vmatpush1.msra.mxu0 %v8495
        %v8497 = vand.u32 %v7803, 4294901760
        %v8498 = vsub.f32 %v7803, %v8497
        %8499 = vmatprep.subr.mxu0 %v8498
        %v8500 = vand.u32 %v7802, 4294901760
        %v8501 = vsub.f32 %v7802, %v8500
        %8502 = vmatpush1.msra.mxu0 %v8501
        %v8503 = vand.u32 %v7805, 4294901760
        %v8504 = vsub.f32 %v7805, %v8503
        %8505 = vmatprep.subr.mxu0 %v8504
        %v8506 = vand.u32 %v7804, 4294901760
        %v8507 = vsub.f32 %v7804, %v8506
        %8508 = vmatpush1.msra.mxu0 %v8507
        %v8509 = vand.u32 %v7807, 4294901760
        %v8510 = vsub.f32 %v7807, %v8509
        %8511 = vmatprep.subr.mxu0 %v8510
        %v8512 = vand.u32 %v7806, 4294901760
        %v8513 = vsub.f32 %v7806, %v8512
        %8514 = vmatpush1.msra.mxu0 %v8513
        %v8515 = vand.u32 %v7809, 4294901760
        %v8516 = vsub.f32 %v7809, %v8515
        %8517 = vmatprep.subr.mxu0 %v8516
        %v8518 = vand.u32 %v7808, 4294901760
        %v8519 = vsub.f32 %v7808, %v8518
        %8520 = vmatpush1.msra.mxu0 %v8519
        %v8521 = vand.u32 %v7811, 4294901760
        %v8522 = vsub.f32 %v7811, %v8521
        %8523 = vmatprep.subr.mxu0 %v8522
        %v8524 = vand.u32 %v7810, 4294901760
        %v8525 = vsub.f32 %v7810, %v8524
        %8526 = vmatpush1.msra.mxu0 %v8525
        %v8527 = vand.u32 %v7813, 4294901760
        %v8528 = vsub.f32 %v7813, %v8527
        %8529 = vmatprep.subr.mxu0 %v8528
        %v8530 = vand.u32 %v7812, 4294901760
        %v8531 = vsub.f32 %v7812, %v8530
        %8532 = vmatpush1.msra.mxu0 %v8531
        %8533 = vmatprep.subr.mxu0 0.0
        %8534 = vmatpush1.msra.mxu0 0.0
        %8535 = vmatprep.subr.mxu0 0.0
        %8536 = vmatpush1.msra.mxu0 0.0
        %8537 = vmatprep.subr.mxu0 0.0
        %8538 = vmatpush1.msra.mxu0 0.0
        %8539 = vmatprep.subr.mxu0 0.0
        %8540 = vmatpush1.msra.mxu0 0.0
        %8541 = vmatprep.subr.mxu0 0.0
        %8542 = vmatpush1.msra.mxu0 0.0
        %8543 = vmatprep.subr.mxu0 0.0
        %8544 = vmatpush1.msra.mxu0 0.0
        %8545 = vmatprep.subr.mxu0 0.0
        %8546 = vmatpush1.msra.mxu0 0.0
        %8547 = vmatprep.subr.mxu0 0.0
        %8548 = vmatpush1.msra.mxu0 0.0
        %8549 = vmatprep.subr.mxu0 0.0
        %8550 = vmatpush1.msra.mxu0 0.0
        %8551 = vmatprep.subr.mxu0 0.0
        %8552 = vmatpush1.msra.mxu0 0.0
        %8553 = vmatprep.subr.mxu0 0.0
        %8554 = vmatpush1.msra.mxu0 0.0
        %8555 = vmatprep.subr.mxu0 0.0
        %8556 = vmatpush1.msra.mxu0 0.0
        %8557 = vmatprep.subr.mxu0 0.0
        %8558 = vmatpush1.msra.mxu0 0.0
        %8559 = vmatprep.subr.mxu0 0.0
        %8560 = vmatpush1.msra.mxu0 0.0
        %8561 = vmatprep.subr.mxu0 0.0
        %8562 = vmatpush1.msra.mxu0 0.0
        %8563 = vmatprep.subr.mxu0 0.0
        %8564 = vmatpush1.msra.mxu0 0.0
        %8565 = vmatprep.mubr.f32.mxu0 0.0
        %v8566 = vand.u32 %v7765, 4294901760
        %v8567 = vsub.f32 %v7765, %v8566
        %8568 = vmatmul.mubr.f32.gmra.mrb[0].mxu0 %v8567
        %v8569 = vpop.f32.mrb[0].mxu0
        %v8570 = vadd.f32 %v8328, %v8569
        %v8571 = vpop.f32.mrb[0].mxu0
        %v8572 = vadd.f32 %v8330, %v8571
        %8573 = vmatprep.mubr.f32.mxu0 0.0
        %v8574 = vand.u32 %v7766, 4294901760
        %v8575 = vsub.f32 %v7766, %v8574
        %8576 = vmatmul.mubr.f32.gmra.mrb[0].mxu0 %v8575
        %v8577 = vpop.f32.mrb[0].mxu0
        %v8578 = vadd.f32 %v8335, %v8577
        %v8579 = vpop.f32.mrb[0].mxu0
        %v8580 = vadd.f32 %v8337, %v8579
        %8581 = vmatprep.mubr.f32.mxu0 0.0
        %v8582 = vand.u32 %v7767, 4294901760
        %v8583 = vsub.f32 %v7767, %v8582
        %8584 = vmatmul.mubr.f32.gmra.mrb[0].mxu0 %v8583
        %v8585 = vpop.f32.mrb[0].mxu0
        %v8586 = vadd.f32 %v8342, %v8585
        %v8587 = vpop.f32.mrb[0].mxu0
        %v8588 = vadd.f32 %v8344, %v8587
        %8589 = vmatprep.mubr.f32.mxu0 0.0
        %v8590 = vand.u32 %v7768, 4294901760
        %v8591 = vsub.f32 %v7768, %v8590
        %8592 = vmatmul.mubr.f32.gmra.mrb[0].mxu0 %v8591
        %v8593 = vpop.f32.mrb[0].mxu0
        %v8594 = vadd.f32 %v8349, %v8593
        %v8595 = vpop.f32.mrb[0].mxu0
        %v8596 = vadd.f32 %v8351, %v8595
        %8597 = vmatprep.mubr.f32.mxu0 0.0
        %v8598 = vand.u32 %v7769, 4294901760
        %v8599 = vsub.f32 %v7769, %v8598
        %8600 = vmatmul.mubr.f32.gmra.mrb[0].mxu0 %v8599
        %v8601 = vpop.f32.mrb[0].mxu0
        %v8602 = vadd.f32 %v8356, %v8601
        %v8603 = vpop.f32.mrb[0].mxu0
        %v8604 = vadd.f32 %v8358, %v8603
        %8605 = vmatprep.mubr.f32.mxu0 0.0
        %v8606 = vand.u32 %v7770, 4294901760
        %v8607 = vsub.f32 %v7770, %v8606
        %8608 = vmatmul.mubr.f32.gmra.mrb[0].mxu0 %v8607
        %v8609 = vpop.f32.mrb[0].mxu0
        %v8610 = vadd.f32 %v8363, %v8609
        %v8611 = vpop.f32.mrb[0].mxu0
        %v8612 = vadd.f32 %v8365, %v8611
        %8613 = vmatprep.mubr.f32.mxu0 0.0
        %v8614 = vand.u32 %v7771, 4294901760
        %v8615 = vsub.f32 %v7771, %v8614
        %8616 = vmatmul.mubr.f32.gmra.mrb[0].mxu0 %v8615
        %v8617 = vpop.f32.mrb[0].mxu0
        %v8618 = vadd.f32 %v8370, %v8617
        %v8619 = vpop.f32.mrb[0].mxu0
        %v8620 = vadd.f32 %v8372, %v8619
        %8621 = vmatprep.mubr.f32.mxu0 0.0
        %v8622 = vand.u32 %v7772, 4294901760
        %v8623 = vsub.f32 %v7772, %v8622
        %8624 = vmatmul.mubr.f32.gmra.mrb[0].mxu0 %v8623
        %v8625 = vpop.f32.mrb[0].mxu0
        %v8626 = vadd.f32 %v8377, %v8625
        %v8627 = vpop.f32.mrb[0].mxu0
        %v8628 = vadd.f32 %v8379, %v8627
        %8629 = vmatprep.mubr.f32.mxu0 0.0
        %v8630 = vand.u32 %v7773, 4294901760
        %v8631 = vsub.f32 %v7773, %v8630
        %8632 = vmatmul.mubr.f32.gmra.mrb[0].mxu0 %v8631
        %v8633 = vpop.f32.mrb[0].mxu0
        %v8634 = vadd.f32 %v8384, %v8633
        %v8635 = vpop.f32.mrb[0].mxu0
        %v8636 = vadd.f32 %v8386, %v8635
        %8637 = vmatprep.mubr.f32.mxu0 0.0
        %v8638 = vand.u32 %v7774, 4294901760
        %v8639 = vsub.f32 %v7774, %v8638
        %8640 = vmatmul.mubr.f32.gmra.mrb[0].mxu0 %v8639
        %v8641 = vpop.f32.mrb[0].mxu0
        %v8642 = vadd.f32 %v8391, %v8641
        %v8643 = vpop.f32.mrb[0].mxu0
        %v8644 = vadd.f32 %v8393, %v8643
        %8645 = vmatprep.mubr.f32.mxu0 0.0
        %v8646 = vand.u32 %v7775, 4294901760
        %v8647 = vsub.f32 %v7775, %v8646
        %8648 = vmatmul.mubr.f32.gmra.mrb[0].mxu0 %v8647
        %v8649 = vpop.f32.mrb[0].mxu0
        %v8650 = vadd.f32 %v8398, %v8649
        %v8651 = vpop.f32.mrb[0].mxu0
        %v8652 = vadd.f32 %v8400, %v8651
        %8653 = vmatprep.mubr.f32.mxu0 0.0
        %v8654 = vand.u32 %v7776, 4294901760
        %v8655 = vsub.f32 %v7776, %v8654
        %8656 = vmatmul.mubr.f32.gmra.mrb[0].mxu0 %v8655
        %v8657 = vpop.f32.mrb[0].mxu0
        %v8658 = vadd.f32 %v8405, %v8657
        %v8659 = vpop.f32.mrb[0].mxu0
        %v8660 = vadd.f32 %v8407, %v8659
        %8661 = vmatprep.mubr.f32.mxu0 0.0
        %v8662 = vand.u32 %v7777, 4294901760
        %v8663 = vsub.f32 %v7777, %v8662
        %8664 = vmatmul.mubr.f32.gmra.mrb[0].mxu0 %v8663
        %v8665 = vpop.f32.mrb[0].mxu0
        %v8666 = vadd.f32 %v8412, %v8665
        %v8667 = vpop.f32.mrb[0].mxu0
        %v8668 = vadd.f32 %v8414, %v8667
        %8669 = vmatprep.mubr.f32.mxu0 0.0
        %v8670 = vand.u32 %v7778, 4294901760
        %v8671 = vsub.f32 %v7778, %v8670
        %8672 = vmatmul.mubr.f32.gmra.mrb[0].mxu0 %v8671
        %v8673 = vpop.f32.mrb[0].mxu0
        %v8674 = vadd.f32 %v8419, %v8673
        %v8675 = vpop.f32.mrb[0].mxu0
        %v8676 = vadd.f32 %v8421, %v8675
        %8677 = vmatprep.mubr.f32.mxu0 0.0
        %v8678 = vand.u32 %v7779, 4294901760
        %v8679 = vsub.f32 %v7779, %v8678
        %8680 = vmatmul.mubr.f32.gmra.mrb[0].mxu0 %v8679
        %v8681 = vpop.f32.mrb[0].mxu0
        %v8682 = vadd.f32 %v8426, %v8681
        %v8683 = vpop.f32.mrb[0].mxu0
        %v8684 = vadd.f32 %v8428, %v8683
        %8685 = vmatprep.mubr.f32.mxu0 0.0
        %v8686 = vand.u32 %v7780, 4294901760
        %v8687 = vsub.f32 %v7780, %v8686
        %8688 = vmatmul.mubr.f32.gmra.mrb[0].mxu0 %v8687
        %v8689 = vpop.f32.mrb[0].mxu0
        %v8690 = vadd.f32 %v8433, %v8689
        %v8691 = vpop.f32.mrb[0].mxu0
        %v8692 = vadd.f32 %v8435, %v8691
        %8693 = vdwg.mxu0
        %v8694 = vand.u32 %v7783, 4294901760
        %8695 = vmatprep.subr.mxu0 %v8694
        %v8696 = vand.u32 %v7782, 4294901760
        %8697 = vmatpush1.msra.mxu0 %v8696
        %v8698 = vand.u32 %v7785, 4294901760
        %8699 = vmatprep.subr.mxu0 %v8698
        %v8700 = vand.u32 %v7784, 4294901760
        %8701 = vmatpush1.msra.mxu0 %v8700
        %v8702 = vand.u32 %v7787, 4294901760
        %8703 = vmatprep.subr.mxu0 %v8702
        %v8704 = vand.u32 %v7786, 4294901760
        %8705 = vmatpush1.msra.mxu0 %v8704
        %v8706 = vand.u32 %v7789, 4294901760
        %8707 = vmatprep.subr.mxu0 %v8706
        %v8708 = vand.u32 %v7788, 4294901760
        %8709 = vmatpush1.msra.mxu0 %v8708
        %v8710 = vand.u32 %v7791, 4294901760
        %8711 = vmatprep.subr.mxu0 %v8710
        %v8712 = vand.u32 %v7790, 4294901760
        %8713 = vmatpush1.msra.mxu0 %v8712
        %v8714 = vand.u32 %v7793, 4294901760
        %8715 = vmatprep.subr.mxu0 %v8714
        %v8716 = vand.u32 %v7792, 4294901760
        %8717 = vmatpush1.msra.mxu0 %v8716
        %v8718 = vand.u32 %v7795, 4294901760
        %8719 = vmatprep.subr.mxu0 %v8718
        %v8720 = vand.u32 %v7794, 4294901760
        %8721 = vmatpush1.msra.mxu0 %v8720
        %v8722 = vand.u32 %v7797, 4294901760
        %8723 = vmatprep.subr.mxu0 %v8722
        %v8724 = vand.u32 %v7796, 4294901760
        %8725 = vmatpush1.msra.mxu0 %v8724
        %v8726 = vand.u32 %v7799, 4294901760
        %8727 = vmatprep.subr.mxu0 %v8726
        %v8728 = vand.u32 %v7798, 4294901760
        %8729 = vmatpush1.msra.mxu0 %v8728
        %v8730 = vand.u32 %v7801, 4294901760
        %8731 = vmatprep.subr.mxu0 %v8730
        %v8732 = vand.u32 %v7800, 4294901760
        %8733 = vmatpush1.msra.mxu0 %v8732
        %v8734 = vand.u32 %v7803, 4294901760
        %8735 = vmatprep.subr.mxu0 %v8734
        %v8736 = vand.u32 %v7802, 4294901760
        %8737 = vmatpush1.msra.mxu0 %v8736
        %v8738 = vand.u32 %v7805, 4294901760
        %8739 = vmatprep.subr.mxu0 %v8738
        %v8740 = vand.u32 %v7804, 4294901760
        %8741 = vmatpush1.msra.mxu0 %v8740
        %v8742 = vand.u32 %v7807, 4294901760
        %8743 = vmatprep.subr.mxu0 %v8742
        %v8744 = vand.u32 %v7806, 4294901760
        %8745 = vmatpush1.msra.mxu0 %v8744
        %v8746 = vand.u32 %v7809, 4294901760
        %8747 = vmatprep.subr.mxu0 %v8746
        %v8748 = vand.u32 %v7808, 4294901760
        %8749 = vmatpush1.msra.mxu0 %v8748
        %v8750 = vand.u32 %v7811, 4294901760
        %8751 = vmatprep.subr.mxu0 %v8750
        %v8752 = vand.u32 %v7810, 4294901760
        %8753 = vmatpush1.msra.mxu0 %v8752
        %v8754 = vand.u32 %v7813, 4294901760
        %8755 = vmatprep.subr.mxu0 %v8754
        %v8756 = vand.u32 %v7812, 4294901760
        %8757 = vmatpush1.msra.mxu0 %v8756
        %8758 = vmatprep.subr.mxu0 0.0
        %8759 = vmatpush1.msra.mxu0 0.0
        %8760 = vmatprep.subr.mxu0 0.0
        %8761 = vmatpush1.msra.mxu0 0.0
        %8762 = vmatprep.subr.mxu0 0.0
        %8763 = vmatpush1.msra.mxu0 0.0
        %8764 = vmatprep.subr.mxu0 0.0
        %8765 = vmatpush1.msra.mxu0 0.0
        %8766 = vmatprep.subr.mxu0 0.0
        %8767 = vmatpush1.msra.mxu0 0.0
        %8768 = vmatprep.subr.mxu0 0.0
        %8769 = vmatpush1.msra.mxu0 0.0
        %8770 = vmatprep.subr.mxu0 0.0
        %8771 = vmatpush1.msra.mxu0 0.0
        %8772 = vmatprep.subr.mxu0 0.0
        %8773 = vmatpush1.msra.mxu0 0.0
        %8774 = vmatprep.subr.mxu0 0.0
        %8775 = vmatpush1.msra.mxu0 0.0
        %8776 = vmatprep.subr.mxu0 0.0
        %8777 = vmatpush1.msra.mxu0 0.0
        %8778 = vmatprep.subr.mxu0 0.0
        %8779 = vmatpush1.msra.mxu0 0.0
        %8780 = vmatprep.subr.mxu0 0.0
        %8781 = vmatpush1.msra.mxu0 0.0
        %8782 = vmatprep.subr.mxu0 0.0
        %8783 = vmatpush1.msra.mxu0 0.0
        %8784 = vmatprep.subr.mxu0 0.0
        %8785 = vmatpush1.msra.mxu0 0.0
        %8786 = vmatprep.subr.mxu0 0.0
        %8787 = vmatpush1.msra.mxu0 0.0
        %8788 = vmatprep.subr.mxu0 0.0
        %8789 = vmatpush1.msra.mxu0 0.0
        %8790 = vmatprep.mubr.f32.mxu0 0.0
        %v8791 = vand.u32 %v7765, 4294901760
        %v8792 = vsub.f32 %v7765, %v8791
        %v8793 = vand.u32 %v8792, 4294901760
        %8794 = vmatmul.mubr.f32.gmra.mrb[0].mxu0 %v8793
        %v8795 = vpop.f32.mrb[0].mxu0
        %v8796 = vadd.f32 %v8570, %v8795
        %v8797 = vpop.f32.mrb[0].mxu0
        %v8798 = vadd.f32 %v8572, %v8797
        %8799 = vmatprep.mubr.f32.mxu0 0.0
        %v8800 = vand.u32 %v7766, 4294901760
        %v8801 = vsub.f32 %v7766, %v8800
        %v8802 = vand.u32 %v8801, 4294901760
        %8803 = vmatmul.mubr.f32.gmra.mrb[0].mxu0 %v8802
        %v8804 = vpop.f32.mrb[0].mxu0
        %v8805 = vadd.f32 %v8578, %v8804
        %v8806 = vpop.f32.mrb[0].mxu0
        %v8807 = vadd.f32 %v8580, %v8806
        %8808 = vmatprep.mubr.f32.mxu0 0.0
        %v8809 = vand.u32 %v7767, 4294901760
        %v8810 = vsub.f32 %v7767, %v8809
        %v8811 = vand.u32 %v8810, 4294901760
        %8812 = vmatmul.mubr.f32.gmra.mrb[0].mxu0 %v8811
        %v8813 = vpop.f32.mrb[0].mxu0
        %v8814 = vadd.f32 %v8586, %v8813
        %v8815 = vpop.f32.mrb[0].mxu0
        %v8816 = vadd.f32 %v8588, %v8815
        %8817 = vmatprep.mubr.f32.mxu0 0.0
        %v8818 = vand.u32 %v7768, 4294901760
        %v8819 = vsub.f32 %v7768, %v8818
        %v8820 = vand.u32 %v8819, 4294901760
        %8821 = vmatmul.mubr.f32.gmra.mrb[0].mxu0 %v8820
        %v8822 = vpop.f32.mrb[0].mxu0
        %v8823 = vadd.f32 %v8594, %v8822
        %v8824 = vpop.f32.mrb[0].mxu0
        %v8825 = vadd.f32 %v8596, %v8824
        %8826 = vmatprep.mubr.f32.mxu0 0.0
        %v8827 = vand.u32 %v7769, 4294901760
        %v8828 = vsub.f32 %v7769, %v8827
        %v8829 = vand.u32 %v8828, 4294901760
        %8830 = vmatmul.mubr.f32.gmra.mrb[0].mxu0 %v8829
        %v8831 = vpop.f32.mrb[0].mxu0
        %v8832 = vadd.f32 %v8602, %v8831
        %v8833 = vpop.f32.mrb[0].mxu0
        %v8834 = vadd.f32 %v8604, %v8833
        %8835 = vmatprep.mubr.f32.mxu0 0.0
        %v8836 = vand.u32 %v7770, 4294901760
        %v8837 = vsub.f32 %v7770, %v8836
        %v8838 = vand.u32 %v8837, 4294901760
        %8839 = vmatmul.mubr.f32.gmra.mrb[0].mxu0 %v8838
        %v8840 = vpop.f32.mrb[0].mxu0
        %v8841 = vadd.f32 %v8610, %v8840
        %v8842 = vpop.f32.mrb[0].mxu0
        %v8843 = vadd.f32 %v8612, %v8842
        %8844 = vmatprep.mubr.f32.mxu0 0.0
        %v8845 = vand.u32 %v7771, 4294901760
        %v8846 = vsub.f32 %v7771, %v8845
        %v8847 = vand.u32 %v8846, 4294901760
        %8848 = vmatmul.mubr.f32.gmra.mrb[0].mxu0 %v8847
        %v8849 = vpop.f32.mrb[0].mxu0
        %v8850 = vadd.f32 %v8618, %v8849
        %v8851 = vpop.f32.mrb[0].mxu0
        %v8852 = vadd.f32 %v8620, %v8851
        %8853 = vmatprep.mubr.f32.mxu0 0.0
        %v8854 = vand.u32 %v7772, 4294901760
        %v8855 = vsub.f32 %v7772, %v8854
        %v8856 = vand.u32 %v8855, 4294901760
        %8857 = vmatmul.mubr.f32.gmra.mrb[0].mxu0 %v8856
        %v8858 = vpop.f32.mrb[0].mxu0
        %v8859 = vadd.f32 %v8626, %v8858
        %v8860 = vpop.f32.mrb[0].mxu0
        %v8861 = vadd.f32 %v8628, %v8860
        %8862 = vmatprep.mubr.f32.mxu0 0.0
        %v8863 = vand.u32 %v7773, 4294901760
        %v8864 = vsub.f32 %v7773, %v8863
        %v8865 = vand.u32 %v8864, 4294901760
        %8866 = vmatmul.mubr.f32.gmra.mrb[0].mxu0 %v8865
        %v8867 = vpop.f32.mrb[0].mxu0
        %v8868 = vadd.f32 %v8634, %v8867
        %v8869 = vpop.f32.mrb[0].mxu0
        %v8870 = vadd.f32 %v8636, %v8869
        %8871 = vmatprep.mubr.f32.mxu0 0.0
        %v8872 = vand.u32 %v7774, 4294901760
        %v8873 = vsub.f32 %v7774, %v8872
        %v8874 = vand.u32 %v8873, 4294901760
        %8875 = vmatmul.mubr.f32.gmra.mrb[0].mxu0 %v8874
        %v8876 = vpop.f32.mrb[0].mxu0
        %v8877 = vadd.f32 %v8642, %v8876
        %v8878 = vpop.f32.mrb[0].mxu0
        %v8879 = vadd.f32 %v8644, %v8878
        %8880 = vmatprep.mubr.f32.mxu0 0.0
        %v8881 = vand.u32 %v7775, 4294901760
        %v8882 = vsub.f32 %v7775, %v8881
        %v8883 = vand.u32 %v8882, 4294901760
        %8884 = vmatmul.mubr.f32.gmra.mrb[0].mxu0 %v8883
        %v8885 = vpop.f32.mrb[0].mxu0
        %v8886 = vadd.f32 %v8650, %v8885
        %v8887 = vpop.f32.mrb[0].mxu0
        %v8888 = vadd.f32 %v8652, %v8887
        %8889 = vmatprep.mubr.f32.mxu0 0.0
        %v8890 = vand.u32 %v7776, 4294901760
        %v8891 = vsub.f32 %v7776, %v8890
        %v8892 = vand.u32 %v8891, 4294901760
        %8893 = vmatmul.mubr.f32.gmra.mrb[0].mxu0 %v8892
        %v8894 = vpop.f32.mrb[0].mxu0
        %v8895 = vadd.f32 %v8658, %v8894
        %v8896 = vpop.f32.mrb[0].mxu0
        %v8897 = vadd.f32 %v8660, %v8896
        %8898 = vmatprep.mubr.f32.mxu0 0.0
        %v8899 = vand.u32 %v7777, 4294901760
        %v8900 = vsub.f32 %v7777, %v8899
        %v8901 = vand.u32 %v8900, 4294901760
        %8902 = vmatmul.mubr.f32.gmra.mrb[0].mxu0 %v8901
        %v8903 = vpop.f32.mrb[0].mxu0
        %v8904 = vadd.f32 %v8666, %v8903
        %v8905 = vpop.f32.mrb[0].mxu0
        %v8906 = vadd.f32 %v8668, %v8905
        %8907 = vmatprep.mubr.f32.mxu0 0.0
        %v8908 = vand.u32 %v7778, 4294901760
        %v8909 = vsub.f32 %v7778, %v8908
        %v8910 = vand.u32 %v8909, 4294901760
        %8911 = vmatmul.mubr.f32.gmra.mrb[0].mxu0 %v8910
        %v8912 = vpop.f32.mrb[0].mxu0
        %v8913 = vadd.f32 %v8674, %v8912
        %v8914 = vpop.f32.mrb[0].mxu0
        %v8915 = vadd.f32 %v8676, %v8914
        %8916 = vmatprep.mubr.f32.mxu0 0.0
        %v8917 = vand.u32 %v7779, 4294901760
        %v8918 = vsub.f32 %v7779, %v8917
        %v8919 = vand.u32 %v8918, 4294901760
        %8920 = vmatmul.mubr.f32.gmra.mrb[0].mxu0 %v8919
        %v8921 = vpop.f32.mrb[0].mxu0
        %v8922 = vadd.f32 %v8682, %v8921
        %v8923 = vpop.f32.mrb[0].mxu0
        %v8924 = vadd.f32 %v8684, %v8923
        %8925 = vmatprep.mubr.f32.mxu0 0.0
        %v8926 = vand.u32 %v7780, 4294901760
        %v8927 = vsub.f32 %v7780, %v8926
        %v8928 = vand.u32 %v8927, 4294901760
        %8929 = vmatmul.mubr.f32.gmra.mrb[0].mxu0 %v8928
        %v8930 = vpop.f32.mrb[0].mxu0
        %v8931 = vadd.f32 %v8690, %v8930
        %v8932 = vpop.f32.mrb[0].mxu0
        %v8933 = vadd.f32 %v8692, %v8932
        %8934 = vdwg.mxu0
        %v8935 = vand.u32 %v7783, 4294901760
        %v8936 = vsub.f32 %v7783, %v8935
        %v8937 = vand.u32 %v8936, 4294901760
        %8938 = vmatprep.subr.mxu0 %v8937
        %v8939 = vand.u32 %v7782, 4294901760
        %v8940 = vsub.f32 %v7782, %v8939
        %v8941 = vand.u32 %v8940, 4294901760
        %8942 = vmatpush1.msra.mxu0 %v8941
        %v8943 = vand.u32 %v7785, 4294901760
        %v8944 = vsub.f32 %v7785, %v8943
        %v8945 = vand.u32 %v8944, 4294901760
        %8946 = vmatprep.subr.mxu0 %v8945
        %v8947 = vand.u32 %v7784, 4294901760
        %v8948 = vsub.f32 %v7784, %v8947
        %v8949 = vand.u32 %v8948, 4294901760
        %8950 = vmatpush1.msra.mxu0 %v8949
        %v8951 = vand.u32 %v7787, 4294901760
        %v8952 = vsub.f32 %v7787, %v8951
        %v8953 = vand.u32 %v8952, 4294901760
        %8954 = vmatprep.subr.mxu0 %v8953
        %v8955 = vand.u32 %v7786, 4294901760
        %v8956 = vsub.f32 %v7786, %v8955
        %v8957 = vand.u32 %v8956, 4294901760
        %8958 = vmatpush1.msra.mxu0 %v8957
        %v8959 = vand.u32 %v7789, 4294901760
        %v8960 = vsub.f32 %v7789, %v8959
        %v8961 = vand.u32 %v8960, 4294901760
        %8962 = vmatprep.subr.mxu0 %v8961
        %v8963 = vand.u32 %v7788, 4294901760
        %v8964 = vsub.f32 %v7788, %v8963
        %v8965 = vand.u32 %v8964, 4294901760
        %8966 = vmatpush1.msra.mxu0 %v8965
        %v8967 = vand.u32 %v7791, 4294901760
        %v8968 = vsub.f32 %v7791, %v8967
        %v8969 = vand.u32 %v8968, 4294901760
        %8970 = vmatprep.subr.mxu0 %v8969
        %v8971 = vand.u32 %v7790, 4294901760
        %v8972 = vsub.f32 %v7790, %v8971
        %v8973 = vand.u32 %v8972, 4294901760
        %8974 = vmatpush1.msra.mxu0 %v8973
        %v8975 = vand.u32 %v7793, 4294901760
        %v8976 = vsub.f32 %v7793, %v8975
        %v8977 = vand.u32 %v8976, 4294901760
        %8978 = vmatprep.subr.mxu0 %v8977
        %v8979 = vand.u32 %v7792, 4294901760
        %v8980 = vsub.f32 %v7792, %v8979
        %v8981 = vand.u32 %v8980, 4294901760
        %8982 = vmatpush1.msra.mxu0 %v8981
        %v8983 = vand.u32 %v7795, 4294901760
        %v8984 = vsub.f32 %v7795, %v8983
        %v8985 = vand.u32 %v8984, 4294901760
        %8986 = vmatprep.subr.mxu0 %v8985
        %v8987 = vand.u32 %v7794, 4294901760
        %v8988 = vsub.f32 %v7794, %v8987
        %v8989 = vand.u32 %v8988, 4294901760
        %8990 = vmatpush1.msra.mxu0 %v8989
        %v8991 = vand.u32 %v7797, 4294901760
        %v8992 = vsub.f32 %v7797, %v8991
        %v8993 = vand.u32 %v8992, 4294901760
        %8994 = vmatprep.subr.mxu0 %v8993
        %v8995 = vand.u32 %v7796, 4294901760
        %v8996 = vsub.f32 %v7796, %v8995
        %v8997 = vand.u32 %v8996, 4294901760
        %8998 = vmatpush1.msra.mxu0 %v8997
        %v8999 = vand.u32 %v7799, 4294901760
        %v9000 = vsub.f32 %v7799, %v8999
        %v9001 = vand.u32 %v9000, 4294901760
        %9002 = vmatprep.subr.mxu0 %v9001
        %v9003 = vand.u32 %v7798, 4294901760
        %v9004 = vsub.f32 %v7798, %v9003
        %v9005 = vand.u32 %v9004, 4294901760
        %9006 = vmatpush1.msra.mxu0 %v9005
        %v9007 = vand.u32 %v7801, 4294901760
        %v9008 = vsub.f32 %v7801, %v9007
        %v9009 = vand.u32 %v9008, 4294901760
        %9010 = vmatprep.subr.mxu0 %v9009
        %v9011 = vand.u32 %v7800, 4294901760
        %v9012 = vsub.f32 %v7800, %v9011
        %v9013 = vand.u32 %v9012, 4294901760
        %9014 = vmatpush1.msra.mxu0 %v9013
        %v9015 = vand.u32 %v7803, 4294901760
        %v9016 = vsub.f32 %v7803, %v9015
        %v9017 = vand.u32 %v9016, 4294901760
        %9018 = vmatprep.subr.mxu0 %v9017
        %v9019 = vand.u32 %v7802, 4294901760
        %v9020 = vsub.f32 %v7802, %v9019
        %v9021 = vand.u32 %v9020, 4294901760
        %9022 = vmatpush1.msra.mxu0 %v9021
        %v9023 = vand.u32 %v7805, 4294901760
        %v9024 = vsub.f32 %v7805, %v9023
        %v9025 = vand.u32 %v9024, 4294901760
        %9026 = vmatprep.subr.mxu0 %v9025
        %v9027 = vand.u32 %v7804, 4294901760
        %v9028 = vsub.f32 %v7804, %v9027
        %v9029 = vand.u32 %v9028, 4294901760
        %9030 = vmatpush1.msra.mxu0 %v9029
        %v9031 = vand.u32 %v7807, 4294901760
        %v9032 = vsub.f32 %v7807, %v9031
        %v9033 = vand.u32 %v9032, 4294901760
        %9034 = vmatprep.subr.mxu0 %v9033
        %v9035 = vand.u32 %v7806, 4294901760
        %v9036 = vsub.f32 %v7806, %v9035
        %v9037 = vand.u32 %v9036, 4294901760
        %9038 = vmatpush1.msra.mxu0 %v9037
        %v9039 = vand.u32 %v7809, 4294901760
        %v9040 = vsub.f32 %v7809, %v9039
        %v9041 = vand.u32 %v9040, 4294901760
        %9042 = vmatprep.subr.mxu0 %v9041
        %v9043 = vand.u32 %v7808, 4294901760
        %v9044 = vsub.f32 %v7808, %v9043
        %v9045 = vand.u32 %v9044, 4294901760
        %9046 = vmatpush1.msra.mxu0 %v9045
        %v9047 = vand.u32 %v7811, 4294901760
        %v9048 = vsub.f32 %v7811, %v9047
        %v9049 = vand.u32 %v9048, 4294901760
        %9050 = vmatprep.subr.mxu0 %v9049
        %v9051 = vand.u32 %v7810, 4294901760
        %v9052 = vsub.f32 %v7810, %v9051
        %v9053 = vand.u32 %v9052, 4294901760
        %9054 = vmatpush1.msra.mxu0 %v9053
        %v9055 = vand.u32 %v7813, 4294901760
        %v9056 = vsub.f32 %v7813, %v9055
        %v9057 = vand.u32 %v9056, 4294901760
        %9058 = vmatprep.subr.mxu0 %v9057
        %v9059 = vand.u32 %v7812, 4294901760
        %v9060 = vsub.f32 %v7812, %v9059
        %v9061 = vand.u32 %v9060, 4294901760
        %9062 = vmatpush1.msra.mxu0 %v9061
        %9063 = vmatprep.subr.mxu0 0.0
        %9064 = vmatpush1.msra.mxu0 0.0
        %9065 = vmatprep.subr.mxu0 0.0
        %9066 = vmatpush1.msra.mxu0 0.0
        %9067 = vmatprep.subr.mxu0 0.0
        %9068 = vmatpush1.msra.mxu0 0.0
        %9069 = vmatprep.subr.mxu0 0.0
        %9070 = vmatpush1.msra.mxu0 0.0
        %9071 = vmatprep.subr.mxu0 0.0
        %9072 = vmatpush1.msra.mxu0 0.0
        %9073 = vmatprep.subr.mxu0 0.0
        %9074 = vmatpush1.msra.mxu0 0.0
        %9075 = vmatprep.subr.mxu0 0.0
        %9076 = vmatpush1.msra.mxu0 0.0
        %9077 = vmatprep.subr.mxu0 0.0
        %9078 = vmatpush1.msra.mxu0 0.0
        %9079 = vmatprep.subr.mxu0 0.0
        %9080 = vmatpush1.msra.mxu0 0.0
        %9081 = vmatprep.subr.mxu0 0.0
        %9082 = vmatpush1.msra.mxu0 0.0
        %9083 = vmatprep.subr.mxu0 0.0
        %9084 = vmatpush1.msra.mxu0 0.0
        %9085 = vmatprep.subr.mxu0 0.0
        %9086 = vmatpush1.msra.mxu0 0.0
        %9087 = vmatprep.subr.mxu0 0.0
        %9088 = vmatpush1.msra.mxu0 0.0
        %9089 = vmatprep.subr.mxu0 0.0
        %9090 = vmatpush1.msra.mxu0 0.0
        %9091 = vmatprep.subr.mxu0 0.0
        %9092 = vmatpush1.msra.mxu0 0.0
        %9093 = vmatprep.subr.mxu0 0.0
        %9094 = vmatpush1.msra.mxu0 0.0
        %9095 = vmatprep.mubr.f32.mxu0 0.0
        %v9096 = vand.u32 %v7765, 4294901760
        %9097 = vmatmul.mubr.f32.gmra.mrb[0].mxu0 %v9096
        %v9098 = vpop.f32.mrb[0].mxu0
        %v9099 = vadd.f32 %v8796, %v9098
        %v9100 = vpop.f32.mrb[0].mxu0
        %v9101 = vadd.f32 %v8798, %v9100
        %9102 = vmatprep.mubr.f32.mxu0 0.0
        %v9103 = vand.u32 %v7766, 4294901760
        %9104 = vmatmul.mubr.f32.gmra.mrb[0].mxu0 %v9103
        %v9105 = vpop.f32.mrb[0].mxu0
        %v9106 = vadd.f32 %v8805, %v9105
        %v9107 = vpop.f32.mrb[0].mxu0
        %v9108 = vadd.f32 %v8807, %v9107
        %9109 = vmatprep.mubr.f32.mxu0 0.0
        %v9110 = vand.u32 %v7767, 4294901760
        %9111 = vmatmul.mubr.f32.gmra.mrb[0].mxu0 %v9110
        %v9112 = vpop.f32.mrb[0].mxu0
        %v9113 = vadd.f32 %v8814, %v9112
        %v9114 = vpop.f32.mrb[0].mxu0
        %v9115 = vadd.f32 %v8816, %v9114
        %9116 = vmatprep.mubr.f32.mxu0 0.0
        %v9117 = vand.u32 %v7768, 4294901760
        %9118 = vmatmul.mubr.f32.gmra.mrb[0].mxu0 %v9117
        %v9119 = vpop.f32.mrb[0].mxu0
        %v9120 = vadd.f32 %v8823, %v9119
        %v9121 = vpop.f32.mrb[0].mxu0
        %v9122 = vadd.f32 %v8825, %v9121
        %9123 = vmatprep.mubr.f32.mxu0 0.0
        %v9124 = vand.u32 %v7769, 4294901760
        %9125 = vmatmul.mubr.f32.gmra.mrb[0].mxu0 %v9124
        %v9126 = vpop.f32.mrb[0].mxu0
        %v9127 = vadd.f32 %v8832, %v9126
        %v9128 = vpop.f32.mrb[0].mxu0
        %v9129 = vadd.f32 %v8834, %v9128
        %9130 = vmatprep.mubr.f32.mxu0 0.0
        %v9131 = vand.u32 %v7770, 4294901760
        %9132 = vmatmul.mubr.f32.gmra.mrb[0].mxu0 %v9131
        %v9133 = vpop.f32.mrb[0].mxu0
        %v9134 = vadd.f32 %v8841, %v9133
        %v9135 = vpop.f32.mrb[0].mxu0
        %v9136 = vadd.f32 %v8843, %v9135
        %9137 = vmatprep.mubr.f32.mxu0 0.0
        %v9138 = vand.u32 %v7771, 4294901760
        %9139 = vmatmul.mubr.f32.gmra.mrb[0].mxu0 %v9138
        %v9140 = vpop.f32.mrb[0].mxu0
        %v9141 = vadd.f32 %v8850, %v9140
        %v9142 = vpop.f32.mrb[0].mxu0
        %v9143 = vadd.f32 %v8852, %v9142
        %9144 = vmatprep.mubr.f32.mxu0 0.0
        %v9145 = vand.u32 %v7772, 4294901760
        %9146 = vmatmul.mubr.f32.gmra.mrb[0].mxu0 %v9145
        %v9147 = vpop.f32.mrb[0].mxu0
        %v9148 = vadd.f32 %v8859, %v9147
        %v9149 = vpop.f32.mrb[0].mxu0
        %v9150 = vadd.f32 %v8861, %v9149
        %9151 = vmatprep.mubr.f32.mxu0 0.0
        %v9152 = vand.u32 %v7773, 4294901760
        %9153 = vmatmul.mubr.f32.gmra.mrb[0].mxu0 %v9152
        %v9154 = vpop.f32.mrb[0].mxu0
        %v9155 = vadd.f32 %v8868, %v9154
        %v9156 = vpop.f32.mrb[0].mxu0
        %v9157 = vadd.f32 %v8870, %v9156
        %9158 = vmatprep.mubr.f32.mxu0 0.0
        %v9159 = vand.u32 %v7774, 4294901760
        %9160 = vmatmul.mubr.f32.gmra.mrb[0].mxu0 %v9159
        %v9161 = vpop.f32.mrb[0].mxu0
        %v9162 = vadd.f32 %v8877, %v9161
        %v9163 = vpop.f32.mrb[0].mxu0
        %v9164 = vadd.f32 %v8879, %v9163
        %9165 = vmatprep.mubr.f32.mxu0 0.0
        %v9166 = vand.u32 %v7775, 4294901760
        %9167 = vmatmul.mubr.f32.gmra.mrb[0].mxu0 %v9166
        %v9168 = vpop.f32.mrb[0].mxu0
        %v9169 = vadd.f32 %v8886, %v9168
        %v9170 = vpop.f32.mrb[0].mxu0
        %v9171 = vadd.f32 %v8888, %v9170
        %9172 = vmatprep.mubr.f32.mxu0 0.0
        %v9173 = vand.u32 %v7776, 4294901760
        %9174 = vmatmul.mubr.f32.gmra.mrb[0].mxu0 %v9173
        %v9175 = vpop.f32.mrb[0].mxu0
        %v9176 = vadd.f32 %v8895, %v9175
        %v9177 = vpop.f32.mrb[0].mxu0
        %v9178 = vadd.f32 %v8897, %v9177
        %9179 = vmatprep.mubr.f32.mxu0 0.0
        %v9180 = vand.u32 %v7777, 4294901760
        %9181 = vmatmul.mubr.f32.gmra.mrb[0].mxu0 %v9180
        %v9182 = vpop.f32.mrb[0].mxu0
        %v9183 = vadd.f32 %v8904, %v9182
        %v9184 = vpop.f32.mrb[0].mxu0
        %v9185 = vadd.f32 %v8906, %v9184
        %9186 = vmatprep.mubr.f32.mxu0 0.0
        %v9187 = vand.u32 %v7778, 4294901760
        %9188 = vmatmul.mubr.f32.gmra.mrb[0].mxu0 %v9187
        %v9189 = vpop.f32.mrb[0].mxu0
        %v9190 = vadd.f32 %v8913, %v9189
        %v9191 = vpop.f32.mrb[0].mxu0
        %v9192 = vadd.f32 %v8915, %v9191
        %9193 = vmatprep.mubr.f32.mxu0 0.0
        %v9194 = vand.u32 %v7779, 4294901760
        %9195 = vmatmul.mubr.f32.gmra.mrb[0].mxu0 %v9194
        %v9196 = vpop.f32.mrb[0].mxu0
        %v9197 = vadd.f32 %v8922, %v9196
        %v9198 = vpop.f32.mrb[0].mxu0
        %v9199 = vadd.f32 %v8924, %v9198
        %9200 = vmatprep.mubr.f32.mxu0 0.0
        %v9201 = vand.u32 %v7780, 4294901760
        %9202 = vmatmul.mubr.f32.gmra.mrb[0].mxu0 %v9201
        %v9203 = vpop.f32.mrb[0].mxu0
        %v9204 = vadd.f32 %v8931, %v9203
        %v9205 = vpop.f32.mrb[0].mxu0
        %v9206 = vadd.f32 %v8933, %v9205
        %9207 = vdwg.mxu0
        %v9208 = vand.u32 %v7783, 4294901760
        %9209 = vmatprep.subr.mxu0 %v9208
        %v9210 = vand.u32 %v7782, 4294901760
        %9211 = vmatpush1.msra.mxu0 %v9210
        %v9212 = vand.u32 %v7785, 4294901760
        %9213 = vmatprep.subr.mxu0 %v9212
        %v9214 = vand.u32 %v7784, 4294901760
        %9215 = vmatpush1.msra.mxu0 %v9214
        %v9216 = vand.u32 %v7787, 4294901760
        %9217 = vmatprep.subr.mxu0 %v9216
        %v9218 = vand.u32 %v7786, 4294901760
        %9219 = vmatpush1.msra.mxu0 %v9218
        %v9220 = vand.u32 %v7789, 4294901760
        %9221 = vmatprep.subr.mxu0 %v9220
        %v9222 = vand.u32 %v7788, 4294901760
        %9223 = vmatpush1.msra.mxu0 %v9222
        %v9224 = vand.u32 %v7791, 4294901760
        %9225 = vmatprep.subr.mxu0 %v9224
        %v9226 = vand.u32 %v7790, 4294901760
        %9227 = vmatpush1.msra.mxu0 %v9226
        %v9228 = vand.u32 %v7793, 4294901760
        %9229 = vmatprep.subr.mxu0 %v9228
        %v9230 = vand.u32 %v7792, 4294901760
        %9231 = vmatpush1.msra.mxu0 %v9230
        %v9232 = vand.u32 %v7795, 4294901760
        %9233 = vmatprep.subr.mxu0 %v9232
        %v9234 = vand.u32 %v7794, 4294901760
        %9235 = vmatpush1.msra.mxu0 %v9234
        %v9236 = vand.u32 %v7797, 4294901760
        %9237 = vmatprep.subr.mxu0 %v9236
        %v9238 = vand.u32 %v7796, 4294901760
        %9239 = vmatpush1.msra.mxu0 %v9238
        %v9240 = vand.u32 %v7799, 4294901760
        %9241 = vmatprep.subr.mxu0 %v9240
        %v9242 = vand.u32 %v7798, 4294901760
        %9243 = vmatpush1.msra.mxu0 %v9242
        %v9244 = vand.u32 %v7801, 4294901760
        %9245 = vmatprep.subr.mxu0 %v9244
        %v9246 = vand.u32 %v7800, 4294901760
        %9247 = vmatpush1.msra.mxu0 %v9246
        %v9248 = vand.u32 %v7803, 4294901760
        %9249 = vmatprep.subr.mxu0 %v9248
        %v9250 = vand.u32 %v7802, 4294901760
        %9251 = vmatpush1.msra.mxu0 %v9250
        %v9252 = vand.u32 %v7805, 4294901760
        %9253 = vmatprep.subr.mxu0 %v9252
        %v9254 = vand.u32 %v7804, 4294901760
        %9255 = vmatpush1.msra.mxu0 %v9254
        %v9256 = vand.u32 %v7807, 4294901760
        %9257 = vmatprep.subr.mxu0 %v9256
        %v9258 = vand.u32 %v7806, 4294901760
        %9259 = vmatpush1.msra.mxu0 %v9258
        %v9260 = vand.u32 %v7809, 4294901760
        %9261 = vmatprep.subr.mxu0 %v9260
        %v9262 = vand.u32 %v7808, 4294901760
        %9263 = vmatpush1.msra.mxu0 %v9262
        %v9264 = vand.u32 %v7811, 4294901760
        %9265 = vmatprep.subr.mxu0 %v9264
        %v9266 = vand.u32 %v7810, 4294901760
        %9267 = vmatpush1.msra.mxu0 %v9266
        %v9268 = vand.u32 %v7813, 4294901760
        %9269 = vmatprep.subr.mxu0 %v9268
        %v9270 = vand.u32 %v7812, 4294901760
        %9271 = vmatpush1.msra.mxu0 %v9270
        %9272 = vmatprep.subr.mxu0 0.0
        %9273 = vmatpush1.msra.mxu0 0.0
        %9274 = vmatprep.subr.mxu0 0.0
        %9275 = vmatpush1.msra.mxu0 0.0
        %9276 = vmatprep.subr.mxu0 0.0
        %9277 = vmatpush1.msra.mxu0 0.0
        %9278 = vmatprep.subr.mxu0 0.0
        %9279 = vmatpush1.msra.mxu0 0.0
        %9280 = vmatprep.subr.mxu0 0.0
        %9281 = vmatpush1.msra.mxu0 0.0
        %9282 = vmatprep.subr.mxu0 0.0
        %9283 = vmatpush1.msra.mxu0 0.0
        %9284 = vmatprep.subr.mxu0 0.0
        %9285 = vmatpush1.msra.mxu0 0.0
        %9286 = vmatprep.subr.mxu0 0.0
        %9287 = vmatpush1.msra.mxu0 0.0
        %9288 = vmatprep.subr.mxu0 0.0
        %9289 = vmatpush1.msra.mxu0 0.0
        %9290 = vmatprep.subr.mxu0 0.0
        %9291 = vmatpush1.msra.mxu0 0.0
        %9292 = vmatprep.subr.mxu0 0.0
        %9293 = vmatpush1.msra.mxu0 0.0
        %9294 = vmatprep.subr.mxu0 0.0
        %9295 = vmatpush1.msra.mxu0 0.0
        %9296 = vmatprep.subr.mxu0 0.0
        %9297 = vmatpush1.msra.mxu0 0.0
        %9298 = vmatprep.subr.mxu0 0.0
        %9299 = vmatpush1.msra.mxu0 0.0
        %9300 = vmatprep.subr.mxu0 0.0
        %9301 = vmatpush1.msra.mxu0 0.0
        %9302 = vmatprep.subr.mxu0 0.0
        %9303 = vmatpush1.msra.mxu0 0.0
        %9304 = vmatprep.mubr.f32.mxu0 0.0
        %v9305 = vand.u32 %v7765, 4294901760
        %9306 = vmatmul.mubr.f32.gmra.mrb[0].mxu0 %v9305
        %v9307 = vpop.f32.mrb[0].mxu0
        %v9308 = vadd.f32 %v9099, %v9307
        %v9309 = vpop.f32.mrb[0].mxu0
        %v9310 = vadd.f32 %v9101, %v9309
        %9311 = vmatprep.mubr.f32.mxu0 0.0
        %v9312 = vand.u32 %v7766, 4294901760
        %9313 = vmatmul.mubr.f32.gmra.mrb[0].mxu0 %v9312
        %v9314 = vpop.f32.mrb[0].mxu0
        %v9315 = vadd.f32 %v9106, %v9314
        %v9316 = vpop.f32.mrb[0].mxu0
        %v9317 = vadd.f32 %v9108, %v9316
        %9318 = vmatprep.mubr.f32.mxu0 0.0
        %v9319 = vand.u32 %v7767, 4294901760
        %9320 = vmatmul.mubr.f32.gmra.mrb[0].mxu0 %v9319
        %v9321 = vpop.f32.mrb[0].mxu0
        %v9322 = vadd.f32 %v9113, %v9321
        %v9323 = vpop.f32.mrb[0].mxu0
        %v9324 = vadd.f32 %v9115, %v9323
        %9325 = vmatprep.mubr.f32.mxu0 0.0
        %v9326 = vand.u32 %v7768, 4294901760
        %9327 = vmatmul.mubr.f32.gmra.mrb[0].mxu0 %v9326
        %v9328 = vpop.f32.mrb[0].mxu0
        %v9329 = vadd.f32 %v9120, %v9328
        %v9330 = vpop.f32.mrb[0].mxu0
        %v9331 = vadd.f32 %v9122, %v9330
        %9332 = vmatprep.mubr.f32.mxu0 0.0
        %v9333 = vand.u32 %v7769, 4294901760
        %9334 = vmatmul.mubr.f32.gmra.mrb[0].mxu0 %v9333
        %v9335 = vpop.f32.mrb[0].mxu0
        %v9336 = vadd.f32 %v9127, %v9335
        %v9337 = vpop.f32.mrb[0].mxu0
        %v9338 = vadd.f32 %v9129, %v9337
        %9339 = vmatprep.mubr.f32.mxu0 0.0
        %v9340 = vand.u32 %v7770, 4294901760
        %9341 = vmatmul.mubr.f32.gmra.mrb[0].mxu0 %v9340
        %v9342 = vpop.f32.mrb[0].mxu0
        %v9343 = vadd.f32 %v9134, %v9342
        %v9344 = vpop.f32.mrb[0].mxu0
        %v9345 = vadd.f32 %v9136, %v9344
        %9346 = vmatprep.mubr.f32.mxu0 0.0
        %v9347 = vand.u32 %v7771, 4294901760
        %9348 = vmatmul.mubr.f32.gmra.mrb[0].mxu0 %v9347
        %v9349 = vpop.f32.mrb[0].mxu0
        %v9350 = vadd.f32 %v9141, %v9349
        %v9351 = vpop.f32.mrb[0].mxu0
        %v9352 = vadd.f32 %v9143, %v9351
        %9353 = vmatprep.mubr.f32.mxu0 0.0
        %v9354 = vand.u32 %v7772, 4294901760
        %9355 = vmatmul.mubr.f32.gmra.mrb[0].mxu0 %v9354
        %v9356 = vpop.f32.mrb[0].mxu0
        %v9357 = vadd.f32 %v9148, %v9356
        %v9358 = vpop.f32.mrb[0].mxu0
        %v9359 = vadd.f32 %v9150, %v9358
        %9360 = vmatprep.mubr.f32.mxu0 0.0
        %v9361 = vand.u32 %v7773, 4294901760
        %9362 = vmatmul.mubr.f32.gmra.mrb[0].mxu0 %v9361
        %v9363 = vpop.f32.mrb[0].mxu0
        %v9364 = vadd.f32 %v9155, %v9363
        %v9365 = vpop.f32.mrb[0].mxu0
        %v9366 = vadd.f32 %v9157, %v9365
        %9367 = vmatprep.mubr.f32.mxu0 0.0
        %v9368 = vand.u32 %v7774, 4294901760
        %9369 = vmatmul.mubr.f32.gmra.mrb[0].mxu0 %v9368
        %v9370 = vpop.f32.mrb[0].mxu0
        %v9371 = vadd.f32 %v9162, %v9370
        %v9372 = vpop.f32.mrb[0].mxu0
        %v9373 = vadd.f32 %v9164, %v9372
        %9374 = vmatprep.mubr.f32.mxu0 0.0
        %v9375 = vand.u32 %v7775, 4294901760
        %9376 = vmatmul.mubr.f32.gmra.mrb[0].mxu0 %v9375
        %v9377 = vpop.f32.mrb[0].mxu0
        %v9378 = vadd.f32 %v9169, %v9377
        %v9379 = vpop.f32.mrb[0].mxu0
        %v9380 = vadd.f32 %v9171, %v9379
        %9381 = vmatprep.mubr.f32.mxu0 0.0
        %v9382 = vand.u32 %v7776, 4294901760
        %9383 = vmatmul.mubr.f32.gmra.mrb[0].mxu0 %v9382
        %v9384 = vpop.f32.mrb[0].mxu0
        %v9385 = vadd.f32 %v9176, %v9384
        %v9386 = vpop.f32.mrb[0].mxu0
        %v9387 = vadd.f32 %v9178, %v9386
        %9388 = vmatprep.mubr.f32.mxu0 0.0
        %v9389 = vand.u32 %v7777, 4294901760
        %9390 = vmatmul.mubr.f32.gmra.mrb[0].mxu0 %v9389
        %v9391 = vpop.f32.mrb[0].mxu0
        %v9392 = vadd.f32 %v9183, %v9391
        %v9393 = vpop.f32.mrb[0].mxu0
        %v9394 = vadd.f32 %v9185, %v9393
        %9395 = vmatprep.mubr.f32.mxu0 0.0
        %v9396 = vand.u32 %v7778, 4294901760
        %9397 = vmatmul.mubr.f32.gmra.mrb[0].mxu0 %v9396
        %v9398 = vpop.f32.mrb[0].mxu0
        %v9399 = vadd.f32 %v9190, %v9398
        %v9400 = vpop.f32.mrb[0].mxu0
        %v9401 = vadd.f32 %v9192, %v9400
        %9402 = vmatprep.mubr.f32.mxu0 0.0
        %v9403 = vand.u32 %v7779, 4294901760
        %9404 = vmatmul.mubr.f32.gmra.mrb[0].mxu0 %v9403
        %v9405 = vpop.f32.mrb[0].mxu0
        %v9406 = vadd.f32 %v9197, %v9405
        %v9407 = vpop.f32.mrb[0].mxu0
        %v9408 = vadd.f32 %v9199, %v9407
        %9409 = vmatprep.mubr.f32.mxu0 0.0
        %v9410 = vand.u32 %v7780, 4294901760
        %9411 = vmatmul.mubr.f32.gmra.mrb[0].mxu0 %v9410
        %v9412 = vpop.f32.mrb[0].mxu0
        %v9413 = vadd.f32 %v9204, %v9412
        %v9414 = vpop.f32.mrb[0].mxu0
        %v9415 = vadd.f32 %v9206, %v9414
        %9416 = vdwg.mxu0
        %v9417 = vtanh.pop %v9308
        %v9418 = vtanh.pop %v9315
        %v9419 = vtanh.pop %v9322
        %v9420 = vtanh.pop %v9329
        %v9421 = vtanh.pop %v9336
        %v9422 = vtanh.pop %v9343
        %v9423 = vtanh.pop %v9350
        %v9424 = vtanh.pop %v9357
        %v9425 = vtanh.pop %v9364
        %v9426 = vtanh.pop %v9371
        %v9427 = vtanh.pop %v9378
        %v9428 = vtanh.pop %v9385
        %v9429 = vtanh.pop %v9392
        %v9430 = vtanh.pop %v9399
        %v9431 = vtanh.pop %v9406
        %v9432 = vtanh.pop %v9413
        %v9433 = vmul.f32 %v9417, 1.442695
        %v9434 = vpow.pop %v9433
        %v9435 = vmul.f32 %v9418, 1.442695
        %v9436 = vpow.pop %v9435
        %v9437 = vmul.f32 %v9419, 1.442695
        %v9438 = vpow.pop %v9437
        %v9439 = vmul.f32 %v9420, 1.442695
        %v9440 = vpow.pop %v9439
        %v9441 = vmul.f32 %v9421, 1.442695
        %v9442 = vpow.pop %v9441
        %v9443 = vmul.f32 %v9422, 1.442695
        %v9444 = vpow.pop %v9443
        %v9445 = vmul.f32 %v9423, 1.442695
        %v9446 = vpow.pop %v9445
        %v9447 = vmul.f32 %v9424, 1.442695
        %v9448 = vpow.pop %v9447
        %v9449 = vmul.f32 %v9425, 1.442695
        %v9450 = vpow.pop %v9449
        %v9451 = vmul.f32 %v9426, 1.442695
        %v9452 = vpow.pop %v9451
        %v9453 = vmul.f32 %v9427, 1.442695
        %v9454 = vpow.pop %v9453
        %v9455 = vmul.f32 %v9428, 1.442695
        %v9456 = vpow.pop %v9455
        %v9457 = vmul.f32 %v9429, 1.442695
        %v9458 = vpow.pop %v9457
        %v9459 = vmul.f32 %v9430, 1.442695
        %v9460 = vpow.pop %v9459
        %v9461 = vmul.f32 %v9431, 1.442695
        %v9462 = vpow.pop %v9461
        %v9463 = vmul.f32 %v9432, 1.442695
        %v9464 = vpow.pop %v9463
        %v9465 = vmul.f32 %v3369, %v9434
        %v9466 = vmul.f32 %v3370, %v9436
        %v9467 = vmul.f32 %v3371, %v9438
        %v9468 = vmul.f32 %v3372, %v9440
        %v9469 = vmul.f32 %v3373, %v9442
        %v9470 = vmul.f32 %v3374, %v9444
        %v9471 = vmul.f32 %v3375, %v9446
        %v9472 = vmul.f32 %v3376, %v9448
        %v9473 = vmul.f32 %v3377, %v9450
        %v9474 = vmul.f32 %v3378, %v9452
        %v9475 = vmul.f32 %v3379, %v9454
        %v9476 = vmul.f32 %v3380, %v9456
        %v9477 = vmul.f32 %v3381, %v9458
        %v9478 = vmul.f32 %v3382, %v9460
        %v9479 = vmul.f32 %v3383, %v9462
        %v9480 = vmul.f32 %v3384, %v9464
        %v9481 = vadd.f32 %v9465, %v9310
        %v9482 = vadd.f32 %v9466, %v9317
        %v9483 = vadd.f32 %v9467, %v9324
        %v9484 = vadd.f32 %v9468, %v9331
        %v9485 = vadd.f32 %v9469, %v9338
        %v9486 = vadd.f32 %v9470, %v9345
        %v9487 = vadd.f32 %v9471, %v9352
        %v9488 = vadd.f32 %v9472, %v9359
        %v9489 = vadd.f32 %v9473, %v9366
        %v9490 = vadd.f32 %v9474, %v9373
        %v9491 = vadd.f32 %v9475, %v9380
        %v9492 = vadd.f32 %v9476, %v9387
        %v9493 = vadd.f32 %v9477, %v9394
        %v9494 = vadd.f32 %v9478, %v9401
        %v9495 = vadd.f32 %v9479, %v9408
        %v9496 = vadd.f32 %v9480, %v9415
        %v9497 = vadd.f32 %v6441, %v9417
        %v9498 = vadd.f32 %v6442, %v9418
        %v9499 = vadd.f32 %v6443, %v9419
        %v9500 = vadd.f32 %v6444, %v9420
        %v9501 = vadd.f32 %v6445, %v9421
        %v9502 = vadd.f32 %v6446, %v9422
        %v9503 = vadd.f32 %v6447, %v9423
        %v9504 = vadd.f32 %v6448, %v9424
        %v9505 = vadd.f32 %v6449, %v9425
        %v9506 = vadd.f32 %v6450, %v9426
        %v9507 = vadd.f32 %v6451, %v9427
        %v9508 = vadd.f32 %v6452, %v9428
        %v9509 = vadd.f32 %v6453, %v9429
        %v9510 = vadd.f32 %v6454, %v9430
        %v9511 = vadd.f32 %v6455, %v9431
        %v9512 = vadd.f32 %v6456, %v9432
        %9513 = vst [vmem:[%s300] sm:$0xff] %v6425
        %9514 = vst [vmem:[%s300 + $0x8] sm:$0xff] %v9481
        %9515 = vst [vmem:[%s300 + $0x10] sm:$0xff] %v6426
        %9516 = vst [vmem:[%s300 + $0x18] sm:$0xff] %v9482
        %9517 = vst [vmem:[%s300 + $0x20] sm:$0xff] %v6427
        %9518 = vst [vmem:[%s300 + $0x28] sm:$0xff] %v9483
        %9519 = vst [vmem:[%s300 + $0x30] sm:$0xff] %v6428
        %9520 = vst [vmem:[%s300 + $0x38] sm:$0xff] %v9484
        %9521 = vst [vmem:[%s300 + $0x40] sm:$0xff] %v6429
        %9522 = vst [vmem:[%s300 + $0x48] sm:$0xff] %v9485
        %9523 = vst [vmem:[%s300 + $0x50] sm:$0xff] %v6430
        %9524 = vst [vmem:[%s300 + $0x58] sm:$0xff] %v9486
        %9525 = vst [vmem:[%s300 + $0x60] sm:$0xff] %v6431
        %9526 = vst [vmem:[%s300 + $0x68] sm:$0xff] %v9487
        %9527 = vst [vmem:[%s300 + $0x70] sm:$0xff] %v6432
        %9528 = vst [vmem:[%s300 + $0x78] sm:$0xff] %v9488
        %9529 = vst [vmem:[%s300 + $0x80] sm:$0xff] %v6433
        %9530 = vst [vmem:[%s300 + $0x88] sm:$0xff] %v9489
        %9531 = vst [vmem:[%s300 + $0x90] sm:$0xff] %v6434
        %9532 = vst [vmem:[%s300 + $0x98] sm:$0xff] %v9490
        %9533 = vst [vmem:[%s300 + $0xa0] sm:$0xff] %v6435
        %9534 = vst [vmem:[%s300 + $0xa8] sm:$0xff] %v9491
        %9535 = vst [vmem:[%s300 + $0xb0] sm:$0xff] %v6436
        %9536 = vst [vmem:[%s300 + $0xb8] sm:$0xff] %v9492
        %9537 = vst [vmem:[%s300 + $0xc0] sm:$0xff] %v6437
        %9538 = vst [vmem:[%s300 + $0xc8] sm:$0xff] %v9493
        %9539 = vst [vmem:[%s300 + $0xd0] sm:$0xff] %v6438
        %9540 = vst [vmem:[%s300 + $0xd8] sm:$0xff] %v9494
        %9541 = vst [vmem:[%s300 + $0xe0] sm:$0xff] %v6439
        %9542 = vst [vmem:[%s300 + $0xe8] sm:$0xff] %v9495
        %9543 = vst [vmem:[%s300 + $0xf0] sm:$0xff] %v6440
        %9544 = vst [vmem:[%s300 + $0xf8] sm:$0xff] %v9496
        %9545 = vadd.xlane.f32.xlu0 %v9497
        %v9546 = vpop.xlane.xlu0 %9545
        %9547 = vadd.xlane.f32.xlu0 %v9498
        %v9548 = vpop.xlane.xlu0 %9547
        %9549 = vadd.xlane.f32.xlu0 %v9499
        %v9550 = vpop.xlane.xlu0 %9549
        %9551 = vadd.xlane.f32.xlu0 %v9500
        %v9552 = vpop.xlane.xlu0 %9551
        %9553 = vadd.xlane.f32.xlu0 %v9501
        %v9554 = vpop.xlane.xlu0 %9553
        %9555 = vadd.xlane.f32.xlu0 %v9502
        %v9556 = vpop.xlane.xlu0 %9555
        %9557 = vadd.xlane.f32.xlu0 %v9503
        %v9558 = vpop.xlane.xlu0 %9557
        %9559 = vadd.xlane.f32.xlu0 %v9504
        %v9560 = vpop.xlane.xlu0 %9559
        %9561 = vadd.xlane.f32.xlu0 %v9505
        %v9562 = vpop.xlane.xlu0 %9561
        %9563 = vadd.xlane.f32.xlu0 %v9506
        %v9564 = vpop.xlane.xlu0 %9563
        %9565 = vadd.xlane.f32.xlu0 %v9507
        %v9566 = vpop.xlane.xlu0 %9565
        %9567 = vadd.xlane.f32.xlu0 %v9508
        %v9568 = vpop.xlane.xlu0 %9567
        %9569 = vadd.xlane.f32.xlu0 %v9509
        %v9570 = vpop.xlane.xlu0 %9569
        %9571 = vadd.xlane.f32.xlu0 %v9510
        %v9572 = vpop.xlane.xlu0 %9571
        %9573 = vadd.xlane.f32.xlu0 %v9511
        %v9574 = vpop.xlane.xlu0 %9573
        %9575 = vadd.xlane.f32.xlu0 %v9512
        %v9576 = vpop.xlane.xlu0 %9575
        %vm9577 = vcmask 7168
        %9578 = vst.msk [vmem:[%s314] sm:$0xff] %vm9577, %v9546
        %9579 = vst.msk [vmem:[%s314 + $0x8] sm:$0xff] %vm9577, %v9548
        %9580 = vst.msk [vmem:[%s314 + $0x10] sm:$0xff] %vm9577, %v9550
        %9581 = vst.msk [vmem:[%s314 + $0x18] sm:$0xff] %vm9577, %v9552
        %9582 = vst.msk [vmem:[%s314 + $0x20] sm:$0xff] %vm9577, %v9554
        %9583 = vst.msk [vmem:[%s314 + $0x28] sm:$0xff] %vm9577, %v9556
        %9584 = vst.msk [vmem:[%s314 + $0x30] sm:$0xff] %vm9577, %v9558
        %9585 = vst.msk [vmem:[%s314 + $0x38] sm:$0xff] %vm9577, %v9560
        %9586 = vst.msk [vmem:[%s314 + $0x40] sm:$0xff] %vm9577, %v9562
        %9587 = vst.msk [vmem:[%s314 + $0x48] sm:$0xff] %vm9577, %v9564
        %9588 = vst.msk [vmem:[%s314 + $0x50] sm:$0xff] %vm9577, %v9566
        %9589 = vst.msk [vmem:[%s314 + $0x58] sm:$0xff] %vm9577, %v9568
        %9590 = vst.msk [vmem:[%s314 + $0x60] sm:$0xff] %vm9577, %v9570
        %9591 = vst.msk [vmem:[%s314 + $0x68] sm:$0xff] %vm9577, %v9572
        %9592 = vst.msk [vmem:[%s314 + $0x70] sm:$0xff] %vm9577, %v9574
        %9593 = vst.msk [vmem:[%s314 + $0x78] sm:$0xff] %vm9577, %v9576
        %s9594 = sand.u32 %s143, 1
        %s9595 = scalar_lea.sflag [#allocation4], %s9594
        %s9596 = sand.u32 %s143, 1
        %s9597 = smul.addr %s9596, 256
        %s9598 = scalar_lea.vmem [#allocation8], %s9597
        %s9599 = smul.u32 16, %s25
        %p9600 = scmp.lt.s32.totalorder %s9599, 31
        %s9601 = scalar_select %p9600, %s9599, 31
        %s9602 = smul.addr %s9601, 8
        %s9603 = scalar_lea.vmem %s6, %s9602
        // Predicated region
        $region53: #{tpu_custom_call.1} parent=39 // pred_check
          %p9604 = pneg %p153
        $region54: #{tpu_custom_call.1} parent=39 // pred_check_branch
          %9606 = sbr.rel (%p9604) target = $region56
        $region55: #{tpu_custom_call.1} parent=39 // pred_region
          %s9607 = smul.u32 16, %s25
          %s9609 = ssub.s32 4096, 4096
          %9610 = vsyncadd %s9595, %s9609
          %s9611 = smul.addr %s9607, 2
          %s9612 = smul.addr %s9611, 128
          %s9613 = scalar_lea.hbm %s5, %s9612
          %s9614 = sshll.u32 %s9598, 4
          %s9615 = int_to_ptr.vmem [resolvable:$true] %s9614
          %9620 = dma.vmem_to_hbm [thread:$0]  %s9615, 4096, %s9613, %s9595, 256, 256, 16
        $region56: #{tpu_custom_call.1} parent=39 // pred_fallthru
          _
        // Predicated region
        $region57: #{tpu_custom_call.1} parent=39 // pred_check
          %p9621 = pneg %p179
        $region58: #{tpu_custom_call.1} parent=39 // pred_check_branch
          %9623 = sbr.rel (%p9621) target = $region60
        $region59: #{tpu_custom_call.1} parent=39 // pred_region
          %s9624 = smul.u32 16, %s25
        $region60: #{tpu_custom_call.1} parent=39 // pred_fallthru
          _
      $region40: #{tpu_custom_call.1} parent=5 // pred_fallthru
        _
      %p9625 = scmp.le.s32.totalorder 2, %s20
      // Predicated region
      $region61: #{tpu_custom_call.1} parent=5 // pred_check
        %p9626 = pneg %p9625
      $region62: #{tpu_custom_call.1} parent=5 // pred_check_branch
        %9628 = sbr.rel (%p9626) target = $region64
      $region63: #{tpu_custom_call.1} parent=5 // pred_region
        %s9629 = ssub.s32 %s20, 2
        // Predicated region
        $region65: #{tpu_custom_call.1} parent=63 // pred_check
          %p9630 = pneg %p159
        $region66: #{tpu_custom_call.1} parent=63 // pred_check_branch
          %9632 = sbr.rel (%p9630) target = $region68
        $region67: #{tpu_custom_call.1} parent=63 // pred_region
          %s9633 = sand.u32 %s144, 1
          %s9634 = scalar_lea.sflag [#allocation4], %s9633
          %s9635 = sand.u32 %s144, 1
          %s9636 = smul.addr %s9635, 256
          %s9637 = scalar_lea.vmem [#allocation8], %s9636
          %9638 = dma.done %s9634, 4096
        $region68: #{tpu_custom_call.1} parent=63 // pred_fallthru
          _
        // Predicated region
        $region69: #{tpu_custom_call.1} parent=63 // pred_check
          %p9639 = pneg %p185
        $region70: #{tpu_custom_call.1} parent=63 // pred_check_branch
          %9641 = sbr.rel (%p9639) target = $region72
        $region71: #{tpu_custom_call.1} parent=63 // pred_region
          %s9642 = smul.u32 16, %s26
          %p9643 = scmp.lt.s32.totalorder %s9642, 31
          %s9644 = scalar_select %p9643, %s9642, 31
          %s9645 = smul.addr %s9644, 8
          %s9646 = scalar_lea.vmem %s6, %s9645
        $region72: #{tpu_custom_call.1} parent=63 // pred_fallthru
          _
      $region64: #{tpu_custom_call.1} parent=5 // pred_fallthru
        _
    $region6: #{tpu_custom_call.1} parent=1 // loop_footer
      %s24 = sadd.s32 1, %s20
    $region7: #{tpu_custom_call.1} parent=1 // loop_footer_branch
      %19 = sbr.rel target = $region3
    $region8: #{tpu_custom_call.1} parent=1 // loop_exit
      _
    %9647 = vsyncpa [#allocation3], 1
    %s9648 = scalar_lea.sflag [#allocation3], 1
    %9649 = vsyncpa %s9648, 1
    %9650 = vsyncpa [#allocation6], 1
    %9651 = vsyncpa [#allocation4], 1
    %s9652 = scalar_lea.sflag [#allocation4], 1
    %9653 = vsyncpa %s9652, 1

</llo_original>
